<compile_context>
chip_gen: v7x
topology: tpu7x:2x2x1
jax: 0.10.0
libtpu: 0.0.40
codegen_flags: <defaults>
</compile_context>

<pallas_src>
import functools

import jax
import jax.numpy as jnp
from jax import lax
from jax.experimental import pallas as pl
from jax.experimental.pallas import tpu as pltpu


# ----------------------------------------------------------------------------
# Fused Pallas kernel: encoder LSTM x2 -> latent -> decoder LSTM x2 -> head
# ----------------------------------------------------------------------------
def _fused_ae_kernel(x_ref, l1_ref, l2_ref,            # VMEM inputs
                     l3_hbm, l4_hbm, head_hbm,          # pl.ANY inputs (HBM)
                     o_ref,                             # VMEM output
                     l3_vmem, l4_vmem, head_vmem, dma_sems,   # scratch
                     *, T, Fp, Hp1, Hp2, Hp3, Hp4):
    """Whole autoencoder forward on one TensorCore, everything VMEM-resident.

    All LSTM weights are padded per-gate to Hp (a multiple of 128) lanes with
    zeros.  With zero-padded weights/bias, the pad lanes of the gates are 0,
    so i=f=o=0.5, g=0 there, and h/c pad lanes remain exactly 0 for every
    step -- the padding never feeds back into the real lanes.
    """
    # ---- Kick off decoder-weight copy-in; overlaps with encoder compute ----
    cp3 = pltpu.make_async_copy(l3_hbm, l3_vmem, dma_sems.at[0])
    cp4 = pltpu.make_async_copy(l4_hbm, l4_vmem, dma_sems.at[1])
    cph = pltpu.make_async_copy(head_hbm, head_vmem, dma_sems.at[2])
    cp3.start()
    cp4.start()
    cph.start()

    def layer_parts(l_ref, Dp, Hp):
        """Unpack one layer's [W_ih; W_hh; b] slab with static, aligned slices."""
        wih = l_ref[0:Dp, :]                          # (Dp, 4*Hp)
        whh = l_ref[Dp:Dp + Hp, :]                    # (Hp, 4*Hp)
        b = l_ref[Dp + Hp:Dp + Hp + 1, :]             # (1,  4*Hp)
        return wih, whh, b

    def lstm(gx_rows, whh, Hp):
        """Run the recurrence given per-step precomputed input projections.

        gx_rows[t] : (1, 4*Hp)  == x_t @ W_ih + (b_ih + b_hh), gate-aligned.
        Only h @ W_hh sits on the serial dependency chain.
        """
        h = jnp.zeros((1, Hp), jnp.float32)
        c = jnp.zeros((1, Hp), jnp.float32)
        hs = []
        for t in range(T):                      # fully unrolled (T is static)
            gates = gx_rows[t] + jnp.dot(
                h, whh, preferred_element_type=jnp.float32)
            # Gate layout is (i | f | o | g).  Sigmoid via tanh: one EUP push
            # per gate block instead of exp + reciprocal (two pushes).
            ifo = 0.5 * jnp.tanh(0.5 * gates[:, 0:3 * Hp]) + 0.5
            i = ifo[:, 0 * Hp:1 * Hp]
            f = ifo[:, 1 * Hp:2 * Hp]
            o = ifo[:, 2 * Hp:3 * Hp]
            g = jnp.tanh(gates[:, 3 * Hp:4 * Hp])
            c = f * c + i * g
            h = o * jnp.tanh(c)
            hs.append(h)
        return hs, h

    # -------------------- Encoder --------------------
    # enc_rnn1: input projection hoisted out of the recurrence.
    wih1, whh1, b1 = layer_parts(l1_ref, Fp, Hp1)
    gx1 = jnp.dot(x_ref[...], wih1,
                  preferred_element_type=jnp.float32) + b1             # (T, 4*Hp1)
    hs1, _ = lstm([gx1[t:t + 1, :] for t in range(T)], whh1, Hp1)
    y1 = jnp.concatenate(hs1, axis=0)                                   # (T, Hp1)

    # enc_rnn2: only the final hidden state (the latent z) is needed.
    wih2, whh2, b2 = layer_parts(l2_ref, Hp1, Hp2)
    gx2 = jnp.dot(y1, wih2,
                  preferred_element_type=jnp.float32) + b2              # (T, 4*Hp2)
    _, z = lstm([gx2[t:t + 1, :] for t in range(T)], whh2, Hp2)         # (1, Hp2)

    # Decoder weights must be resident from here on (copy overlapped above).
    cp3.wait()
    cp4.wait()
    cph.wait()

    # -------------------- Decoder --------------------
    # dec_rnn1: the input is z repeated across time, so the input projection
    # is a single (1, 4*Hp3) row reused for every step.
    wih3, whh3, b3 = layer_parts(l3_vmem, Hp2, Hp3)
    gx3 = jnp.dot(z, wih3,
                  preferred_element_type=jnp.float32) + b3              # (1, 4*Hp3)
    hs3, _ = lstm([gx3] * T, whh3, Hp3)
    y2 = jnp.concatenate(hs3, axis=0)                                   # (T, Hp3)

    # dec_rnn2
    wih4, whh4, b4 = layer_parts(l4_vmem, Hp3, Hp4)
    gx4 = jnp.dot(y2, wih4,
                  preferred_element_type=jnp.float32) + b4              # (T, 4*Hp4)
    hs4, _ = lstm([gx4[t:t + 1, :] for t in range(T)], whh4, Hp4)
    y3 = jnp.concatenate(hs4, axis=0)                                   # (T, Hp4)

    # -------------------- Linear head (out_features == 1) --------------------
    # TODO(synk): head is specialized to n_features == 1 (the only well-formed
    # configuration of the original PyTorch module).
    wout = head_vmem[0:1, :]                                            # (1, Hp4)
    bout = head_vmem[1:2, 0:1]                                          # (1, 1)
    o_ref[...] = jnp.sum(y3 * wout, axis=-1, keepdims=True) + bout


# ----------------------------------------------------------------------------
# Padding / packing helpers (plain JAX, run once per forward under jit; tiny)
# ----------------------------------------------------------------------------
_GATE_PERM = (0, 1, 3, 2)   # torch (i, f, g, o) -> kernel (i, f, o, g)


def _round_up(x, m):
    return ((x + m - 1) // m) * m


def _pad_gate_cols(w, H, Hp):
    """(D, 4H) -> (D, 4*Hp): reorder gates to (i,f,o,g), zero-pad each to Hp."""
    D = w.shape[0]
    w = w.reshape(D, 4, H)
    w = jnp.take(w, jnp.array(_GATE_PERM), axis=1)
    w = jnp.pad(w, ((0, 0), (0, 0), (0, Hp - H)))
    return w.reshape(D, 4 * Hp)


def _pad_lstm(p, Hp, Dp):
    """Pad one layer's params to gate-aligned, row-padded shapes."""
    wih, whh, b = p["wih"], p["whh"], p["b"]
    H = whh.shape[0]
    wih_p = jnp.pad(_pad_gate_cols(wih, H, Hp), ((0, Dp - wih.shape[0]), (0, 0)))
    whh_p = jnp.pad(_pad_gate_cols(whh, H, Hp), ((0, Hp - H), (0, 0)))
    b2 = jnp.take(b.reshape(4, H), jnp.array(_GATE_PERM), axis=0)
    b_p = jnp.pad(b2, ((0, 0), (0, Hp - H))).reshape(1, 4 * Hp)
    return wih_p, whh_p, b_p


def _pack_layer(p, Hp, Dp):
    """Stack [W_ih_pad; W_hh_pad; bias_row(+7 zero rows)] -> (Dp+Hp+8, 4*Hp)."""
    wih_p, whh_p, b_p = _pad_lstm(p, Hp, Dp)
    b_block = jnp.pad(b_p, ((0, 7), (0, 0)))     # bias in row 0 of an 8-row block
    return jnp.concatenate([wih_p, whh_p, b_block], axis=0)


# ----------------------------------------------------------------------------
# Forward pass: one fused pallas_call
# ----------------------------------------------------------------------------
def recurrent_autoencoder(params, x, *, seq_len, n_features, embedding_dim):
    assert n_features == 1, "module is only well-formed for n_features == 1"
    T = seq_len
    E = embedding_dim
    HD = 2 * E

    Hp1 = _round_up(HD, 128)   # enc_rnn1 hidden (2E)
    Hp2 = _round_up(E, 128)    # enc_rnn2 hidden (E, the latent)
    Hp3 = _round_up(E, 128)    # dec_rnn1 hidden (E)
    Hp4 = _round_up(HD, 128)   # dec_rnn2 hidden (2E)
    Fp = _round_up(n_features, 8)

    # Input: (T, F) padded along the feature (contracting) dim to a sublane
    # multiple; the matching extra W_ih rows are zero.
    x2 = x.reshape(T, n_features).astype(jnp.float32)
    x_pad = jnp.pad(x2, ((0, 0), (0, Fp - n_features)))

    l1 = _pack_layer(params["enc_rnn1"], Hp1, Fp)     # rows match x_pad
    l2 = _pack_layer(params["enc_rnn2"], Hp2, Hp1)    # rows match y1
    l3 = _pack_layer(params["dec_rnn1"], Hp3, Hp2)    # rows match z
    l4 = _pack_layer(params["dec_rnn2"], Hp4, Hp3)    # rows match y2

    head = jnp.zeros((8, Hp4), jnp.float32)
    head = head.at[0, :HD].set(params["out_w"].reshape(HD).astype(jnp.float32))
    head = head.at[1, 0].set(params["out_b"].astype(jnp.float32)[0])

    kernel = functools.partial(_fused_ae_kernel, T=T, Fp=Fp,
                               Hp1=Hp1, Hp2=Hp2, Hp3=Hp3, Hp4=Hp4)

    # Total resident footprint is ~2.5 MiB << VMEM on every generation, so the
    # whole forward runs as a single grid-less, VMEM-resident kernel.  Encoder
    # weights + input arrive via prologue DMAs; decoder weights stay in HBM
    # (pl.ANY) and are DMA'd to scratch overlapped with encoder compute.
    out = pl.pallas_call(
        kernel,
        out_shape=jax.ShapeDtypeStruct((T, 1), jnp.float32),
        in_specs=[pl.BlockSpec(memory_space=pltpu.MemorySpace.VMEM)] * 3
                 + [pl.BlockSpec(memory_space=pl.ANY)] * 3,
        out_specs=pl.BlockSpec(memory_space=pltpu.MemorySpace.VMEM),
        scratch_shapes=[
            pltpu.VMEM(l3.shape, jnp.float32),
            pltpu.VMEM(l4.shape, jnp.float32),
            pltpu.VMEM(head.shape, jnp.float32),
            pltpu.SemaphoreType.DMA((3,)),
        ],
    )(x_pad, l1, l2, l3, l4, head)
    return out                                                # (T, n_features=1)


# ----------------------------------------------------------------------------
# Parameters (deterministic init, same shapes / init range as torch defaults)
# ----------------------------------------------------------------------------
def init_lstm_params(key, d_in, hidden):
    k = 1.0 / (hidden ** 0.5)
    ks = jax.random.split(key, 4)
    wih = jax.random.uniform(ks[0], (d_in, 4 * hidden), jnp.float32, -k, k)
    whh = jax.random.uniform(ks[1], (hidden, 4 * hidden), jnp.float32, -k, k)
    bih = jax.random.uniform(ks[2], (4 * hidden,), jnp.float32, -k, k)
    bhh = jax.random.uniform(ks[3], (4 * hidden,), jnp.float32, -k, k)
    return {"wih": wih, "whh": whh, "b": bih + bhh}


def init_autoencoder_params(key, seq_len, n_features, embedding_dim):
    hd = 2 * embedding_dim
    k1, k2, k3, k4, k5 = jax.random.split(key, 5)
    params = {
        "enc_rnn1": init_lstm_params(k1, n_features, hd),               # F  -> 2E
        "enc_rnn2": init_lstm_params(k2, hd, embedding_dim),            # 2E -> E
        "dec_rnn1": init_lstm_params(k3, embedding_dim, embedding_dim), # E  -> E
        "dec_rnn2": init_lstm_params(k4, embedding_dim, hd),            # E  -> 2E
    }
    kf = 1.0 / (hd ** 0.5)
    kw, kb = jax.random.split(k5)
    params["out_w"] = jax.random.uniform(kw, (n_features, hd), jnp.float32, -kf, kf)
    params["out_b"] = jax.random.uniform(kb, (n_features,), jnp.float32, -kf, kf)
    return params


# ----------------------------------------------------------------------------
# Pure-JAX reference (for correctness check) -- uses torch gate order (i,f,g,o)
# ----------------------------------------------------------------------------
def _lstm_ref(x, wih, whh, b):
    H = whh.shape[0]

    def step(carry, x_t):
        h, c = carry
        gates = x_t @ wih + h @ whh + b
        i = jax.nn.sigmoid(gates[0 * H:1 * H])
        f = jax.nn.sigmoid(gates[1 * H:2 * H])
        g = jnp.tanh(gates[2 * H:3 * H])
        o = jax.nn.sigmoid(gates[3 * H:4 * H])
        c = f * c + i * g
        h = o * jnp.tanh(c)
        return (h, c), h

    (h, _), ys = lax.scan(step, (jnp.zeros(H), jnp.zeros(H)), x)
    return ys, h.reshape(1, H)


def reference_forward(params, x, *, seq_len, n_features, embedding_dim):
    x = x.reshape(seq_len, n_features)
    y1, _ = _lstm_ref(x, **params["enc_rnn1"])
    _, h_n = _lstm_ref(y1, **params["enc_rnn2"])
    z = h_n.reshape(n_features, embedding_dim)
    xd = jnp.tile(z, (seq_len, n_features)).reshape(seq_len, embedding_dim)
    y2, _ = _lstm_ref(xd, **params["dec_rnn1"])
    y3, _ = _lstm_ref(y2, **params["dec_rnn2"])
    return y3 @ params["out_w"].T + params["out_b"]


# ----------------------------------------------------------------------------
if __name__ == "__main__":
    seq_len, n_features, embedding_dim = 8, 1, 32

    key = jax.random.PRNGKey(0)
    kx, kp = jax.random.split(key)
    x = jax.random.normal(kx, (seq_len, n_features), jnp.float32)
    params = init_autoencoder_params(kp, seq_len, n_features, embedding_dim)

    fwd = jax.jit(functools.partial(recurrent_autoencoder,
                                    seq_len=seq_len,
                                    n_features=n_features,
                                    embedding_dim=embedding_dim))
    out = fwd(params, x)
    out = jax.block_until_ready(out)

    assert out.shape == (seq_len, n_features), out.shape

    ref = reference_forward(params, x, seq_len=seq_len,
                            n_features=n_features,
                            embedding_dim=embedding_dim)
    assert jnp.allclose(out, ref, atol=1e-4, rtol=1e-4), (out, ref)

    print("KERNEL_OK")
</pallas_src>

<mosaic_0001>
module attributes {stable_mosaic.version = 11 : i64} {
  func.func @_fused_ae_kernel(%arg0: memref<8x8xf32, #tpu.memory_space<vmem>>, %arg1: memref<144x512xf32, #tpu.memory_space<vmem>>, %arg2: memref<264x512xf32, #tpu.memory_space<vmem>>, %arg3: memref<264x512xf32, #tpu.memory_space<any>>, %arg4: memref<264x512xf32, #tpu.memory_space<any>>, %arg5: memref<8x128xf32, #tpu.memory_space<any>>, %arg6: memref<8x1xf32, #tpu.memory_space<vmem>>, %arg7: memref<264x512xf32, #tpu.memory_space<vmem>>, %arg8: memref<264x512xf32, #tpu.memory_space<vmem>>, %arg9: memref<8x128xf32, #tpu.memory_space<vmem>>, %arg10: memref<3x!tpu.dma_semaphore, #tpu.memory_space<semaphore_mem>>) attributes {dimension_semantics = [], scalar_prefetch = 0 : i64, scratch_operands = 4 : i64, tpu.core_type = #tpu.core_type<tc>} {
    %c0_i32 = arith.constant 0 : i32
    %0 = tpu.memref_slice %arg10[%c0_i32] : memref<3x!tpu.dma_semaphore, #tpu.memory_space<semaphore_mem>> -> memref<1x!tpu.dma_semaphore, #tpu.memory_space<semaphore_mem>>
    %1 = tpu.memref_squeeze %0 : memref<1x!tpu.dma_semaphore, #tpu.memory_space<semaphore_mem>> -> memref<!tpu.dma_semaphore, #tpu.memory_space<semaphore_mem>>
    tpu.enqueue_dma source(%arg3 : memref<264x512xf32, #tpu.memory_space<any>>) target(%arg7 : memref<264x512xf32, #tpu.memory_space<vmem>>) target_semaphore(%1 : memref<!tpu.dma_semaphore, #tpu.memory_space<semaphore_mem>>)
    %c1_i32 = arith.constant 1 : i32
    %2 = tpu.memref_slice %arg10[%c1_i32] : memref<3x!tpu.dma_semaphore, #tpu.memory_space<semaphore_mem>> -> memref<1x!tpu.dma_semaphore, #tpu.memory_space<semaphore_mem>>
    %3 = tpu.memref_squeeze %2 : memref<1x!tpu.dma_semaphore, #tpu.memory_space<semaphore_mem>> -> memref<!tpu.dma_semaphore, #tpu.memory_space<semaphore_mem>>
    tpu.enqueue_dma source(%arg4 : memref<264x512xf32, #tpu.memory_space<any>>) target(%arg8 : memref<264x512xf32, #tpu.memory_space<vmem>>) target_semaphore(%3 : memref<!tpu.dma_semaphore, #tpu.memory_space<semaphore_mem>>)
    %c2_i32 = arith.constant 2 : i32
    %4 = tpu.memref_slice %arg10[%c2_i32] : memref<3x!tpu.dma_semaphore, #tpu.memory_space<semaphore_mem>> -> memref<1x!tpu.dma_semaphore, #tpu.memory_space<semaphore_mem>>
    %5 = tpu.memref_squeeze %4 : memref<1x!tpu.dma_semaphore, #tpu.memory_space<semaphore_mem>> -> memref<!tpu.dma_semaphore, #tpu.memory_space<semaphore_mem>>
    tpu.enqueue_dma source(%arg5 : memref<8x128xf32, #tpu.memory_space<any>>) target(%arg9 : memref<8x128xf32, #tpu.memory_space<vmem>>) target_semaphore(%5 : memref<!tpu.dma_semaphore, #tpu.memory_space<semaphore_mem>>)
    %c0 = arith.constant 0 : index
    %c0_0 = arith.constant 0 : index
    %6 = vector.load %arg1[%c0, %c0_0] : memref<144x512xf32, #tpu.memory_space<vmem>>, vector<8x512xf32>
    %c8 = arith.constant 8 : index
    %c0_1 = arith.constant 0 : index
    %7 = vector.load %arg1[%c8, %c0_1] : memref<144x512xf32, #tpu.memory_space<vmem>>, vector<128x512xf32>
    %c136 = arith.constant 136 : index
    %c0_2 = arith.constant 0 : index
    %8 = vector.load %arg1[%c136, %c0_2] : memref<144x512xf32, #tpu.memory_space<vmem>>, vector<1x512xf32>
    %c0_3 = arith.constant 0 : index
    %c0_4 = arith.constant 0 : index
    %9 = vector.load %arg0[%c0_3, %c0_4] : memref<8x8xf32, #tpu.memory_space<vmem>>, vector<8x8xf32>
    %cst = arith.constant dense<0.000000e+00> : vector<8x512xf32>
    %10 = tpu.matmul %9, %6, %cst {dimension_numbers = #tpu.dot_dimension_numbers<[1], [0], [0], [1], [0, 0, 1, 1], [], []>} : vector<8x8xf32>, vector<8x512xf32>, vector<8x512xf32> -> vector<8x512xf32>
    %11 = vector.broadcast %8 : vector<1x512xf32> to vector<8x512xf32>
    %12 = arith.addf %10, %11 : vector<8x512xf32>
    %13 = vector.extract_strided_slice %12 {offsets = [0, 0], sizes = [1, 512], strides = [1, 1]} : vector<8x512xf32> to vector<1x512xf32>
    %14 = vector.extract_strided_slice %12 {offsets = [1, 0], sizes = [1, 512], strides = [1, 1]} : vector<8x512xf32> to vector<1x512xf32>
    %15 = vector.extract_strided_slice %12 {offsets = [2, 0], sizes = [1, 512], strides = [1, 1]} : vector<8x512xf32> to vector<1x512xf32>
    %16 = vector.extract_strided_slice %12 {offsets = [3, 0], sizes = [1, 512], strides = [1, 1]} : vector<8x512xf32> to vector<1x512xf32>
    %17 = vector.extract_strided_slice %12 {offsets = [4, 0], sizes = [1, 512], strides = [1, 1]} : vector<8x512xf32> to vector<1x512xf32>
    %18 = vector.extract_strided_slice %12 {offsets = [5, 0], sizes = [1, 512], strides = [1, 1]} : vector<8x512xf32> to vector<1x512xf32>
    %19 = vector.extract_strided_slice %12 {offsets = [6, 0], sizes = [1, 512], strides = [1, 1]} : vector<8x512xf32> to vector<1x512xf32>
    %20 = vector.extract_strided_slice %12 {offsets = [7, 0], sizes = [1, 512], strides = [1, 1]} : vector<8x512xf32> to vector<1x512xf32>
    %cst_5 = arith.constant 0.000000e+00 : f32
    %21 = vector.broadcast %cst_5 : f32 to vector<1x128xf32>
    %cst_6 = arith.constant 0.000000e+00 : f32
    %22 = vector.broadcast %cst_6 : f32 to vector<1x128xf32>
    %cst_7 = arith.constant dense<0.000000e+00> : vector<1x512xf32>
    %23 = tpu.matmul %21, %7, %cst_7 {dimension_numbers = #tpu.dot_dimension_numbers<[1], [0], [0], [1], [0, 0, 1, 1], [], []>} : vector<1x128xf32>, vector<128x512xf32>, vector<1x512xf32> -> vector<1x512xf32>
    %24 = arith.addf %13, %23 : vector<1x512xf32>
    %25 = vector.extract_strided_slice %24 {offsets = [0, 0], sizes = [1, 384], strides = [1, 1]} : vector<1x512xf32> to vector<1x384xf32>
    %cst_8 = arith.constant 5.000000e-01 : f32
    %26 = vector.broadcast %cst_8 : f32 to vector<1x384xf32>
    %27 = arith.mulf %26, %25 : vector<1x384xf32>
    %28 = math.tanh %27 : vector<1x384xf32>
    %cst_9 = arith.constant 5.000000e-01 : f32
    %29 = vector.broadcast %cst_9 : f32 to vector<1x384xf32>
    %30 = arith.mulf %29, %28 : vector<1x384xf32>
    %cst_10 = arith.constant 5.000000e-01 : f32
    %31 = vector.broadcast %cst_10 : f32 to vector<1x384xf32>
    %32 = arith.addf %30, %31 : vector<1x384xf32>
    %33 = vector.extract_strided_slice %32 {offsets = [0, 0], sizes = [1, 128], strides = [1, 1]} : vector<1x384xf32> to vector<1x128xf32>
    %34 = vector.extract_strided_slice %32 {offsets = [0, 128], sizes = [1, 128], strides = [1, 1]} : vector<1x384xf32> to vector<1x128xf32>
    %35 = vector.extract_strided_slice %32 {offsets = [0, 256], sizes = [1, 128], strides = [1, 1]} : vector<1x384xf32> to vector<1x128xf32>
    %36 = vector.extract_strided_slice %24 {offsets = [0, 384], sizes = [1, 128], strides = [1, 1]} : vector<1x512xf32> to vector<1x128xf32>
    %37 = math.tanh %36 : vector<1x128xf32>
    %38 = arith.mulf %34, %22 : vector<1x128xf32>
    %39 = arith.mulf %33, %37 : vector<1x128xf32>
    %40 = arith.addf %38, %39 : vector<1x128xf32>
    %41 = math.tanh %40 : vector<1x128xf32>
    %42 = arith.mulf %35, %41 : vector<1x128xf32>
    %cst_11 = arith.constant dense<0.000000e+00> : vector<1x512xf32>
    %43 = tpu.matmul %42, %7, %cst_11 {dimension_numbers = #tpu.dot_dimension_numbers<[1], [0], [0], [1], [0, 0, 1, 1], [], []>} : vector<1x128xf32>, vector<128x512xf32>, vector<1x512xf32> -> vector<1x512xf32>
    %44 = arith.addf %14, %43 : vector<1x512xf32>
    %45 = vector.extract_strided_slice %44 {offsets = [0, 0], sizes = [1, 384], strides = [1, 1]} : vector<1x512xf32> to vector<1x384xf32>
    %cst_12 = arith.constant 5.000000e-01 : f32
    %46 = vector.broadcast %cst_12 : f32 to vector<1x384xf32>
    %47 = arith.mulf %46, %45 : vector<1x384xf32>
    %48 = math.tanh %47 : vector<1x384xf32>
    %cst_13 = arith.constant 5.000000e-01 : f32
    %49 = vector.broadcast %cst_13 : f32 to vector<1x384xf32>
    %50 = arith.mulf %49, %48 : vector<1x384xf32>
    %cst_14 = arith.constant 5.000000e-01 : f32
    %51 = vector.broadcast %cst_14 : f32 to vector<1x384xf32>
    %52 = arith.addf %50, %51 : vector<1x384xf32>
    %53 = vector.extract_strided_slice %52 {offsets = [0, 0], sizes = [1, 128], strides = [1, 1]} : vector<1x384xf32> to vector<1x128xf32>
    %54 = vector.extract_strided_slice %52 {offsets = [0, 128], sizes = [1, 128], strides = [1, 1]} : vector<1x384xf32> to vector<1x128xf32>
    %55 = vector.extract_strided_slice %52 {offsets = [0, 256], sizes = [1, 128], strides = [1, 1]} : vector<1x384xf32> to vector<1x128xf32>
    %56 = vector.extract_strided_slice %44 {offsets = [0, 384], sizes = [1, 128], strides = [1, 1]} : vector<1x512xf32> to vector<1x128xf32>
    %57 = math.tanh %56 : vector<1x128xf32>
    %58 = arith.mulf %54, %40 : vector<1x128xf32>
    %59 = arith.mulf %53, %57 : vector<1x128xf32>
    %60 = arith.addf %58, %59 : vector<1x128xf32>
    %61 = math.tanh %60 : vector<1x128xf32>
    %62 = arith.mulf %55, %61 : vector<1x128xf32>
    %cst_15 = arith.constant dense<0.000000e+00> : vector<1x512xf32>
    %63 = tpu.matmul %62, %7, %cst_15 {dimension_numbers = #tpu.dot_dimension_numbers<[1], [0], [0], [1], [0, 0, 1, 1], [], []>} : vector<1x128xf32>, vector<128x512xf32>, vector<1x512xf32> -> vector<1x512xf32>
    %64 = arith.addf %15, %63 : vector<1x512xf32>
    %65 = vector.extract_strided_slice %64 {offsets = [0, 0], sizes = [1, 384], strides = [1, 1]} : vector<1x512xf32> to vector<1x384xf32>
    %cst_16 = arith.constant 5.000000e-01 : f32
    %66 = vector.broadcast %cst_16 : f32 to vector<1x384xf32>
    %67 = arith.mulf %66, %65 : vector<1x384xf32>
    %68 = math.tanh %67 : vector<1x384xf32>
    %cst_17 = arith.constant 5.000000e-01 : f32
    %69 = vector.broadcast %cst_17 : f32 to vector<1x384xf32>
    %70 = arith.mulf %69, %68 : vector<1x384xf32>
    %cst_18 = arith.constant 5.000000e-01 : f32
    %71 = vector.broadcast %cst_18 : f32 to vector<1x384xf32>
    %72 = arith.addf %70, %71 : vector<1x384xf32>
    %73 = vector.extract_strided_slice %72 {offsets = [0, 0], sizes = [1, 128], strides = [1, 1]} : vector<1x384xf32> to vector<1x128xf32>
    %74 = vector.extract_strided_slice %72 {offsets = [0, 128], sizes = [1, 128], strides = [1, 1]} : vector<1x384xf32> to vector<1x128xf32>
    %75 = vector.extract_strided_slice %72 {offsets = [0, 256], sizes = [1, 128], strides = [1, 1]} : vector<1x384xf32> to vector<1x128xf32>
    %76 = vector.extract_strided_slice %64 {offsets = [0, 384], sizes = [1, 128], strides = [1, 1]} : vector<1x512xf32> to vector<1x128xf32>
    %77 = math.tanh %76 : vector<1x128xf32>
    %78 = arith.mulf %74, %60 : vector<1x128xf32>
    %79 = arith.mulf %73, %77 : vector<1x128xf32>
    %80 = arith.addf %78, %79 : vector<1x128xf32>
    %81 = math.tanh %80 : vector<1x128xf32>
    %82 = arith.mulf %75, %81 : vector<1x128xf32>
    %cst_19 = arith.constant dense<0.000000e+00> : vector<1x512xf32>
    %83 = tpu.matmul %82, %7, %cst_19 {dimension_numbers = #tpu.dot_dimension_numbers<[1], [0], [0], [1], [0, 0, 1, 1], [], []>} : vector<1x128xf32>, vector<128x512xf32>, vector<1x512xf32> -> vector<1x512xf32>
    %84 = arith.addf %16, %83 : vector<1x512xf32>
    %85 = vector.extract_strided_slice %84 {offsets = [0, 0], sizes = [1, 384], strides = [1, 1]} : vector<1x512xf32> to vector<1x384xf32>
    %cst_20 = arith.constant 5.000000e-01 : f32
    %86 = vector.broadcast %cst_20 : f32 to vector<1x384xf32>
    %87 = arith.mulf %86, %85 : vector<1x384xf32>
    %88 = math.tanh %87 : vector<1x384xf32>
    %cst_21 = arith.constant 5.000000e-01 : f32
    %89 = vector.broadcast %cst_21 : f32 to vector<1x384xf32>
    %90 = arith.mulf %89, %88 : vector<1x384xf32>
    %cst_22 = arith.constant 5.000000e-01 : f32
    %91 = vector.broadcast %cst_22 : f32 to vector<1x384xf32>
    %92 = arith.addf %90, %91 : vector<1x384xf32>
    %93 = vector.extract_strided_slice %92 {offsets = [0, 0], sizes = [1, 128], strides = [1, 1]} : vector<1x384xf32> to vector<1x128xf32>
    %94 = vector.extract_strided_slice %92 {offsets = [0, 128], sizes = [1, 128], strides = [1, 1]} : vector<1x384xf32> to vector<1x128xf32>
    %95 = vector.extract_strided_slice %92 {offsets = [0, 256], sizes = [1, 128], strides = [1, 1]} : vector<1x384xf32> to vector<1x128xf32>
    %96 = vector.extract_strided_slice %84 {offsets = [0, 384], sizes = [1, 128], strides = [1, 1]} : vector<1x512xf32> to vector<1x128xf32>
    %97 = math.tanh %96 : vector<1x128xf32>
    %98 = arith.mulf %94, %80 : vector<1x128xf32>
    %99 = arith.mulf %93, %97 : vector<1x128xf32>
    %100 = arith.addf %98, %99 : vector<1x128xf32>
    %101 = math.tanh %100 : vector<1x128xf32>
    %102 = arith.mulf %95, %101 : vector<1x128xf32>
    %cst_23 = arith.constant dense<0.000000e+00> : vector<1x512xf32>
    %103 = tpu.matmul %102, %7, %cst_23 {dimension_numbers = #tpu.dot_dimension_numbers<[1], [0], [0], [1], [0, 0, 1, 1], [], []>} : vector<1x128xf32>, vector<128x512xf32>, vector<1x512xf32> -> vector<1x512xf32>
    %104 = arith.addf %17, %103 : vector<1x512xf32>
    %105 = vector.extract_strided_slice %104 {offsets = [0, 0], sizes = [1, 384], strides = [1, 1]} : vector<1x512xf32> to vector<1x384xf32>
    %cst_24 = arith.constant 5.000000e-01 : f32
    %106 = vector.broadcast %cst_24 : f32 to vector<1x384xf32>
    %107 = arith.mulf %106, %105 : vector<1x384xf32>
    %108 = math.tanh %107 : vector<1x384xf32>
    %cst_25 = arith.constant 5.000000e-01 : f32
    %109 = vector.broadcast %cst_25 : f32 to vector<1x384xf32>
    %110 = arith.mulf %109, %108 : vector<1x384xf32>
    %cst_26 = arith.constant 5.000000e-01 : f32
    %111 = vector.broadcast %cst_26 : f32 to vector<1x384xf32>
    %112 = arith.addf %110, %111 : vector<1x384xf32>
    %113 = vector.extract_strided_slice %112 {offsets = [0, 0], sizes = [1, 128], strides = [1, 1]} : vector<1x384xf32> to vector<1x128xf32>
    %114 = vector.extract_strided_slice %112 {offsets = [0, 128], sizes = [1, 128], strides = [1, 1]} : vector<1x384xf32> to vector<1x128xf32>
    %115 = vector.extract_strided_slice %112 {offsets = [0, 256], sizes = [1, 128], strides = [1, 1]} : vector<1x384xf32> to vector<1x128xf32>
    %116 = vector.extract_strided_slice %104 {offsets = [0, 384], sizes = [1, 128], strides = [1, 1]} : vector<1x512xf32> to vector<1x128xf32>
    %117 = math.tanh %116 : vector<1x128xf32>
    %118 = arith.mulf %114, %100 : vector<1x128xf32>
    %119 = arith.mulf %113, %117 : vector<1x128xf32>
    %120 = arith.addf %118, %119 : vector<1x128xf32>
    %121 = math.tanh %120 : vector<1x128xf32>
    %122 = arith.mulf %115, %121 : vector<1x128xf32>
    %cst_27 = arith.constant dense<0.000000e+00> : vector<1x512xf32>
    %123 = tpu.matmul %122, %7, %cst_27 {dimension_numbers = #tpu.dot_dimension_numbers<[1], [0], [0], [1], [0, 0, 1, 1], [], []>} : vector<1x128xf32>, vector<128x512xf32>, vector<1x512xf32> -> vector<1x512xf32>
    %124 = arith.addf %18, %123 : vector<1x512xf32>
    %125 = vector.extract_strided_slice %124 {offsets = [0, 0], sizes = [1, 384], strides = [1, 1]} : vector<1x512xf32> to vector<1x384xf32>
    %cst_28 = arith.constant 5.000000e-01 : f32
    %126 = vector.broadcast %cst_28 : f32 to vector<1x384xf32>
    %127 = arith.mulf %126, %125 : vector<1x384xf32>
    %128 = math.tanh %127 : vector<1x384xf32>
    %cst_29 = arith.constant 5.000000e-01 : f32
    %129 = vector.broadcast %cst_29 : f32 to vector<1x384xf32>
    %130 = arith.mulf %129, %128 : vector<1x384xf32>
    %cst_30 = arith.constant 5.000000e-01 : f32
    %131 = vector.broadcast %cst_30 : f32 to vector<1x384xf32>
    %132 = arith.addf %130, %131 : vector<1x384xf32>
    %133 = vector.extract_strided_slice %132 {offsets = [0, 0], sizes = [1, 128], strides = [1, 1]} : vector<1x384xf32> to vector<1x128xf32>
    %134 = vector.extract_strided_slice %132 {offsets = [0, 128], sizes = [1, 128], strides = [1, 1]} : vector<1x384xf32> to vector<1x128xf32>
    %135 = vector.extract_strided_slice %132 {offsets = [0, 256], sizes = [1, 128], strides = [1, 1]} : vector<1x384xf32> to vector<1x128xf32>
    %136 = vector.extract_strided_slice %124 {offsets = [0, 384], sizes = [1, 128], strides = [1, 1]} : vector<1x512xf32> to vector<1x128xf32>
    %137 = math.tanh %136 : vector<1x128xf32>
    %138 = arith.mulf %134, %120 : vector<1x128xf32>
    %139 = arith.mulf %133, %137 : vector<1x128xf32>
    %140 = arith.addf %138, %139 : vector<1x128xf32>
    %141 = math.tanh %140 : vector<1x128xf32>
    %142 = arith.mulf %135, %141 : vector<1x128xf32>
    %cst_31 = arith.constant dense<0.000000e+00> : vector<1x512xf32>
    %143 = tpu.matmul %142, %7, %cst_31 {dimension_numbers = #tpu.dot_dimension_numbers<[1], [0], [0], [1], [0, 0, 1, 1], [], []>} : vector<1x128xf32>, vector<128x512xf32>, vector<1x512xf32> -> vector<1x512xf32>
    %144 = arith.addf %19, %143 : vector<1x512xf32>
    %145 = vector.extract_strided_slice %144 {offsets = [0, 0], sizes = [1, 384], strides = [1, 1]} : vector<1x512xf32> to vector<1x384xf32>
    %cst_32 = arith.constant 5.000000e-01 : f32
    %146 = vector.broadcast %cst_32 : f32 to vector<1x384xf32>
    %147 = arith.mulf %146, %145 : vector<1x384xf32>
    %148 = math.tanh %147 : vector<1x384xf32>
    %cst_33 = arith.constant 5.000000e-01 : f32
    %149 = vector.broadcast %cst_33 : f32 to vector<1x384xf32>
    %150 = arith.mulf %149, %148 : vector<1x384xf32>
    %cst_34 = arith.constant 5.000000e-01 : f32
    %151 = vector.broadcast %cst_34 : f32 to vector<1x384xf32>
    %152 = arith.addf %150, %151 : vector<1x384xf32>
    %153 = vector.extract_strided_slice %152 {offsets = [0, 0], sizes = [1, 128], strides = [1, 1]} : vector<1x384xf32> to vector<1x128xf32>
    %154 = vector.extract_strided_slice %152 {offsets = [0, 128], sizes = [1, 128], strides = [1, 1]} : vector<1x384xf32> to vector<1x128xf32>
    %155 = vector.extract_strided_slice %152 {offsets = [0, 256], sizes = [1, 128], strides = [1, 1]} : vector<1x384xf32> to vector<1x128xf32>
    %156 = vector.extract_strided_slice %144 {offsets = [0, 384], sizes = [1, 128], strides = [1, 1]} : vector<1x512xf32> to vector<1x128xf32>
    %157 = math.tanh %156 : vector<1x128xf32>
    %158 = arith.mulf %154, %140 : vector<1x128xf32>
    %159 = arith.mulf %153, %157 : vector<1x128xf32>
    %160 = arith.addf %158, %159 : vector<1x128xf32>
    %161 = math.tanh %160 : vector<1x128xf32>
    %162 = arith.mulf %155, %161 : vector<1x128xf32>
    %cst_35 = arith.constant dense<0.000000e+00> : vector<1x512xf32>
    %163 = tpu.matmul %162, %7, %cst_35 {dimension_numbers = #tpu.dot_dimension_numbers<[1], [0], [0], [1], [0, 0, 1, 1], [], []>} : vector<1x128xf32>, vector<128x512xf32>, vector<1x512xf32> -> vector<1x512xf32>
    %164 = arith.addf %20, %163 : vector<1x512xf32>
    %165 = vector.extract_strided_slice %164 {offsets = [0, 0], sizes = [1, 384], strides = [1, 1]} : vector<1x512xf32> to vector<1x384xf32>
    %cst_36 = arith.constant 5.000000e-01 : f32
    %166 = vector.broadcast %cst_36 : f32 to vector<1x384xf32>
    %167 = arith.mulf %166, %165 : vector<1x384xf32>
    %168 = math.tanh %167 : vector<1x384xf32>
    %cst_37 = arith.constant 5.000000e-01 : f32
    %169 = vector.broadcast %cst_37 : f32 to vector<1x384xf32>
    %170 = arith.mulf %169, %168 : vector<1x384xf32>
    %cst_38 = arith.constant 5.000000e-01 : f32
    %171 = vector.broadcast %cst_38 : f32 to vector<1x384xf32>
    %172 = arith.addf %170, %171 : vector<1x384xf32>
    %173 = vector.extract_strided_slice %172 {offsets = [0, 0], sizes = [1, 128], strides = [1, 1]} : vector<1x384xf32> to vector<1x128xf32>
    %174 = vector.extract_strided_slice %172 {offsets = [0, 128], sizes = [1, 128], strides = [1, 1]} : vector<1x384xf32> to vector<1x128xf32>
    %175 = vector.extract_strided_slice %172 {offsets = [0, 256], sizes = [1, 128], strides = [1, 1]} : vector<1x384xf32> to vector<1x128xf32>
    %176 = vector.extract_strided_slice %164 {offsets = [0, 384], sizes = [1, 128], strides = [1, 1]} : vector<1x512xf32> to vector<1x128xf32>
    %177 = math.tanh %176 : vector<1x128xf32>
    %178 = arith.mulf %174, %160 : vector<1x128xf32>
    %179 = arith.mulf %173, %177 : vector<1x128xf32>
    %180 = arith.addf %178, %179 : vector<1x128xf32>
    %181 = math.tanh %180 : vector<1x128xf32>
    %182 = arith.mulf %175, %181 : vector<1x128xf32>
    %183 = tpu.concatenate %42, %62, %82, %102, %122, %142, %162, %182 in 0 : vector<1x128xf32>, vector<1x128xf32>, vector<1x128xf32>, vector<1x128xf32>, vector<1x128xf32>, vector<1x128xf32>, vector<1x128xf32>, vector<1x128xf32> -> vector<8x128xf32>
    %c0_39 = arith.constant 0 : index
    %c0_40 = arith.constant 0 : index
    %184 = vector.load %arg2[%c0_39, %c0_40] : memref<264x512xf32, #tpu.memory_space<vmem>>, vector<128x512xf32>
    %c128 = arith.constant 128 : index
    %c0_41 = arith.constant 0 : index
    %185 = vector.load %arg2[%c128, %c0_41] : memref<264x512xf32, #tpu.memory_space<vmem>>, vector<128x512xf32>
    %c256 = arith.constant 256 : index
    %c0_42 = arith.constant 0 : index
    %186 = vector.load %arg2[%c256, %c0_42] : memref<264x512xf32, #tpu.memory_space<vmem>>, vector<1x512xf32>
    %cst_43 = arith.constant dense<0.000000e+00> : vector<8x512xf32>
    %187 = tpu.matmul %183, %184, %cst_43 {dimension_numbers = #tpu.dot_dimension_numbers<[1], [0], [0], [1], [0, 0, 1, 1], [], []>} : vector<8x128xf32>, vector<128x512xf32>, vector<8x512xf32> -> vector<8x512xf32>
    %188 = vector.broadcast %186 : vector<1x512xf32> to vector<8x512xf32>
    %189 = arith.addf %187, %188 : vector<8x512xf32>
    %190 = vector.extract_strided_slice %189 {offsets = [0, 0], sizes = [1, 512], strides = [1, 1]} : vector<8x512xf32> to vector<1x512xf32>
    %191 = vector.extract_strided_slice %189 {offsets = [1, 0], sizes = [1, 512], strides = [1, 1]} : vector<8x512xf32> to vector<1x512xf32>
    %192 = vector.extract_strided_slice %189 {offsets = [2, 0], sizes = [1, 512], strides = [1, 1]} : vector<8x512xf32> to vector<1x512xf32>
    %193 = vector.extract_strided_slice %189 {offsets = [3, 0], sizes = [1, 512], strides = [1, 1]} : vector<8x512xf32> to vector<1x512xf32>
    %194 = vector.extract_strided_slice %189 {offsets = [4, 0], sizes = [1, 512], strides = [1, 1]} : vector<8x512xf32> to vector<1x512xf32>
    %195 = vector.extract_strided_slice %189 {offsets = [5, 0], sizes = [1, 512], strides = [1, 1]} : vector<8x512xf32> to vector<1x512xf32>
    %196 = vector.extract_strided_slice %189 {offsets = [6, 0], sizes = [1, 512], strides = [1, 1]} : vector<8x512xf32> to vector<1x512xf32>
    %197 = vector.extract_strided_slice %189 {offsets = [7, 0], sizes = [1, 512], strides = [1, 1]} : vector<8x512xf32> to vector<1x512xf32>
    %cst_44 = arith.constant 0.000000e+00 : f32
    %198 = vector.broadcast %cst_44 : f32 to vector<1x128xf32>
    %cst_45 = arith.constant 0.000000e+00 : f32
    %199 = vector.broadcast %cst_45 : f32 to vector<1x128xf32>
    %cst_46 = arith.constant dense<0.000000e+00> : vector<1x512xf32>
    %200 = tpu.matmul %198, %185, %cst_46 {dimension_numbers = #tpu.dot_dimension_numbers<[1], [0], [0], [1], [0, 0, 1, 1], [], []>} : vector<1x128xf32>, vector<128x512xf32>, vector<1x512xf32> -> vector<1x512xf32>
    %201 = arith.addf %190, %200 : vector<1x512xf32>
    %202 = vector.extract_strided_slice %201 {offsets = [0, 0], sizes = [1, 384], strides = [1, 1]} : vector<1x512xf32> to vector<1x384xf32>
    %cst_47 = arith.constant 5.000000e-01 : f32
    %203 = vector.broadcast %cst_47 : f32 to vector<1x384xf32>
    %204 = arith.mulf %203, %202 : vector<1x384xf32>
    %205 = math.tanh %204 : vector<1x384xf32>
    %cst_48 = arith.constant 5.000000e-01 : f32
    %206 = vector.broadcast %cst_48 : f32 to vector<1x384xf32>
    %207 = arith.mulf %206, %205 : vector<1x384xf32>
    %cst_49 = arith.constant 5.000000e-01 : f32
    %208 = vector.broadcast %cst_49 : f32 to vector<1x384xf32>
    %209 = arith.addf %207, %208 : vector<1x384xf32>
    %210 = vector.extract_strided_slice %209 {offsets = [0, 0], sizes = [1, 128], strides = [1, 1]} : vector<1x384xf32> to vector<1x128xf32>
    %211 = vector.extract_strided_slice %209 {offsets = [0, 128], sizes = [1, 128], strides = [1, 1]} : vector<1x384xf32> to vector<1x128xf32>
    %212 = vector.extract_strided_slice %209 {offsets = [0, 256], sizes = [1, 128], strides = [1, 1]} : vector<1x384xf32> to vector<1x128xf32>
    %213 = vector.extract_strided_slice %201 {offsets = [0, 384], sizes = [1, 128], strides = [1, 1]} : vector<1x512xf32> to vector<1x128xf32>
    %214 = math.tanh %213 : vector<1x128xf32>
    %215 = arith.mulf %211, %199 : vector<1x128xf32>
    %216 = arith.mulf %210, %214 : vector<1x128xf32>
    %217 = arith.addf %215, %216 : vector<1x128xf32>
    %218 = math.tanh %217 : vector<1x128xf32>
    %219 = arith.mulf %212, %218 : vector<1x128xf32>
    %cst_50 = arith.constant dense<0.000000e+00> : vector<1x512xf32>
    %220 = tpu.matmul %219, %185, %cst_50 {dimension_numbers = #tpu.dot_dimension_numbers<[1], [0], [0], [1], [0, 0, 1, 1], [], []>} : vector<1x128xf32>, vector<128x512xf32>, vector<1x512xf32> -> vector<1x512xf32>
    %221 = arith.addf %191, %220 : vector<1x512xf32>
    %222 = vector.extract_strided_slice %221 {offsets = [0, 0], sizes = [1, 384], strides = [1, 1]} : vector<1x512xf32> to vector<1x384xf32>
    %cst_51 = arith.constant 5.000000e-01 : f32
    %223 = vector.broadcast %cst_51 : f32 to vector<1x384xf32>
    %224 = arith.mulf %223, %222 : vector<1x384xf32>
    %225 = math.tanh %224 : vector<1x384xf32>
    %cst_52 = arith.constant 5.000000e-01 : f32
    %226 = vector.broadcast %cst_52 : f32 to vector<1x384xf32>
    %227 = arith.mulf %226, %225 : vector<1x384xf32>
    %cst_53 = arith.constant 5.000000e-01 : f32
    %228 = vector.broadcast %cst_53 : f32 to vector<1x384xf32>
    %229 = arith.addf %227, %228 : vector<1x384xf32>
    %230 = vector.extract_strided_slice %229 {offsets = [0, 0], sizes = [1, 128], strides = [1, 1]} : vector<1x384xf32> to vector<1x128xf32>
    %231 = vector.extract_strided_slice %229 {offsets = [0, 128], sizes = [1, 128], strides = [1, 1]} : vector<1x384xf32> to vector<1x128xf32>
    %232 = vector.extract_strided_slice %229 {offsets = [0, 256], sizes = [1, 128], strides = [1, 1]} : vector<1x384xf32> to vector<1x128xf32>
    %233 = vector.extract_strided_slice %221 {offsets = [0, 384], sizes = [1, 128], strides = [1, 1]} : vector<1x512xf32> to vector<1x128xf32>
    %234 = math.tanh %233 : vector<1x128xf32>
    %235 = arith.mulf %231, %217 : vector<1x128xf32>
    %236 = arith.mulf %230, %234 : vector<1x128xf32>
    %237 = arith.addf %235, %236 : vector<1x128xf32>
    %238 = math.tanh %237 : vector<1x128xf32>
    %239 = arith.mulf %232, %238 : vector<1x128xf32>
    %cst_54 = arith.constant dense<0.000000e+00> : vector<1x512xf32>
    %240 = tpu.matmul %239, %185, %cst_54 {dimension_numbers = #tpu.dot_dimension_numbers<[1], [0], [0], [1], [0, 0, 1, 1], [], []>} : vector<1x128xf32>, vector<128x512xf32>, vector<1x512xf32> -> vector<1x512xf32>
    %241 = arith.addf %192, %240 : vector<1x512xf32>
    %242 = vector.extract_strided_slice %241 {offsets = [0, 0], sizes = [1, 384], strides = [1, 1]} : vector<1x512xf32> to vector<1x384xf32>
    %cst_55 = arith.constant 5.000000e-01 : f32
    %243 = vector.broadcast %cst_55 : f32 to vector<1x384xf32>
    %244 = arith.mulf %243, %242 : vector<1x384xf32>
    %245 = math.tanh %244 : vector<1x384xf32>
    %cst_56 = arith.constant 5.000000e-01 : f32
    %246 = vector.broadcast %cst_56 : f32 to vector<1x384xf32>
    %247 = arith.mulf %246, %245 : vector<1x384xf32>
    %cst_57 = arith.constant 5.000000e-01 : f32
    %248 = vector.broadcast %cst_57 : f32 to vector<1x384xf32>
    %249 = arith.addf %247, %248 : vector<1x384xf32>
    %250 = vector.extract_strided_slice %249 {offsets = [0, 0], sizes = [1, 128], strides = [1, 1]} : vector<1x384xf32> to vector<1x128xf32>
    %251 = vector.extract_strided_slice %249 {offsets = [0, 128], sizes = [1, 128], strides = [1, 1]} : vector<1x384xf32> to vector<1x128xf32>
    %252 = vector.extract_strided_slice %249 {offsets = [0, 256], sizes = [1, 128], strides = [1, 1]} : vector<1x384xf32> to vector<1x128xf32>
    %253 = vector.extract_strided_slice %241 {offsets = [0, 384], sizes = [1, 128], strides = [1, 1]} : vector<1x512xf32> to vector<1x128xf32>
    %254 = math.tanh %253 : vector<1x128xf32>
    %255 = arith.mulf %251, %237 : vector<1x128xf32>
    %256 = arith.mulf %250, %254 : vector<1x128xf32>
    %257 = arith.addf %255, %256 : vector<1x128xf32>
    %258 = math.tanh %257 : vector<1x128xf32>
    %259 = arith.mulf %252, %258 : vector<1x128xf32>
    %cst_58 = arith.constant dense<0.000000e+00> : vector<1x512xf32>
    %260 = tpu.matmul %259, %185, %cst_58 {dimension_numbers = #tpu.dot_dimension_numbers<[1], [0], [0], [1], [0, 0, 1, 1], [], []>} : vector<1x128xf32>, vector<128x512xf32>, vector<1x512xf32> -> vector<1x512xf32>
    %261 = arith.addf %193, %260 : vector<1x512xf32>
    %262 = vector.extract_strided_slice %261 {offsets = [0, 0], sizes = [1, 384], strides = [1, 1]} : vector<1x512xf32> to vector<1x384xf32>
    %cst_59 = arith.constant 5.000000e-01 : f32
    %263 = vector.broadcast %cst_59 : f32 to vector<1x384xf32>
    %264 = arith.mulf %263, %262 : vector<1x384xf32>
    %265 = math.tanh %264 : vector<1x384xf32>
    %cst_60 = arith.constant 5.000000e-01 : f32
    %266 = vector.broadcast %cst_60 : f32 to vector<1x384xf32>
    %267 = arith.mulf %266, %265 : vector<1x384xf32>
    %cst_61 = arith.constant 5.000000e-01 : f32
    %268 = vector.broadcast %cst_61 : f32 to vector<1x384xf32>
    %269 = arith.addf %267, %268 : vector<1x384xf32>
    %270 = vector.extract_strided_slice %269 {offsets = [0, 0], sizes = [1, 128], strides = [1, 1]} : vector<1x384xf32> to vector<1x128xf32>
    %271 = vector.extract_strided_slice %269 {offsets = [0, 128], sizes = [1, 128], strides = [1, 1]} : vector<1x384xf32> to vector<1x128xf32>
    %272 = vector.extract_strided_slice %269 {offsets = [0, 256], sizes = [1, 128], strides = [1, 1]} : vector<1x384xf32> to vector<1x128xf32>
    %273 = vector.extract_strided_slice %261 {offsets = [0, 384], sizes = [1, 128], strides = [1, 1]} : vector<1x512xf32> to vector<1x128xf32>
    %274 = math.tanh %273 : vector<1x128xf32>
    %275 = arith.mulf %271, %257 : vector<1x128xf32>
    %276 = arith.mulf %270, %274 : vector<1x128xf32>
    %277 = arith.addf %275, %276 : vector<1x128xf32>
    %278 = math.tanh %277 : vector<1x128xf32>
    %279 = arith.mulf %272, %278 : vector<1x128xf32>
    %cst_62 = arith.constant dense<0.000000e+00> : vector<1x512xf32>
    %280 = tpu.matmul %279, %185, %cst_62 {dimension_numbers = #tpu.dot_dimension_numbers<[1], [0], [0], [1], [0, 0, 1, 1], [], []>} : vector<1x128xf32>, vector<128x512xf32>, vector<1x512xf32> -> vector<1x512xf32>
    %281 = arith.addf %194, %280 : vector<1x512xf32>
    %282 = vector.extract_strided_slice %281 {offsets = [0, 0], sizes = [1, 384], strides = [1, 1]} : vector<1x512xf32> to vector<1x384xf32>
    %cst_63 = arith.constant 5.000000e-01 : f32
    %283 = vector.broadcast %cst_63 : f32 to vector<1x384xf32>
    %284 = arith.mulf %283, %282 : vector<1x384xf32>
    %285 = math.tanh %284 : vector<1x384xf32>
    %cst_64 = arith.constant 5.000000e-01 : f32
    %286 = vector.broadcast %cst_64 : f32 to vector<1x384xf32>
    %287 = arith.mulf %286, %285 : vector<1x384xf32>
    %cst_65 = arith.constant 5.000000e-01 : f32
    %288 = vector.broadcast %cst_65 : f32 to vector<1x384xf32>
    %289 = arith.addf %287, %288 : vector<1x384xf32>
    %290 = vector.extract_strided_slice %289 {offsets = [0, 0], sizes = [1, 128], strides = [1, 1]} : vector<1x384xf32> to vector<1x128xf32>
    %291 = vector.extract_strided_slice %289 {offsets = [0, 128], sizes = [1, 128], strides = [1, 1]} : vector<1x384xf32> to vector<1x128xf32>
    %292 = vector.extract_strided_slice %289 {offsets = [0, 256], sizes = [1, 128], strides = [1, 1]} : vector<1x384xf32> to vector<1x128xf32>
    %293 = vector.extract_strided_slice %281 {offsets = [0, 384], sizes = [1, 128], strides = [1, 1]} : vector<1x512xf32> to vector<1x128xf32>
    %294 = math.tanh %293 : vector<1x128xf32>
    %295 = arith.mulf %291, %277 : vector<1x128xf32>
    %296 = arith.mulf %290, %294 : vector<1x128xf32>
    %297 = arith.addf %295, %296 : vector<1x128xf32>
    %298 = math.tanh %297 : vector<1x128xf32>
    %299 = arith.mulf %292, %298 : vector<1x128xf32>
    %cst_66 = arith.constant dense<0.000000e+00> : vector<1x512xf32>
    %300 = tpu.matmul %299, %185, %cst_66 {dimension_numbers = #tpu.dot_dimension_numbers<[1], [0], [0], [1], [0, 0, 1, 1], [], []>} : vector<1x128xf32>, vector<128x512xf32>, vector<1x512xf32> -> vector<1x512xf32>
    %301 = arith.addf %195, %300 : vector<1x512xf32>
    %302 = vector.extract_strided_slice %301 {offsets = [0, 0], sizes = [1, 384], strides = [1, 1]} : vector<1x512xf32> to vector<1x384xf32>
    %cst_67 = arith.constant 5.000000e-01 : f32
    %303 = vector.broadcast %cst_67 : f32 to vector<1x384xf32>
    %304 = arith.mulf %303, %302 : vector<1x384xf32>
    %305 = math.tanh %304 : vector<1x384xf32>
    %cst_68 = arith.constant 5.000000e-01 : f32
    %306 = vector.broadcast %cst_68 : f32 to vector<1x384xf32>
    %307 = arith.mulf %306, %305 : vector<1x384xf32>
    %cst_69 = arith.constant 5.000000e-01 : f32
    %308 = vector.broadcast %cst_69 : f32 to vector<1x384xf32>
    %309 = arith.addf %307, %308 : vector<1x384xf32>
    %310 = vector.extract_strided_slice %309 {offsets = [0, 0], sizes = [1, 128], strides = [1, 1]} : vector<1x384xf32> to vector<1x128xf32>
    %311 = vector.extract_strided_slice %309 {offsets = [0, 128], sizes = [1, 128], strides = [1, 1]} : vector<1x384xf32> to vector<1x128xf32>
    %312 = vector.extract_strided_slice %309 {offsets = [0, 256], sizes = [1, 128], strides = [1, 1]} : vector<1x384xf32> to vector<1x128xf32>
    %313 = vector.extract_strided_slice %301 {offsets = [0, 384], sizes = [1, 128], strides = [1, 1]} : vector<1x512xf32> to vector<1x128xf32>
    %314 = math.tanh %313 : vector<1x128xf32>
    %315 = arith.mulf %311, %297 : vector<1x128xf32>
    %316 = arith.mulf %310, %314 : vector<1x128xf32>
    %317 = arith.addf %315, %316 : vector<1x128xf32>
    %318 = math.tanh %317 : vector<1x128xf32>
    %319 = arith.mulf %312, %318 : vector<1x128xf32>
    %cst_70 = arith.constant dense<0.000000e+00> : vector<1x512xf32>
    %320 = tpu.matmul %319, %185, %cst_70 {dimension_numbers = #tpu.dot_dimension_numbers<[1], [0], [0], [1], [0, 0, 1, 1], [], []>} : vector<1x128xf32>, vector<128x512xf32>, vector<1x512xf32> -> vector<1x512xf32>
    %321 = arith.addf %196, %320 : vector<1x512xf32>
    %322 = vector.extract_strided_slice %321 {offsets = [0, 0], sizes = [1, 384], strides = [1, 1]} : vector<1x512xf32> to vector<1x384xf32>
    %cst_71 = arith.constant 5.000000e-01 : f32
    %323 = vector.broadcast %cst_71 : f32 to vector<1x384xf32>
    %324 = arith.mulf %323, %322 : vector<1x384xf32>
    %325 = math.tanh %324 : vector<1x384xf32>
    %cst_72 = arith.constant 5.000000e-01 : f32
    %326 = vector.broadcast %cst_72 : f32 to vector<1x384xf32>
    %327 = arith.mulf %326, %325 : vector<1x384xf32>
    %cst_73 = arith.constant 5.000000e-01 : f32
    %328 = vector.broadcast %cst_73 : f32 to vector<1x384xf32>
    %329 = arith.addf %327, %328 : vector<1x384xf32>
    %330 = vector.extract_strided_slice %329 {offsets = [0, 0], sizes = [1, 128], strides = [1, 1]} : vector<1x384xf32> to vector<1x128xf32>
    %331 = vector.extract_strided_slice %329 {offsets = [0, 128], sizes = [1, 128], strides = [1, 1]} : vector<1x384xf32> to vector<1x128xf32>
    %332 = vector.extract_strided_slice %329 {offsets = [0, 256], sizes = [1, 128], strides = [1, 1]} : vector<1x384xf32> to vector<1x128xf32>
    %333 = vector.extract_strided_slice %321 {offsets = [0, 384], sizes = [1, 128], strides = [1, 1]} : vector<1x512xf32> to vector<1x128xf32>
    %334 = math.tanh %333 : vector<1x128xf32>
    %335 = arith.mulf %331, %317 : vector<1x128xf32>
    %336 = arith.mulf %330, %334 : vector<1x128xf32>
    %337 = arith.addf %335, %336 : vector<1x128xf32>
    %338 = math.tanh %337 : vector<1x128xf32>
    %339 = arith.mulf %332, %338 : vector<1x128xf32>
    %cst_74 = arith.constant dense<0.000000e+00> : vector<1x512xf32>
    %340 = tpu.matmul %339, %185, %cst_74 {dimension_numbers = #tpu.dot_dimension_numbers<[1], [0], [0], [1], [0, 0, 1, 1], [], []>} : vector<1x128xf32>, vector<128x512xf32>, vector<1x512xf32> -> vector<1x512xf32>
    %341 = arith.addf %197, %340 : vector<1x512xf32>
    %342 = vector.extract_strided_slice %341 {offsets = [0, 0], sizes = [1, 384], strides = [1, 1]} : vector<1x512xf32> to vector<1x384xf32>
    %cst_75 = arith.constant 5.000000e-01 : f32
    %343 = vector.broadcast %cst_75 : f32 to vector<1x384xf32>
    %344 = arith.mulf %343, %342 : vector<1x384xf32>
    %345 = math.tanh %344 : vector<1x384xf32>
    %cst_76 = arith.constant 5.000000e-01 : f32
    %346 = vector.broadcast %cst_76 : f32 to vector<1x384xf32>
    %347 = arith.mulf %346, %345 : vector<1x384xf32>
    %cst_77 = arith.constant 5.000000e-01 : f32
    %348 = vector.broadcast %cst_77 : f32 to vector<1x384xf32>
    %349 = arith.addf %347, %348 : vector<1x384xf32>
    %350 = vector.extract_strided_slice %349 {offsets = [0, 0], sizes = [1, 128], strides = [1, 1]} : vector<1x384xf32> to vector<1x128xf32>
    %351 = vector.extract_strided_slice %349 {offsets = [0, 128], sizes = [1, 128], strides = [1, 1]} : vector<1x384xf32> to vector<1x128xf32>
    %352 = vector.extract_strided_slice %349 {offsets = [0, 256], sizes = [1, 128], strides = [1, 1]} : vector<1x384xf32> to vector<1x128xf32>
    %353 = vector.extract_strided_slice %341 {offsets = [0, 384], sizes = [1, 128], strides = [1, 1]} : vector<1x512xf32> to vector<1x128xf32>
    %354 = math.tanh %353 : vector<1x128xf32>
    %355 = arith.mulf %351, %337 : vector<1x128xf32>
    %356 = arith.mulf %350, %354 : vector<1x128xf32>
    %357 = arith.addf %355, %356 : vector<1x128xf32>
    %358 = math.tanh %357 : vector<1x128xf32>
    %359 = arith.mulf %352, %358 : vector<1x128xf32>
    %c0_i32_78 = arith.constant 0 : i32
    %360 = tpu.memref_slice %arg10[%c0_i32_78] : memref<3x!tpu.dma_semaphore, #tpu.memory_space<semaphore_mem>> -> memref<1x!tpu.dma_semaphore, #tpu.memory_space<semaphore_mem>>
    %361 = tpu.memref_squeeze %360 : memref<1x!tpu.dma_semaphore, #tpu.memory_space<semaphore_mem>> -> memref<!tpu.dma_semaphore, #tpu.memory_space<semaphore_mem>>
    tpu.wait_dma2 semaphore(%361 : memref<!tpu.dma_semaphore, #tpu.memory_space<semaphore_mem>>) src(%arg3 : memref<264x512xf32, #tpu.memory_space<any>>) dst(%arg7 : memref<264x512xf32, #tpu.memory_space<vmem>>)
    %c1_i32_79 = arith.constant 1 : i32
    %362 = tpu.memref_slice %arg10[%c1_i32_79] : memref<3x!tpu.dma_semaphore, #tpu.memory_space<semaphore_mem>> -> memref<1x!tpu.dma_semaphore, #tpu.memory_space<semaphore_mem>>
    %363 = tpu.memref_squeeze %362 : memref<1x!tpu.dma_semaphore, #tpu.memory_space<semaphore_mem>> -> memref<!tpu.dma_semaphore, #tpu.memory_space<semaphore_mem>>
    tpu.wait_dma2 semaphore(%363 : memref<!tpu.dma_semaphore, #tpu.memory_space<semaphore_mem>>) src(%arg4 : memref<264x512xf32, #tpu.memory_space<any>>) dst(%arg8 : memref<264x512xf32, #tpu.memory_space<vmem>>)
    %c2_i32_80 = arith.constant 2 : i32
    %364 = tpu.memref_slice %arg10[%c2_i32_80] : memref<3x!tpu.dma_semaphore, #tpu.memory_space<semaphore_mem>> -> memref<1x!tpu.dma_semaphore, #tpu.memory_space<semaphore_mem>>
    %365 = tpu.memref_squeeze %364 : memref<1x!tpu.dma_semaphore, #tpu.memory_space<semaphore_mem>> -> memref<!tpu.dma_semaphore, #tpu.memory_space<semaphore_mem>>
    tpu.wait_dma2 semaphore(%365 : memref<!tpu.dma_semaphore, #tpu.memory_space<semaphore_mem>>) src(%arg5 : memref<8x128xf32, #tpu.memory_space<any>>) dst(%arg9 : memref<8x128xf32, #tpu.memory_space<vmem>>)
    %c0_81 = arith.constant 0 : index
    %c0_82 = arith.constant 0 : index
    %366 = vector.load %arg7[%c0_81, %c0_82] : memref<264x512xf32, #tpu.memory_space<vmem>>, vector<128x512xf32>
    %c128_83 = arith.constant 128 : index
    %c0_84 = arith.constant 0 : index
    %367 = vector.load %arg7[%c128_83, %c0_84] : memref<264x512xf32, #tpu.memory_space<vmem>>, vector<128x512xf32>
    %c256_85 = arith.constant 256 : index
    %c0_86 = arith.constant 0 : index
    %368 = vector.load %arg7[%c256_85, %c0_86] : memref<264x512xf32, #tpu.memory_space<vmem>>, vector<1x512xf32>
    %cst_87 = arith.constant dense<0.000000e+00> : vector<1x512xf32>
    %369 = tpu.matmul %359, %366, %cst_87 {dimension_numbers = #tpu.dot_dimension_numbers<[1], [0], [0], [1], [0, 0, 1, 1], [], []>} : vector<1x128xf32>, vector<128x512xf32>, vector<1x512xf32> -> vector<1x512xf32>
    %370 = arith.addf %369, %368 : vector<1x512xf32>
    %cst_88 = arith.constant 0.000000e+00 : f32
    %371 = vector.broadcast %cst_88 : f32 to vector<1x128xf32>
    %cst_89 = arith.constant 0.000000e+00 : f32
    %372 = vector.broadcast %cst_89 : f32 to vector<1x128xf32>
    %cst_90 = arith.constant dense<0.000000e+00> : vector<1x512xf32>
    %373 = tpu.matmul %371, %367, %cst_90 {dimension_numbers = #tpu.dot_dimension_numbers<[1], [0], [0], [1], [0, 0, 1, 1], [], []>} : vector<1x128xf32>, vector<128x512xf32>, vector<1x512xf32> -> vector<1x512xf32>
    %374 = arith.addf %370, %373 : vector<1x512xf32>
    %375 = vector.extract_strided_slice %374 {offsets = [0, 0], sizes = [1, 384], strides = [1, 1]} : vector<1x512xf32> to vector<1x384xf32>
    %cst_91 = arith.constant 5.000000e-01 : f32
    %376 = vector.broadcast %cst_91 : f32 to vector<1x384xf32>
    %377 = arith.mulf %376, %375 : vector<1x384xf32>
    %378 = math.tanh %377 : vector<1x384xf32>
    %cst_92 = arith.constant 5.000000e-01 : f32
    %379 = vector.broadcast %cst_92 : f32 to vector<1x384xf32>
    %380 = arith.mulf %379, %378 : vector<1x384xf32>
    %cst_93 = arith.constant 5.000000e-01 : f32
    %381 = vector.broadcast %cst_93 : f32 to vector<1x384xf32>
    %382 = arith.addf %380, %381 : vector<1x384xf32>
    %383 = vector.extract_strided_slice %382 {offsets = [0, 0], sizes = [1, 128], strides = [1, 1]} : vector<1x384xf32> to vector<1x128xf32>
    %384 = vector.extract_strided_slice %382 {offsets = [0, 128], sizes = [1, 128], strides = [1, 1]} : vector<1x384xf32> to vector<1x128xf32>
    %385 = vector.extract_strided_slice %382 {offsets = [0, 256], sizes = [1, 128], strides = [1, 1]} : vector<1x384xf32> to vector<1x128xf32>
    %386 = vector.extract_strided_slice %374 {offsets = [0, 384], sizes = [1, 128], strides = [1, 1]} : vector<1x512xf32> to vector<1x128xf32>
    %387 = math.tanh %386 : vector<1x128xf32>
    %388 = arith.mulf %384, %372 : vector<1x128xf32>
    %389 = arith.mulf %383, %387 : vector<1x128xf32>
    %390 = arith.addf %388, %389 : vector<1x128xf32>
    %391 = math.tanh %390 : vector<1x128xf32>
    %392 = arith.mulf %385, %391 : vector<1x128xf32>
    %cst_94 = arith.constant dense<0.000000e+00> : vector<1x512xf32>
    %393 = tpu.matmul %392, %367, %cst_94 {dimension_numbers = #tpu.dot_dimension_numbers<[1], [0], [0], [1], [0, 0, 1, 1], [], []>} : vector<1x128xf32>, vector<128x512xf32>, vector<1x512xf32> -> vector<1x512xf32>
    %394 = arith.addf %370, %393 : vector<1x512xf32>
    %395 = vector.extract_strided_slice %394 {offsets = [0, 0], sizes = [1, 384], strides = [1, 1]} : vector<1x512xf32> to vector<1x384xf32>
    %cst_95 = arith.constant 5.000000e-01 : f32
    %396 = vector.broadcast %cst_95 : f32 to vector<1x384xf32>
    %397 = arith.mulf %396, %395 : vector<1x384xf32>
    %398 = math.tanh %397 : vector<1x384xf32>
    %cst_96 = arith.constant 5.000000e-01 : f32
    %399 = vector.broadcast %cst_96 : f32 to vector<1x384xf32>
    %400 = arith.mulf %399, %398 : vector<1x384xf32>
    %cst_97 = arith.constant 5.000000e-01 : f32
    %401 = vector.broadcast %cst_97 : f32 to vector<1x384xf32>
    %402 = arith.addf %400, %401 : vector<1x384xf32>
    %403 = vector.extract_strided_slice %402 {offsets = [0, 0], sizes = [1, 128], strides = [1, 1]} : vector<1x384xf32> to vector<1x128xf32>
    %404 = vector.extract_strided_slice %402 {offsets = [0, 128], sizes = [1, 128], strides = [1, 1]} : vector<1x384xf32> to vector<1x128xf32>
    %405 = vector.extract_strided_slice %402 {offsets = [0, 256], sizes = [1, 128], strides = [1, 1]} : vector<1x384xf32> to vector<1x128xf32>
    %406 = vector.extract_strided_slice %394 {offsets = [0, 384], sizes = [1, 128], strides = [1, 1]} : vector<1x512xf32> to vector<1x128xf32>
    %407 = math.tanh %406 : vector<1x128xf32>
    %408 = arith.mulf %404, %390 : vector<1x128xf32>
    %409 = arith.mulf %403, %407 : vector<1x128xf32>
    %410 = arith.addf %408, %409 : vector<1x128xf32>
    %411 = math.tanh %410 : vector<1x128xf32>
    %412 = arith.mulf %405, %411 : vector<1x128xf32>
    %cst_98 = arith.constant dense<0.000000e+00> : vector<1x512xf32>
    %413 = tpu.matmul %412, %367, %cst_98 {dimension_numbers = #tpu.dot_dimension_numbers<[1], [0], [0], [1], [0, 0, 1, 1], [], []>} : vector<1x128xf32>, vector<128x512xf32>, vector<1x512xf32> -> vector<1x512xf32>
    %414 = arith.addf %370, %413 : vector<1x512xf32>
    %415 = vector.extract_strided_slice %414 {offsets = [0, 0], sizes = [1, 384], strides = [1, 1]} : vector<1x512xf32> to vector<1x384xf32>
    %cst_99 = arith.constant 5.000000e-01 : f32
    %416 = vector.broadcast %cst_99 : f32 to vector<1x384xf32>
    %417 = arith.mulf %416, %415 : vector<1x384xf32>
    %418 = math.tanh %417 : vector<1x384xf32>
    %cst_100 = arith.constant 5.000000e-01 : f32
    %419 = vector.broadcast %cst_100 : f32 to vector<1x384xf32>
    %420 = arith.mulf %419, %418 : vector<1x384xf32>
    %cst_101 = arith.constant 5.000000e-01 : f32
    %421 = vector.broadcast %cst_101 : f32 to vector<1x384xf32>
    %422 = arith.addf %420, %421 : vector<1x384xf32>
    %423 = vector.extract_strided_slice %422 {offsets = [0, 0], sizes = [1, 128], strides = [1, 1]} : vector<1x384xf32> to vector<1x128xf32>
    %424 = vector.extract_strided_slice %422 {offsets = [0, 128], sizes = [1, 128], strides = [1, 1]} : vector<1x384xf32> to vector<1x128xf32>
    %425 = vector.extract_strided_slice %422 {offsets = [0, 256], sizes = [1, 128], strides = [1, 1]} : vector<1x384xf32> to vector<1x128xf32>
    %426 = vector.extract_strided_slice %414 {offsets = [0, 384], sizes = [1, 128], strides = [1, 1]} : vector<1x512xf32> to vector<1x128xf32>
    %427 = math.tanh %426 : vector<1x128xf32>
    %428 = arith.mulf %424, %410 : vector<1x128xf32>
    %429 = arith.mulf %423, %427 : vector<1x128xf32>
    %430 = arith.addf %428, %429 : vector<1x128xf32>
    %431 = math.tanh %430 : vector<1x128xf32>
    %432 = arith.mulf %425, %431 : vector<1x128xf32>
    %cst_102 = arith.constant dense<0.000000e+00> : vector<1x512xf32>
    %433 = tpu.matmul %432, %367, %cst_102 {dimension_numbers = #tpu.dot_dimension_numbers<[1], [0], [0], [1], [0, 0, 1, 1], [], []>} : vector<1x128xf32>, vector<128x512xf32>, vector<1x512xf32> -> vector<1x512xf32>
    %434 = arith.addf %370, %433 : vector<1x512xf32>
    %435 = vector.extract_strided_slice %434 {offsets = [0, 0], sizes = [1, 384], strides = [1, 1]} : vector<1x512xf32> to vector<1x384xf32>
    %cst_103 = arith.constant 5.000000e-01 : f32
    %436 = vector.broadcast %cst_103 : f32 to vector<1x384xf32>
    %437 = arith.mulf %436, %435 : vector<1x384xf32>
    %438 = math.tanh %437 : vector<1x384xf32>
    %cst_104 = arith.constant 5.000000e-01 : f32
    %439 = vector.broadcast %cst_104 : f32 to vector<1x384xf32>
    %440 = arith.mulf %439, %438 : vector<1x384xf32>
    %cst_105 = arith.constant 5.000000e-01 : f32
    %441 = vector.broadcast %cst_105 : f32 to vector<1x384xf32>
    %442 = arith.addf %440, %441 : vector<1x384xf32>
    %443 = vector.extract_strided_slice %442 {offsets = [0, 0], sizes = [1, 128], strides = [1, 1]} : vector<1x384xf32> to vector<1x128xf32>
    %444 = vector.extract_strided_slice %442 {offsets = [0, 128], sizes = [1, 128], strides = [1, 1]} : vector<1x384xf32> to vector<1x128xf32>
    %445 = vector.extract_strided_slice %442 {offsets = [0, 256], sizes = [1, 128], strides = [1, 1]} : vector<1x384xf32> to vector<1x128xf32>
    %446 = vector.extract_strided_slice %434 {offsets = [0, 384], sizes = [1, 128], strides = [1, 1]} : vector<1x512xf32> to vector<1x128xf32>
    %447 = math.tanh %446 : vector<1x128xf32>
    %448 = arith.mulf %444, %430 : vector<1x128xf32>
    %449 = arith.mulf %443, %447 : vector<1x128xf32>
    %450 = arith.addf %448, %449 : vector<1x128xf32>
    %451 = math.tanh %450 : vector<1x128xf32>
    %452 = arith.mulf %445, %451 : vector<1x128xf32>
    %cst_106 = arith.constant dense<0.000000e+00> : vector<1x512xf32>
    %453 = tpu.matmul %452, %367, %cst_106 {dimension_numbers = #tpu.dot_dimension_numbers<[1], [0], [0], [1], [0, 0, 1, 1], [], []>} : vector<1x128xf32>, vector<128x512xf32>, vector<1x512xf32> -> vector<1x512xf32>
    %454 = arith.addf %370, %453 : vector<1x512xf32>
    %455 = vector.extract_strided_slice %454 {offsets = [0, 0], sizes = [1, 384], strides = [1, 1]} : vector<1x512xf32> to vector<1x384xf32>
    %cst_107 = arith.constant 5.000000e-01 : f32
    %456 = vector.broadcast %cst_107 : f32 to vector<1x384xf32>
    %457 = arith.mulf %456, %455 : vector<1x384xf32>
    %458 = math.tanh %457 : vector<1x384xf32>
    %cst_108 = arith.constant 5.000000e-01 : f32
    %459 = vector.broadcast %cst_108 : f32 to vector<1x384xf32>
    %460 = arith.mulf %459, %458 : vector<1x384xf32>
    %cst_109 = arith.constant 5.000000e-01 : f32
    %461 = vector.broadcast %cst_109 : f32 to vector<1x384xf32>
    %462 = arith.addf %460, %461 : vector<1x384xf32>
    %463 = vector.extract_strided_slice %462 {offsets = [0, 0], sizes = [1, 128], strides = [1, 1]} : vector<1x384xf32> to vector<1x128xf32>
    %464 = vector.extract_strided_slice %462 {offsets = [0, 128], sizes = [1, 128], strides = [1, 1]} : vector<1x384xf32> to vector<1x128xf32>
    %465 = vector.extract_strided_slice %462 {offsets = [0, 256], sizes = [1, 128], strides = [1, 1]} : vector<1x384xf32> to vector<1x128xf32>
    %466 = vector.extract_strided_slice %454 {offsets = [0, 384], sizes = [1, 128], strides = [1, 1]} : vector<1x512xf32> to vector<1x128xf32>
    %467 = math.tanh %466 : vector<1x128xf32>
    %468 = arith.mulf %464, %450 : vector<1x128xf32>
    %469 = arith.mulf %463, %467 : vector<1x128xf32>
    %470 = arith.addf %468, %469 : vector<1x128xf32>
    %471 = math.tanh %470 : vector<1x128xf32>
    %472 = arith.mulf %465, %471 : vector<1x128xf32>
    %cst_110 = arith.constant dense<0.000000e+00> : vector<1x512xf32>
    %473 = tpu.matmul %472, %367, %cst_110 {dimension_numbers = #tpu.dot_dimension_numbers<[1], [0], [0], [1], [0, 0, 1, 1], [], []>} : vector<1x128xf32>, vector<128x512xf32>, vector<1x512xf32> -> vector<1x512xf32>
    %474 = arith.addf %370, %473 : vector<1x512xf32>
    %475 = vector.extract_strided_slice %474 {offsets = [0, 0], sizes = [1, 384], strides = [1, 1]} : vector<1x512xf32> to vector<1x384xf32>
    %cst_111 = arith.constant 5.000000e-01 : f32
    %476 = vector.broadcast %cst_111 : f32 to vector<1x384xf32>
    %477 = arith.mulf %476, %475 : vector<1x384xf32>
    %478 = math.tanh %477 : vector<1x384xf32>
    %cst_112 = arith.constant 5.000000e-01 : f32
    %479 = vector.broadcast %cst_112 : f32 to vector<1x384xf32>
    %480 = arith.mulf %479, %478 : vector<1x384xf32>
    %cst_113 = arith.constant 5.000000e-01 : f32
    %481 = vector.broadcast %cst_113 : f32 to vector<1x384xf32>
    %482 = arith.addf %480, %481 : vector<1x384xf32>
    %483 = vector.extract_strided_slice %482 {offsets = [0, 0], sizes = [1, 128], strides = [1, 1]} : vector<1x384xf32> to vector<1x128xf32>
    %484 = vector.extract_strided_slice %482 {offsets = [0, 128], sizes = [1, 128], strides = [1, 1]} : vector<1x384xf32> to vector<1x128xf32>
    %485 = vector.extract_strided_slice %482 {offsets = [0, 256], sizes = [1, 128], strides = [1, 1]} : vector<1x384xf32> to vector<1x128xf32>
    %486 = vector.extract_strided_slice %474 {offsets = [0, 384], sizes = [1, 128], strides = [1, 1]} : vector<1x512xf32> to vector<1x128xf32>
    %487 = math.tanh %486 : vector<1x128xf32>
    %488 = arith.mulf %484, %470 : vector<1x128xf32>
    %489 = arith.mulf %483, %487 : vector<1x128xf32>
    %490 = arith.addf %488, %489 : vector<1x128xf32>
    %491 = math.tanh %490 : vector<1x128xf32>
    %492 = arith.mulf %485, %491 : vector<1x128xf32>
    %cst_114 = arith.constant dense<0.000000e+00> : vector<1x512xf32>
    %493 = tpu.matmul %492, %367, %cst_114 {dimension_numbers = #tpu.dot_dimension_numbers<[1], [0], [0], [1], [0, 0, 1, 1], [], []>} : vector<1x128xf32>, vector<128x512xf32>, vector<1x512xf32> -> vector<1x512xf32>
    %494 = arith.addf %370, %493 : vector<1x512xf32>
    %495 = vector.extract_strided_slice %494 {offsets = [0, 0], sizes = [1, 384], strides = [1, 1]} : vector<1x512xf32> to vector<1x384xf32>
    %cst_115 = arith.constant 5.000000e-01 : f32
    %496 = vector.broadcast %cst_115 : f32 to vector<1x384xf32>
    %497 = arith.mulf %496, %495 : vector<1x384xf32>
    %498 = math.tanh %497 : vector<1x384xf32>
    %cst_116 = arith.constant 5.000000e-01 : f32
    %499 = vector.broadcast %cst_116 : f32 to vector<1x384xf32>
    %500 = arith.mulf %499, %498 : vector<1x384xf32>
    %cst_117 = arith.constant 5.000000e-01 : f32
    %501 = vector.broadcast %cst_117 : f32 to vector<1x384xf32>
    %502 = arith.addf %500, %501 : vector<1x384xf32>
    %503 = vector.extract_strided_slice %502 {offsets = [0, 0], sizes = [1, 128], strides = [1, 1]} : vector<1x384xf32> to vector<1x128xf32>
    %504 = vector.extract_strided_slice %502 {offsets = [0, 128], sizes = [1, 128], strides = [1, 1]} : vector<1x384xf32> to vector<1x128xf32>
    %505 = vector.extract_strided_slice %502 {offsets = [0, 256], sizes = [1, 128], strides = [1, 1]} : vector<1x384xf32> to vector<1x128xf32>
    %506 = vector.extract_strided_slice %494 {offsets = [0, 384], sizes = [1, 128], strides = [1, 1]} : vector<1x512xf32> to vector<1x128xf32>
    %507 = math.tanh %506 : vector<1x128xf32>
    %508 = arith.mulf %504, %490 : vector<1x128xf32>
    %509 = arith.mulf %503, %507 : vector<1x128xf32>
    %510 = arith.addf %508, %509 : vector<1x128xf32>
    %511 = math.tanh %510 : vector<1x128xf32>
    %512 = arith.mulf %505, %511 : vector<1x128xf32>
    %cst_118 = arith.constant dense<0.000000e+00> : vector<1x512xf32>
    %513 = tpu.matmul %512, %367, %cst_118 {dimension_numbers = #tpu.dot_dimension_numbers<[1], [0], [0], [1], [0, 0, 1, 1], [], []>} : vector<1x128xf32>, vector<128x512xf32>, vector<1x512xf32> -> vector<1x512xf32>
    %514 = arith.addf %370, %513 : vector<1x512xf32>
    %515 = vector.extract_strided_slice %514 {offsets = [0, 0], sizes = [1, 384], strides = [1, 1]} : vector<1x512xf32> to vector<1x384xf32>
    %cst_119 = arith.constant 5.000000e-01 : f32
    %516 = vector.broadcast %cst_119 : f32 to vector<1x384xf32>
    %517 = arith.mulf %516, %515 : vector<1x384xf32>
    %518 = math.tanh %517 : vector<1x384xf32>
    %cst_120 = arith.constant 5.000000e-01 : f32
    %519 = vector.broadcast %cst_120 : f32 to vector<1x384xf32>
    %520 = arith.mulf %519, %518 : vector<1x384xf32>
    %cst_121 = arith.constant 5.000000e-01 : f32
    %521 = vector.broadcast %cst_121 : f32 to vector<1x384xf32>
    %522 = arith.addf %520, %521 : vector<1x384xf32>
    %523 = vector.extract_strided_slice %522 {offsets = [0, 0], sizes = [1, 128], strides = [1, 1]} : vector<1x384xf32> to vector<1x128xf32>
    %524 = vector.extract_strided_slice %522 {offsets = [0, 128], sizes = [1, 128], strides = [1, 1]} : vector<1x384xf32> to vector<1x128xf32>
    %525 = vector.extract_strided_slice %522 {offsets = [0, 256], sizes = [1, 128], strides = [1, 1]} : vector<1x384xf32> to vector<1x128xf32>
    %526 = vector.extract_strided_slice %514 {offsets = [0, 384], sizes = [1, 128], strides = [1, 1]} : vector<1x512xf32> to vector<1x128xf32>
    %527 = math.tanh %526 : vector<1x128xf32>
    %528 = arith.mulf %524, %510 : vector<1x128xf32>
    %529 = arith.mulf %523, %527 : vector<1x128xf32>
    %530 = arith.addf %528, %529 : vector<1x128xf32>
    %531 = math.tanh %530 : vector<1x128xf32>
    %532 = arith.mulf %525, %531 : vector<1x128xf32>
    %533 = tpu.concatenate %392, %412, %432, %452, %472, %492, %512, %532 in 0 : vector<1x128xf32>, vector<1x128xf32>, vector<1x128xf32>, vector<1x128xf32>, vector<1x128xf32>, vector<1x128xf32>, vector<1x128xf32>, vector<1x128xf32> -> vector<8x128xf32>
    %c0_122 = arith.constant 0 : index
    %c0_123 = arith.constant 0 : index
    %534 = vector.load %arg8[%c0_122, %c0_123] : memref<264x512xf32, #tpu.memory_space<vmem>>, vector<128x512xf32>
    %c128_124 = arith.constant 128 : index
    %c0_125 = arith.constant 0 : index
    %535 = vector.load %arg8[%c128_124, %c0_125] : memref<264x512xf32, #tpu.memory_space<vmem>>, vector<128x512xf32>
    %c256_126 = arith.constant 256 : index
    %c0_127 = arith.constant 0 : index
    %536 = vector.load %arg8[%c256_126, %c0_127] : memref<264x512xf32, #tpu.memory_space<vmem>>, vector<1x512xf32>
    %cst_128 = arith.constant dense<0.000000e+00> : vector<8x512xf32>
    %537 = tpu.matmul %533, %534, %cst_128 {dimension_numbers = #tpu.dot_dimension_numbers<[1], [0], [0], [1], [0, 0, 1, 1], [], []>} : vector<8x128xf32>, vector<128x512xf32>, vector<8x512xf32> -> vector<8x512xf32>
    %538 = vector.broadcast %536 : vector<1x512xf32> to vector<8x512xf32>
    %539 = arith.addf %537, %538 : vector<8x512xf32>
    %540 = vector.extract_strided_slice %539 {offsets = [0, 0], sizes = [1, 512], strides = [1, 1]} : vector<8x512xf32> to vector<1x512xf32>
    %541 = vector.extract_strided_slice %539 {offsets = [1, 0], sizes = [1, 512], strides = [1, 1]} : vector<8x512xf32> to vector<1x512xf32>
    %542 = vector.extract_strided_slice %539 {offsets = [2, 0], sizes = [1, 512], strides = [1, 1]} : vector<8x512xf32> to vector<1x512xf32>
    %543 = vector.extract_strided_slice %539 {offsets = [3, 0], sizes = [1, 512], strides = [1, 1]} : vector<8x512xf32> to vector<1x512xf32>
    %544 = vector.extract_strided_slice %539 {offsets = [4, 0], sizes = [1, 512], strides = [1, 1]} : vector<8x512xf32> to vector<1x512xf32>
    %545 = vector.extract_strided_slice %539 {offsets = [5, 0], sizes = [1, 512], strides = [1, 1]} : vector<8x512xf32> to vector<1x512xf32>
    %546 = vector.extract_strided_slice %539 {offsets = [6, 0], sizes = [1, 512], strides = [1, 1]} : vector<8x512xf32> to vector<1x512xf32>
    %547 = vector.extract_strided_slice %539 {offsets = [7, 0], sizes = [1, 512], strides = [1, 1]} : vector<8x512xf32> to vector<1x512xf32>
    %cst_129 = arith.constant 0.000000e+00 : f32
    %548 = vector.broadcast %cst_129 : f32 to vector<1x128xf32>
    %cst_130 = arith.constant 0.000000e+00 : f32
    %549 = vector.broadcast %cst_130 : f32 to vector<1x128xf32>
    %cst_131 = arith.constant dense<0.000000e+00> : vector<1x512xf32>
    %550 = tpu.matmul %548, %535, %cst_131 {dimension_numbers = #tpu.dot_dimension_numbers<[1], [0], [0], [1], [0, 0, 1, 1], [], []>} : vector<1x128xf32>, vector<128x512xf32>, vector<1x512xf32> -> vector<1x512xf32>
    %551 = arith.addf %540, %550 : vector<1x512xf32>
    %552 = vector.extract_strided_slice %551 {offsets = [0, 0], sizes = [1, 384], strides = [1, 1]} : vector<1x512xf32> to vector<1x384xf32>
    %cst_132 = arith.constant 5.000000e-01 : f32
    %553 = vector.broadcast %cst_132 : f32 to vector<1x384xf32>
    %554 = arith.mulf %553, %552 : vector<1x384xf32>
    %555 = math.tanh %554 : vector<1x384xf32>
    %cst_133 = arith.constant 5.000000e-01 : f32
    %556 = vector.broadcast %cst_133 : f32 to vector<1x384xf32>
    %557 = arith.mulf %556, %555 : vector<1x384xf32>
    %cst_134 = arith.constant 5.000000e-01 : f32
    %558 = vector.broadcast %cst_134 : f32 to vector<1x384xf32>
    %559 = arith.addf %557, %558 : vector<1x384xf32>
    %560 = vector.extract_strided_slice %559 {offsets = [0, 0], sizes = [1, 128], strides = [1, 1]} : vector<1x384xf32> to vector<1x128xf32>
    %561 = vector.extract_strided_slice %559 {offsets = [0, 128], sizes = [1, 128], strides = [1, 1]} : vector<1x384xf32> to vector<1x128xf32>
    %562 = vector.extract_strided_slice %559 {offsets = [0, 256], sizes = [1, 128], strides = [1, 1]} : vector<1x384xf32> to vector<1x128xf32>
    %563 = vector.extract_strided_slice %551 {offsets = [0, 384], sizes = [1, 128], strides = [1, 1]} : vector<1x512xf32> to vector<1x128xf32>
    %564 = math.tanh %563 : vector<1x128xf32>
    %565 = arith.mulf %561, %549 : vector<1x128xf32>
    %566 = arith.mulf %560, %564 : vector<1x128xf32>
    %567 = arith.addf %565, %566 : vector<1x128xf32>
    %568 = math.tanh %567 : vector<1x128xf32>
    %569 = arith.mulf %562, %568 : vector<1x128xf32>
    %cst_135 = arith.constant dense<0.000000e+00> : vector<1x512xf32>
    %570 = tpu.matmul %569, %535, %cst_135 {dimension_numbers = #tpu.dot_dimension_numbers<[1], [0], [0], [1], [0, 0, 1, 1], [], []>} : vector<1x128xf32>, vector<128x512xf32>, vector<1x512xf32> -> vector<1x512xf32>
    %571 = arith.addf %541, %570 : vector<1x512xf32>
    %572 = vector.extract_strided_slice %571 {offsets = [0, 0], sizes = [1, 384], strides = [1, 1]} : vector<1x512xf32> to vector<1x384xf32>
    %cst_136 = arith.constant 5.000000e-01 : f32
    %573 = vector.broadcast %cst_136 : f32 to vector<1x384xf32>
    %574 = arith.mulf %573, %572 : vector<1x384xf32>
    %575 = math.tanh %574 : vector<1x384xf32>
    %cst_137 = arith.constant 5.000000e-01 : f32
    %576 = vector.broadcast %cst_137 : f32 to vector<1x384xf32>
    %577 = arith.mulf %576, %575 : vector<1x384xf32>
    %cst_138 = arith.constant 5.000000e-01 : f32
    %578 = vector.broadcast %cst_138 : f32 to vector<1x384xf32>
    %579 = arith.addf %577, %578 : vector<1x384xf32>
    %580 = vector.extract_strided_slice %579 {offsets = [0, 0], sizes = [1, 128], strides = [1, 1]} : vector<1x384xf32> to vector<1x128xf32>
    %581 = vector.extract_strided_slice %579 {offsets = [0, 128], sizes = [1, 128], strides = [1, 1]} : vector<1x384xf32> to vector<1x128xf32>
    %582 = vector.extract_strided_slice %579 {offsets = [0, 256], sizes = [1, 128], strides = [1, 1]} : vector<1x384xf32> to vector<1x128xf32>
    %583 = vector.extract_strided_slice %571 {offsets = [0, 384], sizes = [1, 128], strides = [1, 1]} : vector<1x512xf32> to vector<1x128xf32>
    %584 = math.tanh %583 : vector<1x128xf32>
    %585 = arith.mulf %581, %567 : vector<1x128xf32>
    %586 = arith.mulf %580, %584 : vector<1x128xf32>
    %587 = arith.addf %585, %586 : vector<1x128xf32>
    %588 = math.tanh %587 : vector<1x128xf32>
    %589 = arith.mulf %582, %588 : vector<1x128xf32>
    %cst_139 = arith.constant dense<0.000000e+00> : vector<1x512xf32>
    %590 = tpu.matmul %589, %535, %cst_139 {dimension_numbers = #tpu.dot_dimension_numbers<[1], [0], [0], [1], [0, 0, 1, 1], [], []>} : vector<1x128xf32>, vector<128x512xf32>, vector<1x512xf32> -> vector<1x512xf32>
    %591 = arith.addf %542, %590 : vector<1x512xf32>
    %592 = vector.extract_strided_slice %591 {offsets = [0, 0], sizes = [1, 384], strides = [1, 1]} : vector<1x512xf32> to vector<1x384xf32>
    %cst_140 = arith.constant 5.000000e-01 : f32
    %593 = vector.broadcast %cst_140 : f32 to vector<1x384xf32>
    %594 = arith.mulf %593, %592 : vector<1x384xf32>
    %595 = math.tanh %594 : vector<1x384xf32>
    %cst_141 = arith.constant 5.000000e-01 : f32
    %596 = vector.broadcast %cst_141 : f32 to vector<1x384xf32>
    %597 = arith.mulf %596, %595 : vector<1x384xf32>
    %cst_142 = arith.constant 5.000000e-01 : f32
    %598 = vector.broadcast %cst_142 : f32 to vector<1x384xf32>
    %599 = arith.addf %597, %598 : vector<1x384xf32>
    %600 = vector.extract_strided_slice %599 {offsets = [0, 0], sizes = [1, 128], strides = [1, 1]} : vector<1x384xf32> to vector<1x128xf32>
    %601 = vector.extract_strided_slice %599 {offsets = [0, 128], sizes = [1, 128], strides = [1, 1]} : vector<1x384xf32> to vector<1x128xf32>
    %602 = vector.extract_strided_slice %599 {offsets = [0, 256], sizes = [1, 128], strides = [1, 1]} : vector<1x384xf32> to vector<1x128xf32>
    %603 = vector.extract_strided_slice %591 {offsets = [0, 384], sizes = [1, 128], strides = [1, 1]} : vector<1x512xf32> to vector<1x128xf32>
    %604 = math.tanh %603 : vector<1x128xf32>
    %605 = arith.mulf %601, %587 : vector<1x128xf32>
    %606 = arith.mulf %600, %604 : vector<1x128xf32>
    %607 = arith.addf %605, %606 : vector<1x128xf32>
    %608 = math.tanh %607 : vector<1x128xf32>
    %609 = arith.mulf %602, %608 : vector<1x128xf32>
    %cst_143 = arith.constant dense<0.000000e+00> : vector<1x512xf32>
    %610 = tpu.matmul %609, %535, %cst_143 {dimension_numbers = #tpu.dot_dimension_numbers<[1], [0], [0], [1], [0, 0, 1, 1], [], []>} : vector<1x128xf32>, vector<128x512xf32>, vector<1x512xf32> -> vector<1x512xf32>
    %611 = arith.addf %543, %610 : vector<1x512xf32>
    %612 = vector.extract_strided_slice %611 {offsets = [0, 0], sizes = [1, 384], strides = [1, 1]} : vector<1x512xf32> to vector<1x384xf32>
    %cst_144 = arith.constant 5.000000e-01 : f32
    %613 = vector.broadcast %cst_144 : f32 to vector<1x384xf32>
    %614 = arith.mulf %613, %612 : vector<1x384xf32>
    %615 = math.tanh %614 : vector<1x384xf32>
    %cst_145 = arith.constant 5.000000e-01 : f32
    %616 = vector.broadcast %cst_145 : f32 to vector<1x384xf32>
    %617 = arith.mulf %616, %615 : vector<1x384xf32>
    %cst_146 = arith.constant 5.000000e-01 : f32
    %618 = vector.broadcast %cst_146 : f32 to vector<1x384xf32>
    %619 = arith.addf %617, %618 : vector<1x384xf32>
    %620 = vector.extract_strided_slice %619 {offsets = [0, 0], sizes = [1, 128], strides = [1, 1]} : vector<1x384xf32> to vector<1x128xf32>
    %621 = vector.extract_strided_slice %619 {offsets = [0, 128], sizes = [1, 128], strides = [1, 1]} : vector<1x384xf32> to vector<1x128xf32>
    %622 = vector.extract_strided_slice %619 {offsets = [0, 256], sizes = [1, 128], strides = [1, 1]} : vector<1x384xf32> to vector<1x128xf32>
    %623 = vector.extract_strided_slice %611 {offsets = [0, 384], sizes = [1, 128], strides = [1, 1]} : vector<1x512xf32> to vector<1x128xf32>
    %624 = math.tanh %623 : vector<1x128xf32>
    %625 = arith.mulf %621, %607 : vector<1x128xf32>
    %626 = arith.mulf %620, %624 : vector<1x128xf32>
    %627 = arith.addf %625, %626 : vector<1x128xf32>
    %628 = math.tanh %627 : vector<1x128xf32>
    %629 = arith.mulf %622, %628 : vector<1x128xf32>
    %cst_147 = arith.constant dense<0.000000e+00> : vector<1x512xf32>
    %630 = tpu.matmul %629, %535, %cst_147 {dimension_numbers = #tpu.dot_dimension_numbers<[1], [0], [0], [1], [0, 0, 1, 1], [], []>} : vector<1x128xf32>, vector<128x512xf32>, vector<1x512xf32> -> vector<1x512xf32>
    %631 = arith.addf %544, %630 : vector<1x512xf32>
    %632 = vector.extract_strided_slice %631 {offsets = [0, 0], sizes = [1, 384], strides = [1, 1]} : vector<1x512xf32> to vector<1x384xf32>
    %cst_148 = arith.constant 5.000000e-01 : f32
    %633 = vector.broadcast %cst_148 : f32 to vector<1x384xf32>
    %634 = arith.mulf %633, %632 : vector<1x384xf32>
    %635 = math.tanh %634 : vector<1x384xf32>
    %cst_149 = arith.constant 5.000000e-01 : f32
    %636 = vector.broadcast %cst_149 : f32 to vector<1x384xf32>
    %637 = arith.mulf %636, %635 : vector<1x384xf32>
    %cst_150 = arith.constant 5.000000e-01 : f32
    %638 = vector.broadcast %cst_150 : f32 to vector<1x384xf32>
    %639 = arith.addf %637, %638 : vector<1x384xf32>
    %640 = vector.extract_strided_slice %639 {offsets = [0, 0], sizes = [1, 128], strides = [1, 1]} : vector<1x384xf32> to vector<1x128xf32>
    %641 = vector.extract_strided_slice %639 {offsets = [0, 128], sizes = [1, 128], strides = [1, 1]} : vector<1x384xf32> to vector<1x128xf32>
    %642 = vector.extract_strided_slice %639 {offsets = [0, 256], sizes = [1, 128], strides = [1, 1]} : vector<1x384xf32> to vector<1x128xf32>
    %643 = vector.extract_strided_slice %631 {offsets = [0, 384], sizes = [1, 128], strides = [1, 1]} : vector<1x512xf32> to vector<1x128xf32>
    %644 = math.tanh %643 : vector<1x128xf32>
    %645 = arith.mulf %641, %627 : vector<1x128xf32>
    %646 = arith.mulf %640, %644 : vector<1x128xf32>
    %647 = arith.addf %645, %646 : vector<1x128xf32>
    %648 = math.tanh %647 : vector<1x128xf32>
    %649 = arith.mulf %642, %648 : vector<1x128xf32>
    %cst_151 = arith.constant dense<0.000000e+00> : vector<1x512xf32>
    %650 = tpu.matmul %649, %535, %cst_151 {dimension_numbers = #tpu.dot_dimension_numbers<[1], [0], [0], [1], [0, 0, 1, 1], [], []>} : vector<1x128xf32>, vector<128x512xf32>, vector<1x512xf32> -> vector<1x512xf32>
    %651 = arith.addf %545, %650 : vector<1x512xf32>
    %652 = vector.extract_strided_slice %651 {offsets = [0, 0], sizes = [1, 384], strides = [1, 1]} : vector<1x512xf32> to vector<1x384xf32>
    %cst_152 = arith.constant 5.000000e-01 : f32
    %653 = vector.broadcast %cst_152 : f32 to vector<1x384xf32>
    %654 = arith.mulf %653, %652 : vector<1x384xf32>
    %655 = math.tanh %654 : vector<1x384xf32>
    %cst_153 = arith.constant 5.000000e-01 : f32
    %656 = vector.broadcast %cst_153 : f32 to vector<1x384xf32>
    %657 = arith.mulf %656, %655 : vector<1x384xf32>
    %cst_154 = arith.constant 5.000000e-01 : f32
    %658 = vector.broadcast %cst_154 : f32 to vector<1x384xf32>
    %659 = arith.addf %657, %658 : vector<1x384xf32>
    %660 = vector.extract_strided_slice %659 {offsets = [0, 0], sizes = [1, 128], strides = [1, 1]} : vector<1x384xf32> to vector<1x128xf32>
    %661 = vector.extract_strided_slice %659 {offsets = [0, 128], sizes = [1, 128], strides = [1, 1]} : vector<1x384xf32> to vector<1x128xf32>
    %662 = vector.extract_strided_slice %659 {offsets = [0, 256], sizes = [1, 128], strides = [1, 1]} : vector<1x384xf32> to vector<1x128xf32>
    %663 = vector.extract_strided_slice %651 {offsets = [0, 384], sizes = [1, 128], strides = [1, 1]} : vector<1x512xf32> to vector<1x128xf32>
    %664 = math.tanh %663 : vector<1x128xf32>
    %665 = arith.mulf %661, %647 : vector<1x128xf32>
    %666 = arith.mulf %660, %664 : vector<1x128xf32>
    %667 = arith.addf %665, %666 : vector<1x128xf32>
    %668 = math.tanh %667 : vector<1x128xf32>
    %669 = arith.mulf %662, %668 : vector<1x128xf32>
    %cst_155 = arith.constant dense<0.000000e+00> : vector<1x512xf32>
    %670 = tpu.matmul %669, %535, %cst_155 {dimension_numbers = #tpu.dot_dimension_numbers<[1], [0], [0], [1], [0, 0, 1, 1], [], []>} : vector<1x128xf32>, vector<128x512xf32>, vector<1x512xf32> -> vector<1x512xf32>
    %671 = arith.addf %546, %670 : vector<1x512xf32>
    %672 = vector.extract_strided_slice %671 {offsets = [0, 0], sizes = [1, 384], strides = [1, 1]} : vector<1x512xf32> to vector<1x384xf32>
    %cst_156 = arith.constant 5.000000e-01 : f32
    %673 = vector.broadcast %cst_156 : f32 to vector<1x384xf32>
    %674 = arith.mulf %673, %672 : vector<1x384xf32>
    %675 = math.tanh %674 : vector<1x384xf32>
    %cst_157 = arith.constant 5.000000e-01 : f32
    %676 = vector.broadcast %cst_157 : f32 to vector<1x384xf32>
    %677 = arith.mulf %676, %675 : vector<1x384xf32>
    %cst_158 = arith.constant 5.000000e-01 : f32
    %678 = vector.broadcast %cst_158 : f32 to vector<1x384xf32>
    %679 = arith.addf %677, %678 : vector<1x384xf32>
    %680 = vector.extract_strided_slice %679 {offsets = [0, 0], sizes = [1, 128], strides = [1, 1]} : vector<1x384xf32> to vector<1x128xf32>
    %681 = vector.extract_strided_slice %679 {offsets = [0, 128], sizes = [1, 128], strides = [1, 1]} : vector<1x384xf32> to vector<1x128xf32>
    %682 = vector.extract_strided_slice %679 {offsets = [0, 256], sizes = [1, 128], strides = [1, 1]} : vector<1x384xf32> to vector<1x128xf32>
    %683 = vector.extract_strided_slice %671 {offsets = [0, 384], sizes = [1, 128], strides = [1, 1]} : vector<1x512xf32> to vector<1x128xf32>
    %684 = math.tanh %683 : vector<1x128xf32>
    %685 = arith.mulf %681, %667 : vector<1x128xf32>
    %686 = arith.mulf %680, %684 : vector<1x128xf32>
    %687 = arith.addf %685, %686 : vector<1x128xf32>
    %688 = math.tanh %687 : vector<1x128xf32>
    %689 = arith.mulf %682, %688 : vector<1x128xf32>
    %cst_159 = arith.constant dense<0.000000e+00> : vector<1x512xf32>
    %690 = tpu.matmul %689, %535, %cst_159 {dimension_numbers = #tpu.dot_dimension_numbers<[1], [0], [0], [1], [0, 0, 1, 1], [], []>} : vector<1x128xf32>, vector<128x512xf32>, vector<1x512xf32> -> vector<1x512xf32>
    %691 = arith.addf %547, %690 : vector<1x512xf32>
    %692 = vector.extract_strided_slice %691 {offsets = [0, 0], sizes = [1, 384], strides = [1, 1]} : vector<1x512xf32> to vector<1x384xf32>
    %cst_160 = arith.constant 5.000000e-01 : f32
    %693 = vector.broadcast %cst_160 : f32 to vector<1x384xf32>
    %694 = arith.mulf %693, %692 : vector<1x384xf32>
    %695 = math.tanh %694 : vector<1x384xf32>
    %cst_161 = arith.constant 5.000000e-01 : f32
    %696 = vector.broadcast %cst_161 : f32 to vector<1x384xf32>
    %697 = arith.mulf %696, %695 : vector<1x384xf32>
    %cst_162 = arith.constant 5.000000e-01 : f32
    %698 = vector.broadcast %cst_162 : f32 to vector<1x384xf32>
    %699 = arith.addf %697, %698 : vector<1x384xf32>
    %700 = vector.extract_strided_slice %699 {offsets = [0, 0], sizes = [1, 128], strides = [1, 1]} : vector<1x384xf32> to vector<1x128xf32>
    %701 = vector.extract_strided_slice %699 {offsets = [0, 128], sizes = [1, 128], strides = [1, 1]} : vector<1x384xf32> to vector<1x128xf32>
    %702 = vector.extract_strided_slice %699 {offsets = [0, 256], sizes = [1, 128], strides = [1, 1]} : vector<1x384xf32> to vector<1x128xf32>
    %703 = vector.extract_strided_slice %691 {offsets = [0, 384], sizes = [1, 128], strides = [1, 1]} : vector<1x512xf32> to vector<1x128xf32>
    %704 = math.tanh %703 : vector<1x128xf32>
    %705 = arith.mulf %701, %687 : vector<1x128xf32>
    %706 = arith.mulf %700, %704 : vector<1x128xf32>
    %707 = arith.addf %705, %706 : vector<1x128xf32>
    %708 = math.tanh %707 : vector<1x128xf32>
    %709 = arith.mulf %702, %708 : vector<1x128xf32>
    %710 = tpu.concatenate %569, %589, %609, %629, %649, %669, %689, %709 in 0 : vector<1x128xf32>, vector<1x128xf32>, vector<1x128xf32>, vector<1x128xf32>, vector<1x128xf32>, vector<1x128xf32>, vector<1x128xf32>, vector<1x128xf32> -> vector<8x128xf32>
    %c0_163 = arith.constant 0 : index
    %c0_164 = arith.constant 0 : index
    %711 = vector.load %arg9[%c0_163, %c0_164] : memref<8x128xf32, #tpu.memory_space<vmem>>, vector<1x128xf32>
    %c1 = arith.constant 1 : index
    %c0_165 = arith.constant 0 : index
    %712 = vector.load %arg9[%c1, %c0_165] : memref<8x128xf32, #tpu.memory_space<vmem>>, vector<1x1xf32>
    %713 = vector.broadcast %711 : vector<1x128xf32> to vector<8x128xf32>
    %714 = arith.mulf %710, %713 : vector<8x128xf32>
    %cst_166 = arith.constant dense<0.000000e+00> : vector<8xf32>
    %715 = vector.multi_reduction <add>, %714, %cst_166 [1] : vector<8x128xf32> to vector<8xf32>
    %716 = vector.shape_cast %715 : vector<8xf32> to vector<8x1xf32>
    %717 = vector.broadcast %712 : vector<1x1xf32> to vector<8x1xf32>
    %718 = arith.addf %716, %717 : vector<8x1xf32>
    %c0_167 = arith.constant 0 : index
    %c0_168 = arith.constant 0 : index
    %719 = vector.load %arg6[%c0_167, %c0_168] : memref<8x1xf32, #tpu.memory_space<vmem>>, vector<8x1xf32>
    tpu.vector_store %arg6[%c0_167, %c0_168], %718 {strides = array<i32>} : memref<8x1xf32, #tpu.memory_space<vmem>>, vector<8x1xf32>,
    return
  }
}

</mosaic_0001>

<llo_original>
// kernel: recurrent_autoencoder.1
$region0: #{recurrent_autoencoder.1}
  #allocation0 [shape = 'u32[]', space=smem, size = 0x4, offset = 0x4, fixed_abs, tag = 'smem constant byte address 0x4 - core index']
  #allocation1 [shape = 'u32[144,128]{1,0:T(1,128)}', space=vmem, size = 0x12000, scoped, tag = 'internal scratch']
  #allocation2 [shape = 'f32[264,512]{1,0:T(8,128)}', space=vmem, size = 0x84000, scoped, tag = 'scratch operand']
  #allocation3 [shape = 'f32[264,512]{1,0:T(8,128)}', space=vmem, size = 0x84000, scoped, tag = 'scratch operand']
  #allocation4 [shape = 'f32[8,128]{1,0:T(8,128)}', space=vmem, size = 0x1000, scoped, tag = 'scratch operand']
  #allocation5 [shape = 's32[3]{0}', space=sflag, size = 0xc, scoped, tag = 'scratch operand']
  #allocation6 [shape = 's32[]', space=sflag, size = 0x4, offset = 0, fixed_abs, tag = 'sflag constant byte address 0x0 - dummy sync flag']
  #allocation7 [shape = 's32[]', space=sflag, size = 0x4, offset = 0, fixed_abs, tag = 'sflag constant byte address 0x0 - dummy sync flag']
  #allocation8 [shape = 's32[]', space=sflag, size = 0x4, offset = 0, fixed_abs, tag = 'sflag constant byte address 0x0 - dummy sync flag']
  %s0 = inlined_call_operand.vmem [shape: f32[8,8], index: 0, kind: input, shape index: {}]
  %s1 = inlined_call_operand.vmem [shape: f32[144,512], index: 1, kind: input, shape index: {}]
  %s2 = inlined_call_operand.vmem [shape: f32[264,512], index: 2, kind: input, shape index: {}]
  %s3 = inlined_call_operand.vmem [shape: f32[264,512], index: 3, kind: input, shape index: {}]
  %s4 = inlined_call_operand.vmem [shape: f32[264,512], index: 4, kind: input, shape index: {}]
  %s5 = inlined_call_operand.vmem [shape: f32[8,128], index: 5, kind: input, shape index: {}]
  %s6 = inlined_call_operand.vmem [shape: f32[8,1], index: 6, kind: output, shape index: {}]
  %s7 = sld [smem:[#allocation0]]
  $region124: #{recurrent_autoencoder.1} parent=0
    _
  %s9 = ssub.s32 1, %s7
  %s10 = scalar_select 0, %s9, %s7
  // Predicated region
  $region2: #{recurrent_autoencoder.1} parent=0 // pred_check
    _
  $region3: #{recurrent_autoencoder.1} parent=0 // pred_check_branch
    %12 = sbr.rel (0) target = $region5
  $region4: #{recurrent_autoencoder.1} parent=0 // pred_region
    _
  $region5: #{recurrent_autoencoder.1} parent=0 // pred_fallthru
    _
  // Predicated region
  $region6: #{recurrent_autoencoder.1} parent=0 // pred_check
    _
  $region7: #{recurrent_autoencoder.1} parent=0 // pred_check_branch
    %14 = sbr.rel (0) target = $region9
  $region8: #{recurrent_autoencoder.1} parent=0 // pred_region
    _
  $region9: #{recurrent_autoencoder.1} parent=0 // pred_fallthru
    _
  // Predicated region
  $region10: #{recurrent_autoencoder.1} parent=0 // pred_check
    _
  $region11: #{recurrent_autoencoder.1} parent=0 // pred_check_branch
    %16 = sbr.rel (0) target = $region13
  $region12: #{recurrent_autoencoder.1} parent=0 // pred_region
    _
  $region13: #{recurrent_autoencoder.1} parent=0 // pred_fallthru
    _
  %p18 = scmp.lt.u32.totalorder 1056, 8
  %p19 = pneg %p18
  // Predicated region
  $region14: #{recurrent_autoencoder.1} parent=0 // pred_check
    _
  $region15: #{recurrent_autoencoder.1} parent=0 // pred_check_branch
    %21 = sbr.rel (%p18) target = $region17
  $region16: #{recurrent_autoencoder.1} parent=0 // pred_region
    %s36 = sand.u32 1056, 7
    %p37 = scmp.eq.s32.totalorder %s36, 0
    // Predicated region
    $region29: #{recurrent_autoencoder.1} parent=16 // pred_check
      %p38 = pneg %p37
    $region30: #{recurrent_autoencoder.1} parent=16 // pred_check_branch
      %40 = sbr.rel (%p38) target = $region32
    $region31: #{recurrent_autoencoder.1} parent=16 // pred_region
      loop: start=0, step=1, limit=1
      $region33: #{recurrent_autoencoder.1} parent=31 // loop_pre_header
        _
      $region34: #{recurrent_autoencoder.1} parent=31 // loop_header
        %s42 = sphi 0, %s46
        %p43 = scmp.ge.s32.totalorder %s42, 1
        %s47 = sphi %s3, %s3
        %s48 = sphi [#allocation2], [#allocation2]
      $region35: #{recurrent_autoencoder.1} parent=31 // loop_header_branch
        %45 = sbr.rel (%p43) target = $region39
      $region36: #{recurrent_autoencoder.1} parent=31 // loop_body
        %v49 = vld [vmem:[%s47] sm:$0xff]
        %50 = vst [vmem:[%s48] sm:$0xff] %v49
        %v51 = vld [vmem:[%s47 + $0x8] sm:$0xff]
        %52 = vst [vmem:[%s48 + $0x8] sm:$0xff] %v51
        %v53 = vld [vmem:[%s47 + $0x10] sm:$0xff]
        %54 = vst [vmem:[%s48 + $0x10] sm:$0xff] %v53
        %v55 = vld [vmem:[%s47 + $0x18] sm:$0xff]
        %56 = vst [vmem:[%s48 + $0x18] sm:$0xff] %v55
        %v57 = vld [vmem:[%s47 + $0x20] sm:$0xff]
        %58 = vst [vmem:[%s48 + $0x20] sm:$0xff] %v57
        %v59 = vld [vmem:[%s47 + $0x28] sm:$0xff]
        %60 = vst [vmem:[%s48 + $0x28] sm:$0xff] %v59
        %v61 = vld [vmem:[%s47 + $0x30] sm:$0xff]
        %62 = vst [vmem:[%s48 + $0x30] sm:$0xff] %v61
        %v63 = vld [vmem:[%s47 + $0x38] sm:$0xff]
        %64 = vst [vmem:[%s48 + $0x38] sm:$0xff] %v63
        %v65 = vld [vmem:[%s47 + $0x40] sm:$0xff]
        %66 = vst [vmem:[%s48 + $0x40] sm:$0xff] %v65
        %v67 = vld [vmem:[%s47 + $0x48] sm:$0xff]
        %68 = vst [vmem:[%s48 + $0x48] sm:$0xff] %v67
        %v69 = vld [vmem:[%s47 + $0x50] sm:$0xff]
        %70 = vst [vmem:[%s48 + $0x50] sm:$0xff] %v69
        %v71 = vld [vmem:[%s47 + $0x58] sm:$0xff]
        %72 = vst [vmem:[%s48 + $0x58] sm:$0xff] %v71
        %v73 = vld [vmem:[%s47 + $0x60] sm:$0xff]
        %74 = vst [vmem:[%s48 + $0x60] sm:$0xff] %v73
        %v75 = vld [vmem:[%s47 + $0x68] sm:$0xff]
        %76 = vst [vmem:[%s48 + $0x68] sm:$0xff] %v75
        %v77 = vld [vmem:[%s47 + $0x70] sm:$0xff]
        %78 = vst [vmem:[%s48 + $0x70] sm:$0xff] %v77
        %v79 = vld [vmem:[%s47 + $0x78] sm:$0xff]
        %80 = vst [vmem:[%s48 + $0x78] sm:$0xff] %v79
        %v81 = vld [vmem:[%s47 + $0x80] sm:$0xff]
        %82 = vst [vmem:[%s48 + $0x80] sm:$0xff] %v81
        %v83 = vld [vmem:[%s47 + $0x88] sm:$0xff]
        %84 = vst [vmem:[%s48 + $0x88] sm:$0xff] %v83
        %v85 = vld [vmem:[%s47 + $0x90] sm:$0xff]
        %86 = vst [vmem:[%s48 + $0x90] sm:$0xff] %v85
        %v87 = vld [vmem:[%s47 + $0x98] sm:$0xff]
        %88 = vst [vmem:[%s48 + $0x98] sm:$0xff] %v87
        %v89 = vld [vmem:[%s47 + $0xa0] sm:$0xff]
        %90 = vst [vmem:[%s48 + $0xa0] sm:$0xff] %v89
        %v91 = vld [vmem:[%s47 + $0xa8] sm:$0xff]
        %92 = vst [vmem:[%s48 + $0xa8] sm:$0xff] %v91
        %v93 = vld [vmem:[%s47 + $0xb0] sm:$0xff]
        %94 = vst [vmem:[%s48 + $0xb0] sm:$0xff] %v93
        %v95 = vld [vmem:[%s47 + $0xb8] sm:$0xff]
        %96 = vst [vmem:[%s48 + $0xb8] sm:$0xff] %v95
        %v97 = vld [vmem:[%s47 + $0xc0] sm:$0xff]
        %98 = vst [vmem:[%s48 + $0xc0] sm:$0xff] %v97
        %v99 = vld [vmem:[%s47 + $0xc8] sm:$0xff]
        %100 = vst [vmem:[%s48 + $0xc8] sm:$0xff] %v99
        %v101 = vld [vmem:[%s47 + $0xd0] sm:$0xff]
        %102 = vst [vmem:[%s48 + $0xd0] sm:$0xff] %v101
        %v103 = vld [vmem:[%s47 + $0xd8] sm:$0xff]
        %104 = vst [vmem:[%s48 + $0xd8] sm:$0xff] %v103
        %v105 = vld [vmem:[%s47 + $0xe0] sm:$0xff]
        %106 = vst [vmem:[%s48 + $0xe0] sm:$0xff] %v105
        %v107 = vld [vmem:[%s47 + $0xe8] sm:$0xff]
        %108 = vst [vmem:[%s48 + $0xe8] sm:$0xff] %v107
        %v109 = vld [vmem:[%s47 + $0xf0] sm:$0xff]
        %110 = vst [vmem:[%s48 + $0xf0] sm:$0xff] %v109
        %v111 = vld [vmem:[%s47 + $0xf8] sm:$0xff]
        %112 = vst [vmem:[%s48 + $0xf8] sm:$0xff] %v111
        %v113 = vld [vmem:[%s47 + $0x100] sm:$0xff]
        %114 = vst [vmem:[%s48 + $0x100] sm:$0xff] %v113
        %v115 = vld [vmem:[%s47 + $0x108] sm:$0xff]
        %116 = vst [vmem:[%s48 + $0x108] sm:$0xff] %v115
        %v117 = vld [vmem:[%s47 + $0x110] sm:$0xff]
        %118 = vst [vmem:[%s48 + $0x110] sm:$0xff] %v117
        %v119 = vld [vmem:[%s47 + $0x118] sm:$0xff]
        %120 = vst [vmem:[%s48 + $0x118] sm:$0xff] %v119
        %v121 = vld [vmem:[%s47 + $0x120] sm:$0xff]
        %122 = vst [vmem:[%s48 + $0x120] sm:$0xff] %v121
        %v123 = vld [vmem:[%s47 + $0x128] sm:$0xff]
        %124 = vst [vmem:[%s48 + $0x128] sm:$0xff] %v123
        %v125 = vld [vmem:[%s47 + $0x130] sm:$0xff]
        %126 = vst [vmem:[%s48 + $0x130] sm:$0xff] %v125
        %v127 = vld [vmem:[%s47 + $0x138] sm:$0xff]
        %128 = vst [vmem:[%s48 + $0x138] sm:$0xff] %v127
        %v129 = vld [vmem:[%s47 + $0x140] sm:$0xff]
        %130 = vst [vmem:[%s48 + $0x140] sm:$0xff] %v129
        %v131 = vld [vmem:[%s47 + $0x148] sm:$0xff]
        %132 = vst [vmem:[%s48 + $0x148] sm:$0xff] %v131
        %v133 = vld [vmem:[%s47 + $0x150] sm:$0xff]
        %134 = vst [vmem:[%s48 + $0x150] sm:$0xff] %v133
        %v135 = vld [vmem:[%s47 + $0x158] sm:$0xff]
        %136 = vst [vmem:[%s48 + $0x158] sm:$0xff] %v135
        %v137 = vld [vmem:[%s47 + $0x160] sm:$0xff]
        %138 = vst [vmem:[%s48 + $0x160] sm:$0xff] %v137
        %v139 = vld [vmem:[%s47 + $0x168] sm:$0xff]
        %140 = vst [vmem:[%s48 + $0x168] sm:$0xff] %v139
        %v141 = vld [vmem:[%s47 + $0x170] sm:$0xff]
        %142 = vst [vmem:[%s48 + $0x170] sm:$0xff] %v141
        %v143 = vld [vmem:[%s47 + $0x178] sm:$0xff]
        %144 = vst [vmem:[%s48 + $0x178] sm:$0xff] %v143
        %v145 = vld [vmem:[%s47 + $0x180] sm:$0xff]
        %146 = vst [vmem:[%s48 + $0x180] sm:$0xff] %v145
        %v147 = vld [vmem:[%s47 + $0x188] sm:$0xff]
        %148 = vst [vmem:[%s48 + $0x188] sm:$0xff] %v147
        %v149 = vld [vmem:[%s47 + $0x190] sm:$0xff]
        %150 = vst [vmem:[%s48 + $0x190] sm:$0xff] %v149
        %v151 = vld [vmem:[%s47 + $0x198] sm:$0xff]
        %152 = vst [vmem:[%s48 + $0x198] sm:$0xff] %v151
        %v153 = vld [vmem:[%s47 + $0x1a0] sm:$0xff]
        %154 = vst [vmem:[%s48 + $0x1a0] sm:$0xff] %v153
        %v155 = vld [vmem:[%s47 + $0x1a8] sm:$0xff]
        %156 = vst [vmem:[%s48 + $0x1a8] sm:$0xff] %v155
        %v157 = vld [vmem:[%s47 + $0x1b0] sm:$0xff]
        %158 = vst [vmem:[%s48 + $0x1b0] sm:$0xff] %v157
        %v159 = vld [vmem:[%s47 + $0x1b8] sm:$0xff]
        %160 = vst [vmem:[%s48 + $0x1b8] sm:$0xff] %v159
        %v161 = vld [vmem:[%s47 + $0x1c0] sm:$0xff]
        %162 = vst [vmem:[%s48 + $0x1c0] sm:$0xff] %v161
        %v163 = vld [vmem:[%s47 + $0x1c8] sm:$0xff]
        %164 = vst [vmem:[%s48 + $0x1c8] sm:$0xff] %v163
        %v165 = vld [vmem:[%s47 + $0x1d0] sm:$0xff]
        %166 = vst [vmem:[%s48 + $0x1d0] sm:$0xff] %v165
        %v167 = vld [vmem:[%s47 + $0x1d8] sm:$0xff]
        %168 = vst [vmem:[%s48 + $0x1d8] sm:$0xff] %v167
        %v169 = vld [vmem:[%s47 + $0x1e0] sm:$0xff]
        %170 = vst [vmem:[%s48 + $0x1e0] sm:$0xff] %v169
        %v171 = vld [vmem:[%s47 + $0x1e8] sm:$0xff]
        %172 = vst [vmem:[%s48 + $0x1e8] sm:$0xff] %v171
        %v173 = vld [vmem:[%s47 + $0x1f0] sm:$0xff]
        %174 = vst [vmem:[%s48 + $0x1f0] sm:$0xff] %v173
        %v175 = vld [vmem:[%s47 + $0x1f8] sm:$0xff]
        %176 = vst [vmem:[%s48 + $0x1f8] sm:$0xff] %v175
        %v177 = vld [vmem:[%s47 + $0x200] sm:$0xff]
        %178 = vst [vmem:[%s48 + $0x200] sm:$0xff] %v177
        %v179 = vld [vmem:[%s47 + $0x208] sm:$0xff]
        %180 = vst [vmem:[%s48 + $0x208] sm:$0xff] %v179
        %v181 = vld [vmem:[%s47 + $0x210] sm:$0xff]
        %182 = vst [vmem:[%s48 + $0x210] sm:$0xff] %v181
        %v183 = vld [vmem:[%s47 + $0x218] sm:$0xff]
        %184 = vst [vmem:[%s48 + $0x218] sm:$0xff] %v183
        %v185 = vld [vmem:[%s47 + $0x220] sm:$0xff]
        %186 = vst [vmem:[%s48 + $0x220] sm:$0xff] %v185
        %v187 = vld [vmem:[%s47 + $0x228] sm:$0xff]
        %188 = vst [vmem:[%s48 + $0x228] sm:$0xff] %v187
        %v189 = vld [vmem:[%s47 + $0x230] sm:$0xff]
        %190 = vst [vmem:[%s48 + $0x230] sm:$0xff] %v189
        %v191 = vld [vmem:[%s47 + $0x238] sm:$0xff]
        %192 = vst [vmem:[%s48 + $0x238] sm:$0xff] %v191
        %v193 = vld [vmem:[%s47 + $0x240] sm:$0xff]
        %194 = vst [vmem:[%s48 + $0x240] sm:$0xff] %v193
        %v195 = vld [vmem:[%s47 + $0x248] sm:$0xff]
        %196 = vst [vmem:[%s48 + $0x248] sm:$0xff] %v195
        %v197 = vld [vmem:[%s47 + $0x250] sm:$0xff]
        %198 = vst [vmem:[%s48 + $0x250] sm:$0xff] %v197
        %v199 = vld [vmem:[%s47 + $0x258] sm:$0xff]
        %200 = vst [vmem:[%s48 + $0x258] sm:$0xff] %v199
        %v201 = vld [vmem:[%s47 + $0x260] sm:$0xff]
        %202 = vst [vmem:[%s48 + $0x260] sm:$0xff] %v201
        %v203 = vld [vmem:[%s47 + $0x268] sm:$0xff]
        %204 = vst [vmem:[%s48 + $0x268] sm:$0xff] %v203
        %v205 = vld [vmem:[%s47 + $0x270] sm:$0xff]
        %206 = vst [vmem:[%s48 + $0x270] sm:$0xff] %v205
        %v207 = vld [vmem:[%s47 + $0x278] sm:$0xff]
        %208 = vst [vmem:[%s48 + $0x278] sm:$0xff] %v207
        %v209 = vld [vmem:[%s47 + $0x280] sm:$0xff]
        %210 = vst [vmem:[%s48 + $0x280] sm:$0xff] %v209
        %v211 = vld [vmem:[%s47 + $0x288] sm:$0xff]
        %212 = vst [vmem:[%s48 + $0x288] sm:$0xff] %v211
        %v213 = vld [vmem:[%s47 + $0x290] sm:$0xff]
        %214 = vst [vmem:[%s48 + $0x290] sm:$0xff] %v213
        %v215 = vld [vmem:[%s47 + $0x298] sm:$0xff]
        %216 = vst [vmem:[%s48 + $0x298] sm:$0xff] %v215
        %v217 = vld [vmem:[%s47 + $0x2a0] sm:$0xff]
        %218 = vst [vmem:[%s48 + $0x2a0] sm:$0xff] %v217
        %v219 = vld [vmem:[%s47 + $0x2a8] sm:$0xff]
        %220 = vst [vmem:[%s48 + $0x2a8] sm:$0xff] %v219
        %v221 = vld [vmem:[%s47 + $0x2b0] sm:$0xff]
        %222 = vst [vmem:[%s48 + $0x2b0] sm:$0xff] %v221
        %v223 = vld [vmem:[%s47 + $0x2b8] sm:$0xff]
        %224 = vst [vmem:[%s48 + $0x2b8] sm:$0xff] %v223
        %v225 = vld [vmem:[%s47 + $0x2c0] sm:$0xff]
        %226 = vst [vmem:[%s48 + $0x2c0] sm:$0xff] %v225
        %v227 = vld [vmem:[%s47 + $0x2c8] sm:$0xff]
        %228 = vst [vmem:[%s48 + $0x2c8] sm:$0xff] %v227
        %v229 = vld [vmem:[%s47 + $0x2d0] sm:$0xff]
        %230 = vst [vmem:[%s48 + $0x2d0] sm:$0xff] %v229
        %v231 = vld [vmem:[%s47 + $0x2d8] sm:$0xff]
        %232 = vst [vmem:[%s48 + $0x2d8] sm:$0xff] %v231
        %v233 = vld [vmem:[%s47 + $0x2e0] sm:$0xff]
        %234 = vst [vmem:[%s48 + $0x2e0] sm:$0xff] %v233
        %v235 = vld [vmem:[%s47 + $0x2e8] sm:$0xff]
        %236 = vst [vmem:[%s48 + $0x2e8] sm:$0xff] %v235
        %v237 = vld [vmem:[%s47 + $0x2f0] sm:$0xff]
        %238 = vst [vmem:[%s48 + $0x2f0] sm:$0xff] %v237
        %v239 = vld [vmem:[%s47 + $0x2f8] sm:$0xff]
        %240 = vst [vmem:[%s48 + $0x2f8] sm:$0xff] %v239
        %v241 = vld [vmem:[%s47 + $0x300] sm:$0xff]
        %242 = vst [vmem:[%s48 + $0x300] sm:$0xff] %v241
        %v243 = vld [vmem:[%s47 + $0x308] sm:$0xff]
        %244 = vst [vmem:[%s48 + $0x308] sm:$0xff] %v243
        %v245 = vld [vmem:[%s47 + $0x310] sm:$0xff]
        %246 = vst [vmem:[%s48 + $0x310] sm:$0xff] %v245
        %v247 = vld [vmem:[%s47 + $0x318] sm:$0xff]
        %248 = vst [vmem:[%s48 + $0x318] sm:$0xff] %v247
        %v249 = vld [vmem:[%s47 + $0x320] sm:$0xff]
        %250 = vst [vmem:[%s48 + $0x320] sm:$0xff] %v249
        %v251 = vld [vmem:[%s47 + $0x328] sm:$0xff]
        %252 = vst [vmem:[%s48 + $0x328] sm:$0xff] %v251
        %v253 = vld [vmem:[%s47 + $0x330] sm:$0xff]
        %254 = vst [vmem:[%s48 + $0x330] sm:$0xff] %v253
        %v255 = vld [vmem:[%s47 + $0x338] sm:$0xff]
        %256 = vst [vmem:[%s48 + $0x338] sm:$0xff] %v255
        %v257 = vld [vmem:[%s47 + $0x340] sm:$0xff]
        %258 = vst [vmem:[%s48 + $0x340] sm:$0xff] %v257
        %v259 = vld [vmem:[%s47 + $0x348] sm:$0xff]
        %260 = vst [vmem:[%s48 + $0x348] sm:$0xff] %v259
        %v261 = vld [vmem:[%s47 + $0x350] sm:$0xff]
        %262 = vst [vmem:[%s48 + $0x350] sm:$0xff] %v261
        %v263 = vld [vmem:[%s47 + $0x358] sm:$0xff]
        %264 = vst [vmem:[%s48 + $0x358] sm:$0xff] %v263
        %v265 = vld [vmem:[%s47 + $0x360] sm:$0xff]
        %266 = vst [vmem:[%s48 + $0x360] sm:$0xff] %v265
        %v267 = vld [vmem:[%s47 + $0x368] sm:$0xff]
        %268 = vst [vmem:[%s48 + $0x368] sm:$0xff] %v267
        %v269 = vld [vmem:[%s47 + $0x370] sm:$0xff]
        %270 = vst [vmem:[%s48 + $0x370] sm:$0xff] %v269
        %v271 = vld [vmem:[%s47 + $0x378] sm:$0xff]
        %272 = vst [vmem:[%s48 + $0x378] sm:$0xff] %v271
        %v273 = vld [vmem:[%s47 + $0x380] sm:$0xff]
        %274 = vst [vmem:[%s48 + $0x380] sm:$0xff] %v273
        %v275 = vld [vmem:[%s47 + $0x388] sm:$0xff]
        %276 = vst [vmem:[%s48 + $0x388] sm:$0xff] %v275
        %v277 = vld [vmem:[%s47 + $0x390] sm:$0xff]
        %278 = vst [vmem:[%s48 + $0x390] sm:$0xff] %v277
        %v279 = vld [vmem:[%s47 + $0x398] sm:$0xff]
        %280 = vst [vmem:[%s48 + $0x398] sm:$0xff] %v279
        %v281 = vld [vmem:[%s47 + $0x3a0] sm:$0xff]
        %282 = vst [vmem:[%s48 + $0x3a0] sm:$0xff] %v281
        %v283 = vld [vmem:[%s47 + $0x3a8] sm:$0xff]
        %284 = vst [vmem:[%s48 + $0x3a8] sm:$0xff] %v283
        %v285 = vld [vmem:[%s47 + $0x3b0] sm:$0xff]
        %286 = vst [vmem:[%s48 + $0x3b0] sm:$0xff] %v285
        %v287 = vld [vmem:[%s47 + $0x3b8] sm:$0xff]
        %288 = vst [vmem:[%s48 + $0x3b8] sm:$0xff] %v287
        %v289 = vld [vmem:[%s47 + $0x3c0] sm:$0xff]
        %290 = vst [vmem:[%s48 + $0x3c0] sm:$0xff] %v289
        %v291 = vld [vmem:[%s47 + $0x3c8] sm:$0xff]
        %292 = vst [vmem:[%s48 + $0x3c8] sm:$0xff] %v291
        %v293 = vld [vmem:[%s47 + $0x3d0] sm:$0xff]
        %294 = vst [vmem:[%s48 + $0x3d0] sm:$0xff] %v293
        %v295 = vld [vmem:[%s47 + $0x3d8] sm:$0xff]
        %296 = vst [vmem:[%s48 + $0x3d8] sm:$0xff] %v295
        %v297 = vld [vmem:[%s47 + $0x3e0] sm:$0xff]
        %298 = vst [vmem:[%s48 + $0x3e0] sm:$0xff] %v297
        %v299 = vld [vmem:[%s47 + $0x3e8] sm:$0xff]
        %300 = vst [vmem:[%s48 + $0x3e8] sm:$0xff] %v299
        %v301 = vld [vmem:[%s47 + $0x3f0] sm:$0xff]
        %302 = vst [vmem:[%s48 + $0x3f0] sm:$0xff] %v301
        %v303 = vld [vmem:[%s47 + $0x3f8] sm:$0xff]
        %304 = vst [vmem:[%s48 + $0x3f8] sm:$0xff] %v303
        %v305 = vld [vmem:[%s47 + $0x400] sm:$0xff]
        %306 = vst [vmem:[%s48 + $0x400] sm:$0xff] %v305
        %v307 = vld [vmem:[%s47 + $0x408] sm:$0xff]
        %308 = vst [vmem:[%s48 + $0x408] sm:$0xff] %v307
        %v309 = vld [vmem:[%s47 + $0x410] sm:$0xff]
        %310 = vst [vmem:[%s48 + $0x410] sm:$0xff] %v309
        %v311 = vld [vmem:[%s47 + $0x418] sm:$0xff]
        %312 = vst [vmem:[%s48 + $0x418] sm:$0xff] %v311
      $region37: #{recurrent_autoencoder.1} parent=31 // loop_footer
        %s46 = sadd.s32 1, %s42
      $region38: #{recurrent_autoencoder.1} parent=31 // loop_footer_branch
        %41 = sbr.rel target = $region34
      $region39: #{recurrent_autoencoder.1} parent=31 // loop_exit
        _
    $region32: #{recurrent_autoencoder.1} parent=16 // pred_fallthru
      _
    %p313 = pneg %p37
    // Predicated region
    $region40: #{recurrent_autoencoder.1} parent=16 // pred_check
      _
    $region41: #{recurrent_autoencoder.1} parent=16 // pred_check_branch
      %315 = sbr.rel (%p37) target = $region43
    $region42: #{recurrent_autoencoder.1} parent=16 // pred_region
      %s316 = sand.u32 1056, 7
    $region43: #{recurrent_autoencoder.1} parent=16 // pred_fallthru
      _
  $region17: #{recurrent_autoencoder.1} parent=0 // pred_fallthru
    _
  // Predicated region
  $region18: #{recurrent_autoencoder.1} parent=0 // pred_check
    %p22 = pneg %p18
  $region19: #{recurrent_autoencoder.1} parent=0 // pred_check_branch
    %24 = sbr.rel (%p22) target = $region21
  $region20: #{recurrent_autoencoder.1} parent=0 // pred_region
    %s25 = sshllo.u32 0, 1056
    loop: start=0, step=1, limit=1
    $region22: #{recurrent_autoencoder.1} parent=20 // loop_pre_header
      _
    $region23: #{recurrent_autoencoder.1} parent=20 // loop_header
      %s27 = sphi 0, %s31
      %p28 = scmp.ge.s32.totalorder %s27, 1
      %s32 = sphi %s3, %s3
      %s33 = sphi [#allocation2], [#allocation2]
    $region24: #{recurrent_autoencoder.1} parent=20 // loop_header_branch
      %30 = sbr.rel (%p28) target = $region28
    $region25: #{recurrent_autoencoder.1} parent=20 // loop_body
      %v34 = vld [vmem:[%s32] sm:%s25]
      %35 = vst [vmem:[%s33] sm:%s25] %v34
    $region26: #{recurrent_autoencoder.1} parent=20 // loop_footer
      %s31 = sadd.s32 1, %s27
    $region27: #{recurrent_autoencoder.1} parent=20 // loop_footer_branch
      %26 = sbr.rel target = $region23
    $region28: #{recurrent_autoencoder.1} parent=20 // loop_exit
      _
  $region21: #{recurrent_autoencoder.1} parent=0 // pred_fallthru
    _
  // Predicated region
  $region44: #{recurrent_autoencoder.1} parent=0 // pred_check
    _
  $region45: #{recurrent_autoencoder.1} parent=0 // pred_check_branch
    %319 = sbr.rel (0) target = $region47
  $region46: #{recurrent_autoencoder.1} parent=0 // pred_region
    %320 = vsyncadd [#allocation5], 16896
  $region47: #{recurrent_autoencoder.1} parent=0 // pred_fallthru
    _
  %s321 = scalar_lea.sflag [#allocation5], 1
  %p323 = scmp.lt.u32.totalorder 1056, 8
  %p324 = pneg %p323
  // Predicated region
  $region48: #{recurrent_autoencoder.1} parent=0 // pred_check
    _
  $region49: #{recurrent_autoencoder.1} parent=0 // pred_check_branch
    %326 = sbr.rel (%p323) target = $region51
  $region50: #{recurrent_autoencoder.1} parent=0 // pred_region
    %s341 = sand.u32 1056, 7
    %p342 = scmp.eq.s32.totalorder %s341, 0
    // Predicated region
    $region63: #{recurrent_autoencoder.1} parent=50 // pred_check
      %p343 = pneg %p342
    $region64: #{recurrent_autoencoder.1} parent=50 // pred_check_branch
      %345 = sbr.rel (%p343) target = $region66
    $region65: #{recurrent_autoencoder.1} parent=50 // pred_region
      loop: start=0, step=1, limit=1
      $region67: #{recurrent_autoencoder.1} parent=65 // loop_pre_header
        _
      $region68: #{recurrent_autoencoder.1} parent=65 // loop_header
        %s347 = sphi 0, %s351
        %p348 = scmp.ge.s32.totalorder %s347, 1
        %s352 = sphi %s4, %s4
        %s353 = sphi [#allocation3], [#allocation3]
      $region69: #{recurrent_autoencoder.1} parent=65 // loop_header_branch
        %350 = sbr.rel (%p348) target = $region73
      $region70: #{recurrent_autoencoder.1} parent=65 // loop_body
        %v354 = vld [vmem:[%s352] sm:$0xff]
        %355 = vst [vmem:[%s353] sm:$0xff] %v354
        %v356 = vld [vmem:[%s352 + $0x8] sm:$0xff]
        %357 = vst [vmem:[%s353 + $0x8] sm:$0xff] %v356
        %v358 = vld [vmem:[%s352 + $0x10] sm:$0xff]
        %359 = vst [vmem:[%s353 + $0x10] sm:$0xff] %v358
        %v360 = vld [vmem:[%s352 + $0x18] sm:$0xff]
        %361 = vst [vmem:[%s353 + $0x18] sm:$0xff] %v360
        %v362 = vld [vmem:[%s352 + $0x20] sm:$0xff]
        %363 = vst [vmem:[%s353 + $0x20] sm:$0xff] %v362
        %v364 = vld [vmem:[%s352 + $0x28] sm:$0xff]
        %365 = vst [vmem:[%s353 + $0x28] sm:$0xff] %v364
        %v366 = vld [vmem:[%s352 + $0x30] sm:$0xff]
        %367 = vst [vmem:[%s353 + $0x30] sm:$0xff] %v366
        %v368 = vld [vmem:[%s352 + $0x38] sm:$0xff]
        %369 = vst [vmem:[%s353 + $0x38] sm:$0xff] %v368
        %v370 = vld [vmem:[%s352 + $0x40] sm:$0xff]
        %371 = vst [vmem:[%s353 + $0x40] sm:$0xff] %v370
        %v372 = vld [vmem:[%s352 + $0x48] sm:$0xff]
        %373 = vst [vmem:[%s353 + $0x48] sm:$0xff] %v372
        %v374 = vld [vmem:[%s352 + $0x50] sm:$0xff]
        %375 = vst [vmem:[%s353 + $0x50] sm:$0xff] %v374
        %v376 = vld [vmem:[%s352 + $0x58] sm:$0xff]
        %377 = vst [vmem:[%s353 + $0x58] sm:$0xff] %v376
        %v378 = vld [vmem:[%s352 + $0x60] sm:$0xff]
        %379 = vst [vmem:[%s353 + $0x60] sm:$0xff] %v378
        %v380 = vld [vmem:[%s352 + $0x68] sm:$0xff]
        %381 = vst [vmem:[%s353 + $0x68] sm:$0xff] %v380
        %v382 = vld [vmem:[%s352 + $0x70] sm:$0xff]
        %383 = vst [vmem:[%s353 + $0x70] sm:$0xff] %v382
        %v384 = vld [vmem:[%s352 + $0x78] sm:$0xff]
        %385 = vst [vmem:[%s353 + $0x78] sm:$0xff] %v384
        %v386 = vld [vmem:[%s352 + $0x80] sm:$0xff]
        %387 = vst [vmem:[%s353 + $0x80] sm:$0xff] %v386
        %v388 = vld [vmem:[%s352 + $0x88] sm:$0xff]
        %389 = vst [vmem:[%s353 + $0x88] sm:$0xff] %v388
        %v390 = vld [vmem:[%s352 + $0x90] sm:$0xff]
        %391 = vst [vmem:[%s353 + $0x90] sm:$0xff] %v390
        %v392 = vld [vmem:[%s352 + $0x98] sm:$0xff]
        %393 = vst [vmem:[%s353 + $0x98] sm:$0xff] %v392
        %v394 = vld [vmem:[%s352 + $0xa0] sm:$0xff]
        %395 = vst [vmem:[%s353 + $0xa0] sm:$0xff] %v394
        %v396 = vld [vmem:[%s352 + $0xa8] sm:$0xff]
        %397 = vst [vmem:[%s353 + $0xa8] sm:$0xff] %v396
        %v398 = vld [vmem:[%s352 + $0xb0] sm:$0xff]
        %399 = vst [vmem:[%s353 + $0xb0] sm:$0xff] %v398
        %v400 = vld [vmem:[%s352 + $0xb8] sm:$0xff]
        %401 = vst [vmem:[%s353 + $0xb8] sm:$0xff] %v400
        %v402 = vld [vmem:[%s352 + $0xc0] sm:$0xff]
        %403 = vst [vmem:[%s353 + $0xc0] sm:$0xff] %v402
        %v404 = vld [vmem:[%s352 + $0xc8] sm:$0xff]
        %405 = vst [vmem:[%s353 + $0xc8] sm:$0xff] %v404
        %v406 = vld [vmem:[%s352 + $0xd0] sm:$0xff]
        %407 = vst [vmem:[%s353 + $0xd0] sm:$0xff] %v406
        %v408 = vld [vmem:[%s352 + $0xd8] sm:$0xff]
        %409 = vst [vmem:[%s353 + $0xd8] sm:$0xff] %v408
        %v410 = vld [vmem:[%s352 + $0xe0] sm:$0xff]
        %411 = vst [vmem:[%s353 + $0xe0] sm:$0xff] %v410
        %v412 = vld [vmem:[%s352 + $0xe8] sm:$0xff]
        %413 = vst [vmem:[%s353 + $0xe8] sm:$0xff] %v412
        %v414 = vld [vmem:[%s352 + $0xf0] sm:$0xff]
        %415 = vst [vmem:[%s353 + $0xf0] sm:$0xff] %v414
        %v416 = vld [vmem:[%s352 + $0xf8] sm:$0xff]
        %417 = vst [vmem:[%s353 + $0xf8] sm:$0xff] %v416
        %v418 = vld [vmem:[%s352 + $0x100] sm:$0xff]
        %419 = vst [vmem:[%s353 + $0x100] sm:$0xff] %v418
        %v420 = vld [vmem:[%s352 + $0x108] sm:$0xff]
        %421 = vst [vmem:[%s353 + $0x108] sm:$0xff] %v420
        %v422 = vld [vmem:[%s352 + $0x110] sm:$0xff]
        %423 = vst [vmem:[%s353 + $0x110] sm:$0xff] %v422
        %v424 = vld [vmem:[%s352 + $0x118] sm:$0xff]
        %425 = vst [vmem:[%s353 + $0x118] sm:$0xff] %v424
        %v426 = vld [vmem:[%s352 + $0x120] sm:$0xff]
        %427 = vst [vmem:[%s353 + $0x120] sm:$0xff] %v426
        %v428 = vld [vmem:[%s352 + $0x128] sm:$0xff]
        %429 = vst [vmem:[%s353 + $0x128] sm:$0xff] %v428
        %v430 = vld [vmem:[%s352 + $0x130] sm:$0xff]
        %431 = vst [vmem:[%s353 + $0x130] sm:$0xff] %v430
        %v432 = vld [vmem:[%s352 + $0x138] sm:$0xff]
        %433 = vst [vmem:[%s353 + $0x138] sm:$0xff] %v432
        %v434 = vld [vmem:[%s352 + $0x140] sm:$0xff]
        %435 = vst [vmem:[%s353 + $0x140] sm:$0xff] %v434
        %v436 = vld [vmem:[%s352 + $0x148] sm:$0xff]
        %437 = vst [vmem:[%s353 + $0x148] sm:$0xff] %v436
        %v438 = vld [vmem:[%s352 + $0x150] sm:$0xff]
        %439 = vst [vmem:[%s353 + $0x150] sm:$0xff] %v438
        %v440 = vld [vmem:[%s352 + $0x158] sm:$0xff]
        %441 = vst [vmem:[%s353 + $0x158] sm:$0xff] %v440
        %v442 = vld [vmem:[%s352 + $0x160] sm:$0xff]
        %443 = vst [vmem:[%s353 + $0x160] sm:$0xff] %v442
        %v444 = vld [vmem:[%s352 + $0x168] sm:$0xff]
        %445 = vst [vmem:[%s353 + $0x168] sm:$0xff] %v444
        %v446 = vld [vmem:[%s352 + $0x170] sm:$0xff]
        %447 = vst [vmem:[%s353 + $0x170] sm:$0xff] %v446
        %v448 = vld [vmem:[%s352 + $0x178] sm:$0xff]
        %449 = vst [vmem:[%s353 + $0x178] sm:$0xff] %v448
        %v450 = vld [vmem:[%s352 + $0x180] sm:$0xff]
        %451 = vst [vmem:[%s353 + $0x180] sm:$0xff] %v450
        %v452 = vld [vmem:[%s352 + $0x188] sm:$0xff]
        %453 = vst [vmem:[%s353 + $0x188] sm:$0xff] %v452
        %v454 = vld [vmem:[%s352 + $0x190] sm:$0xff]
        %455 = vst [vmem:[%s353 + $0x190] sm:$0xff] %v454
        %v456 = vld [vmem:[%s352 + $0x198] sm:$0xff]
        %457 = vst [vmem:[%s353 + $0x198] sm:$0xff] %v456
        %v458 = vld [vmem:[%s352 + $0x1a0] sm:$0xff]
        %459 = vst [vmem:[%s353 + $0x1a0] sm:$0xff] %v458
        %v460 = vld [vmem:[%s352 + $0x1a8] sm:$0xff]
        %461 = vst [vmem:[%s353 + $0x1a8] sm:$0xff] %v460
        %v462 = vld [vmem:[%s352 + $0x1b0] sm:$0xff]
        %463 = vst [vmem:[%s353 + $0x1b0] sm:$0xff] %v462
        %v464 = vld [vmem:[%s352 + $0x1b8] sm:$0xff]
        %465 = vst [vmem:[%s353 + $0x1b8] sm:$0xff] %v464
        %v466 = vld [vmem:[%s352 + $0x1c0] sm:$0xff]
        %467 = vst [vmem:[%s353 + $0x1c0] sm:$0xff] %v466
        %v468 = vld [vmem:[%s352 + $0x1c8] sm:$0xff]
        %469 = vst [vmem:[%s353 + $0x1c8] sm:$0xff] %v468
        %v470 = vld [vmem:[%s352 + $0x1d0] sm:$0xff]
        %471 = vst [vmem:[%s353 + $0x1d0] sm:$0xff] %v470
        %v472 = vld [vmem:[%s352 + $0x1d8] sm:$0xff]
        %473 = vst [vmem:[%s353 + $0x1d8] sm:$0xff] %v472
        %v474 = vld [vmem:[%s352 + $0x1e0] sm:$0xff]
        %475 = vst [vmem:[%s353 + $0x1e0] sm:$0xff] %v474
        %v476 = vld [vmem:[%s352 + $0x1e8] sm:$0xff]
        %477 = vst [vmem:[%s353 + $0x1e8] sm:$0xff] %v476
        %v478 = vld [vmem:[%s352 + $0x1f0] sm:$0xff]
        %479 = vst [vmem:[%s353 + $0x1f0] sm:$0xff] %v478
        %v480 = vld [vmem:[%s352 + $0x1f8] sm:$0xff]
        %481 = vst [vmem:[%s353 + $0x1f8] sm:$0xff] %v480
        %v482 = vld [vmem:[%s352 + $0x200] sm:$0xff]
        %483 = vst [vmem:[%s353 + $0x200] sm:$0xff] %v482
        %v484 = vld [vmem:[%s352 + $0x208] sm:$0xff]
        %485 = vst [vmem:[%s353 + $0x208] sm:$0xff] %v484
        %v486 = vld [vmem:[%s352 + $0x210] sm:$0xff]
        %487 = vst [vmem:[%s353 + $0x210] sm:$0xff] %v486
        %v488 = vld [vmem:[%s352 + $0x218] sm:$0xff]
        %489 = vst [vmem:[%s353 + $0x218] sm:$0xff] %v488
        %v490 = vld [vmem:[%s352 + $0x220] sm:$0xff]
        %491 = vst [vmem:[%s353 + $0x220] sm:$0xff] %v490
        %v492 = vld [vmem:[%s352 + $0x228] sm:$0xff]
        %493 = vst [vmem:[%s353 + $0x228] sm:$0xff] %v492
        %v494 = vld [vmem:[%s352 + $0x230] sm:$0xff]
        %495 = vst [vmem:[%s353 + $0x230] sm:$0xff] %v494
        %v496 = vld [vmem:[%s352 + $0x238] sm:$0xff]
        %497 = vst [vmem:[%s353 + $0x238] sm:$0xff] %v496
        %v498 = vld [vmem:[%s352 + $0x240] sm:$0xff]
        %499 = vst [vmem:[%s353 + $0x240] sm:$0xff] %v498
        %v500 = vld [vmem:[%s352 + $0x248] sm:$0xff]
        %501 = vst [vmem:[%s353 + $0x248] sm:$0xff] %v500
        %v502 = vld [vmem:[%s352 + $0x250] sm:$0xff]
        %503 = vst [vmem:[%s353 + $0x250] sm:$0xff] %v502
        %v504 = vld [vmem:[%s352 + $0x258] sm:$0xff]
        %505 = vst [vmem:[%s353 + $0x258] sm:$0xff] %v504
        %v506 = vld [vmem:[%s352 + $0x260] sm:$0xff]
        %507 = vst [vmem:[%s353 + $0x260] sm:$0xff] %v506
        %v508 = vld [vmem:[%s352 + $0x268] sm:$0xff]
        %509 = vst [vmem:[%s353 + $0x268] sm:$0xff] %v508
        %v510 = vld [vmem:[%s352 + $0x270] sm:$0xff]
        %511 = vst [vmem:[%s353 + $0x270] sm:$0xff] %v510
        %v512 = vld [vmem:[%s352 + $0x278] sm:$0xff]
        %513 = vst [vmem:[%s353 + $0x278] sm:$0xff] %v512
        %v514 = vld [vmem:[%s352 + $0x280] sm:$0xff]
        %515 = vst [vmem:[%s353 + $0x280] sm:$0xff] %v514
        %v516 = vld [vmem:[%s352 + $0x288] sm:$0xff]
        %517 = vst [vmem:[%s353 + $0x288] sm:$0xff] %v516
        %v518 = vld [vmem:[%s352 + $0x290] sm:$0xff]
        %519 = vst [vmem:[%s353 + $0x290] sm:$0xff] %v518
        %v520 = vld [vmem:[%s352 + $0x298] sm:$0xff]
        %521 = vst [vmem:[%s353 + $0x298] sm:$0xff] %v520
        %v522 = vld [vmem:[%s352 + $0x2a0] sm:$0xff]
        %523 = vst [vmem:[%s353 + $0x2a0] sm:$0xff] %v522
        %v524 = vld [vmem:[%s352 + $0x2a8] sm:$0xff]
        %525 = vst [vmem:[%s353 + $0x2a8] sm:$0xff] %v524
        %v526 = vld [vmem:[%s352 + $0x2b0] sm:$0xff]
        %527 = vst [vmem:[%s353 + $0x2b0] sm:$0xff] %v526
        %v528 = vld [vmem:[%s352 + $0x2b8] sm:$0xff]
        %529 = vst [vmem:[%s353 + $0x2b8] sm:$0xff] %v528
        %v530 = vld [vmem:[%s352 + $0x2c0] sm:$0xff]
        %531 = vst [vmem:[%s353 + $0x2c0] sm:$0xff] %v530
        %v532 = vld [vmem:[%s352 + $0x2c8] sm:$0xff]
        %533 = vst [vmem:[%s353 + $0x2c8] sm:$0xff] %v532
        %v534 = vld [vmem:[%s352 + $0x2d0] sm:$0xff]
        %535 = vst [vmem:[%s353 + $0x2d0] sm:$0xff] %v534
        %v536 = vld [vmem:[%s352 + $0x2d8] sm:$0xff]
        %537 = vst [vmem:[%s353 + $0x2d8] sm:$0xff] %v536
        %v538 = vld [vmem:[%s352 + $0x2e0] sm:$0xff]
        %539 = vst [vmem:[%s353 + $0x2e0] sm:$0xff] %v538
        %v540 = vld [vmem:[%s352 + $0x2e8] sm:$0xff]
        %541 = vst [vmem:[%s353 + $0x2e8] sm:$0xff] %v540
        %v542 = vld [vmem:[%s352 + $0x2f0] sm:$0xff]
        %543 = vst [vmem:[%s353 + $0x2f0] sm:$0xff] %v542
        %v544 = vld [vmem:[%s352 + $0x2f8] sm:$0xff]
        %545 = vst [vmem:[%s353 + $0x2f8] sm:$0xff] %v544
        %v546 = vld [vmem:[%s352 + $0x300] sm:$0xff]
        %547 = vst [vmem:[%s353 + $0x300] sm:$0xff] %v546
        %v548 = vld [vmem:[%s352 + $0x308] sm:$0xff]
        %549 = vst [vmem:[%s353 + $0x308] sm:$0xff] %v548
        %v550 = vld [vmem:[%s352 + $0x310] sm:$0xff]
        %551 = vst [vmem:[%s353 + $0x310] sm:$0xff] %v550
        %v552 = vld [vmem:[%s352 + $0x318] sm:$0xff]
        %553 = vst [vmem:[%s353 + $0x318] sm:$0xff] %v552
        %v554 = vld [vmem:[%s352 + $0x320] sm:$0xff]
        %555 = vst [vmem:[%s353 + $0x320] sm:$0xff] %v554
        %v556 = vld [vmem:[%s352 + $0x328] sm:$0xff]
        %557 = vst [vmem:[%s353 + $0x328] sm:$0xff] %v556
        %v558 = vld [vmem:[%s352 + $0x330] sm:$0xff]
        %559 = vst [vmem:[%s353 + $0x330] sm:$0xff] %v558
        %v560 = vld [vmem:[%s352 + $0x338] sm:$0xff]
        %561 = vst [vmem:[%s353 + $0x338] sm:$0xff] %v560
        %v562 = vld [vmem:[%s352 + $0x340] sm:$0xff]
        %563 = vst [vmem:[%s353 + $0x340] sm:$0xff] %v562
        %v564 = vld [vmem:[%s352 + $0x348] sm:$0xff]
        %565 = vst [vmem:[%s353 + $0x348] sm:$0xff] %v564
        %v566 = vld [vmem:[%s352 + $0x350] sm:$0xff]
        %567 = vst [vmem:[%s353 + $0x350] sm:$0xff] %v566
        %v568 = vld [vmem:[%s352 + $0x358] sm:$0xff]
        %569 = vst [vmem:[%s353 + $0x358] sm:$0xff] %v568
        %v570 = vld [vmem:[%s352 + $0x360] sm:$0xff]
        %571 = vst [vmem:[%s353 + $0x360] sm:$0xff] %v570
        %v572 = vld [vmem:[%s352 + $0x368] sm:$0xff]
        %573 = vst [vmem:[%s353 + $0x368] sm:$0xff] %v572
        %v574 = vld [vmem:[%s352 + $0x370] sm:$0xff]
        %575 = vst [vmem:[%s353 + $0x370] sm:$0xff] %v574
        %v576 = vld [vmem:[%s352 + $0x378] sm:$0xff]
        %577 = vst [vmem:[%s353 + $0x378] sm:$0xff] %v576
        %v578 = vld [vmem:[%s352 + $0x380] sm:$0xff]
        %579 = vst [vmem:[%s353 + $0x380] sm:$0xff] %v578
        %v580 = vld [vmem:[%s352 + $0x388] sm:$0xff]
        %581 = vst [vmem:[%s353 + $0x388] sm:$0xff] %v580
        %v582 = vld [vmem:[%s352 + $0x390] sm:$0xff]
        %583 = vst [vmem:[%s353 + $0x390] sm:$0xff] %v582
        %v584 = vld [vmem:[%s352 + $0x398] sm:$0xff]
        %585 = vst [vmem:[%s353 + $0x398] sm:$0xff] %v584
        %v586 = vld [vmem:[%s352 + $0x3a0] sm:$0xff]
        %587 = vst [vmem:[%s353 + $0x3a0] sm:$0xff] %v586
        %v588 = vld [vmem:[%s352 + $0x3a8] sm:$0xff]
        %589 = vst [vmem:[%s353 + $0x3a8] sm:$0xff] %v588
        %v590 = vld [vmem:[%s352 + $0x3b0] sm:$0xff]
        %591 = vst [vmem:[%s353 + $0x3b0] sm:$0xff] %v590
        %v592 = vld [vmem:[%s352 + $0x3b8] sm:$0xff]
        %593 = vst [vmem:[%s353 + $0x3b8] sm:$0xff] %v592
        %v594 = vld [vmem:[%s352 + $0x3c0] sm:$0xff]
        %595 = vst [vmem:[%s353 + $0x3c0] sm:$0xff] %v594
        %v596 = vld [vmem:[%s352 + $0x3c8] sm:$0xff]
        %597 = vst [vmem:[%s353 + $0x3c8] sm:$0xff] %v596
        %v598 = vld [vmem:[%s352 + $0x3d0] sm:$0xff]
        %599 = vst [vmem:[%s353 + $0x3d0] sm:$0xff] %v598
        %v600 = vld [vmem:[%s352 + $0x3d8] sm:$0xff]
        %601 = vst [vmem:[%s353 + $0x3d8] sm:$0xff] %v600
        %v602 = vld [vmem:[%s352 + $0x3e0] sm:$0xff]
        %603 = vst [vmem:[%s353 + $0x3e0] sm:$0xff] %v602
        %v604 = vld [vmem:[%s352 + $0x3e8] sm:$0xff]
        %605 = vst [vmem:[%s353 + $0x3e8] sm:$0xff] %v604
        %v606 = vld [vmem:[%s352 + $0x3f0] sm:$0xff]
        %607 = vst [vmem:[%s353 + $0x3f0] sm:$0xff] %v606
        %v608 = vld [vmem:[%s352 + $0x3f8] sm:$0xff]
        %609 = vst [vmem:[%s353 + $0x3f8] sm:$0xff] %v608
        %v610 = vld [vmem:[%s352 + $0x400] sm:$0xff]
        %611 = vst [vmem:[%s353 + $0x400] sm:$0xff] %v610
        %v612 = vld [vmem:[%s352 + $0x408] sm:$0xff]
        %613 = vst [vmem:[%s353 + $0x408] sm:$0xff] %v612
        %v614 = vld [vmem:[%s352 + $0x410] sm:$0xff]
        %615 = vst [vmem:[%s353 + $0x410] sm:$0xff] %v614
        %v616 = vld [vmem:[%s352 + $0x418] sm:$0xff]
        %617 = vst [vmem:[%s353 + $0x418] sm:$0xff] %v616
      $region71: #{recurrent_autoencoder.1} parent=65 // loop_footer
        %s351 = sadd.s32 1, %s347
      $region72: #{recurrent_autoencoder.1} parent=65 // loop_footer_branch
        %346 = sbr.rel target = $region68
      $region73: #{recurrent_autoencoder.1} parent=65 // loop_exit
        _
    $region66: #{recurrent_autoencoder.1} parent=50 // pred_fallthru
      _
    %p618 = pneg %p342
    // Predicated region
    $region74: #{recurrent_autoencoder.1} parent=50 // pred_check
      _
    $region75: #{recurrent_autoencoder.1} parent=50 // pred_check_branch
      %620 = sbr.rel (%p342) target = $region77
    $region76: #{recurrent_autoencoder.1} parent=50 // pred_region
      %s621 = sand.u32 1056, 7
    $region77: #{recurrent_autoencoder.1} parent=50 // pred_fallthru
      _
  $region51: #{recurrent_autoencoder.1} parent=0 // pred_fallthru
    _
  // Predicated region
  $region52: #{recurrent_autoencoder.1} parent=0 // pred_check
    %p327 = pneg %p323
  $region53: #{recurrent_autoencoder.1} parent=0 // pred_check_branch
    %329 = sbr.rel (%p327) target = $region55
  $region54: #{recurrent_autoencoder.1} parent=0 // pred_region
    %s330 = sshllo.u32 0, 1056
    loop: start=0, step=1, limit=1
    $region56: #{recurrent_autoencoder.1} parent=54 // loop_pre_header
      _
    $region57: #{recurrent_autoencoder.1} parent=54 // loop_header
      %s332 = sphi 0, %s336
      %p333 = scmp.ge.s32.totalorder %s332, 1
      %s337 = sphi %s4, %s4
      %s338 = sphi [#allocation3], [#allocation3]
    $region58: #{recurrent_autoencoder.1} parent=54 // loop_header_branch
      %335 = sbr.rel (%p333) target = $region62
    $region59: #{recurrent_autoencoder.1} parent=54 // loop_body
      %v339 = vld [vmem:[%s337] sm:%s330]
      %340 = vst [vmem:[%s338] sm:%s330] %v339
    $region60: #{recurrent_autoencoder.1} parent=54 // loop_footer
      %s336 = sadd.s32 1, %s332
    $region61: #{recurrent_autoencoder.1} parent=54 // loop_footer_branch
      %331 = sbr.rel target = $region57
    $region62: #{recurrent_autoencoder.1} parent=54 // loop_exit
      _
  $region55: #{recurrent_autoencoder.1} parent=0 // pred_fallthru
    _
  // Predicated region
  $region78: #{recurrent_autoencoder.1} parent=0 // pred_check
    _
  $region79: #{recurrent_autoencoder.1} parent=0 // pred_check_branch
    %624 = sbr.rel (0) target = $region81
  $region80: #{recurrent_autoencoder.1} parent=0 // pred_region
    %625 = vsyncadd %s321, 16896
  $region81: #{recurrent_autoencoder.1} parent=0 // pred_fallthru
    _
  %s626 = scalar_lea.sflag [#allocation5], 2
  %p628 = scmp.lt.u32.totalorder 8, 8
  %p629 = pneg %p628
  // Predicated region
  $region82: #{recurrent_autoencoder.1} parent=0 // pred_check
    _
  $region83: #{recurrent_autoencoder.1} parent=0 // pred_check_branch
    %631 = sbr.rel (%p628) target = $region85
  $region84: #{recurrent_autoencoder.1} parent=0 // pred_region
    %s646 = sand.u32 8, 7
    %p647 = scmp.eq.s32.totalorder %s646, 0
    // Predicated region
    $region97: #{recurrent_autoencoder.1} parent=84 // pred_check
      %p648 = pneg %p647
    $region98: #{recurrent_autoencoder.1} parent=84 // pred_check_branch
      %650 = sbr.rel (%p648) target = $region100
    $region99: #{recurrent_autoencoder.1} parent=84 // pred_region
      loop: start=0, step=1, limit=1
      $region101: #{recurrent_autoencoder.1} parent=99 // loop_pre_header
        _
      $region102: #{recurrent_autoencoder.1} parent=99 // loop_header
        %s652 = sphi 0, %s656
        %p653 = scmp.ge.s32.totalorder %s652, 1
        %s657 = sphi %s5, %s5
        %s658 = sphi [#allocation4], [#allocation4]
      $region103: #{recurrent_autoencoder.1} parent=99 // loop_header_branch
        %655 = sbr.rel (%p653) target = $region107
      $region104: #{recurrent_autoencoder.1} parent=99 // loop_body
        %v659 = vld [vmem:[%s657] sm:$0xff]
        %660 = vst [vmem:[%s658] sm:$0xff] %v659
      $region105: #{recurrent_autoencoder.1} parent=99 // loop_footer
        %s656 = sadd.s32 1, %s652
      $region106: #{recurrent_autoencoder.1} parent=99 // loop_footer_branch
        %651 = sbr.rel target = $region102
      $region107: #{recurrent_autoencoder.1} parent=99 // loop_exit
        _
    $region100: #{recurrent_autoencoder.1} parent=84 // pred_fallthru
      _
    %p661 = pneg %p647
    // Predicated region
    $region108: #{recurrent_autoencoder.1} parent=84 // pred_check
      _
    $region109: #{recurrent_autoencoder.1} parent=84 // pred_check_branch
      %663 = sbr.rel (%p647) target = $region111
    $region110: #{recurrent_autoencoder.1} parent=84 // pred_region
      %s664 = sand.u32 8, 7
    $region111: #{recurrent_autoencoder.1} parent=84 // pred_fallthru
      _
  $region85: #{recurrent_autoencoder.1} parent=0 // pred_fallthru
    _
  // Predicated region
  $region86: #{recurrent_autoencoder.1} parent=0 // pred_check
    %p632 = pneg %p628
  $region87: #{recurrent_autoencoder.1} parent=0 // pred_check_branch
    %634 = sbr.rel (%p632) target = $region89
  $region88: #{recurrent_autoencoder.1} parent=0 // pred_region
    %s635 = sshllo.u32 0, 8
    loop: start=0, step=1, limit=1
    $region90: #{recurrent_autoencoder.1} parent=88 // loop_pre_header
      _
    $region91: #{recurrent_autoencoder.1} parent=88 // loop_header
      %s637 = sphi 0, %s641
      %p638 = scmp.ge.s32.totalorder %s637, 1
      %s642 = sphi %s5, %s5
      %s643 = sphi [#allocation4], [#allocation4]
    $region92: #{recurrent_autoencoder.1} parent=88 // loop_header_branch
      %640 = sbr.rel (%p638) target = $region96
    $region93: #{recurrent_autoencoder.1} parent=88 // loop_body
      %v644 = vld [vmem:[%s642] sm:%s635]
      %645 = vst [vmem:[%s643] sm:%s635] %v644
    $region94: #{recurrent_autoencoder.1} parent=88 // loop_footer
      %s641 = sadd.s32 1, %s637
    $region95: #{recurrent_autoencoder.1} parent=88 // loop_footer_branch
      %636 = sbr.rel target = $region91
    $region96: #{recurrent_autoencoder.1} parent=88 // loop_exit
      _
  $region89: #{recurrent_autoencoder.1} parent=0 // pred_fallthru
    _
  // Predicated region
  $region112: #{recurrent_autoencoder.1} parent=0 // pred_check
    _
  $region113: #{recurrent_autoencoder.1} parent=0 // pred_check_branch
    %667 = sbr.rel (0) target = $region115
  $region114: #{recurrent_autoencoder.1} parent=0 // pred_region
    %668 = vsyncadd %s626, 128
  $region115: #{recurrent_autoencoder.1} parent=0 // pred_fallthru
    _
  %v669 = vld [vmem:[%s1] sm:$0xff]
  %v670 = vld [vmem:[%s1 + $0x8] sm:$0xff]
  %v671 = vld [vmem:[%s1 + $0x10] sm:$0xff]
  %v672 = vld [vmem:[%s1 + $0x18] sm:$0xff]
  %v673 = vld [vmem:[%s1 + $0x20] sm:$0xff]
  %v674 = vld [vmem:[%s1 + $0x28] sm:$0xff]
  %v675 = vld [vmem:[%s1 + $0x30] sm:$0xff]
  %v676 = vld [vmem:[%s1 + $0x38] sm:$0xff]
  %v677 = vld [vmem:[%s1 + $0x40] sm:$0xff]
  %v678 = vld [vmem:[%s1 + $0x48] sm:$0xff]
  %v679 = vld [vmem:[%s1 + $0x50] sm:$0xff]
  %v680 = vld [vmem:[%s1 + $0x58] sm:$0xff]
  %v681 = vld [vmem:[%s1 + $0x60] sm:$0xff]
  %v682 = vld [vmem:[%s1 + $0x68] sm:$0xff]
  %v683 = vld [vmem:[%s1 + $0x70] sm:$0xff]
  %v684 = vld [vmem:[%s1 + $0x78] sm:$0xff]
  %v685 = vld [vmem:[%s1 + $0x80] sm:$0xff]
  %v686 = vld [vmem:[%s1 + $0x88] sm:$0xff]
  %v687 = vld [vmem:[%s1 + $0x90] sm:$0xff]
  %v688 = vld [vmem:[%s1 + $0x98] sm:$0xff]
  %v689 = vld [vmem:[%s1 + $0xa0] sm:$0xff]
  %v690 = vld [vmem:[%s1 + $0xa8] sm:$0xff]
  %v691 = vld [vmem:[%s1 + $0xb0] sm:$0xff]
  %v692 = vld [vmem:[%s1 + $0xb8] sm:$0xff]
  %v693 = vld [vmem:[%s1 + $0xc0] sm:$0xff]
  %v694 = vld [vmem:[%s1 + $0xc8] sm:$0xff]
  %v695 = vld [vmem:[%s1 + $0xd0] sm:$0xff]
  %v696 = vld [vmem:[%s1 + $0xd8] sm:$0xff]
  %v697 = vld [vmem:[%s1 + $0xe0] sm:$0xff]
  %v698 = vld [vmem:[%s1 + $0xe8] sm:$0xff]
  %v699 = vld [vmem:[%s1 + $0xf0] sm:$0xff]
  %v700 = vld [vmem:[%s1 + $0xf8] sm:$0xff]
  %v701 = vld [vmem:[%s1 + $0x100] sm:$0xff]
  %v702 = vld [vmem:[%s1 + $0x108] sm:$0xff]
  %v703 = vld [vmem:[%s1 + $0x110] sm:$0xff]
  %v704 = vld [vmem:[%s1 + $0x118] sm:$0xff]
  %v705 = vld [vmem:[%s1 + $0x120] sm:$0xff]
  %v706 = vld [vmem:[%s1 + $0x128] sm:$0xff]
  %v707 = vld [vmem:[%s1 + $0x130] sm:$0xff]
  %v708 = vld [vmem:[%s1 + $0x138] sm:$0xff]
  %v709 = vld [vmem:[%s1 + $0x140] sm:$0xff]
  %v710 = vld [vmem:[%s1 + $0x148] sm:$0xff]
  %v711 = vld [vmem:[%s1 + $0x150] sm:$0xff]
  %v712 = vld [vmem:[%s1 + $0x158] sm:$0xff]
  %v713 = vld [vmem:[%s1 + $0x160] sm:$0xff]
  %v714 = vld [vmem:[%s1 + $0x168] sm:$0xff]
  %v715 = vld [vmem:[%s1 + $0x170] sm:$0xff]
  %v716 = vld [vmem:[%s1 + $0x178] sm:$0xff]
  %v717 = vld [vmem:[%s1 + $0x180] sm:$0xff]
  %v718 = vld [vmem:[%s1 + $0x188] sm:$0xff]
  %v719 = vld [vmem:[%s1 + $0x190] sm:$0xff]
  %v720 = vld [vmem:[%s1 + $0x198] sm:$0xff]
  %v721 = vld [vmem:[%s1 + $0x1a0] sm:$0xff]
  %v722 = vld [vmem:[%s1 + $0x1a8] sm:$0xff]
  %v723 = vld [vmem:[%s1 + $0x1b0] sm:$0xff]
  %v724 = vld [vmem:[%s1 + $0x1b8] sm:$0xff]
  %v725 = vld [vmem:[%s1 + $0x1c0] sm:$0xff]
  %v726 = vld [vmem:[%s1 + $0x1c8] sm:$0xff]
  %v727 = vld [vmem:[%s1 + $0x1d0] sm:$0xff]
  %v728 = vld [vmem:[%s1 + $0x1d8] sm:$0xff]
  %v729 = vld [vmem:[%s1 + $0x1e0] sm:$0xff]
  %v730 = vld [vmem:[%s1 + $0x1e8] sm:$0xff]
  %v731 = vld [vmem:[%s1 + $0x1f0] sm:$0xff]
  %v732 = vld [vmem:[%s1 + $0x1f8] sm:$0xff]
  %v733 = vld [vmem:[%s1 + $0x200] sm:$0xff]
  %v734 = vld [vmem:[%s1 + $0x208] sm:$0xff]
  %v735 = vld [vmem:[%s1 + $0x210] sm:$0xff]
  %v736 = vld [vmem:[%s1 + $0x218] sm:$0xff]
  %s737 = scalar_lea.vmem %s1, 544
  %v738 = vld [vmem:[%s737] ss:$8 sm:$0xf]
  %v739 = vld [vmem:[%s0] sm:$0xff]
  %v741 = vlaneseq
  %v742 = vshrl.u32 %v741, 7
  %v743 = vsub.s32 0, %v742
  %v744 = vrot.slane %v738, %v743
  %v745 = vlaneseq
  %v746 = vshrl.u32 %v745, 7
  %v747 = vsub.s32 1, %v746
  %v748 = vrot.slane %v738, %v747
  %v749 = vlaneseq
  %v750 = vshrl.u32 %v749, 7
  %v751 = vsub.s32 2, %v750
  %v752 = vrot.slane %v738, %v751
  %v753 = vlaneseq
  %v754 = vshrl.u32 %v753, 7
  %v755 = vsub.s32 3, %v754
  %v756 = vrot.slane %v738, %v755
  %vm761 = vcmask 64512
  %v763 = vsel %vm761, %v739, 0
  %765 = vmatprep.subr.mxu0 %v670
  %766 = vmatpush1.msra.mxu0 %v669
  %767 = vmatprep.subr.mxu0 0.0
  %768 = vmatpush1.msra.mxu0 0.0
  %769 = vmatprep.subr.mxu0 0.0
  %770 = vmatpush1.msra.mxu0 0.0
  %771 = vmatprep.subr.mxu0 0.0
  %772 = vmatpush1.msra.mxu0 0.0
  %773 = vmatprep.subr.mxu0 0.0
  %774 = vmatpush1.msra.mxu0 0.0
  %775 = vmatprep.subr.mxu0 0.0
  %776 = vmatpush1.msra.mxu0 0.0
  %777 = vmatprep.subr.mxu0 0.0
  %778 = vmatpush1.msra.mxu0 0.0
  %779 = vmatprep.subr.mxu0 0.0
  %780 = vmatpush1.msra.mxu0 0.0
  %781 = vmatprep.subr.mxu0 0.0
  %782 = vmatpush1.msra.mxu0 0.0
  %783 = vmatprep.subr.mxu0 0.0
  %784 = vmatpush1.msra.mxu0 0.0
  %785 = vmatprep.subr.mxu0 0.0
  %786 = vmatpush1.msra.mxu0 0.0
  %787 = vmatprep.subr.mxu0 0.0
  %788 = vmatpush1.msra.mxu0 0.0
  %789 = vmatprep.subr.mxu0 0.0
  %790 = vmatpush1.msra.mxu0 0.0
  %791 = vmatprep.subr.mxu0 0.0
  %792 = vmatpush1.msra.mxu0 0.0
  %793 = vmatprep.subr.mxu0 0.0
  %794 = vmatpush1.msra.mxu0 0.0
  %795 = vmatprep.subr.mxu0 0.0
  %796 = vmatpush1.msra.mxu0 0.0
  %797 = vmatprep.subr.mxu0 0.0
  %798 = vmatpush1.msra.mxu0 0.0
  %799 = vmatprep.subr.mxu0 0.0
  %800 = vmatpush1.msra.mxu0 0.0
  %801 = vmatprep.subr.mxu0 0.0
  %802 = vmatpush1.msra.mxu0 0.0
  %803 = vmatprep.subr.mxu0 0.0
  %804 = vmatpush1.msra.mxu0 0.0
  %805 = vmatprep.subr.mxu0 0.0
  %806 = vmatpush1.msra.mxu0 0.0
  %807 = vmatprep.subr.mxu0 0.0
  %808 = vmatpush1.msra.mxu0 0.0
  %809 = vmatprep.subr.mxu0 0.0
  %810 = vmatpush1.msra.mxu0 0.0
  %811 = vmatprep.subr.mxu0 0.0
  %812 = vmatpush1.msra.mxu0 0.0
  %813 = vmatprep.subr.mxu0 0.0
  %814 = vmatpush1.msra.mxu0 0.0
  %815 = vmatprep.subr.mxu0 0.0
  %816 = vmatpush1.msra.mxu0 0.0
  %817 = vmatprep.subr.mxu0 0.0
  %818 = vmatpush1.msra.mxu0 0.0
  %819 = vmatprep.subr.mxu0 0.0
  %820 = vmatpush1.msra.mxu0 0.0
  %821 = vmatprep.subr.mxu0 0.0
  %822 = vmatpush1.msra.mxu0 0.0
  %823 = vmatprep.subr.mxu0 0.0
  %824 = vmatpush1.msra.mxu0 0.0
  %825 = vmatprep.subr.mxu0 0.0
  %826 = vmatpush1.msra.mxu0 0.0
  %827 = vmatprep.subr.mxu0 0.0
  %828 = vmatpush1.msra.mxu0 0.0
  %829 = vmatprep.mubr.f32.mxu0 0.0
  %830 = vmatmul.mubr.f32.gmra.mrb[0].mxu0 %v763
  %v831 = vpop.f32.mrb[0].mxu0
  %v832 = vadd.f32 %v744, %v831
  %v833 = vpop.f32.mrb[0].mxu0
  %v834 = vadd.f32 %v748, %v833
  %835 = vdwg.mxu0
  %836 = vmatprep.subr.mxu0 %v672
  %837 = vmatpush1.msra.mxu0 %v671
  %838 = vmatprep.subr.mxu0 0.0
  %839 = vmatpush1.msra.mxu0 0.0
  %840 = vmatprep.subr.mxu0 0.0
  %841 = vmatpush1.msra.mxu0 0.0
  %842 = vmatprep.subr.mxu0 0.0
  %843 = vmatpush1.msra.mxu0 0.0
  %844 = vmatprep.subr.mxu0 0.0
  %845 = vmatpush1.msra.mxu0 0.0
  %846 = vmatprep.subr.mxu0 0.0
  %847 = vmatpush1.msra.mxu0 0.0
  %848 = vmatprep.subr.mxu0 0.0
  %849 = vmatpush1.msra.mxu0 0.0
  %850 = vmatprep.subr.mxu0 0.0
  %851 = vmatpush1.msra.mxu0 0.0
  %852 = vmatprep.subr.mxu0 0.0
  %853 = vmatpush1.msra.mxu0 0.0
  %854 = vmatprep.subr.mxu0 0.0
  %855 = vmatpush1.msra.mxu0 0.0
  %856 = vmatprep.subr.mxu0 0.0
  %857 = vmatpush1.msra.mxu0 0.0
  %858 = vmatprep.subr.mxu0 0.0
  %859 = vmatpush1.msra.mxu0 0.0
  %860 = vmatprep.subr.mxu0 0.0
  %861 = vmatpush1.msra.mxu0 0.0
  %862 = vmatprep.subr.mxu0 0.0
  %863 = vmatpush1.msra.mxu0 0.0
  %864 = vmatprep.subr.mxu0 0.0
  %865 = vmatpush1.msra.mxu0 0.0
  %866 = vmatprep.subr.mxu0 0.0
  %867 = vmatpush1.msra.mxu0 0.0
  %868 = vmatprep.subr.mxu0 0.0
  %869 = vmatpush1.msra.mxu0 0.0
  %870 = vmatprep.subr.mxu0 0.0
  %871 = vmatpush1.msra.mxu0 0.0
  %872 = vmatprep.subr.mxu0 0.0
  %873 = vmatpush1.msra.mxu0 0.0
  %874 = vmatprep.subr.mxu0 0.0
  %875 = vmatpush1.msra.mxu0 0.0
  %876 = vmatprep.subr.mxu0 0.0
  %877 = vmatpush1.msra.mxu0 0.0
  %878 = vmatprep.subr.mxu0 0.0
  %879 = vmatpush1.msra.mxu0 0.0
  %880 = vmatprep.subr.mxu0 0.0
  %881 = vmatpush1.msra.mxu0 0.0
  %882 = vmatprep.subr.mxu0 0.0
  %883 = vmatpush1.msra.mxu0 0.0
  %884 = vmatprep.subr.mxu0 0.0
  %885 = vmatpush1.msra.mxu0 0.0
  %886 = vmatprep.subr.mxu0 0.0
  %887 = vmatpush1.msra.mxu0 0.0
  %888 = vmatprep.subr.mxu0 0.0
  %889 = vmatpush1.msra.mxu0 0.0
  %890 = vmatprep.subr.mxu0 0.0
  %891 = vmatpush1.msra.mxu0 0.0
  %892 = vmatprep.subr.mxu0 0.0
  %893 = vmatpush1.msra.mxu0 0.0
  %894 = vmatprep.subr.mxu0 0.0
  %895 = vmatpush1.msra.mxu0 0.0
  %896 = vmatprep.subr.mxu0 0.0
  %897 = vmatpush1.msra.mxu0 0.0
  %898 = vmatprep.subr.mxu0 0.0
  %899 = vmatpush1.msra.mxu0 0.0
  %900 = vmatprep.mubr.f32.mxu0 0.0
  %901 = vmatmul.mubr.f32.gmra.mrb[0].mxu0 %v763
  %v902 = vpop.f32.mrb[0].mxu0
  %v903 = vadd.f32 %v752, %v902
  %v904 = vpop.f32.mrb[0].mxu0
  %v905 = vadd.f32 %v756, %v904
  %906 = vdwg.mxu0
  %907 = vmatprep.subr.mxu0 %v674
  %908 = vmatpush1.msra.mxu0 %v673
  %909 = vmatprep.subr.mxu0 %v678
  %910 = vmatpush1.msra.mxu0 %v677
  %911 = vmatprep.subr.mxu0 %v682
  %912 = vmatpush1.msra.mxu0 %v681
  %913 = vmatprep.subr.mxu0 %v686
  %914 = vmatpush1.msra.mxu0 %v685
  %915 = vmatprep.subr.mxu0 %v690
  %916 = vmatpush1.msra.mxu0 %v689
  %917 = vmatprep.subr.mxu0 %v694
  %918 = vmatpush1.msra.mxu0 %v693
  %919 = vmatprep.subr.mxu0 %v698
  %920 = vmatpush1.msra.mxu0 %v697
  %921 = vmatprep.subr.mxu0 %v702
  %922 = vmatpush1.msra.mxu0 %v701
  %923 = vmatprep.subr.mxu0 %v706
  %924 = vmatpush1.msra.mxu0 %v705
  %925 = vmatprep.subr.mxu0 %v710
  %926 = vmatpush1.msra.mxu0 %v709
  %927 = vmatprep.subr.mxu0 %v714
  %928 = vmatpush1.msra.mxu0 %v713
  %929 = vmatprep.subr.mxu0 %v718
  %930 = vmatpush1.msra.mxu0 %v717
  %931 = vmatprep.subr.mxu0 %v722
  %932 = vmatpush1.msra.mxu0 %v721
  %933 = vmatprep.subr.mxu0 %v726
  %934 = vmatpush1.msra.mxu0 %v725
  %935 = vmatprep.subr.mxu0 %v730
  %936 = vmatpush1.msra.mxu0 %v729
  %937 = vmatprep.subr.mxu0 %v734
  %938 = vmatpush1.msra.mxu0 %v733
  %939 = vmatprep.subr.mxu0 0.0
  %940 = vmatpush1.msra.mxu0 0.0
  %941 = vmatprep.subr.mxu0 0.0
  %942 = vmatpush1.msra.mxu0 0.0
  %943 = vmatprep.subr.mxu0 0.0
  %944 = vmatpush1.msra.mxu0 0.0
  %945 = vmatprep.subr.mxu0 0.0
  %946 = vmatpush1.msra.mxu0 0.0
  %947 = vmatprep.subr.mxu0 0.0
  %948 = vmatpush1.msra.mxu0 0.0
  %949 = vmatprep.subr.mxu0 0.0
  %950 = vmatpush1.msra.mxu0 0.0
  %951 = vmatprep.subr.mxu0 0.0
  %952 = vmatpush1.msra.mxu0 0.0
  %953 = vmatprep.subr.mxu0 0.0
  %954 = vmatpush1.msra.mxu0 0.0
  %955 = vmatprep.subr.mxu0 0.0
  %956 = vmatpush1.msra.mxu0 0.0
  %957 = vmatprep.subr.mxu0 0.0
  %958 = vmatpush1.msra.mxu0 0.0
  %959 = vmatprep.subr.mxu0 0.0
  %960 = vmatpush1.msra.mxu0 0.0
  %961 = vmatprep.subr.mxu0 0.0
  %962 = vmatpush1.msra.mxu0 0.0
  %963 = vmatprep.subr.mxu0 0.0
  %964 = vmatpush1.msra.mxu0 0.0
  %965 = vmatprep.subr.mxu0 0.0
  %966 = vmatpush1.msra.mxu0 0.0
  %967 = vmatprep.subr.mxu0 0.0
  %968 = vmatpush1.msra.mxu0 0.0
  %969 = vmatprep.subr.mxu0 0.0
  %970 = vmatpush1.msra.mxu0 0.0
  %971 = vmatprep.mubr.f32.mxu0 0.0
  %972 = vmatmul.mubr.f32.gmra.mrb[0].mxu0 0.0
  %v973 = vpop.f32.mrb[0].mxu0
  %v974 = vadd.f32 0.0, %v973
  %v975 = vpop.f32.mrb[0].mxu0
  %v976 = vadd.f32 0.0, %v975
  %977 = vdwg.mxu0
  %978 = vmatprep.subr.mxu0 %v676
  %979 = vmatpush1.msra.mxu0 %v675
  %980 = vmatprep.subr.mxu0 %v680
  %981 = vmatpush1.msra.mxu0 %v679
  %982 = vmatprep.subr.mxu0 %v684
  %983 = vmatpush1.msra.mxu0 %v683
  %984 = vmatprep.subr.mxu0 %v688
  %985 = vmatpush1.msra.mxu0 %v687
  %986 = vmatprep.subr.mxu0 %v692
  %987 = vmatpush1.msra.mxu0 %v691
  %988 = vmatprep.subr.mxu0 %v696
  %989 = vmatpush1.msra.mxu0 %v695
  %990 = vmatprep.subr.mxu0 %v700
  %991 = vmatpush1.msra.mxu0 %v699
  %992 = vmatprep.subr.mxu0 %v704
  %993 = vmatpush1.msra.mxu0 %v703
  %994 = vmatprep.subr.mxu0 %v708
  %995 = vmatpush1.msra.mxu0 %v707
  %996 = vmatprep.subr.mxu0 %v712
  %997 = vmatpush1.msra.mxu0 %v711
  %998 = vmatprep.subr.mxu0 %v716
  %999 = vmatpush1.msra.mxu0 %v715
  %1000 = vmatprep.subr.mxu0 %v720
  %1001 = vmatpush1.msra.mxu0 %v719
  %1002 = vmatprep.subr.mxu0 %v724
  %1003 = vmatpush1.msra.mxu0 %v723
  %1004 = vmatprep.subr.mxu0 %v728
  %1005 = vmatpush1.msra.mxu0 %v727
  %1006 = vmatprep.subr.mxu0 %v732
  %1007 = vmatpush1.msra.mxu0 %v731
  %1008 = vmatprep.subr.mxu0 %v736
  %1009 = vmatpush1.msra.mxu0 %v735
  %1010 = vmatprep.subr.mxu0 0.0
  %1011 = vmatpush1.msra.mxu0 0.0
  %1012 = vmatprep.subr.mxu0 0.0
  %1013 = vmatpush1.msra.mxu0 0.0
  %1014 = vmatprep.subr.mxu0 0.0
  %1015 = vmatpush1.msra.mxu0 0.0
  %1016 = vmatprep.subr.mxu0 0.0
  %1017 = vmatpush1.msra.mxu0 0.0
  %1018 = vmatprep.subr.mxu0 0.0
  %1019 = vmatpush1.msra.mxu0 0.0
  %1020 = vmatprep.subr.mxu0 0.0
  %1021 = vmatpush1.msra.mxu0 0.0
  %1022 = vmatprep.subr.mxu0 0.0
  %1023 = vmatpush1.msra.mxu0 0.0
  %1024 = vmatprep.subr.mxu0 0.0
  %1025 = vmatpush1.msra.mxu0 0.0
  %1026 = vmatprep.subr.mxu0 0.0
  %1027 = vmatpush1.msra.mxu0 0.0
  %1028 = vmatprep.subr.mxu0 0.0
  %1029 = vmatpush1.msra.mxu0 0.0
  %1030 = vmatprep.subr.mxu0 0.0
  %1031 = vmatpush1.msra.mxu0 0.0
  %1032 = vmatprep.subr.mxu0 0.0
  %1033 = vmatpush1.msra.mxu0 0.0
  %1034 = vmatprep.subr.mxu0 0.0
  %1035 = vmatpush1.msra.mxu0 0.0
  %1036 = vmatprep.subr.mxu0 0.0
  %1037 = vmatpush1.msra.mxu0 0.0
  %1038 = vmatprep.subr.mxu0 0.0
  %1039 = vmatpush1.msra.mxu0 0.0
  %1040 = vmatprep.subr.mxu0 0.0
  %1041 = vmatpush1.msra.mxu0 0.0
  %1042 = vmatprep.mubr.f32.mxu0 0.0
  %1043 = vmatmul.mubr.f32.gmra.mrb[0].mxu0 0.0
  %v1044 = vpop.f32.mrb[0].mxu0
  %v1045 = vadd.f32 0.0, %v1044
  %v1046 = vpop.f32.mrb[0].mxu0
  %v1047 = vadd.f32 0.0, %v1046
  %1048 = vdwg.mxu0
  %v1049 = vadd.f32 %v832, %v974
  %v1050 = vadd.f32 %v834, %v976
  %v1051 = vadd.f32 %v903, %v1045
  %v1052 = vadd.f32 %v905, %v1047
  %v1053 = vmul.f32 %v1049, 0.5
  %v1054 = vmul.f32 %v1050, 0.5
  %v1055 = vmul.f32 %v1051, 0.5
  %v1056 = vtanh.pop %v1053
  %v1057 = vtanh.pop %v1054
  %v1058 = vtanh.pop %v1055
  %v1059 = vmul.f32 %v1056, 0.5
  %v1060 = vmul.f32 %v1057, 0.5
  %v1061 = vmul.f32 %v1058, 0.5
  %v1062 = vadd.f32 %v1059, 0.5
  %v1063 = vadd.f32 %v1060, 0.5
  %v1064 = vadd.f32 %v1061, 0.5
  %v1065 = vtanh.pop %v1052
  %v1066 = vmul.f32 %v1063, 0.0
  %v1067 = vmul.f32 %v1062, %v1065
  %v1068 = vadd.f32 %v1066, %v1067
  %v1069 = vtanh.pop %v1068
  %v1070 = vmul.f32 %v1064, %v1069
  %1071 = vmatprep.subr.mxu0 %v674
  %1072 = vmatpush1.msra.mxu0 %v673
  %1073 = vmatprep.subr.mxu0 %v678
  %1074 = vmatpush1.msra.mxu0 %v677
  %1075 = vmatprep.subr.mxu0 %v682
  %1076 = vmatpush1.msra.mxu0 %v681
  %1077 = vmatprep.subr.mxu0 %v686
  %1078 = vmatpush1.msra.mxu0 %v685
  %1079 = vmatprep.subr.mxu0 %v690
  %1080 = vmatpush1.msra.mxu0 %v689
  %1081 = vmatprep.subr.mxu0 %v694
  %1082 = vmatpush1.msra.mxu0 %v693
  %1083 = vmatprep.subr.mxu0 %v698
  %1084 = vmatpush1.msra.mxu0 %v697
  %1085 = vmatprep.subr.mxu0 %v702
  %1086 = vmatpush1.msra.mxu0 %v701
  %1087 = vmatprep.subr.mxu0 %v706
  %1088 = vmatpush1.msra.mxu0 %v705
  %1089 = vmatprep.subr.mxu0 %v710
  %1090 = vmatpush1.msra.mxu0 %v709
  %1091 = vmatprep.subr.mxu0 %v714
  %1092 = vmatpush1.msra.mxu0 %v713
  %1093 = vmatprep.subr.mxu0 %v718
  %1094 = vmatpush1.msra.mxu0 %v717
  %1095 = vmatprep.subr.mxu0 %v722
  %1096 = vmatpush1.msra.mxu0 %v721
  %1097 = vmatprep.subr.mxu0 %v726
  %1098 = vmatpush1.msra.mxu0 %v725
  %1099 = vmatprep.subr.mxu0 %v730
  %1100 = vmatpush1.msra.mxu0 %v729
  %1101 = vmatprep.subr.mxu0 %v734
  %1102 = vmatpush1.msra.mxu0 %v733
  %1103 = vmatprep.subr.mxu0 0.0
  %1104 = vmatpush1.msra.mxu0 0.0
  %1105 = vmatprep.subr.mxu0 0.0
  %1106 = vmatpush1.msra.mxu0 0.0
  %1107 = vmatprep.subr.mxu0 0.0
  %1108 = vmatpush1.msra.mxu0 0.0
  %1109 = vmatprep.subr.mxu0 0.0
  %1110 = vmatpush1.msra.mxu0 0.0
  %1111 = vmatprep.subr.mxu0 0.0
  %1112 = vmatpush1.msra.mxu0 0.0
  %1113 = vmatprep.subr.mxu0 0.0
  %1114 = vmatpush1.msra.mxu0 0.0
  %1115 = vmatprep.subr.mxu0 0.0
  %1116 = vmatpush1.msra.mxu0 0.0
  %1117 = vmatprep.subr.mxu0 0.0
  %1118 = vmatpush1.msra.mxu0 0.0
  %1119 = vmatprep.subr.mxu0 0.0
  %1120 = vmatpush1.msra.mxu0 0.0
  %1121 = vmatprep.subr.mxu0 0.0
  %1122 = vmatpush1.msra.mxu0 0.0
  %1123 = vmatprep.subr.mxu0 0.0
  %1124 = vmatpush1.msra.mxu0 0.0
  %1125 = vmatprep.subr.mxu0 0.0
  %1126 = vmatpush1.msra.mxu0 0.0
  %1127 = vmatprep.subr.mxu0 0.0
  %1128 = vmatpush1.msra.mxu0 0.0
  %1129 = vmatprep.subr.mxu0 0.0
  %1130 = vmatpush1.msra.mxu0 0.0
  %1131 = vmatprep.subr.mxu0 0.0
  %1132 = vmatpush1.msra.mxu0 0.0
  %1133 = vmatprep.subr.mxu0 0.0
  %1134 = vmatpush1.msra.mxu0 0.0
  %1135 = vmatprep.mubr.f32.mxu0 0.0
  %1136 = vmatmul.mubr.f32.gmra.mrb[0].mxu0 %v1070
  %v1137 = vpop.f32.mrb[0].mxu0
  %v1138 = vadd.f32 0.0, %v1137
  %v1139 = vpop.f32.mrb[0].mxu0
  %v1140 = vadd.f32 0.0, %v1139
  %1141 = vdwg.mxu0
  %1142 = vmatprep.subr.mxu0 %v676
  %1143 = vmatpush1.msra.mxu0 %v675
  %1144 = vmatprep.subr.mxu0 %v680
  %1145 = vmatpush1.msra.mxu0 %v679
  %1146 = vmatprep.subr.mxu0 %v684
  %1147 = vmatpush1.msra.mxu0 %v683
  %1148 = vmatprep.subr.mxu0 %v688
  %1149 = vmatpush1.msra.mxu0 %v687
  %1150 = vmatprep.subr.mxu0 %v692
  %1151 = vmatpush1.msra.mxu0 %v691
  %1152 = vmatprep.subr.mxu0 %v696
  %1153 = vmatpush1.msra.mxu0 %v695
  %1154 = vmatprep.subr.mxu0 %v700
  %1155 = vmatpush1.msra.mxu0 %v699
  %1156 = vmatprep.subr.mxu0 %v704
  %1157 = vmatpush1.msra.mxu0 %v703
  %1158 = vmatprep.subr.mxu0 %v708
  %1159 = vmatpush1.msra.mxu0 %v707
  %1160 = vmatprep.subr.mxu0 %v712
  %1161 = vmatpush1.msra.mxu0 %v711
  %1162 = vmatprep.subr.mxu0 %v716
  %1163 = vmatpush1.msra.mxu0 %v715
  %1164 = vmatprep.subr.mxu0 %v720
  %1165 = vmatpush1.msra.mxu0 %v719
  %1166 = vmatprep.subr.mxu0 %v724
  %1167 = vmatpush1.msra.mxu0 %v723
  %1168 = vmatprep.subr.mxu0 %v728
  %1169 = vmatpush1.msra.mxu0 %v727
  %1170 = vmatprep.subr.mxu0 %v732
  %1171 = vmatpush1.msra.mxu0 %v731
  %1172 = vmatprep.subr.mxu0 %v736
  %1173 = vmatpush1.msra.mxu0 %v735
  %1174 = vmatprep.subr.mxu0 0.0
  %1175 = vmatpush1.msra.mxu0 0.0
  %1176 = vmatprep.subr.mxu0 0.0
  %1177 = vmatpush1.msra.mxu0 0.0
  %1178 = vmatprep.subr.mxu0 0.0
  %1179 = vmatpush1.msra.mxu0 0.0
  %1180 = vmatprep.subr.mxu0 0.0
  %1181 = vmatpush1.msra.mxu0 0.0
  %1182 = vmatprep.subr.mxu0 0.0
  %1183 = vmatpush1.msra.mxu0 0.0
  %1184 = vmatprep.subr.mxu0 0.0
  %1185 = vmatpush1.msra.mxu0 0.0
  %1186 = vmatprep.subr.mxu0 0.0
  %1187 = vmatpush1.msra.mxu0 0.0
  %1188 = vmatprep.subr.mxu0 0.0
  %1189 = vmatpush1.msra.mxu0 0.0
  %1190 = vmatprep.subr.mxu0 0.0
  %1191 = vmatpush1.msra.mxu0 0.0
  %1192 = vmatprep.subr.mxu0 0.0
  %1193 = vmatpush1.msra.mxu0 0.0
  %1194 = vmatprep.subr.mxu0 0.0
  %1195 = vmatpush1.msra.mxu0 0.0
  %1196 = vmatprep.subr.mxu0 0.0
  %1197 = vmatpush1.msra.mxu0 0.0
  %1198 = vmatprep.subr.mxu0 0.0
  %1199 = vmatpush1.msra.mxu0 0.0
  %1200 = vmatprep.subr.mxu0 0.0
  %1201 = vmatpush1.msra.mxu0 0.0
  %1202 = vmatprep.subr.mxu0 0.0
  %1203 = vmatpush1.msra.mxu0 0.0
  %1204 = vmatprep.subr.mxu0 0.0
  %1205 = vmatpush1.msra.mxu0 0.0
  %1206 = vmatprep.mubr.f32.mxu0 0.0
  %1207 = vmatmul.mubr.f32.gmra.mrb[0].mxu0 %v1070
  %v1208 = vpop.f32.mrb[0].mxu0
  %v1209 = vadd.f32 0.0, %v1208
  %v1210 = vpop.f32.mrb[0].mxu0
  %v1211 = vadd.f32 0.0, %v1210
  %1212 = vdwg.mxu0
  %v1217 = vrot.slane %v1138, 7
  %v1218 = vrot.slane %v1140, 7
  %v1219 = vrot.slane %v1209, 7
  %v1220 = vrot.slane %v1211, 7
  %v1225 = vadd.f32 %v832, %v1217
  %v1226 = vadd.f32 %v834, %v1218
  %v1227 = vadd.f32 %v903, %v1219
  %v1228 = vadd.f32 %v905, %v1220
  %v1229 = vmul.f32 %v1225, 0.5
  %v1230 = vmul.f32 %v1226, 0.5
  %v1231 = vmul.f32 %v1227, 0.5
  %v1232 = vtanh.pop %v1229
  %v1233 = vtanh.pop %v1230
  %v1234 = vtanh.pop %v1231
  %v1235 = vmul.f32 %v1232, 0.5
  %v1236 = vmul.f32 %v1233, 0.5
  %v1237 = vmul.f32 %v1234, 0.5
  %v1238 = vadd.f32 %v1235, 0.5
  %v1239 = vadd.f32 %v1236, 0.5
  %v1240 = vadd.f32 %v1237, 0.5
  %v1241 = vtanh.pop %v1228
  %v1243 = vrot.slane %v1068, 7
  %v1245 = vmul.f32 %v1239, %v1243
  %v1246 = vmul.f32 %v1238, %v1241
  %v1247 = vadd.f32 %v1245, %v1246
  %v1248 = vtanh.pop %v1247
  %v1249 = vmul.f32 %v1240, %v1248
  %v1251 = vrot.slane %v1249, 1
  %1253 = vmatprep.subr.mxu0 %v674
  %1254 = vmatpush1.msra.mxu0 %v673
  %1255 = vmatprep.subr.mxu0 %v678
  %1256 = vmatpush1.msra.mxu0 %v677
  %1257 = vmatprep.subr.mxu0 %v682
  %1258 = vmatpush1.msra.mxu0 %v681
  %1259 = vmatprep.subr.mxu0 %v686
  %1260 = vmatpush1.msra.mxu0 %v685
  %1261 = vmatprep.subr.mxu0 %v690
  %1262 = vmatpush1.msra.mxu0 %v689
  %1263 = vmatprep.subr.mxu0 %v694
  %1264 = vmatpush1.msra.mxu0 %v693
  %1265 = vmatprep.subr.mxu0 %v698
  %1266 = vmatpush1.msra.mxu0 %v697
  %1267 = vmatprep.subr.mxu0 %v702
  %1268 = vmatpush1.msra.mxu0 %v701
  %1269 = vmatprep.subr.mxu0 %v706
  %1270 = vmatpush1.msra.mxu0 %v705
  %1271 = vmatprep.subr.mxu0 %v710
  %1272 = vmatpush1.msra.mxu0 %v709
  %1273 = vmatprep.subr.mxu0 %v714
  %1274 = vmatpush1.msra.mxu0 %v713
  %1275 = vmatprep.subr.mxu0 %v718
  %1276 = vmatpush1.msra.mxu0 %v717
  %1277 = vmatprep.subr.mxu0 %v722
  %1278 = vmatpush1.msra.mxu0 %v721
  %1279 = vmatprep.subr.mxu0 %v726
  %1280 = vmatpush1.msra.mxu0 %v725
  %1281 = vmatprep.subr.mxu0 %v730
  %1282 = vmatpush1.msra.mxu0 %v729
  %1283 = vmatprep.subr.mxu0 %v734
  %1284 = vmatpush1.msra.mxu0 %v733
  %1285 = vmatprep.subr.mxu0 0.0
  %1286 = vmatpush1.msra.mxu0 0.0
  %1287 = vmatprep.subr.mxu0 0.0
  %1288 = vmatpush1.msra.mxu0 0.0
  %1289 = vmatprep.subr.mxu0 0.0
  %1290 = vmatpush1.msra.mxu0 0.0
  %1291 = vmatprep.subr.mxu0 0.0
  %1292 = vmatpush1.msra.mxu0 0.0
  %1293 = vmatprep.subr.mxu0 0.0
  %1294 = vmatpush1.msra.mxu0 0.0
  %1295 = vmatprep.subr.mxu0 0.0
  %1296 = vmatpush1.msra.mxu0 0.0
  %1297 = vmatprep.subr.mxu0 0.0
  %1298 = vmatpush1.msra.mxu0 0.0
  %1299 = vmatprep.subr.mxu0 0.0
  %1300 = vmatpush1.msra.mxu0 0.0
  %1301 = vmatprep.subr.mxu0 0.0
  %1302 = vmatpush1.msra.mxu0 0.0
  %1303 = vmatprep.subr.mxu0 0.0
  %1304 = vmatpush1.msra.mxu0 0.0
  %1305 = vmatprep.subr.mxu0 0.0
  %1306 = vmatpush1.msra.mxu0 0.0
  %1307 = vmatprep.subr.mxu0 0.0
  %1308 = vmatpush1.msra.mxu0 0.0
  %1309 = vmatprep.subr.mxu0 0.0
  %1310 = vmatpush1.msra.mxu0 0.0
  %1311 = vmatprep.subr.mxu0 0.0
  %1312 = vmatpush1.msra.mxu0 0.0
  %1313 = vmatprep.subr.mxu0 0.0
  %1314 = vmatpush1.msra.mxu0 0.0
  %1315 = vmatprep.subr.mxu0 0.0
  %1316 = vmatpush1.msra.mxu0 0.0
  %1317 = vmatprep.mubr.f32.mxu0 0.0
  %1318 = vmatmul.mubr.f32.gmra.mrb[0].mxu0 %v1251
  %v1319 = vpop.f32.mrb[0].mxu0
  %v1320 = vadd.f32 0.0, %v1319
  %v1321 = vpop.f32.mrb[0].mxu0
  %v1322 = vadd.f32 0.0, %v1321
  %1323 = vdwg.mxu0
  %1324 = vmatprep.subr.mxu0 %v676
  %1325 = vmatpush1.msra.mxu0 %v675
  %1326 = vmatprep.subr.mxu0 %v680
  %1327 = vmatpush1.msra.mxu0 %v679
  %1328 = vmatprep.subr.mxu0 %v684
  %1329 = vmatpush1.msra.mxu0 %v683
  %1330 = vmatprep.subr.mxu0 %v688
  %1331 = vmatpush1.msra.mxu0 %v687
  %1332 = vmatprep.subr.mxu0 %v692
  %1333 = vmatpush1.msra.mxu0 %v691
  %1334 = vmatprep.subr.mxu0 %v696
  %1335 = vmatpush1.msra.mxu0 %v695
  %1336 = vmatprep.subr.mxu0 %v700
  %1337 = vmatpush1.msra.mxu0 %v699
  %1338 = vmatprep.subr.mxu0 %v704
  %1339 = vmatpush1.msra.mxu0 %v703
  %1340 = vmatprep.subr.mxu0 %v708
  %1341 = vmatpush1.msra.mxu0 %v707
  %1342 = vmatprep.subr.mxu0 %v712
  %1343 = vmatpush1.msra.mxu0 %v711
  %1344 = vmatprep.subr.mxu0 %v716
  %1345 = vmatpush1.msra.mxu0 %v715
  %1346 = vmatprep.subr.mxu0 %v720
  %1347 = vmatpush1.msra.mxu0 %v719
  %1348 = vmatprep.subr.mxu0 %v724
  %1349 = vmatpush1.msra.mxu0 %v723
  %1350 = vmatprep.subr.mxu0 %v728
  %1351 = vmatpush1.msra.mxu0 %v727
  %1352 = vmatprep.subr.mxu0 %v732
  %1353 = vmatpush1.msra.mxu0 %v731
  %1354 = vmatprep.subr.mxu0 %v736
  %1355 = vmatpush1.msra.mxu0 %v735
  %1356 = vmatprep.subr.mxu0 0.0
  %1357 = vmatpush1.msra.mxu0 0.0
  %1358 = vmatprep.subr.mxu0 0.0
  %1359 = vmatpush1.msra.mxu0 0.0
  %1360 = vmatprep.subr.mxu0 0.0
  %1361 = vmatpush1.msra.mxu0 0.0
  %1362 = vmatprep.subr.mxu0 0.0
  %1363 = vmatpush1.msra.mxu0 0.0
  %1364 = vmatprep.subr.mxu0 0.0
  %1365 = vmatpush1.msra.mxu0 0.0
  %1366 = vmatprep.subr.mxu0 0.0
  %1367 = vmatpush1.msra.mxu0 0.0
  %1368 = vmatprep.subr.mxu0 0.0
  %1369 = vmatpush1.msra.mxu0 0.0
  %1370 = vmatprep.subr.mxu0 0.0
  %1371 = vmatpush1.msra.mxu0 0.0
  %1372 = vmatprep.subr.mxu0 0.0
  %1373 = vmatpush1.msra.mxu0 0.0
  %1374 = vmatprep.subr.mxu0 0.0
  %1375 = vmatpush1.msra.mxu0 0.0
  %1376 = vmatprep.subr.mxu0 0.0
  %1377 = vmatpush1.msra.mxu0 0.0
  %1378 = vmatprep.subr.mxu0 0.0
  %1379 = vmatpush1.msra.mxu0 0.0
  %1380 = vmatprep.subr.mxu0 0.0
  %1381 = vmatpush1.msra.mxu0 0.0
  %1382 = vmatprep.subr.mxu0 0.0
  %1383 = vmatpush1.msra.mxu0 0.0
  %1384 = vmatprep.subr.mxu0 0.0
  %1385 = vmatpush1.msra.mxu0 0.0
  %1386 = vmatprep.subr.mxu0 0.0
  %1387 = vmatpush1.msra.mxu0 0.0
  %1388 = vmatprep.mubr.f32.mxu0 0.0
  %1389 = vmatmul.mubr.f32.gmra.mrb[0].mxu0 %v1251
  %v1390 = vpop.f32.mrb[0].mxu0
  %v1391 = vadd.f32 0.0, %v1390
  %v1392 = vpop.f32.mrb[0].mxu0
  %v1393 = vadd.f32 0.0, %v1392
  %1394 = vdwg.mxu0
  %v1399 = vrot.slane %v1320, 6
  %v1400 = vrot.slane %v1322, 6
  %v1401 = vrot.slane %v1391, 6
  %v1402 = vrot.slane %v1393, 6
  %v1407 = vadd.f32 %v832, %v1399
  %v1408 = vadd.f32 %v834, %v1400
  %v1409 = vadd.f32 %v903, %v1401
  %v1410 = vadd.f32 %v905, %v1402
  %v1411 = vmul.f32 %v1407, 0.5
  %v1412 = vmul.f32 %v1408, 0.5
  %v1413 = vmul.f32 %v1409, 0.5
  %v1414 = vtanh.pop %v1411
  %v1415 = vtanh.pop %v1412
  %v1416 = vtanh.pop %v1413
  %v1417 = vmul.f32 %v1414, 0.5
  %v1418 = vmul.f32 %v1415, 0.5
  %v1419 = vmul.f32 %v1416, 0.5
  %v1420 = vadd.f32 %v1417, 0.5
  %v1421 = vadd.f32 %v1418, 0.5
  %v1422 = vadd.f32 %v1419, 0.5
  %v1423 = vtanh.pop %v1410
  %v1425 = vrot.slane %v1247, 7
  %v1427 = vmul.f32 %v1421, %v1425
  %v1428 = vmul.f32 %v1420, %v1423
  %v1429 = vadd.f32 %v1427, %v1428
  %v1430 = vtanh.pop %v1429
  %v1431 = vmul.f32 %v1422, %v1430
  %v1433 = vrot.slane %v1431, 2
  %1435 = vmatprep.subr.mxu0 %v674
  %1436 = vmatpush1.msra.mxu0 %v673
  %1437 = vmatprep.subr.mxu0 %v678
  %1438 = vmatpush1.msra.mxu0 %v677
  %1439 = vmatprep.subr.mxu0 %v682
  %1440 = vmatpush1.msra.mxu0 %v681
  %1441 = vmatprep.subr.mxu0 %v686
  %1442 = vmatpush1.msra.mxu0 %v685
  %1443 = vmatprep.subr.mxu0 %v690
  %1444 = vmatpush1.msra.mxu0 %v689
  %1445 = vmatprep.subr.mxu0 %v694
  %1446 = vmatpush1.msra.mxu0 %v693
  %1447 = vmatprep.subr.mxu0 %v698
  %1448 = vmatpush1.msra.mxu0 %v697
  %1449 = vmatprep.subr.mxu0 %v702
  %1450 = vmatpush1.msra.mxu0 %v701
  %1451 = vmatprep.subr.mxu0 %v706
  %1452 = vmatpush1.msra.mxu0 %v705
  %1453 = vmatprep.subr.mxu0 %v710
  %1454 = vmatpush1.msra.mxu0 %v709
  %1455 = vmatprep.subr.mxu0 %v714
  %1456 = vmatpush1.msra.mxu0 %v713
  %1457 = vmatprep.subr.mxu0 %v718
  %1458 = vmatpush1.msra.mxu0 %v717
  %1459 = vmatprep.subr.mxu0 %v722
  %1460 = vmatpush1.msra.mxu0 %v721
  %1461 = vmatprep.subr.mxu0 %v726
  %1462 = vmatpush1.msra.mxu0 %v725
  %1463 = vmatprep.subr.mxu0 %v730
  %1464 = vmatpush1.msra.mxu0 %v729
  %1465 = vmatprep.subr.mxu0 %v734
  %1466 = vmatpush1.msra.mxu0 %v733
  %1467 = vmatprep.subr.mxu0 0.0
  %1468 = vmatpush1.msra.mxu0 0.0
  %1469 = vmatprep.subr.mxu0 0.0
  %1470 = vmatpush1.msra.mxu0 0.0
  %1471 = vmatprep.subr.mxu0 0.0
  %1472 = vmatpush1.msra.mxu0 0.0
  %1473 = vmatprep.subr.mxu0 0.0
  %1474 = vmatpush1.msra.mxu0 0.0
  %1475 = vmatprep.subr.mxu0 0.0
  %1476 = vmatpush1.msra.mxu0 0.0
  %1477 = vmatprep.subr.mxu0 0.0
  %1478 = vmatpush1.msra.mxu0 0.0
  %1479 = vmatprep.subr.mxu0 0.0
  %1480 = vmatpush1.msra.mxu0 0.0
  %1481 = vmatprep.subr.mxu0 0.0
  %1482 = vmatpush1.msra.mxu0 0.0
  %1483 = vmatprep.subr.mxu0 0.0
  %1484 = vmatpush1.msra.mxu0 0.0
  %1485 = vmatprep.subr.mxu0 0.0
  %1486 = vmatpush1.msra.mxu0 0.0
  %1487 = vmatprep.subr.mxu0 0.0
  %1488 = vmatpush1.msra.mxu0 0.0
  %1489 = vmatprep.subr.mxu0 0.0
  %1490 = vmatpush1.msra.mxu0 0.0
  %1491 = vmatprep.subr.mxu0 0.0
  %1492 = vmatpush1.msra.mxu0 0.0
  %1493 = vmatprep.subr.mxu0 0.0
  %1494 = vmatpush1.msra.mxu0 0.0
  %1495 = vmatprep.subr.mxu0 0.0
  %1496 = vmatpush1.msra.mxu0 0.0
  %1497 = vmatprep.subr.mxu0 0.0
  %1498 = vmatpush1.msra.mxu0 0.0
  %1499 = vmatprep.mubr.f32.mxu0 0.0
  %1500 = vmatmul.mubr.f32.gmra.mrb[0].mxu0 %v1433
  %v1501 = vpop.f32.mrb[0].mxu0
  %v1502 = vadd.f32 0.0, %v1501
  %v1503 = vpop.f32.mrb[0].mxu0
  %v1504 = vadd.f32 0.0, %v1503
  %1505 = vdwg.mxu0
  %1506 = vmatprep.subr.mxu0 %v676
  %1507 = vmatpush1.msra.mxu0 %v675
  %1508 = vmatprep.subr.mxu0 %v680
  %1509 = vmatpush1.msra.mxu0 %v679
  %1510 = vmatprep.subr.mxu0 %v684
  %1511 = vmatpush1.msra.mxu0 %v683
  %1512 = vmatprep.subr.mxu0 %v688
  %1513 = vmatpush1.msra.mxu0 %v687
  %1514 = vmatprep.subr.mxu0 %v692
  %1515 = vmatpush1.msra.mxu0 %v691
  %1516 = vmatprep.subr.mxu0 %v696
  %1517 = vmatpush1.msra.mxu0 %v695
  %1518 = vmatprep.subr.mxu0 %v700
  %1519 = vmatpush1.msra.mxu0 %v699
  %1520 = vmatprep.subr.mxu0 %v704
  %1521 = vmatpush1.msra.mxu0 %v703
  %1522 = vmatprep.subr.mxu0 %v708
  %1523 = vmatpush1.msra.mxu0 %v707
  %1524 = vmatprep.subr.mxu0 %v712
  %1525 = vmatpush1.msra.mxu0 %v711
  %1526 = vmatprep.subr.mxu0 %v716
  %1527 = vmatpush1.msra.mxu0 %v715
  %1528 = vmatprep.subr.mxu0 %v720
  %1529 = vmatpush1.msra.mxu0 %v719
  %1530 = vmatprep.subr.mxu0 %v724
  %1531 = vmatpush1.msra.mxu0 %v723
  %1532 = vmatprep.subr.mxu0 %v728
  %1533 = vmatpush1.msra.mxu0 %v727
  %1534 = vmatprep.subr.mxu0 %v732
  %1535 = vmatpush1.msra.mxu0 %v731
  %1536 = vmatprep.subr.mxu0 %v736
  %1537 = vmatpush1.msra.mxu0 %v735
  %1538 = vmatprep.subr.mxu0 0.0
  %1539 = vmatpush1.msra.mxu0 0.0
  %1540 = vmatprep.subr.mxu0 0.0
  %1541 = vmatpush1.msra.mxu0 0.0
  %1542 = vmatprep.subr.mxu0 0.0
  %1543 = vmatpush1.msra.mxu0 0.0
  %1544 = vmatprep.subr.mxu0 0.0
  %1545 = vmatpush1.msra.mxu0 0.0
  %1546 = vmatprep.subr.mxu0 0.0
  %1547 = vmatpush1.msra.mxu0 0.0
  %1548 = vmatprep.subr.mxu0 0.0
  %1549 = vmatpush1.msra.mxu0 0.0
  %1550 = vmatprep.subr.mxu0 0.0
  %1551 = vmatpush1.msra.mxu0 0.0
  %1552 = vmatprep.subr.mxu0 0.0
  %1553 = vmatpush1.msra.mxu0 0.0
  %1554 = vmatprep.subr.mxu0 0.0
  %1555 = vmatpush1.msra.mxu0 0.0
  %1556 = vmatprep.subr.mxu0 0.0
  %1557 = vmatpush1.msra.mxu0 0.0
  %1558 = vmatprep.subr.mxu0 0.0
  %1559 = vmatpush1.msra.mxu0 0.0
  %1560 = vmatprep.subr.mxu0 0.0
  %1561 = vmatpush1.msra.mxu0 0.0
  %1562 = vmatprep.subr.mxu0 0.0
  %1563 = vmatpush1.msra.mxu0 0.0
  %1564 = vmatprep.subr.mxu0 0.0
  %1565 = vmatpush1.msra.mxu0 0.0
  %1566 = vmatprep.subr.mxu0 0.0
  %1567 = vmatpush1.msra.mxu0 0.0
  %1568 = vmatprep.subr.mxu0 0.0
  %1569 = vmatpush1.msra.mxu0 0.0
  %1570 = vmatprep.mubr.f32.mxu0 0.0
  %1571 = vmatmul.mubr.f32.gmra.mrb[0].mxu0 %v1433
  %v1572 = vpop.f32.mrb[0].mxu0
  %v1573 = vadd.f32 0.0, %v1572
  %v1574 = vpop.f32.mrb[0].mxu0
  %v1575 = vadd.f32 0.0, %v1574
  %1576 = vdwg.mxu0
  %v1581 = vrot.slane %v1502, 5
  %v1582 = vrot.slane %v1504, 5
  %v1583 = vrot.slane %v1573, 5
  %v1584 = vrot.slane %v1575, 5
  %v1589 = vadd.f32 %v832, %v1581
  %v1590 = vadd.f32 %v834, %v1582
  %v1591 = vadd.f32 %v903, %v1583
  %v1592 = vadd.f32 %v905, %v1584
  %v1593 = vmul.f32 %v1589, 0.5
  %v1594 = vmul.f32 %v1590, 0.5
  %v1595 = vmul.f32 %v1591, 0.5
  %v1596 = vtanh.pop %v1593
  %v1597 = vtanh.pop %v1594
  %v1598 = vtanh.pop %v1595
  %v1599 = vmul.f32 %v1596, 0.5
  %v1600 = vmul.f32 %v1597, 0.5
  %v1601 = vmul.f32 %v1598, 0.5
  %v1602 = vadd.f32 %v1599, 0.5
  %v1603 = vadd.f32 %v1600, 0.5
  %v1604 = vadd.f32 %v1601, 0.5
  %v1605 = vtanh.pop %v1592
  %v1607 = vrot.slane %v1429, 7
  %v1609 = vmul.f32 %v1603, %v1607
  %v1610 = vmul.f32 %v1602, %v1605
  %v1611 = vadd.f32 %v1609, %v1610
  %v1612 = vtanh.pop %v1611
  %v1613 = vmul.f32 %v1604, %v1612
  %v1615 = vrot.slane %v1613, 3
  %1617 = vmatprep.subr.mxu0 %v674
  %1618 = vmatpush1.msra.mxu0 %v673
  %1619 = vmatprep.subr.mxu0 %v678
  %1620 = vmatpush1.msra.mxu0 %v677
  %1621 = vmatprep.subr.mxu0 %v682
  %1622 = vmatpush1.msra.mxu0 %v681
  %1623 = vmatprep.subr.mxu0 %v686
  %1624 = vmatpush1.msra.mxu0 %v685
  %1625 = vmatprep.subr.mxu0 %v690
  %1626 = vmatpush1.msra.mxu0 %v689
  %1627 = vmatprep.subr.mxu0 %v694
  %1628 = vmatpush1.msra.mxu0 %v693
  %1629 = vmatprep.subr.mxu0 %v698
  %1630 = vmatpush1.msra.mxu0 %v697
  %1631 = vmatprep.subr.mxu0 %v702
  %1632 = vmatpush1.msra.mxu0 %v701
  %1633 = vmatprep.subr.mxu0 %v706
  %1634 = vmatpush1.msra.mxu0 %v705
  %1635 = vmatprep.subr.mxu0 %v710
  %1636 = vmatpush1.msra.mxu0 %v709
  %1637 = vmatprep.subr.mxu0 %v714
  %1638 = vmatpush1.msra.mxu0 %v713
  %1639 = vmatprep.subr.mxu0 %v718
  %1640 = vmatpush1.msra.mxu0 %v717
  %1641 = vmatprep.subr.mxu0 %v722
  %1642 = vmatpush1.msra.mxu0 %v721
  %1643 = vmatprep.subr.mxu0 %v726
  %1644 = vmatpush1.msra.mxu0 %v725
  %1645 = vmatprep.subr.mxu0 %v730
  %1646 = vmatpush1.msra.mxu0 %v729
  %1647 = vmatprep.subr.mxu0 %v734
  %1648 = vmatpush1.msra.mxu0 %v733
  %1649 = vmatprep.subr.mxu0 0.0
  %1650 = vmatpush1.msra.mxu0 0.0
  %1651 = vmatprep.subr.mxu0 0.0
  %1652 = vmatpush1.msra.mxu0 0.0
  %1653 = vmatprep.subr.mxu0 0.0
  %1654 = vmatpush1.msra.mxu0 0.0
  %1655 = vmatprep.subr.mxu0 0.0
  %1656 = vmatpush1.msra.mxu0 0.0
  %1657 = vmatprep.subr.mxu0 0.0
  %1658 = vmatpush1.msra.mxu0 0.0
  %1659 = vmatprep.subr.mxu0 0.0
  %1660 = vmatpush1.msra.mxu0 0.0
  %1661 = vmatprep.subr.mxu0 0.0
  %1662 = vmatpush1.msra.mxu0 0.0
  %1663 = vmatprep.subr.mxu0 0.0
  %1664 = vmatpush1.msra.mxu0 0.0
  %1665 = vmatprep.subr.mxu0 0.0
  %1666 = vmatpush1.msra.mxu0 0.0
  %1667 = vmatprep.subr.mxu0 0.0
  %1668 = vmatpush1.msra.mxu0 0.0
  %1669 = vmatprep.subr.mxu0 0.0
  %1670 = vmatpush1.msra.mxu0 0.0
  %1671 = vmatprep.subr.mxu0 0.0
  %1672 = vmatpush1.msra.mxu0 0.0
  %1673 = vmatprep.subr.mxu0 0.0
  %1674 = vmatpush1.msra.mxu0 0.0
  %1675 = vmatprep.subr.mxu0 0.0
  %1676 = vmatpush1.msra.mxu0 0.0
  %1677 = vmatprep.subr.mxu0 0.0
  %1678 = vmatpush1.msra.mxu0 0.0
  %1679 = vmatprep.subr.mxu0 0.0
  %1680 = vmatpush1.msra.mxu0 0.0
  %1681 = vmatprep.mubr.f32.mxu0 0.0
  %1682 = vmatmul.mubr.f32.gmra.mrb[0].mxu0 %v1615
  %v1683 = vpop.f32.mrb[0].mxu0
  %v1684 = vadd.f32 0.0, %v1683
  %v1685 = vpop.f32.mrb[0].mxu0
  %v1686 = vadd.f32 0.0, %v1685
  %1687 = vdwg.mxu0
  %1688 = vmatprep.subr.mxu0 %v676
  %1689 = vmatpush1.msra.mxu0 %v675
  %1690 = vmatprep.subr.mxu0 %v680
  %1691 = vmatpush1.msra.mxu0 %v679
  %1692 = vmatprep.subr.mxu0 %v684
  %1693 = vmatpush1.msra.mxu0 %v683
  %1694 = vmatprep.subr.mxu0 %v688
  %1695 = vmatpush1.msra.mxu0 %v687
  %1696 = vmatprep.subr.mxu0 %v692
  %1697 = vmatpush1.msra.mxu0 %v691
  %1698 = vmatprep.subr.mxu0 %v696
  %1699 = vmatpush1.msra.mxu0 %v695
  %1700 = vmatprep.subr.mxu0 %v700
  %1701 = vmatpush1.msra.mxu0 %v699
  %1702 = vmatprep.subr.mxu0 %v704
  %1703 = vmatpush1.msra.mxu0 %v703
  %1704 = vmatprep.subr.mxu0 %v708
  %1705 = vmatpush1.msra.mxu0 %v707
  %1706 = vmatprep.subr.mxu0 %v712
  %1707 = vmatpush1.msra.mxu0 %v711
  %1708 = vmatprep.subr.mxu0 %v716
  %1709 = vmatpush1.msra.mxu0 %v715
  %1710 = vmatprep.subr.mxu0 %v720
  %1711 = vmatpush1.msra.mxu0 %v719
  %1712 = vmatprep.subr.mxu0 %v724
  %1713 = vmatpush1.msra.mxu0 %v723
  %1714 = vmatprep.subr.mxu0 %v728
  %1715 = vmatpush1.msra.mxu0 %v727
  %1716 = vmatprep.subr.mxu0 %v732
  %1717 = vmatpush1.msra.mxu0 %v731
  %1718 = vmatprep.subr.mxu0 %v736
  %1719 = vmatpush1.msra.mxu0 %v735
  %1720 = vmatprep.subr.mxu0 0.0
  %1721 = vmatpush1.msra.mxu0 0.0
  %1722 = vmatprep.subr.mxu0 0.0
  %1723 = vmatpush1.msra.mxu0 0.0
  %1724 = vmatprep.subr.mxu0 0.0
  %1725 = vmatpush1.msra.mxu0 0.0
  %1726 = vmatprep.subr.mxu0 0.0
  %1727 = vmatpush1.msra.mxu0 0.0
  %1728 = vmatprep.subr.mxu0 0.0
  %1729 = vmatpush1.msra.mxu0 0.0
  %1730 = vmatprep.subr.mxu0 0.0
  %1731 = vmatpush1.msra.mxu0 0.0
  %1732 = vmatprep.subr.mxu0 0.0
  %1733 = vmatpush1.msra.mxu0 0.0
  %1734 = vmatprep.subr.mxu0 0.0
  %1735 = vmatpush1.msra.mxu0 0.0
  %1736 = vmatprep.subr.mxu0 0.0
  %1737 = vmatpush1.msra.mxu0 0.0
  %1738 = vmatprep.subr.mxu0 0.0
  %1739 = vmatpush1.msra.mxu0 0.0
  %1740 = vmatprep.subr.mxu0 0.0
  %1741 = vmatpush1.msra.mxu0 0.0
  %1742 = vmatprep.subr.mxu0 0.0
  %1743 = vmatpush1.msra.mxu0 0.0
  %1744 = vmatprep.subr.mxu0 0.0
  %1745 = vmatpush1.msra.mxu0 0.0
  %1746 = vmatprep.subr.mxu0 0.0
  %1747 = vmatpush1.msra.mxu0 0.0
  %1748 = vmatprep.subr.mxu0 0.0
  %1749 = vmatpush1.msra.mxu0 0.0
  %1750 = vmatprep.subr.mxu0 0.0
  %1751 = vmatpush1.msra.mxu0 0.0
  %1752 = vmatprep.mubr.f32.mxu0 0.0
  %1753 = vmatmul.mubr.f32.gmra.mrb[0].mxu0 %v1615
  %v1754 = vpop.f32.mrb[0].mxu0
  %v1755 = vadd.f32 0.0, %v1754
  %v1756 = vpop.f32.mrb[0].mxu0
  %v1757 = vadd.f32 0.0, %v1756
  %1758 = vdwg.mxu0
  %v1763 = vrot.slane %v1684, 4
  %v1764 = vrot.slane %v1686, 4
  %v1765 = vrot.slane %v1755, 4
  %v1766 = vrot.slane %v1757, 4
  %v1771 = vadd.f32 %v832, %v1763
  %v1772 = vadd.f32 %v834, %v1764
  %v1773 = vadd.f32 %v903, %v1765
  %v1774 = vadd.f32 %v905, %v1766
  %v1775 = vmul.f32 %v1771, 0.5
  %v1776 = vmul.f32 %v1772, 0.5
  %v1777 = vmul.f32 %v1773, 0.5
  %v1778 = vtanh.pop %v1775
  %v1779 = vtanh.pop %v1776
  %v1780 = vtanh.pop %v1777
  %v1781 = vmul.f32 %v1778, 0.5
  %v1782 = vmul.f32 %v1779, 0.5
  %v1783 = vmul.f32 %v1780, 0.5
  %v1784 = vadd.f32 %v1781, 0.5
  %v1785 = vadd.f32 %v1782, 0.5
  %v1786 = vadd.f32 %v1783, 0.5
  %v1787 = vtanh.pop %v1774
  %v1789 = vrot.slane %v1611, 7
  %v1791 = vmul.f32 %v1785, %v1789
  %v1792 = vmul.f32 %v1784, %v1787
  %v1793 = vadd.f32 %v1791, %v1792
  %v1794 = vtanh.pop %v1793
  %v1795 = vmul.f32 %v1786, %v1794
  %v1797 = vrot.slane %v1795, 4
  %1799 = vmatprep.subr.mxu0 %v674
  %1800 = vmatpush1.msra.mxu0 %v673
  %1801 = vmatprep.subr.mxu0 %v678
  %1802 = vmatpush1.msra.mxu0 %v677
  %1803 = vmatprep.subr.mxu0 %v682
  %1804 = vmatpush1.msra.mxu0 %v681
  %1805 = vmatprep.subr.mxu0 %v686
  %1806 = vmatpush1.msra.mxu0 %v685
  %1807 = vmatprep.subr.mxu0 %v690
  %1808 = vmatpush1.msra.mxu0 %v689
  %1809 = vmatprep.subr.mxu0 %v694
  %1810 = vmatpush1.msra.mxu0 %v693
  %1811 = vmatprep.subr.mxu0 %v698
  %1812 = vmatpush1.msra.mxu0 %v697
  %1813 = vmatprep.subr.mxu0 %v702
  %1814 = vmatpush1.msra.mxu0 %v701
  %1815 = vmatprep.subr.mxu0 %v706
  %1816 = vmatpush1.msra.mxu0 %v705
  %1817 = vmatprep.subr.mxu0 %v710
  %1818 = vmatpush1.msra.mxu0 %v709
  %1819 = vmatprep.subr.mxu0 %v714
  %1820 = vmatpush1.msra.mxu0 %v713
  %1821 = vmatprep.subr.mxu0 %v718
  %1822 = vmatpush1.msra.mxu0 %v717
  %1823 = vmatprep.subr.mxu0 %v722
  %1824 = vmatpush1.msra.mxu0 %v721
  %1825 = vmatprep.subr.mxu0 %v726
  %1826 = vmatpush1.msra.mxu0 %v725
  %1827 = vmatprep.subr.mxu0 %v730
  %1828 = vmatpush1.msra.mxu0 %v729
  %1829 = vmatprep.subr.mxu0 %v734
  %1830 = vmatpush1.msra.mxu0 %v733
  %1831 = vmatprep.subr.mxu0 0.0
  %1832 = vmatpush1.msra.mxu0 0.0
  %1833 = vmatprep.subr.mxu0 0.0
  %1834 = vmatpush1.msra.mxu0 0.0
  %1835 = vmatprep.subr.mxu0 0.0
  %1836 = vmatpush1.msra.mxu0 0.0
  %1837 = vmatprep.subr.mxu0 0.0
  %1838 = vmatpush1.msra.mxu0 0.0
  %1839 = vmatprep.subr.mxu0 0.0
  %1840 = vmatpush1.msra.mxu0 0.0
  %1841 = vmatprep.subr.mxu0 0.0
  %1842 = vmatpush1.msra.mxu0 0.0
  %1843 = vmatprep.subr.mxu0 0.0
  %1844 = vmatpush1.msra.mxu0 0.0
  %1845 = vmatprep.subr.mxu0 0.0
  %1846 = vmatpush1.msra.mxu0 0.0
  %1847 = vmatprep.subr.mxu0 0.0
  %1848 = vmatpush1.msra.mxu0 0.0
  %1849 = vmatprep.subr.mxu0 0.0
  %1850 = vmatpush1.msra.mxu0 0.0
  %1851 = vmatprep.subr.mxu0 0.0
  %1852 = vmatpush1.msra.mxu0 0.0
  %1853 = vmatprep.subr.mxu0 0.0
  %1854 = vmatpush1.msra.mxu0 0.0
  %1855 = vmatprep.subr.mxu0 0.0
  %1856 = vmatpush1.msra.mxu0 0.0
  %1857 = vmatprep.subr.mxu0 0.0
  %1858 = vmatpush1.msra.mxu0 0.0
  %1859 = vmatprep.subr.mxu0 0.0
  %1860 = vmatpush1.msra.mxu0 0.0
  %1861 = vmatprep.subr.mxu0 0.0
  %1862 = vmatpush1.msra.mxu0 0.0
  %1863 = vmatprep.mubr.f32.mxu0 0.0
  %1864 = vmatmul.mubr.f32.gmra.mrb[0].mxu0 %v1797
  %v1865 = vpop.f32.mrb[0].mxu0
  %v1866 = vadd.f32 0.0, %v1865
  %v1867 = vpop.f32.mrb[0].mxu0
  %v1868 = vadd.f32 0.0, %v1867
  %1869 = vdwg.mxu0
  %1870 = vmatprep.subr.mxu0 %v676
  %1871 = vmatpush1.msra.mxu0 %v675
  %1872 = vmatprep.subr.mxu0 %v680
  %1873 = vmatpush1.msra.mxu0 %v679
  %1874 = vmatprep.subr.mxu0 %v684
  %1875 = vmatpush1.msra.mxu0 %v683
  %1876 = vmatprep.subr.mxu0 %v688
  %1877 = vmatpush1.msra.mxu0 %v687
  %1878 = vmatprep.subr.mxu0 %v692
  %1879 = vmatpush1.msra.mxu0 %v691
  %1880 = vmatprep.subr.mxu0 %v696
  %1881 = vmatpush1.msra.mxu0 %v695
  %1882 = vmatprep.subr.mxu0 %v700
  %1883 = vmatpush1.msra.mxu0 %v699
  %1884 = vmatprep.subr.mxu0 %v704
  %1885 = vmatpush1.msra.mxu0 %v703
  %1886 = vmatprep.subr.mxu0 %v708
  %1887 = vmatpush1.msra.mxu0 %v707
  %1888 = vmatprep.subr.mxu0 %v712
  %1889 = vmatpush1.msra.mxu0 %v711
  %1890 = vmatprep.subr.mxu0 %v716
  %1891 = vmatpush1.msra.mxu0 %v715
  %1892 = vmatprep.subr.mxu0 %v720
  %1893 = vmatpush1.msra.mxu0 %v719
  %1894 = vmatprep.subr.mxu0 %v724
  %1895 = vmatpush1.msra.mxu0 %v723
  %1896 = vmatprep.subr.mxu0 %v728
  %1897 = vmatpush1.msra.mxu0 %v727
  %1898 = vmatprep.subr.mxu0 %v732
  %1899 = vmatpush1.msra.mxu0 %v731
  %1900 = vmatprep.subr.mxu0 %v736
  %1901 = vmatpush1.msra.mxu0 %v735
  %1902 = vmatprep.subr.mxu0 0.0
  %1903 = vmatpush1.msra.mxu0 0.0
  %1904 = vmatprep.subr.mxu0 0.0
  %1905 = vmatpush1.msra.mxu0 0.0
  %1906 = vmatprep.subr.mxu0 0.0
  %1907 = vmatpush1.msra.mxu0 0.0
  %1908 = vmatprep.subr.mxu0 0.0
  %1909 = vmatpush1.msra.mxu0 0.0
  %1910 = vmatprep.subr.mxu0 0.0
  %1911 = vmatpush1.msra.mxu0 0.0
  %1912 = vmatprep.subr.mxu0 0.0
  %1913 = vmatpush1.msra.mxu0 0.0
  %1914 = vmatprep.subr.mxu0 0.0
  %1915 = vmatpush1.msra.mxu0 0.0
  %1916 = vmatprep.subr.mxu0 0.0
  %1917 = vmatpush1.msra.mxu0 0.0
  %1918 = vmatprep.subr.mxu0 0.0
  %1919 = vmatpush1.msra.mxu0 0.0
  %1920 = vmatprep.subr.mxu0 0.0
  %1921 = vmatpush1.msra.mxu0 0.0
  %1922 = vmatprep.subr.mxu0 0.0
  %1923 = vmatpush1.msra.mxu0 0.0
  %1924 = vmatprep.subr.mxu0 0.0
  %1925 = vmatpush1.msra.mxu0 0.0
  %1926 = vmatprep.subr.mxu0 0.0
  %1927 = vmatpush1.msra.mxu0 0.0
  %1928 = vmatprep.subr.mxu0 0.0
  %1929 = vmatpush1.msra.mxu0 0.0
  %1930 = vmatprep.subr.mxu0 0.0
  %1931 = vmatpush1.msra.mxu0 0.0
  %1932 = vmatprep.subr.mxu0 0.0
  %1933 = vmatpush1.msra.mxu0 0.0
  %1934 = vmatprep.mubr.f32.mxu0 0.0
  %1935 = vmatmul.mubr.f32.gmra.mrb[0].mxu0 %v1797
  %v1936 = vpop.f32.mrb[0].mxu0
  %v1937 = vadd.f32 0.0, %v1936
  %v1938 = vpop.f32.mrb[0].mxu0
  %v1939 = vadd.f32 0.0, %v1938
  %1940 = vdwg.mxu0
  %v1945 = vrot.slane %v1866, 3
  %v1946 = vrot.slane %v1868, 3
  %v1947 = vrot.slane %v1937, 3
  %v1948 = vrot.slane %v1939, 3
  %v1953 = vadd.f32 %v832, %v1945
  %v1954 = vadd.f32 %v834, %v1946
  %v1955 = vadd.f32 %v903, %v1947
  %v1956 = vadd.f32 %v905, %v1948
  %v1957 = vmul.f32 %v1953, 0.5
  %v1958 = vmul.f32 %v1954, 0.5
  %v1959 = vmul.f32 %v1955, 0.5
  %v1960 = vtanh.pop %v1957
  %v1961 = vtanh.pop %v1958
  %v1962 = vtanh.pop %v1959
  %v1963 = vmul.f32 %v1960, 0.5
  %v1964 = vmul.f32 %v1961, 0.5
  %v1965 = vmul.f32 %v1962, 0.5
  %v1966 = vadd.f32 %v1963, 0.5
  %v1967 = vadd.f32 %v1964, 0.5
  %v1968 = vadd.f32 %v1965, 0.5
  %v1969 = vtanh.pop %v1956
  %v1971 = vrot.slane %v1793, 7
  %v1973 = vmul.f32 %v1967, %v1971
  %v1974 = vmul.f32 %v1966, %v1969
  %v1975 = vadd.f32 %v1973, %v1974
  %v1976 = vtanh.pop %v1975
  %v1977 = vmul.f32 %v1968, %v1976
  %v1979 = vrot.slane %v1977, 5
  %1981 = vmatprep.subr.mxu0 %v674
  %1982 = vmatpush1.msra.mxu0 %v673
  %1983 = vmatprep.subr.mxu0 %v678
  %1984 = vmatpush1.msra.mxu0 %v677
  %1985 = vmatprep.subr.mxu0 %v682
  %1986 = vmatpush1.msra.mxu0 %v681
  %1987 = vmatprep.subr.mxu0 %v686
  %1988 = vmatpush1.msra.mxu0 %v685
  %1989 = vmatprep.subr.mxu0 %v690
  %1990 = vmatpush1.msra.mxu0 %v689
  %1991 = vmatprep.subr.mxu0 %v694
  %1992 = vmatpush1.msra.mxu0 %v693
  %1993 = vmatprep.subr.mxu0 %v698
  %1994 = vmatpush1.msra.mxu0 %v697
  %1995 = vmatprep.subr.mxu0 %v702
  %1996 = vmatpush1.msra.mxu0 %v701
  %1997 = vmatprep.subr.mxu0 %v706
  %1998 = vmatpush1.msra.mxu0 %v705
  %1999 = vmatprep.subr.mxu0 %v710
  %2000 = vmatpush1.msra.mxu0 %v709
  %2001 = vmatprep.subr.mxu0 %v714
  %2002 = vmatpush1.msra.mxu0 %v713
  %2003 = vmatprep.subr.mxu0 %v718
  %2004 = vmatpush1.msra.mxu0 %v717
  %2005 = vmatprep.subr.mxu0 %v722
  %2006 = vmatpush1.msra.mxu0 %v721
  %2007 = vmatprep.subr.mxu0 %v726
  %2008 = vmatpush1.msra.mxu0 %v725
  %2009 = vmatprep.subr.mxu0 %v730
  %2010 = vmatpush1.msra.mxu0 %v729
  %2011 = vmatprep.subr.mxu0 %v734
  %2012 = vmatpush1.msra.mxu0 %v733
  %2013 = vmatprep.subr.mxu0 0.0
  %2014 = vmatpush1.msra.mxu0 0.0
  %2015 = vmatprep.subr.mxu0 0.0
  %2016 = vmatpush1.msra.mxu0 0.0
  %2017 = vmatprep.subr.mxu0 0.0
  %2018 = vmatpush1.msra.mxu0 0.0
  %2019 = vmatprep.subr.mxu0 0.0
  %2020 = vmatpush1.msra.mxu0 0.0
  %2021 = vmatprep.subr.mxu0 0.0
  %2022 = vmatpush1.msra.mxu0 0.0
  %2023 = vmatprep.subr.mxu0 0.0
  %2024 = vmatpush1.msra.mxu0 0.0
  %2025 = vmatprep.subr.mxu0 0.0
  %2026 = vmatpush1.msra.mxu0 0.0
  %2027 = vmatprep.subr.mxu0 0.0
  %2028 = vmatpush1.msra.mxu0 0.0
  %2029 = vmatprep.subr.mxu0 0.0
  %2030 = vmatpush1.msra.mxu0 0.0
  %2031 = vmatprep.subr.mxu0 0.0
  %2032 = vmatpush1.msra.mxu0 0.0
  %2033 = vmatprep.subr.mxu0 0.0
  %2034 = vmatpush1.msra.mxu0 0.0
  %2035 = vmatprep.subr.mxu0 0.0
  %2036 = vmatpush1.msra.mxu0 0.0
  %2037 = vmatprep.subr.mxu0 0.0
  %2038 = vmatpush1.msra.mxu0 0.0
  %2039 = vmatprep.subr.mxu0 0.0
  %2040 = vmatpush1.msra.mxu0 0.0
  %2041 = vmatprep.subr.mxu0 0.0
  %2042 = vmatpush1.msra.mxu0 0.0
  %2043 = vmatprep.subr.mxu0 0.0
  %2044 = vmatpush1.msra.mxu0 0.0
  %2045 = vmatprep.mubr.f32.mxu0 0.0
  %2046 = vmatmul.mubr.f32.gmra.mrb[0].mxu0 %v1979
  %v2047 = vpop.f32.mrb[0].mxu0
  %v2048 = vadd.f32 0.0, %v2047
  %v2049 = vpop.f32.mrb[0].mxu0
  %v2050 = vadd.f32 0.0, %v2049
  %2051 = vdwg.mxu0
  %2052 = vmatprep.subr.mxu0 %v676
  %2053 = vmatpush1.msra.mxu0 %v675
  %2054 = vmatprep.subr.mxu0 %v680
  %2055 = vmatpush1.msra.mxu0 %v679
  %2056 = vmatprep.subr.mxu0 %v684
  %2057 = vmatpush1.msra.mxu0 %v683
  %2058 = vmatprep.subr.mxu0 %v688
  %2059 = vmatpush1.msra.mxu0 %v687
  %2060 = vmatprep.subr.mxu0 %v692
  %2061 = vmatpush1.msra.mxu0 %v691
  %2062 = vmatprep.subr.mxu0 %v696
  %2063 = vmatpush1.msra.mxu0 %v695
  %2064 = vmatprep.subr.mxu0 %v700
  %2065 = vmatpush1.msra.mxu0 %v699
  %2066 = vmatprep.subr.mxu0 %v704
  %2067 = vmatpush1.msra.mxu0 %v703
  %2068 = vmatprep.subr.mxu0 %v708
  %2069 = vmatpush1.msra.mxu0 %v707
  %2070 = vmatprep.subr.mxu0 %v712
  %2071 = vmatpush1.msra.mxu0 %v711
  %2072 = vmatprep.subr.mxu0 %v716
  %2073 = vmatpush1.msra.mxu0 %v715
  %2074 = vmatprep.subr.mxu0 %v720
  %2075 = vmatpush1.msra.mxu0 %v719
  %2076 = vmatprep.subr.mxu0 %v724
  %2077 = vmatpush1.msra.mxu0 %v723
  %2078 = vmatprep.subr.mxu0 %v728
  %2079 = vmatpush1.msra.mxu0 %v727
  %2080 = vmatprep.subr.mxu0 %v732
  %2081 = vmatpush1.msra.mxu0 %v731
  %2082 = vmatprep.subr.mxu0 %v736
  %2083 = vmatpush1.msra.mxu0 %v735
  %2084 = vmatprep.subr.mxu0 0.0
  %2085 = vmatpush1.msra.mxu0 0.0
  %2086 = vmatprep.subr.mxu0 0.0
  %2087 = vmatpush1.msra.mxu0 0.0
  %2088 = vmatprep.subr.mxu0 0.0
  %2089 = vmatpush1.msra.mxu0 0.0
  %2090 = vmatprep.subr.mxu0 0.0
  %2091 = vmatpush1.msra.mxu0 0.0
  %2092 = vmatprep.subr.mxu0 0.0
  %2093 = vmatpush1.msra.mxu0 0.0
  %2094 = vmatprep.subr.mxu0 0.0
  %2095 = vmatpush1.msra.mxu0 0.0
  %2096 = vmatprep.subr.mxu0 0.0
  %2097 = vmatpush1.msra.mxu0 0.0
  %2098 = vmatprep.subr.mxu0 0.0
  %2099 = vmatpush1.msra.mxu0 0.0
  %2100 = vmatprep.subr.mxu0 0.0
  %2101 = vmatpush1.msra.mxu0 0.0
  %2102 = vmatprep.subr.mxu0 0.0
  %2103 = vmatpush1.msra.mxu0 0.0
  %2104 = vmatprep.subr.mxu0 0.0
  %2105 = vmatpush1.msra.mxu0 0.0
  %2106 = vmatprep.subr.mxu0 0.0
  %2107 = vmatpush1.msra.mxu0 0.0
  %2108 = vmatprep.subr.mxu0 0.0
  %2109 = vmatpush1.msra.mxu0 0.0
  %2110 = vmatprep.subr.mxu0 0.0
  %2111 = vmatpush1.msra.mxu0 0.0
  %2112 = vmatprep.subr.mxu0 0.0
  %2113 = vmatpush1.msra.mxu0 0.0
  %2114 = vmatprep.subr.mxu0 0.0
  %2115 = vmatpush1.msra.mxu0 0.0
  %2116 = vmatprep.mubr.f32.mxu0 0.0
  %2117 = vmatmul.mubr.f32.gmra.mrb[0].mxu0 %v1979
  %v2118 = vpop.f32.mrb[0].mxu0
  %v2119 = vadd.f32 0.0, %v2118
  %v2120 = vpop.f32.mrb[0].mxu0
  %v2121 = vadd.f32 0.0, %v2120
  %2122 = vdwg.mxu0
  %v2127 = vrot.slane %v2048, 2
  %v2128 = vrot.slane %v2050, 2
  %v2129 = vrot.slane %v2119, 2
  %v2130 = vrot.slane %v2121, 2
  %v2135 = vadd.f32 %v832, %v2127
  %v2136 = vadd.f32 %v834, %v2128
  %v2137 = vadd.f32 %v903, %v2129
  %v2138 = vadd.f32 %v905, %v2130
  %v2139 = vmul.f32 %v2135, 0.5
  %v2140 = vmul.f32 %v2136, 0.5
  %v2141 = vmul.f32 %v2137, 0.5
  %v2142 = vtanh.pop %v2139
  %v2143 = vtanh.pop %v2140
  %v2144 = vtanh.pop %v2141
  %v2145 = vmul.f32 %v2142, 0.5
  %v2146 = vmul.f32 %v2143, 0.5
  %v2147 = vmul.f32 %v2144, 0.5
  %v2148 = vadd.f32 %v2145, 0.5
  %v2149 = vadd.f32 %v2146, 0.5
  %v2150 = vadd.f32 %v2147, 0.5
  %v2151 = vtanh.pop %v2138
  %v2153 = vrot.slane %v1975, 7
  %v2155 = vmul.f32 %v2149, %v2153
  %v2156 = vmul.f32 %v2148, %v2151
  %v2157 = vadd.f32 %v2155, %v2156
  %v2158 = vtanh.pop %v2157
  %v2159 = vmul.f32 %v2150, %v2158
  %v2161 = vrot.slane %v2159, 6
  %2163 = vmatprep.subr.mxu0 %v674
  %2164 = vmatpush1.msra.mxu0 %v673
  %2165 = vmatprep.subr.mxu0 %v678
  %2166 = vmatpush1.msra.mxu0 %v677
  %2167 = vmatprep.subr.mxu0 %v682
  %2168 = vmatpush1.msra.mxu0 %v681
  %2169 = vmatprep.subr.mxu0 %v686
  %2170 = vmatpush1.msra.mxu0 %v685
  %2171 = vmatprep.subr.mxu0 %v690
  %2172 = vmatpush1.msra.mxu0 %v689
  %2173 = vmatprep.subr.mxu0 %v694
  %2174 = vmatpush1.msra.mxu0 %v693
  %2175 = vmatprep.subr.mxu0 %v698
  %2176 = vmatpush1.msra.mxu0 %v697
  %2177 = vmatprep.subr.mxu0 %v702
  %2178 = vmatpush1.msra.mxu0 %v701
  %2179 = vmatprep.subr.mxu0 %v706
  %2180 = vmatpush1.msra.mxu0 %v705
  %2181 = vmatprep.subr.mxu0 %v710
  %2182 = vmatpush1.msra.mxu0 %v709
  %2183 = vmatprep.subr.mxu0 %v714
  %2184 = vmatpush1.msra.mxu0 %v713
  %2185 = vmatprep.subr.mxu0 %v718
  %2186 = vmatpush1.msra.mxu0 %v717
  %2187 = vmatprep.subr.mxu0 %v722
  %2188 = vmatpush1.msra.mxu0 %v721
  %2189 = vmatprep.subr.mxu0 %v726
  %2190 = vmatpush1.msra.mxu0 %v725
  %2191 = vmatprep.subr.mxu0 %v730
  %2192 = vmatpush1.msra.mxu0 %v729
  %2193 = vmatprep.subr.mxu0 %v734
  %2194 = vmatpush1.msra.mxu0 %v733
  %2195 = vmatprep.subr.mxu0 0.0
  %2196 = vmatpush1.msra.mxu0 0.0
  %2197 = vmatprep.subr.mxu0 0.0
  %2198 = vmatpush1.msra.mxu0 0.0
  %2199 = vmatprep.subr.mxu0 0.0
  %2200 = vmatpush1.msra.mxu0 0.0
  %2201 = vmatprep.subr.mxu0 0.0
  %2202 = vmatpush1.msra.mxu0 0.0
  %2203 = vmatprep.subr.mxu0 0.0
  %2204 = vmatpush1.msra.mxu0 0.0
  %2205 = vmatprep.subr.mxu0 0.0
  %2206 = vmatpush1.msra.mxu0 0.0
  %2207 = vmatprep.subr.mxu0 0.0
  %2208 = vmatpush1.msra.mxu0 0.0
  %2209 = vmatprep.subr.mxu0 0.0
  %2210 = vmatpush1.msra.mxu0 0.0
  %2211 = vmatprep.subr.mxu0 0.0
  %2212 = vmatpush1.msra.mxu0 0.0
  %2213 = vmatprep.subr.mxu0 0.0
  %2214 = vmatpush1.msra.mxu0 0.0
  %2215 = vmatprep.subr.mxu0 0.0
  %2216 = vmatpush1.msra.mxu0 0.0
  %2217 = vmatprep.subr.mxu0 0.0
  %2218 = vmatpush1.msra.mxu0 0.0
  %2219 = vmatprep.subr.mxu0 0.0
  %2220 = vmatpush1.msra.mxu0 0.0
  %2221 = vmatprep.subr.mxu0 0.0
  %2222 = vmatpush1.msra.mxu0 0.0
  %2223 = vmatprep.subr.mxu0 0.0
  %2224 = vmatpush1.msra.mxu0 0.0
  %2225 = vmatprep.subr.mxu0 0.0
  %2226 = vmatpush1.msra.mxu0 0.0
  %2227 = vmatprep.mubr.f32.mxu0 0.0
  %2228 = vmatmul.mubr.f32.gmra.mrb[0].mxu0 %v2161
  %v2229 = vpop.f32.mrb[0].mxu0
  %v2230 = vadd.f32 0.0, %v2229
  %v2231 = vpop.f32.mrb[0].mxu0
  %v2232 = vadd.f32 0.0, %v2231
  %2233 = vdwg.mxu0
  %2234 = vmatprep.subr.mxu0 %v676
  %2235 = vmatpush1.msra.mxu0 %v675
  %2236 = vmatprep.subr.mxu0 %v680
  %2237 = vmatpush1.msra.mxu0 %v679
  %2238 = vmatprep.subr.mxu0 %v684
  %2239 = vmatpush1.msra.mxu0 %v683
  %2240 = vmatprep.subr.mxu0 %v688
  %2241 = vmatpush1.msra.mxu0 %v687
  %2242 = vmatprep.subr.mxu0 %v692
  %2243 = vmatpush1.msra.mxu0 %v691
  %2244 = vmatprep.subr.mxu0 %v696
  %2245 = vmatpush1.msra.mxu0 %v695
  %2246 = vmatprep.subr.mxu0 %v700
  %2247 = vmatpush1.msra.mxu0 %v699
  %2248 = vmatprep.subr.mxu0 %v704
  %2249 = vmatpush1.msra.mxu0 %v703
  %2250 = vmatprep.subr.mxu0 %v708
  %2251 = vmatpush1.msra.mxu0 %v707
  %2252 = vmatprep.subr.mxu0 %v712
  %2253 = vmatpush1.msra.mxu0 %v711
  %2254 = vmatprep.subr.mxu0 %v716
  %2255 = vmatpush1.msra.mxu0 %v715
  %2256 = vmatprep.subr.mxu0 %v720
  %2257 = vmatpush1.msra.mxu0 %v719
  %2258 = vmatprep.subr.mxu0 %v724
  %2259 = vmatpush1.msra.mxu0 %v723
  %2260 = vmatprep.subr.mxu0 %v728
  %2261 = vmatpush1.msra.mxu0 %v727
  %2262 = vmatprep.subr.mxu0 %v732
  %2263 = vmatpush1.msra.mxu0 %v731
  %2264 = vmatprep.subr.mxu0 %v736
  %2265 = vmatpush1.msra.mxu0 %v735
  %2266 = vmatprep.subr.mxu0 0.0
  %2267 = vmatpush1.msra.mxu0 0.0
  %2268 = vmatprep.subr.mxu0 0.0
  %2269 = vmatpush1.msra.mxu0 0.0
  %2270 = vmatprep.subr.mxu0 0.0
  %2271 = vmatpush1.msra.mxu0 0.0
  %2272 = vmatprep.subr.mxu0 0.0
  %2273 = vmatpush1.msra.mxu0 0.0
  %2274 = vmatprep.subr.mxu0 0.0
  %2275 = vmatpush1.msra.mxu0 0.0
  %2276 = vmatprep.subr.mxu0 0.0
  %2277 = vmatpush1.msra.mxu0 0.0
  %2278 = vmatprep.subr.mxu0 0.0
  %2279 = vmatpush1.msra.mxu0 0.0
  %2280 = vmatprep.subr.mxu0 0.0
  %2281 = vmatpush1.msra.mxu0 0.0
  %2282 = vmatprep.subr.mxu0 0.0
  %2283 = vmatpush1.msra.mxu0 0.0
  %2284 = vmatprep.subr.mxu0 0.0
  %2285 = vmatpush1.msra.mxu0 0.0
  %2286 = vmatprep.subr.mxu0 0.0
  %2287 = vmatpush1.msra.mxu0 0.0
  %2288 = vmatprep.subr.mxu0 0.0
  %2289 = vmatpush1.msra.mxu0 0.0
  %2290 = vmatprep.subr.mxu0 0.0
  %2291 = vmatpush1.msra.mxu0 0.0
  %2292 = vmatprep.subr.mxu0 0.0
  %2293 = vmatpush1.msra.mxu0 0.0
  %2294 = vmatprep.subr.mxu0 0.0
  %2295 = vmatpush1.msra.mxu0 0.0
  %2296 = vmatprep.subr.mxu0 0.0
  %2297 = vmatpush1.msra.mxu0 0.0
  %2298 = vmatprep.mubr.f32.mxu0 0.0
  %2299 = vmatmul.mubr.f32.gmra.mrb[0].mxu0 %v2161
  %v2300 = vpop.f32.mrb[0].mxu0
  %v2301 = vadd.f32 0.0, %v2300
  %v2302 = vpop.f32.mrb[0].mxu0
  %v2303 = vadd.f32 0.0, %v2302
  %2304 = vdwg.mxu0
  %v2309 = vrot.slane %v2230, 1
  %v2310 = vrot.slane %v2232, 1
  %v2311 = vrot.slane %v2301, 1
  %v2312 = vrot.slane %v2303, 1
  %v2317 = vadd.f32 %v832, %v2309
  %v2318 = vadd.f32 %v834, %v2310
  %v2319 = vadd.f32 %v903, %v2311
  %v2320 = vadd.f32 %v905, %v2312
  %v2321 = vmul.f32 %v2317, 0.5
  %v2322 = vmul.f32 %v2318, 0.5
  %v2323 = vmul.f32 %v2319, 0.5
  %v2324 = vtanh.pop %v2321
  %v2325 = vtanh.pop %v2322
  %v2326 = vtanh.pop %v2323
  %v2327 = vmul.f32 %v2324, 0.5
  %v2328 = vmul.f32 %v2325, 0.5
  %v2329 = vmul.f32 %v2326, 0.5
  %v2330 = vadd.f32 %v2327, 0.5
  %v2331 = vadd.f32 %v2328, 0.5
  %v2332 = vadd.f32 %v2329, 0.5
  %v2333 = vtanh.pop %v2320
  %v2335 = vrot.slane %v2157, 7
  %v2337 = vmul.f32 %v2331, %v2335
  %v2338 = vmul.f32 %v2330, %v2333
  %v2339 = vadd.f32 %v2337, %v2338
  %v2340 = vtanh.pop %v2339
  %v2341 = vmul.f32 %v2332, %v2340
  %vm2342 = vcmask 1040384
  %v2343 = vsel %vm2342, %v1070, %v1249
  %vm2344 = vcmask 1041408
  %v2345 = vsel %vm2344, %v2343, %v1431
  %vm2346 = vcmask 1042432
  %v2347 = vsel %vm2346, %v2345, %v1613
  %vm2348 = vcmask 1043456
  %v2349 = vsel %vm2348, %v2347, %v1795
  %vm2350 = vcmask 1044480
  %v2351 = vsel %vm2350, %v2349, %v1977
  %vm2352 = vcmask 1045504
  %v2353 = vsel %vm2352, %v2351, %v2159
  %vm2354 = vcmask 1046528
  %v2355 = vsel %vm2354, %v2353, %v2341
  %v2356 = vld [vmem:[%s2] sm:$0xff]
  %v2357 = vld [vmem:[%s2 + $0x8] sm:$0xff]
  %v2358 = vld [vmem:[%s2 + $0x10] sm:$0xff]
  %v2359 = vld [vmem:[%s2 + $0x18] sm:$0xff]
  %v2360 = vld [vmem:[%s2 + $0x20] sm:$0xff]
  %v2361 = vld [vmem:[%s2 + $0x28] sm:$0xff]
  %v2362 = vld [vmem:[%s2 + $0x30] sm:$0xff]
  %v2363 = vld [vmem:[%s2 + $0x38] sm:$0xff]
  %v2364 = vld [vmem:[%s2 + $0x40] sm:$0xff]
  %v2365 = vld [vmem:[%s2 + $0x48] sm:$0xff]
  %v2366 = vld [vmem:[%s2 + $0x50] sm:$0xff]
  %v2367 = vld [vmem:[%s2 + $0x58] sm:$0xff]
  %v2368 = vld [vmem:[%s2 + $0x60] sm:$0xff]
  %v2369 = vld [vmem:[%s2 + $0x68] sm:$0xff]
  %v2370 = vld [vmem:[%s2 + $0x70] sm:$0xff]
  %v2371 = vld [vmem:[%s2 + $0x78] sm:$0xff]
  %v2372 = vld [vmem:[%s2 + $0x80] sm:$0xff]
  %v2373 = vld [vmem:[%s2 + $0x88] sm:$0xff]
  %v2374 = vld [vmem:[%s2 + $0x90] sm:$0xff]
  %v2375 = vld [vmem:[%s2 + $0x98] sm:$0xff]
  %v2376 = vld [vmem:[%s2 + $0xa0] sm:$0xff]
  %v2377 = vld [vmem:[%s2 + $0xa8] sm:$0xff]
  %v2378 = vld [vmem:[%s2 + $0xb0] sm:$0xff]
  %v2379 = vld [vmem:[%s2 + $0xb8] sm:$0xff]
  %v2380 = vld [vmem:[%s2 + $0xc0] sm:$0xff]
  %v2381 = vld [vmem:[%s2 + $0xc8] sm:$0xff]
  %v2382 = vld [vmem:[%s2 + $0xd0] sm:$0xff]
  %v2383 = vld [vmem:[%s2 + $0xd8] sm:$0xff]
  %v2384 = vld [vmem:[%s2 + $0xe0] sm:$0xff]
  %v2385 = vld [vmem:[%s2 + $0xe8] sm:$0xff]
  %v2386 = vld [vmem:[%s2 + $0xf0] sm:$0xff]
  %v2387 = vld [vmem:[%s2 + $0xf8] sm:$0xff]
  %v2388 = vld [vmem:[%s2 + $0x100] sm:$0xff]
  %v2389 = vld [vmem:[%s2 + $0x108] sm:$0xff]
  %v2390 = vld [vmem:[%s2 + $0x110] sm:$0xff]
  %v2391 = vld [vmem:[%s2 + $0x118] sm:$0xff]
  %v2392 = vld [vmem:[%s2 + $0x120] sm:$0xff]
  %v2393 = vld [vmem:[%s2 + $0x128] sm:$0xff]
  %v2394 = vld [vmem:[%s2 + $0x130] sm:$0xff]
  %v2395 = vld [vmem:[%s2 + $0x138] sm:$0xff]
  %v2396 = vld [vmem:[%s2 + $0x140] sm:$0xff]
  %v2397 = vld [vmem:[%s2 + $0x148] sm:$0xff]
  %v2398 = vld [vmem:[%s2 + $0x150] sm:$0xff]
  %v2399 = vld [vmem:[%s2 + $0x158] sm:$0xff]
  %v2400 = vld [vmem:[%s2 + $0x160] sm:$0xff]
  %v2401 = vld [vmem:[%s2 + $0x168] sm:$0xff]
  %v2402 = vld [vmem:[%s2 + $0x170] sm:$0xff]
  %v2403 = vld [vmem:[%s2 + $0x178] sm:$0xff]
  %v2404 = vld [vmem:[%s2 + $0x180] sm:$0xff]
  %v2405 = vld [vmem:[%s2 + $0x188] sm:$0xff]
  %v2406 = vld [vmem:[%s2 + $0x190] sm:$0xff]
  %v2407 = vld [vmem:[%s2 + $0x198] sm:$0xff]
  %v2408 = vld [vmem:[%s2 + $0x1a0] sm:$0xff]
  %v2409 = vld [vmem:[%s2 + $0x1a8] sm:$0xff]
  %v2410 = vld [vmem:[%s2 + $0x1b0] sm:$0xff]
  %v2411 = vld [vmem:[%s2 + $0x1b8] sm:$0xff]
  %v2412 = vld [vmem:[%s2 + $0x1c0] sm:$0xff]
  %v2413 = vld [vmem:[%s2 + $0x1c8] sm:$0xff]
  %v2414 = vld [vmem:[%s2 + $0x1d0] sm:$0xff]
  %v2415 = vld [vmem:[%s2 + $0x1d8] sm:$0xff]
  %v2416 = vld [vmem:[%s2 + $0x1e0] sm:$0xff]
  %v2417 = vld [vmem:[%s2 + $0x1e8] sm:$0xff]
  %v2418 = vld [vmem:[%s2 + $0x1f0] sm:$0xff]
  %v2419 = vld [vmem:[%s2 + $0x1f8] sm:$0xff]
  %v2420 = vld [vmem:[%s2 + $0x200] sm:$0xff]
  %v2421 = vld [vmem:[%s2 + $0x208] sm:$0xff]
  %v2422 = vld [vmem:[%s2 + $0x210] sm:$0xff]
  %v2423 = vld [vmem:[%s2 + $0x218] sm:$0xff]
  %v2424 = vld [vmem:[%s2 + $0x220] sm:$0xff]
  %v2425 = vld [vmem:[%s2 + $0x228] sm:$0xff]
  %v2426 = vld [vmem:[%s2 + $0x230] sm:$0xff]
  %v2427 = vld [vmem:[%s2 + $0x238] sm:$0xff]
  %v2428 = vld [vmem:[%s2 + $0x240] sm:$0xff]
  %v2429 = vld [vmem:[%s2 + $0x248] sm:$0xff]
  %v2430 = vld [vmem:[%s2 + $0x250] sm:$0xff]
  %v2431 = vld [vmem:[%s2 + $0x258] sm:$0xff]
  %v2432 = vld [vmem:[%s2 + $0x260] sm:$0xff]
  %v2433 = vld [vmem:[%s2 + $0x268] sm:$0xff]
  %v2434 = vld [vmem:[%s2 + $0x270] sm:$0xff]
  %v2435 = vld [vmem:[%s2 + $0x278] sm:$0xff]
  %v2436 = vld [vmem:[%s2 + $0x280] sm:$0xff]
  %v2437 = vld [vmem:[%s2 + $0x288] sm:$0xff]
  %v2438 = vld [vmem:[%s2 + $0x290] sm:$0xff]
  %v2439 = vld [vmem:[%s2 + $0x298] sm:$0xff]
  %v2440 = vld [vmem:[%s2 + $0x2a0] sm:$0xff]
  %v2441 = vld [vmem:[%s2 + $0x2a8] sm:$0xff]
  %v2442 = vld [vmem:[%s2 + $0x2b0] sm:$0xff]
  %v2443 = vld [vmem:[%s2 + $0x2b8] sm:$0xff]
  %v2444 = vld [vmem:[%s2 + $0x2c0] sm:$0xff]
  %v2445 = vld [vmem:[%s2 + $0x2c8] sm:$0xff]
  %v2446 = vld [vmem:[%s2 + $0x2d0] sm:$0xff]
  %v2447 = vld [vmem:[%s2 + $0x2d8] sm:$0xff]
  %v2448 = vld [vmem:[%s2 + $0x2e0] sm:$0xff]
  %v2449 = vld [vmem:[%s2 + $0x2e8] sm:$0xff]
  %v2450 = vld [vmem:[%s2 + $0x2f0] sm:$0xff]
  %v2451 = vld [vmem:[%s2 + $0x2f8] sm:$0xff]
  %v2452 = vld [vmem:[%s2 + $0x300] sm:$0xff]
  %v2453 = vld [vmem:[%s2 + $0x308] sm:$0xff]
  %v2454 = vld [vmem:[%s2 + $0x310] sm:$0xff]
  %v2455 = vld [vmem:[%s2 + $0x318] sm:$0xff]
  %v2456 = vld [vmem:[%s2 + $0x320] sm:$0xff]
  %v2457 = vld [vmem:[%s2 + $0x328] sm:$0xff]
  %v2458 = vld [vmem:[%s2 + $0x330] sm:$0xff]
  %v2459 = vld [vmem:[%s2 + $0x338] sm:$0xff]
  %v2460 = vld [vmem:[%s2 + $0x340] sm:$0xff]
  %v2461 = vld [vmem:[%s2 + $0x348] sm:$0xff]
  %v2462 = vld [vmem:[%s2 + $0x350] sm:$0xff]
  %v2463 = vld [vmem:[%s2 + $0x358] sm:$0xff]
  %v2464 = vld [vmem:[%s2 + $0x360] sm:$0xff]
  %v2465 = vld [vmem:[%s2 + $0x368] sm:$0xff]
  %v2466 = vld [vmem:[%s2 + $0x370] sm:$0xff]
  %v2467 = vld [vmem:[%s2 + $0x378] sm:$0xff]
  %v2468 = vld [vmem:[%s2 + $0x380] sm:$0xff]
  %v2469 = vld [vmem:[%s2 + $0x388] sm:$0xff]
  %v2470 = vld [vmem:[%s2 + $0x390] sm:$0xff]
  %v2471 = vld [vmem:[%s2 + $0x398] sm:$0xff]
  %v2472 = vld [vmem:[%s2 + $0x3a0] sm:$0xff]
  %v2473 = vld [vmem:[%s2 + $0x3a8] sm:$0xff]
  %v2474 = vld [vmem:[%s2 + $0x3b0] sm:$0xff]
  %v2475 = vld [vmem:[%s2 + $0x3b8] sm:$0xff]
  %v2476 = vld [vmem:[%s2 + $0x3c0] sm:$0xff]
  %v2477 = vld [vmem:[%s2 + $0x3c8] sm:$0xff]
  %v2478 = vld [vmem:[%s2 + $0x3d0] sm:$0xff]
  %v2479 = vld [vmem:[%s2 + $0x3d8] sm:$0xff]
  %v2480 = vld [vmem:[%s2 + $0x3e0] sm:$0xff]
  %v2481 = vld [vmem:[%s2 + $0x3e8] sm:$0xff]
  %v2482 = vld [vmem:[%s2 + $0x3f0] sm:$0xff]
  %v2483 = vld [vmem:[%s2 + $0x3f8] sm:$0xff]
  %s2484 = scalar_lea.vmem %s2, 1024
  %v2485 = vld [vmem:[%s2484] ss:$8 sm:$0xf]
  %v2487 = vlaneseq
  %v2488 = vshrl.u32 %v2487, 7
  %v2489 = vsub.s32 0, %v2488
  %v2490 = vrot.slane %v2485, %v2489
  %v2491 = vlaneseq
  %v2492 = vshrl.u32 %v2491, 7
  %v2493 = vsub.s32 1, %v2492
  %v2494 = vrot.slane %v2485, %v2493
  %v2495 = vlaneseq
  %v2496 = vshrl.u32 %v2495, 7
  %v2497 = vsub.s32 2, %v2496
  %v2498 = vrot.slane %v2485, %v2497
  %v2499 = vlaneseq
  %v2500 = vshrl.u32 %v2499, 7
  %v2501 = vsub.s32 3, %v2500
  %v2502 = vrot.slane %v2485, %v2501
  %2507 = vmatprep.subr.mxu0 %v2357
  %2508 = vmatpush1.msra.mxu0 %v2356
  %2509 = vmatprep.subr.mxu0 %v2361
  %2510 = vmatpush1.msra.mxu0 %v2360
  %2511 = vmatprep.subr.mxu0 %v2365
  %2512 = vmatpush1.msra.mxu0 %v2364
  %2513 = vmatprep.subr.mxu0 %v2369
  %2514 = vmatpush1.msra.mxu0 %v2368
  %2515 = vmatprep.subr.mxu0 %v2373
  %2516 = vmatpush1.msra.mxu0 %v2372
  %2517 = vmatprep.subr.mxu0 %v2377
  %2518 = vmatpush1.msra.mxu0 %v2376
  %2519 = vmatprep.subr.mxu0 %v2381
  %2520 = vmatpush1.msra.mxu0 %v2380
  %2521 = vmatprep.subr.mxu0 %v2385
  %2522 = vmatpush1.msra.mxu0 %v2384
  %2523 = vmatprep.subr.mxu0 %v2389
  %2524 = vmatpush1.msra.mxu0 %v2388
  %2525 = vmatprep.subr.mxu0 %v2393
  %2526 = vmatpush1.msra.mxu0 %v2392
  %2527 = vmatprep.subr.mxu0 %v2397
  %2528 = vmatpush1.msra.mxu0 %v2396
  %2529 = vmatprep.subr.mxu0 %v2401
  %2530 = vmatpush1.msra.mxu0 %v2400
  %2531 = vmatprep.subr.mxu0 %v2405
  %2532 = vmatpush1.msra.mxu0 %v2404
  %2533 = vmatprep.subr.mxu0 %v2409
  %2534 = vmatpush1.msra.mxu0 %v2408
  %2535 = vmatprep.subr.mxu0 %v2413
  %2536 = vmatpush1.msra.mxu0 %v2412
  %2537 = vmatprep.subr.mxu0 %v2417
  %2538 = vmatpush1.msra.mxu0 %v2416
  %2539 = vmatprep.subr.mxu0 0.0
  %2540 = vmatpush1.msra.mxu0 0.0
  %2541 = vmatprep.subr.mxu0 0.0
  %2542 = vmatpush1.msra.mxu0 0.0
  %2543 = vmatprep.subr.mxu0 0.0
  %2544 = vmatpush1.msra.mxu0 0.0
  %2545 = vmatprep.subr.mxu0 0.0
  %2546 = vmatpush1.msra.mxu0 0.0
  %2547 = vmatprep.subr.mxu0 0.0
  %2548 = vmatpush1.msra.mxu0 0.0
  %2549 = vmatprep.subr.mxu0 0.0
  %2550 = vmatpush1.msra.mxu0 0.0
  %2551 = vmatprep.subr.mxu0 0.0
  %2552 = vmatpush1.msra.mxu0 0.0
  %2553 = vmatprep.subr.mxu0 0.0
  %2554 = vmatpush1.msra.mxu0 0.0
  %2555 = vmatprep.subr.mxu0 0.0
  %2556 = vmatpush1.msra.mxu0 0.0
  %2557 = vmatprep.subr.mxu0 0.0
  %2558 = vmatpush1.msra.mxu0 0.0
  %2559 = vmatprep.subr.mxu0 0.0
  %2560 = vmatpush1.msra.mxu0 0.0
  %2561 = vmatprep.subr.mxu0 0.0
  %2562 = vmatpush1.msra.mxu0 0.0
  %2563 = vmatprep.subr.mxu0 0.0
  %2564 = vmatpush1.msra.mxu0 0.0
  %2565 = vmatprep.subr.mxu0 0.0
  %2566 = vmatpush1.msra.mxu0 0.0
  %2567 = vmatprep.subr.mxu0 0.0
  %2568 = vmatpush1.msra.mxu0 0.0
  %2569 = vmatprep.subr.mxu0 0.0
  %2570 = vmatpush1.msra.mxu0 0.0
  %2571 = vmatprep.mubr.f32.mxu0 0.0
  %2572 = vmatmul.mubr.f32.gmra.mrb[0].mxu0 %v2355
  %v2573 = vpop.f32.mrb[0].mxu0
  %v2574 = vadd.f32 %v2490, %v2573
  %v2575 = vpop.f32.mrb[0].mxu0
  %v2576 = vadd.f32 %v2494, %v2575
  %2577 = vdwg.mxu0
  %2578 = vmatprep.subr.mxu0 %v2359
  %2579 = vmatpush1.msra.mxu0 %v2358
  %2580 = vmatprep.subr.mxu0 %v2363
  %2581 = vmatpush1.msra.mxu0 %v2362
  %2582 = vmatprep.subr.mxu0 %v2367
  %2583 = vmatpush1.msra.mxu0 %v2366
  %2584 = vmatprep.subr.mxu0 %v2371
  %2585 = vmatpush1.msra.mxu0 %v2370
  %2586 = vmatprep.subr.mxu0 %v2375
  %2587 = vmatpush1.msra.mxu0 %v2374
  %2588 = vmatprep.subr.mxu0 %v2379
  %2589 = vmatpush1.msra.mxu0 %v2378
  %2590 = vmatprep.subr.mxu0 %v2383
  %2591 = vmatpush1.msra.mxu0 %v2382
  %2592 = vmatprep.subr.mxu0 %v2387
  %2593 = vmatpush1.msra.mxu0 %v2386
  %2594 = vmatprep.subr.mxu0 %v2391
  %2595 = vmatpush1.msra.mxu0 %v2390
  %2596 = vmatprep.subr.mxu0 %v2395
  %2597 = vmatpush1.msra.mxu0 %v2394
  %2598 = vmatprep.subr.mxu0 %v2399
  %2599 = vmatpush1.msra.mxu0 %v2398
  %2600 = vmatprep.subr.mxu0 %v2403
  %2601 = vmatpush1.msra.mxu0 %v2402
  %2602 = vmatprep.subr.mxu0 %v2407
  %2603 = vmatpush1.msra.mxu0 %v2406
  %2604 = vmatprep.subr.mxu0 %v2411
  %2605 = vmatpush1.msra.mxu0 %v2410
  %2606 = vmatprep.subr.mxu0 %v2415
  %2607 = vmatpush1.msra.mxu0 %v2414
  %2608 = vmatprep.subr.mxu0 %v2419
  %2609 = vmatpush1.msra.mxu0 %v2418
  %2610 = vmatprep.subr.mxu0 0.0
  %2611 = vmatpush1.msra.mxu0 0.0
  %2612 = vmatprep.subr.mxu0 0.0
  %2613 = vmatpush1.msra.mxu0 0.0
  %2614 = vmatprep.subr.mxu0 0.0
  %2615 = vmatpush1.msra.mxu0 0.0
  %2616 = vmatprep.subr.mxu0 0.0
  %2617 = vmatpush1.msra.mxu0 0.0
  %2618 = vmatprep.subr.mxu0 0.0
  %2619 = vmatpush1.msra.mxu0 0.0
  %2620 = vmatprep.subr.mxu0 0.0
  %2621 = vmatpush1.msra.mxu0 0.0
  %2622 = vmatprep.subr.mxu0 0.0
  %2623 = vmatpush1.msra.mxu0 0.0
  %2624 = vmatprep.subr.mxu0 0.0
  %2625 = vmatpush1.msra.mxu0 0.0
  %2626 = vmatprep.subr.mxu0 0.0
  %2627 = vmatpush1.msra.mxu0 0.0
  %2628 = vmatprep.subr.mxu0 0.0
  %2629 = vmatpush1.msra.mxu0 0.0
  %2630 = vmatprep.subr.mxu0 0.0
  %2631 = vmatpush1.msra.mxu0 0.0
  %2632 = vmatprep.subr.mxu0 0.0
  %2633 = vmatpush1.msra.mxu0 0.0
  %2634 = vmatprep.subr.mxu0 0.0
  %2635 = vmatpush1.msra.mxu0 0.0
  %2636 = vmatprep.subr.mxu0 0.0
  %2637 = vmatpush1.msra.mxu0 0.0
  %2638 = vmatprep.subr.mxu0 0.0
  %2639 = vmatpush1.msra.mxu0 0.0
  %2640 = vmatprep.subr.mxu0 0.0
  %2641 = vmatpush1.msra.mxu0 0.0
  %2642 = vmatprep.mubr.f32.mxu0 0.0
  %2643 = vmatmul.mubr.f32.gmra.mrb[0].mxu0 %v2355
  %v2644 = vpop.f32.mrb[0].mxu0
  %v2645 = vadd.f32 %v2498, %v2644
  %v2646 = vpop.f32.mrb[0].mxu0
  %v2647 = vadd.f32 %v2502, %v2646
  %2648 = vdwg.mxu0
  %2649 = vmatprep.subr.mxu0 %v2421
  %2650 = vmatpush1.msra.mxu0 %v2420
  %2651 = vmatprep.subr.mxu0 %v2425
  %2652 = vmatpush1.msra.mxu0 %v2424
  %2653 = vmatprep.subr.mxu0 %v2429
  %2654 = vmatpush1.msra.mxu0 %v2428
  %2655 = vmatprep.subr.mxu0 %v2433
  %2656 = vmatpush1.msra.mxu0 %v2432
  %2657 = vmatprep.subr.mxu0 %v2437
  %2658 = vmatpush1.msra.mxu0 %v2436
  %2659 = vmatprep.subr.mxu0 %v2441
  %2660 = vmatpush1.msra.mxu0 %v2440
  %2661 = vmatprep.subr.mxu0 %v2445
  %2662 = vmatpush1.msra.mxu0 %v2444
  %2663 = vmatprep.subr.mxu0 %v2449
  %2664 = vmatpush1.msra.mxu0 %v2448
  %2665 = vmatprep.subr.mxu0 %v2453
  %2666 = vmatpush1.msra.mxu0 %v2452
  %2667 = vmatprep.subr.mxu0 %v2457
  %2668 = vmatpush1.msra.mxu0 %v2456
  %2669 = vmatprep.subr.mxu0 %v2461
  %2670 = vmatpush1.msra.mxu0 %v2460
  %2671 = vmatprep.subr.mxu0 %v2465
  %2672 = vmatpush1.msra.mxu0 %v2464
  %2673 = vmatprep.subr.mxu0 %v2469
  %2674 = vmatpush1.msra.mxu0 %v2468
  %2675 = vmatprep.subr.mxu0 %v2473
  %2676 = vmatpush1.msra.mxu0 %v2472
  %2677 = vmatprep.subr.mxu0 %v2477
  %2678 = vmatpush1.msra.mxu0 %v2476
  %2679 = vmatprep.subr.mxu0 %v2481
  %2680 = vmatpush1.msra.mxu0 %v2480
  %2681 = vmatprep.subr.mxu0 0.0
  %2682 = vmatpush1.msra.mxu0 0.0
  %2683 = vmatprep.subr.mxu0 0.0
  %2684 = vmatpush1.msra.mxu0 0.0
  %2685 = vmatprep.subr.mxu0 0.0
  %2686 = vmatpush1.msra.mxu0 0.0
  %2687 = vmatprep.subr.mxu0 0.0
  %2688 = vmatpush1.msra.mxu0 0.0
  %2689 = vmatprep.subr.mxu0 0.0
  %2690 = vmatpush1.msra.mxu0 0.0
  %2691 = vmatprep.subr.mxu0 0.0
  %2692 = vmatpush1.msra.mxu0 0.0
  %2693 = vmatprep.subr.mxu0 0.0
  %2694 = vmatpush1.msra.mxu0 0.0
  %2695 = vmatprep.subr.mxu0 0.0
  %2696 = vmatpush1.msra.mxu0 0.0
  %2697 = vmatprep.subr.mxu0 0.0
  %2698 = vmatpush1.msra.mxu0 0.0
  %2699 = vmatprep.subr.mxu0 0.0
  %2700 = vmatpush1.msra.mxu0 0.0
  %2701 = vmatprep.subr.mxu0 0.0
  %2702 = vmatpush1.msra.mxu0 0.0
  %2703 = vmatprep.subr.mxu0 0.0
  %2704 = vmatpush1.msra.mxu0 0.0
  %2705 = vmatprep.subr.mxu0 0.0
  %2706 = vmatpush1.msra.mxu0 0.0
  %2707 = vmatprep.subr.mxu0 0.0
  %2708 = vmatpush1.msra.mxu0 0.0
  %2709 = vmatprep.subr.mxu0 0.0
  %2710 = vmatpush1.msra.mxu0 0.0
  %2711 = vmatprep.subr.mxu0 0.0
  %2712 = vmatpush1.msra.mxu0 0.0
  %2713 = vmatprep.mubr.f32.mxu0 0.0
  %2714 = vmatmul.mubr.f32.gmra.mrb[0].mxu0 0.0
  %v2715 = vpop.f32.mrb[0].mxu0
  %v2716 = vadd.f32 0.0, %v2715
  %v2717 = vpop.f32.mrb[0].mxu0
  %v2718 = vadd.f32 0.0, %v2717
  %2719 = vdwg.mxu0
  %2720 = vmatprep.subr.mxu0 %v2423
  %2721 = vmatpush1.msra.mxu0 %v2422
  %2722 = vmatprep.subr.mxu0 %v2427
  %2723 = vmatpush1.msra.mxu0 %v2426
  %2724 = vmatprep.subr.mxu0 %v2431
  %2725 = vmatpush1.msra.mxu0 %v2430
  %2726 = vmatprep.subr.mxu0 %v2435
  %2727 = vmatpush1.msra.mxu0 %v2434
  %2728 = vmatprep.subr.mxu0 %v2439
  %2729 = vmatpush1.msra.mxu0 %v2438
  %2730 = vmatprep.subr.mxu0 %v2443
  %2731 = vmatpush1.msra.mxu0 %v2442
  %2732 = vmatprep.subr.mxu0 %v2447
  %2733 = vmatpush1.msra.mxu0 %v2446
  %2734 = vmatprep.subr.mxu0 %v2451
  %2735 = vmatpush1.msra.mxu0 %v2450
  %2736 = vmatprep.subr.mxu0 %v2455
  %2737 = vmatpush1.msra.mxu0 %v2454
  %2738 = vmatprep.subr.mxu0 %v2459
  %2739 = vmatpush1.msra.mxu0 %v2458
  %2740 = vmatprep.subr.mxu0 %v2463
  %2741 = vmatpush1.msra.mxu0 %v2462
  %2742 = vmatprep.subr.mxu0 %v2467
  %2743 = vmatpush1.msra.mxu0 %v2466
  %2744 = vmatprep.subr.mxu0 %v2471
  %2745 = vmatpush1.msra.mxu0 %v2470
  %2746 = vmatprep.subr.mxu0 %v2475
  %2747 = vmatpush1.msra.mxu0 %v2474
  %2748 = vmatprep.subr.mxu0 %v2479
  %2749 = vmatpush1.msra.mxu0 %v2478
  %2750 = vmatprep.subr.mxu0 %v2483
  %2751 = vmatpush1.msra.mxu0 %v2482
  %2752 = vmatprep.subr.mxu0 0.0
  %2753 = vmatpush1.msra.mxu0 0.0
  %2754 = vmatprep.subr.mxu0 0.0
  %2755 = vmatpush1.msra.mxu0 0.0
  %2756 = vmatprep.subr.mxu0 0.0
  %2757 = vmatpush1.msra.mxu0 0.0
  %2758 = vmatprep.subr.mxu0 0.0
  %2759 = vmatpush1.msra.mxu0 0.0
  %2760 = vmatprep.subr.mxu0 0.0
  %2761 = vmatpush1.msra.mxu0 0.0
  %2762 = vmatprep.subr.mxu0 0.0
  %2763 = vmatpush1.msra.mxu0 0.0
  %2764 = vmatprep.subr.mxu0 0.0
  %2765 = vmatpush1.msra.mxu0 0.0
  %2766 = vmatprep.subr.mxu0 0.0
  %2767 = vmatpush1.msra.mxu0 0.0
  %2768 = vmatprep.subr.mxu0 0.0
  %2769 = vmatpush1.msra.mxu0 0.0
  %2770 = vmatprep.subr.mxu0 0.0
  %2771 = vmatpush1.msra.mxu0 0.0
  %2772 = vmatprep.subr.mxu0 0.0
  %2773 = vmatpush1.msra.mxu0 0.0
  %2774 = vmatprep.subr.mxu0 0.0
  %2775 = vmatpush1.msra.mxu0 0.0
  %2776 = vmatprep.subr.mxu0 0.0
  %2777 = vmatpush1.msra.mxu0 0.0
  %2778 = vmatprep.subr.mxu0 0.0
  %2779 = vmatpush1.msra.mxu0 0.0
  %2780 = vmatprep.subr.mxu0 0.0
  %2781 = vmatpush1.msra.mxu0 0.0
  %2782 = vmatprep.subr.mxu0 0.0
  %2783 = vmatpush1.msra.mxu0 0.0
  %2784 = vmatprep.mubr.f32.mxu0 0.0
  %2785 = vmatmul.mubr.f32.gmra.mrb[0].mxu0 0.0
  %v2786 = vpop.f32.mrb[0].mxu0
  %v2787 = vadd.f32 0.0, %v2786
  %v2788 = vpop.f32.mrb[0].mxu0
  %v2789 = vadd.f32 0.0, %v2788
  %2790 = vdwg.mxu0
  %v2791 = vadd.f32 %v2574, %v2716
  %v2792 = vadd.f32 %v2576, %v2718
  %v2793 = vadd.f32 %v2645, %v2787
  %v2794 = vadd.f32 %v2647, %v2789
  %v2795 = vmul.f32 %v2791, 0.5
  %v2796 = vmul.f32 %v2792, 0.5
  %v2797 = vmul.f32 %v2793, 0.5
  %v2798 = vtanh.pop %v2795
  %v2799 = vtanh.pop %v2796
  %v2800 = vtanh.pop %v2797
  %v2801 = vmul.f32 %v2798, 0.5
  %v2802 = vmul.f32 %v2799, 0.5
  %v2803 = vmul.f32 %v2800, 0.5
  %v2804 = vadd.f32 %v2801, 0.5
  %v2805 = vadd.f32 %v2802, 0.5
  %v2806 = vadd.f32 %v2803, 0.5
  %v2807 = vtanh.pop %v2794
  %v2808 = vmul.f32 %v2805, 0.0
  %v2809 = vmul.f32 %v2804, %v2807
  %v2810 = vadd.f32 %v2808, %v2809
  %v2811 = vtanh.pop %v2810
  %v2812 = vmul.f32 %v2806, %v2811
  %2813 = vmatprep.subr.mxu0 %v2421
  %2814 = vmatpush1.msra.mxu0 %v2420
  %2815 = vmatprep.subr.mxu0 %v2425
  %2816 = vmatpush1.msra.mxu0 %v2424
  %2817 = vmatprep.subr.mxu0 %v2429
  %2818 = vmatpush1.msra.mxu0 %v2428
  %2819 = vmatprep.subr.mxu0 %v2433
  %2820 = vmatpush1.msra.mxu0 %v2432
  %2821 = vmatprep.subr.mxu0 %v2437
  %2822 = vmatpush1.msra.mxu0 %v2436
  %2823 = vmatprep.subr.mxu0 %v2441
  %2824 = vmatpush1.msra.mxu0 %v2440
  %2825 = vmatprep.subr.mxu0 %v2445
  %2826 = vmatpush1.msra.mxu0 %v2444
  %2827 = vmatprep.subr.mxu0 %v2449
  %2828 = vmatpush1.msra.mxu0 %v2448
  %2829 = vmatprep.subr.mxu0 %v2453
  %2830 = vmatpush1.msra.mxu0 %v2452
  %2831 = vmatprep.subr.mxu0 %v2457
  %2832 = vmatpush1.msra.mxu0 %v2456
  %2833 = vmatprep.subr.mxu0 %v2461
  %2834 = vmatpush1.msra.mxu0 %v2460
  %2835 = vmatprep.subr.mxu0 %v2465
  %2836 = vmatpush1.msra.mxu0 %v2464
  %2837 = vmatprep.subr.mxu0 %v2469
  %2838 = vmatpush1.msra.mxu0 %v2468
  %2839 = vmatprep.subr.mxu0 %v2473
  %2840 = vmatpush1.msra.mxu0 %v2472
  %2841 = vmatprep.subr.mxu0 %v2477
  %2842 = vmatpush1.msra.mxu0 %v2476
  %2843 = vmatprep.subr.mxu0 %v2481
  %2844 = vmatpush1.msra.mxu0 %v2480
  %2845 = vmatprep.subr.mxu0 0.0
  %2846 = vmatpush1.msra.mxu0 0.0
  %2847 = vmatprep.subr.mxu0 0.0
  %2848 = vmatpush1.msra.mxu0 0.0
  %2849 = vmatprep.subr.mxu0 0.0
  %2850 = vmatpush1.msra.mxu0 0.0
  %2851 = vmatprep.subr.mxu0 0.0
  %2852 = vmatpush1.msra.mxu0 0.0
  %2853 = vmatprep.subr.mxu0 0.0
  %2854 = vmatpush1.msra.mxu0 0.0
  %2855 = vmatprep.subr.mxu0 0.0
  %2856 = vmatpush1.msra.mxu0 0.0
  %2857 = vmatprep.subr.mxu0 0.0
  %2858 = vmatpush1.msra.mxu0 0.0
  %2859 = vmatprep.subr.mxu0 0.0
  %2860 = vmatpush1.msra.mxu0 0.0
  %2861 = vmatprep.subr.mxu0 0.0
  %2862 = vmatpush1.msra.mxu0 0.0
  %2863 = vmatprep.subr.mxu0 0.0
  %2864 = vmatpush1.msra.mxu0 0.0
  %2865 = vmatprep.subr.mxu0 0.0
  %2866 = vmatpush1.msra.mxu0 0.0
  %2867 = vmatprep.subr.mxu0 0.0
  %2868 = vmatpush1.msra.mxu0 0.0
  %2869 = vmatprep.subr.mxu0 0.0
  %2870 = vmatpush1.msra.mxu0 0.0
  %2871 = vmatprep.subr.mxu0 0.0
  %2872 = vmatpush1.msra.mxu0 0.0
  %2873 = vmatprep.subr.mxu0 0.0
  %2874 = vmatpush1.msra.mxu0 0.0
  %2875 = vmatprep.subr.mxu0 0.0
  %2876 = vmatpush1.msra.mxu0 0.0
  %2877 = vmatprep.mubr.f32.mxu0 0.0
  %2878 = vmatmul.mubr.f32.gmra.mrb[0].mxu0 %v2812
  %v2879 = vpop.f32.mrb[0].mxu0
  %v2880 = vadd.f32 0.0, %v2879
  %v2881 = vpop.f32.mrb[0].mxu0
  %v2882 = vadd.f32 0.0, %v2881
  %2883 = vdwg.mxu0
  %2884 = vmatprep.subr.mxu0 %v2423
  %2885 = vmatpush1.msra.mxu0 %v2422
  %2886 = vmatprep.subr.mxu0 %v2427
  %2887 = vmatpush1.msra.mxu0 %v2426
  %2888 = vmatprep.subr.mxu0 %v2431
  %2889 = vmatpush1.msra.mxu0 %v2430
  %2890 = vmatprep.subr.mxu0 %v2435
  %2891 = vmatpush1.msra.mxu0 %v2434
  %2892 = vmatprep.subr.mxu0 %v2439
  %2893 = vmatpush1.msra.mxu0 %v2438
  %2894 = vmatprep.subr.mxu0 %v2443
  %2895 = vmatpush1.msra.mxu0 %v2442
  %2896 = vmatprep.subr.mxu0 %v2447
  %2897 = vmatpush1.msra.mxu0 %v2446
  %2898 = vmatprep.subr.mxu0 %v2451
  %2899 = vmatpush1.msra.mxu0 %v2450
  %2900 = vmatprep.subr.mxu0 %v2455
  %2901 = vmatpush1.msra.mxu0 %v2454
  %2902 = vmatprep.subr.mxu0 %v2459
  %2903 = vmatpush1.msra.mxu0 %v2458
  %2904 = vmatprep.subr.mxu0 %v2463
  %2905 = vmatpush1.msra.mxu0 %v2462
  %2906 = vmatprep.subr.mxu0 %v2467
  %2907 = vmatpush1.msra.mxu0 %v2466
  %2908 = vmatprep.subr.mxu0 %v2471
  %2909 = vmatpush1.msra.mxu0 %v2470
  %2910 = vmatprep.subr.mxu0 %v2475
  %2911 = vmatpush1.msra.mxu0 %v2474
  %2912 = vmatprep.subr.mxu0 %v2479
  %2913 = vmatpush1.msra.mxu0 %v2478
  %2914 = vmatprep.subr.mxu0 %v2483
  %2915 = vmatpush1.msra.mxu0 %v2482
  %2916 = vmatprep.subr.mxu0 0.0
  %2917 = vmatpush1.msra.mxu0 0.0
  %2918 = vmatprep.subr.mxu0 0.0
  %2919 = vmatpush1.msra.mxu0 0.0
  %2920 = vmatprep.subr.mxu0 0.0
  %2921 = vmatpush1.msra.mxu0 0.0
  %2922 = vmatprep.subr.mxu0 0.0
  %2923 = vmatpush1.msra.mxu0 0.0
  %2924 = vmatprep.subr.mxu0 0.0
  %2925 = vmatpush1.msra.mxu0 0.0
  %2926 = vmatprep.subr.mxu0 0.0
  %2927 = vmatpush1.msra.mxu0 0.0
  %2928 = vmatprep.subr.mxu0 0.0
  %2929 = vmatpush1.msra.mxu0 0.0
  %2930 = vmatprep.subr.mxu0 0.0
  %2931 = vmatpush1.msra.mxu0 0.0
  %2932 = vmatprep.subr.mxu0 0.0
  %2933 = vmatpush1.msra.mxu0 0.0
  %2934 = vmatprep.subr.mxu0 0.0
  %2935 = vmatpush1.msra.mxu0 0.0
  %2936 = vmatprep.subr.mxu0 0.0
  %2937 = vmatpush1.msra.mxu0 0.0
  %2938 = vmatprep.subr.mxu0 0.0
  %2939 = vmatpush1.msra.mxu0 0.0
  %2940 = vmatprep.subr.mxu0 0.0
  %2941 = vmatpush1.msra.mxu0 0.0
  %2942 = vmatprep.subr.mxu0 0.0
  %2943 = vmatpush1.msra.mxu0 0.0
  %2944 = vmatprep.subr.mxu0 0.0
  %2945 = vmatpush1.msra.mxu0 0.0
  %2946 = vmatprep.subr.mxu0 0.0
  %2947 = vmatpush1.msra.mxu0 0.0
  %2948 = vmatprep.mubr.f32.mxu0 0.0
  %2949 = vmatmul.mubr.f32.gmra.mrb[0].mxu0 %v2812
  %v2950 = vpop.f32.mrb[0].mxu0
  %v2951 = vadd.f32 0.0, %v2950
  %v2952 = vpop.f32.mrb[0].mxu0
  %v2953 = vadd.f32 0.0, %v2952
  %2954 = vdwg.mxu0
  %v2959 = vrot.slane %v2880, 7
  %v2960 = vrot.slane %v2882, 7
  %v2961 = vrot.slane %v2951, 7
  %v2962 = vrot.slane %v2953, 7
  %v2967 = vadd.f32 %v2574, %v2959
  %v2968 = vadd.f32 %v2576, %v2960
  %v2969 = vadd.f32 %v2645, %v2961
  %v2970 = vadd.f32 %v2647, %v2962
  %v2971 = vmul.f32 %v2967, 0.5
  %v2972 = vmul.f32 %v2968, 0.5
  %v2973 = vmul.f32 %v2969, 0.5
  %v2974 = vtanh.pop %v2971
  %v2975 = vtanh.pop %v2972
  %v2976 = vtanh.pop %v2973
  %v2977 = vmul.f32 %v2974, 0.5
  %v2978 = vmul.f32 %v2975, 0.5
  %v2979 = vmul.f32 %v2976, 0.5
  %v2980 = vadd.f32 %v2977, 0.5
  %v2981 = vadd.f32 %v2978, 0.5
  %v2982 = vadd.f32 %v2979, 0.5
  %v2983 = vtanh.pop %v2970
  %v2985 = vrot.slane %v2810, 7
  %v2987 = vmul.f32 %v2981, %v2985
  %v2988 = vmul.f32 %v2980, %v2983
  %v2989 = vadd.f32 %v2987, %v2988
  %v2990 = vtanh.pop %v2989
  %v2991 = vmul.f32 %v2982, %v2990
  %v2993 = vrot.slane %v2991, 1
  %2995 = vmatprep.subr.mxu0 %v2421
  %2996 = vmatpush1.msra.mxu0 %v2420
  %2997 = vmatprep.subr.mxu0 %v2425
  %2998 = vmatpush1.msra.mxu0 %v2424
  %2999 = vmatprep.subr.mxu0 %v2429
  %3000 = vmatpush1.msra.mxu0 %v2428
  %3001 = vmatprep.subr.mxu0 %v2433
  %3002 = vmatpush1.msra.mxu0 %v2432
  %3003 = vmatprep.subr.mxu0 %v2437
  %3004 = vmatpush1.msra.mxu0 %v2436
  %3005 = vmatprep.subr.mxu0 %v2441
  %3006 = vmatpush1.msra.mxu0 %v2440
  %3007 = vmatprep.subr.mxu0 %v2445
  %3008 = vmatpush1.msra.mxu0 %v2444
  %3009 = vmatprep.subr.mxu0 %v2449
  %3010 = vmatpush1.msra.mxu0 %v2448
  %3011 = vmatprep.subr.mxu0 %v2453
  %3012 = vmatpush1.msra.mxu0 %v2452
  %3013 = vmatprep.subr.mxu0 %v2457
  %3014 = vmatpush1.msra.mxu0 %v2456
  %3015 = vmatprep.subr.mxu0 %v2461
  %3016 = vmatpush1.msra.mxu0 %v2460
  %3017 = vmatprep.subr.mxu0 %v2465
  %3018 = vmatpush1.msra.mxu0 %v2464
  %3019 = vmatprep.subr.mxu0 %v2469
  %3020 = vmatpush1.msra.mxu0 %v2468
  %3021 = vmatprep.subr.mxu0 %v2473
  %3022 = vmatpush1.msra.mxu0 %v2472
  %3023 = vmatprep.subr.mxu0 %v2477
  %3024 = vmatpush1.msra.mxu0 %v2476
  %3025 = vmatprep.subr.mxu0 %v2481
  %3026 = vmatpush1.msra.mxu0 %v2480
  %3027 = vmatprep.subr.mxu0 0.0
  %3028 = vmatpush1.msra.mxu0 0.0
  %3029 = vmatprep.subr.mxu0 0.0
  %3030 = vmatpush1.msra.mxu0 0.0
  %3031 = vmatprep.subr.mxu0 0.0
  %3032 = vmatpush1.msra.mxu0 0.0
  %3033 = vmatprep.subr.mxu0 0.0
  %3034 = vmatpush1.msra.mxu0 0.0
  %3035 = vmatprep.subr.mxu0 0.0
  %3036 = vmatpush1.msra.mxu0 0.0
  %3037 = vmatprep.subr.mxu0 0.0
  %3038 = vmatpush1.msra.mxu0 0.0
  %3039 = vmatprep.subr.mxu0 0.0
  %3040 = vmatpush1.msra.mxu0 0.0
  %3041 = vmatprep.subr.mxu0 0.0
  %3042 = vmatpush1.msra.mxu0 0.0
  %3043 = vmatprep.subr.mxu0 0.0
  %3044 = vmatpush1.msra.mxu0 0.0
  %3045 = vmatprep.subr.mxu0 0.0
  %3046 = vmatpush1.msra.mxu0 0.0
  %3047 = vmatprep.subr.mxu0 0.0
  %3048 = vmatpush1.msra.mxu0 0.0
  %3049 = vmatprep.subr.mxu0 0.0
  %3050 = vmatpush1.msra.mxu0 0.0
  %3051 = vmatprep.subr.mxu0 0.0
  %3052 = vmatpush1.msra.mxu0 0.0
  %3053 = vmatprep.subr.mxu0 0.0
  %3054 = vmatpush1.msra.mxu0 0.0
  %3055 = vmatprep.subr.mxu0 0.0
  %3056 = vmatpush1.msra.mxu0 0.0
  %3057 = vmatprep.subr.mxu0 0.0
  %3058 = vmatpush1.msra.mxu0 0.0
  %3059 = vmatprep.mubr.f32.mxu0 0.0
  %3060 = vmatmul.mubr.f32.gmra.mrb[0].mxu0 %v2993
  %v3061 = vpop.f32.mrb[0].mxu0
  %v3062 = vadd.f32 0.0, %v3061
  %v3063 = vpop.f32.mrb[0].mxu0
  %v3064 = vadd.f32 0.0, %v3063
  %3065 = vdwg.mxu0
  %3066 = vmatprep.subr.mxu0 %v2423
  %3067 = vmatpush1.msra.mxu0 %v2422
  %3068 = vmatprep.subr.mxu0 %v2427
  %3069 = vmatpush1.msra.mxu0 %v2426
  %3070 = vmatprep.subr.mxu0 %v2431
  %3071 = vmatpush1.msra.mxu0 %v2430
  %3072 = vmatprep.subr.mxu0 %v2435
  %3073 = vmatpush1.msra.mxu0 %v2434
  %3074 = vmatprep.subr.mxu0 %v2439
  %3075 = vmatpush1.msra.mxu0 %v2438
  %3076 = vmatprep.subr.mxu0 %v2443
  %3077 = vmatpush1.msra.mxu0 %v2442
  %3078 = vmatprep.subr.mxu0 %v2447
  %3079 = vmatpush1.msra.mxu0 %v2446
  %3080 = vmatprep.subr.mxu0 %v2451
  %3081 = vmatpush1.msra.mxu0 %v2450
  %3082 = vmatprep.subr.mxu0 %v2455
  %3083 = vmatpush1.msra.mxu0 %v2454
  %3084 = vmatprep.subr.mxu0 %v2459
  %3085 = vmatpush1.msra.mxu0 %v2458
  %3086 = vmatprep.subr.mxu0 %v2463
  %3087 = vmatpush1.msra.mxu0 %v2462
  %3088 = vmatprep.subr.mxu0 %v2467
  %3089 = vmatpush1.msra.mxu0 %v2466
  %3090 = vmatprep.subr.mxu0 %v2471
  %3091 = vmatpush1.msra.mxu0 %v2470
  %3092 = vmatprep.subr.mxu0 %v2475
  %3093 = vmatpush1.msra.mxu0 %v2474
  %3094 = vmatprep.subr.mxu0 %v2479
  %3095 = vmatpush1.msra.mxu0 %v2478
  %3096 = vmatprep.subr.mxu0 %v2483
  %3097 = vmatpush1.msra.mxu0 %v2482
  %3098 = vmatprep.subr.mxu0 0.0
  %3099 = vmatpush1.msra.mxu0 0.0
  %3100 = vmatprep.subr.mxu0 0.0
  %3101 = vmatpush1.msra.mxu0 0.0
  %3102 = vmatprep.subr.mxu0 0.0
  %3103 = vmatpush1.msra.mxu0 0.0
  %3104 = vmatprep.subr.mxu0 0.0
  %3105 = vmatpush1.msra.mxu0 0.0
  %3106 = vmatprep.subr.mxu0 0.0
  %3107 = vmatpush1.msra.mxu0 0.0
  %3108 = vmatprep.subr.mxu0 0.0
  %3109 = vmatpush1.msra.mxu0 0.0
  %3110 = vmatprep.subr.mxu0 0.0
  %3111 = vmatpush1.msra.mxu0 0.0
  %3112 = vmatprep.subr.mxu0 0.0
  %3113 = vmatpush1.msra.mxu0 0.0
  %3114 = vmatprep.subr.mxu0 0.0
  %3115 = vmatpush1.msra.mxu0 0.0
  %3116 = vmatprep.subr.mxu0 0.0
  %3117 = vmatpush1.msra.mxu0 0.0
  %3118 = vmatprep.subr.mxu0 0.0
  %3119 = vmatpush1.msra.mxu0 0.0
  %3120 = vmatprep.subr.mxu0 0.0
  %3121 = vmatpush1.msra.mxu0 0.0
  %3122 = vmatprep.subr.mxu0 0.0
  %3123 = vmatpush1.msra.mxu0 0.0
  %3124 = vmatprep.subr.mxu0 0.0
  %3125 = vmatpush1.msra.mxu0 0.0
  %3126 = vmatprep.subr.mxu0 0.0
  %3127 = vmatpush1.msra.mxu0 0.0
  %3128 = vmatprep.subr.mxu0 0.0
  %3129 = vmatpush1.msra.mxu0 0.0
  %3130 = vmatprep.mubr.f32.mxu0 0.0
  %3131 = vmatmul.mubr.f32.gmra.mrb[0].mxu0 %v2993
  %v3132 = vpop.f32.mrb[0].mxu0
  %v3133 = vadd.f32 0.0, %v3132
  %v3134 = vpop.f32.mrb[0].mxu0
  %v3135 = vadd.f32 0.0, %v3134
  %3136 = vdwg.mxu0
  %v3141 = vrot.slane %v3062, 6
  %v3142 = vrot.slane %v3064, 6
  %v3143 = vrot.slane %v3133, 6
  %v3144 = vrot.slane %v3135, 6
  %v3149 = vadd.f32 %v2574, %v3141
  %v3150 = vadd.f32 %v2576, %v3142
  %v3151 = vadd.f32 %v2645, %v3143
  %v3152 = vadd.f32 %v2647, %v3144
  %v3153 = vmul.f32 %v3149, 0.5
  %v3154 = vmul.f32 %v3150, 0.5
  %v3155 = vmul.f32 %v3151, 0.5
  %v3156 = vtanh.pop %v3153
  %v3157 = vtanh.pop %v3154
  %v3158 = vtanh.pop %v3155
  %v3159 = vmul.f32 %v3156, 0.5
  %v3160 = vmul.f32 %v3157, 0.5
  %v3161 = vmul.f32 %v3158, 0.5
  %v3162 = vadd.f32 %v3159, 0.5
  %v3163 = vadd.f32 %v3160, 0.5
  %v3164 = vadd.f32 %v3161, 0.5
  %v3165 = vtanh.pop %v3152
  %v3167 = vrot.slane %v2989, 7
  %v3169 = vmul.f32 %v3163, %v3167
  %v3170 = vmul.f32 %v3162, %v3165
  %v3171 = vadd.f32 %v3169, %v3170
  %v3172 = vtanh.pop %v3171
  %v3173 = vmul.f32 %v3164, %v3172
  %v3175 = vrot.slane %v3173, 2
  %3177 = vmatprep.subr.mxu0 %v2421
  %3178 = vmatpush1.msra.mxu0 %v2420
  %3179 = vmatprep.subr.mxu0 %v2425
  %3180 = vmatpush1.msra.mxu0 %v2424
  %3181 = vmatprep.subr.mxu0 %v2429
  %3182 = vmatpush1.msra.mxu0 %v2428
  %3183 = vmatprep.subr.mxu0 %v2433
  %3184 = vmatpush1.msra.mxu0 %v2432
  %3185 = vmatprep.subr.mxu0 %v2437
  %3186 = vmatpush1.msra.mxu0 %v2436
  %3187 = vmatprep.subr.mxu0 %v2441
  %3188 = vmatpush1.msra.mxu0 %v2440
  %3189 = vmatprep.subr.mxu0 %v2445
  %3190 = vmatpush1.msra.mxu0 %v2444
  %3191 = vmatprep.subr.mxu0 %v2449
  %3192 = vmatpush1.msra.mxu0 %v2448
  %3193 = vmatprep.subr.mxu0 %v2453
  %3194 = vmatpush1.msra.mxu0 %v2452
  %3195 = vmatprep.subr.mxu0 %v2457
  %3196 = vmatpush1.msra.mxu0 %v2456
  %3197 = vmatprep.subr.mxu0 %v2461
  %3198 = vmatpush1.msra.mxu0 %v2460
  %3199 = vmatprep.subr.mxu0 %v2465
  %3200 = vmatpush1.msra.mxu0 %v2464
  %3201 = vmatprep.subr.mxu0 %v2469
  %3202 = vmatpush1.msra.mxu0 %v2468
  %3203 = vmatprep.subr.mxu0 %v2473
  %3204 = vmatpush1.msra.mxu0 %v2472
  %3205 = vmatprep.subr.mxu0 %v2477
  %3206 = vmatpush1.msra.mxu0 %v2476
  %3207 = vmatprep.subr.mxu0 %v2481
  %3208 = vmatpush1.msra.mxu0 %v2480
  %3209 = vmatprep.subr.mxu0 0.0
  %3210 = vmatpush1.msra.mxu0 0.0
  %3211 = vmatprep.subr.mxu0 0.0
  %3212 = vmatpush1.msra.mxu0 0.0
  %3213 = vmatprep.subr.mxu0 0.0
  %3214 = vmatpush1.msra.mxu0 0.0
  %3215 = vmatprep.subr.mxu0 0.0
  %3216 = vmatpush1.msra.mxu0 0.0
  %3217 = vmatprep.subr.mxu0 0.0
  %3218 = vmatpush1.msra.mxu0 0.0
  %3219 = vmatprep.subr.mxu0 0.0
  %3220 = vmatpush1.msra.mxu0 0.0
  %3221 = vmatprep.subr.mxu0 0.0
  %3222 = vmatpush1.msra.mxu0 0.0
  %3223 = vmatprep.subr.mxu0 0.0
  %3224 = vmatpush1.msra.mxu0 0.0
  %3225 = vmatprep.subr.mxu0 0.0
  %3226 = vmatpush1.msra.mxu0 0.0
  %3227 = vmatprep.subr.mxu0 0.0
  %3228 = vmatpush1.msra.mxu0 0.0
  %3229 = vmatprep.subr.mxu0 0.0
  %3230 = vmatpush1.msra.mxu0 0.0
  %3231 = vmatprep.subr.mxu0 0.0
  %3232 = vmatpush1.msra.mxu0 0.0
  %3233 = vmatprep.subr.mxu0 0.0
  %3234 = vmatpush1.msra.mxu0 0.0
  %3235 = vmatprep.subr.mxu0 0.0
  %3236 = vmatpush1.msra.mxu0 0.0
  %3237 = vmatprep.subr.mxu0 0.0
  %3238 = vmatpush1.msra.mxu0 0.0
  %3239 = vmatprep.subr.mxu0 0.0
  %3240 = vmatpush1.msra.mxu0 0.0
  %3241 = vmatprep.mubr.f32.mxu0 0.0
  %3242 = vmatmul.mubr.f32.gmra.mrb[0].mxu0 %v3175
  %v3243 = vpop.f32.mrb[0].mxu0
  %v3244 = vadd.f32 0.0, %v3243
  %v3245 = vpop.f32.mrb[0].mxu0
  %v3246 = vadd.f32 0.0, %v3245
  %3247 = vdwg.mxu0
  %3248 = vmatprep.subr.mxu0 %v2423
  %3249 = vmatpush1.msra.mxu0 %v2422
  %3250 = vmatprep.subr.mxu0 %v2427
  %3251 = vmatpush1.msra.mxu0 %v2426
  %3252 = vmatprep.subr.mxu0 %v2431
  %3253 = vmatpush1.msra.mxu0 %v2430
  %3254 = vmatprep.subr.mxu0 %v2435
  %3255 = vmatpush1.msra.mxu0 %v2434
  %3256 = vmatprep.subr.mxu0 %v2439
  %3257 = vmatpush1.msra.mxu0 %v2438
  %3258 = vmatprep.subr.mxu0 %v2443
  %3259 = vmatpush1.msra.mxu0 %v2442
  %3260 = vmatprep.subr.mxu0 %v2447
  %3261 = vmatpush1.msra.mxu0 %v2446
  %3262 = vmatprep.subr.mxu0 %v2451
  %3263 = vmatpush1.msra.mxu0 %v2450
  %3264 = vmatprep.subr.mxu0 %v2455
  %3265 = vmatpush1.msra.mxu0 %v2454
  %3266 = vmatprep.subr.mxu0 %v2459
  %3267 = vmatpush1.msra.mxu0 %v2458
  %3268 = vmatprep.subr.mxu0 %v2463
  %3269 = vmatpush1.msra.mxu0 %v2462
  %3270 = vmatprep.subr.mxu0 %v2467
  %3271 = vmatpush1.msra.mxu0 %v2466
  %3272 = vmatprep.subr.mxu0 %v2471
  %3273 = vmatpush1.msra.mxu0 %v2470
  %3274 = vmatprep.subr.mxu0 %v2475
  %3275 = vmatpush1.msra.mxu0 %v2474
  %3276 = vmatprep.subr.mxu0 %v2479
  %3277 = vmatpush1.msra.mxu0 %v2478
  %3278 = vmatprep.subr.mxu0 %v2483
  %3279 = vmatpush1.msra.mxu0 %v2482
  %3280 = vmatprep.subr.mxu0 0.0
  %3281 = vmatpush1.msra.mxu0 0.0
  %3282 = vmatprep.subr.mxu0 0.0
  %3283 = vmatpush1.msra.mxu0 0.0
  %3284 = vmatprep.subr.mxu0 0.0
  %3285 = vmatpush1.msra.mxu0 0.0
  %3286 = vmatprep.subr.mxu0 0.0
  %3287 = vmatpush1.msra.mxu0 0.0
  %3288 = vmatprep.subr.mxu0 0.0
  %3289 = vmatpush1.msra.mxu0 0.0
  %3290 = vmatprep.subr.mxu0 0.0
  %3291 = vmatpush1.msra.mxu0 0.0
  %3292 = vmatprep.subr.mxu0 0.0
  %3293 = vmatpush1.msra.mxu0 0.0
  %3294 = vmatprep.subr.mxu0 0.0
  %3295 = vmatpush1.msra.mxu0 0.0
  %3296 = vmatprep.subr.mxu0 0.0
  %3297 = vmatpush1.msra.mxu0 0.0
  %3298 = vmatprep.subr.mxu0 0.0
  %3299 = vmatpush1.msra.mxu0 0.0
  %3300 = vmatprep.subr.mxu0 0.0
  %3301 = vmatpush1.msra.mxu0 0.0
  %3302 = vmatprep.subr.mxu0 0.0
  %3303 = vmatpush1.msra.mxu0 0.0
  %3304 = vmatprep.subr.mxu0 0.0
  %3305 = vmatpush1.msra.mxu0 0.0
  %3306 = vmatprep.subr.mxu0 0.0
  %3307 = vmatpush1.msra.mxu0 0.0
  %3308 = vmatprep.subr.mxu0 0.0
  %3309 = vmatpush1.msra.mxu0 0.0
  %3310 = vmatprep.subr.mxu0 0.0
  %3311 = vmatpush1.msra.mxu0 0.0
  %3312 = vmatprep.mubr.f32.mxu0 0.0
  %3313 = vmatmul.mubr.f32.gmra.mrb[0].mxu0 %v3175
  %v3314 = vpop.f32.mrb[0].mxu0
  %v3315 = vadd.f32 0.0, %v3314
  %v3316 = vpop.f32.mrb[0].mxu0
  %v3317 = vadd.f32 0.0, %v3316
  %3318 = vdwg.mxu0
  %v3323 = vrot.slane %v3244, 5
  %v3324 = vrot.slane %v3246, 5
  %v3325 = vrot.slane %v3315, 5
  %v3326 = vrot.slane %v3317, 5
  %v3331 = vadd.f32 %v2574, %v3323
  %v3332 = vadd.f32 %v2576, %v3324
  %v3333 = vadd.f32 %v2645, %v3325
  %v3334 = vadd.f32 %v2647, %v3326
  %v3335 = vmul.f32 %v3331, 0.5
  %v3336 = vmul.f32 %v3332, 0.5
  %v3337 = vmul.f32 %v3333, 0.5
  %v3338 = vtanh.pop %v3335
  %v3339 = vtanh.pop %v3336
  %v3340 = vtanh.pop %v3337
  %v3341 = vmul.f32 %v3338, 0.5
  %v3342 = vmul.f32 %v3339, 0.5
  %v3343 = vmul.f32 %v3340, 0.5
  %v3344 = vadd.f32 %v3341, 0.5
  %v3345 = vadd.f32 %v3342, 0.5
  %v3346 = vadd.f32 %v3343, 0.5
  %v3347 = vtanh.pop %v3334
  %v3349 = vrot.slane %v3171, 7
  %v3351 = vmul.f32 %v3345, %v3349
  %v3352 = vmul.f32 %v3344, %v3347
  %v3353 = vadd.f32 %v3351, %v3352
  %v3354 = vtanh.pop %v3353
  %v3355 = vmul.f32 %v3346, %v3354
  %v3357 = vrot.slane %v3355, 3
  %3359 = vmatprep.subr.mxu0 %v2421
  %3360 = vmatpush1.msra.mxu0 %v2420
  %3361 = vmatprep.subr.mxu0 %v2425
  %3362 = vmatpush1.msra.mxu0 %v2424
  %3363 = vmatprep.subr.mxu0 %v2429
  %3364 = vmatpush1.msra.mxu0 %v2428
  %3365 = vmatprep.subr.mxu0 %v2433
  %3366 = vmatpush1.msra.mxu0 %v2432
  %3367 = vmatprep.subr.mxu0 %v2437
  %3368 = vmatpush1.msra.mxu0 %v2436
  %3369 = vmatprep.subr.mxu0 %v2441
  %3370 = vmatpush1.msra.mxu0 %v2440
  %3371 = vmatprep.subr.mxu0 %v2445
  %3372 = vmatpush1.msra.mxu0 %v2444
  %3373 = vmatprep.subr.mxu0 %v2449
  %3374 = vmatpush1.msra.mxu0 %v2448
  %3375 = vmatprep.subr.mxu0 %v2453
  %3376 = vmatpush1.msra.mxu0 %v2452
  %3377 = vmatprep.subr.mxu0 %v2457
  %3378 = vmatpush1.msra.mxu0 %v2456
  %3379 = vmatprep.subr.mxu0 %v2461
  %3380 = vmatpush1.msra.mxu0 %v2460
  %3381 = vmatprep.subr.mxu0 %v2465
  %3382 = vmatpush1.msra.mxu0 %v2464
  %3383 = vmatprep.subr.mxu0 %v2469
  %3384 = vmatpush1.msra.mxu0 %v2468
  %3385 = vmatprep.subr.mxu0 %v2473
  %3386 = vmatpush1.msra.mxu0 %v2472
  %3387 = vmatprep.subr.mxu0 %v2477
  %3388 = vmatpush1.msra.mxu0 %v2476
  %3389 = vmatprep.subr.mxu0 %v2481
  %3390 = vmatpush1.msra.mxu0 %v2480
  %3391 = vmatprep.subr.mxu0 0.0
  %3392 = vmatpush1.msra.mxu0 0.0
  %3393 = vmatprep.subr.mxu0 0.0
  %3394 = vmatpush1.msra.mxu0 0.0
  %3395 = vmatprep.subr.mxu0 0.0
  %3396 = vmatpush1.msra.mxu0 0.0
  %3397 = vmatprep.subr.mxu0 0.0
  %3398 = vmatpush1.msra.mxu0 0.0
  %3399 = vmatprep.subr.mxu0 0.0
  %3400 = vmatpush1.msra.mxu0 0.0
  %3401 = vmatprep.subr.mxu0 0.0
  %3402 = vmatpush1.msra.mxu0 0.0
  %3403 = vmatprep.subr.mxu0 0.0
  %3404 = vmatpush1.msra.mxu0 0.0
  %3405 = vmatprep.subr.mxu0 0.0
  %3406 = vmatpush1.msra.mxu0 0.0
  %3407 = vmatprep.subr.mxu0 0.0
  %3408 = vmatpush1.msra.mxu0 0.0
  %3409 = vmatprep.subr.mxu0 0.0
  %3410 = vmatpush1.msra.mxu0 0.0
  %3411 = vmatprep.subr.mxu0 0.0
  %3412 = vmatpush1.msra.mxu0 0.0
  %3413 = vmatprep.subr.mxu0 0.0
  %3414 = vmatpush1.msra.mxu0 0.0
  %3415 = vmatprep.subr.mxu0 0.0
  %3416 = vmatpush1.msra.mxu0 0.0
  %3417 = vmatprep.subr.mxu0 0.0
  %3418 = vmatpush1.msra.mxu0 0.0
  %3419 = vmatprep.subr.mxu0 0.0
  %3420 = vmatpush1.msra.mxu0 0.0
  %3421 = vmatprep.subr.mxu0 0.0
  %3422 = vmatpush1.msra.mxu0 0.0
  %3423 = vmatprep.mubr.f32.mxu0 0.0
  %3424 = vmatmul.mubr.f32.gmra.mrb[0].mxu0 %v3357
  %v3425 = vpop.f32.mrb[0].mxu0
  %v3426 = vadd.f32 0.0, %v3425
  %v3427 = vpop.f32.mrb[0].mxu0
  %v3428 = vadd.f32 0.0, %v3427
  %3429 = vdwg.mxu0
  %3430 = vmatprep.subr.mxu0 %v2423
  %3431 = vmatpush1.msra.mxu0 %v2422
  %3432 = vmatprep.subr.mxu0 %v2427
  %3433 = vmatpush1.msra.mxu0 %v2426
  %3434 = vmatprep.subr.mxu0 %v2431
  %3435 = vmatpush1.msra.mxu0 %v2430
  %3436 = vmatprep.subr.mxu0 %v2435
  %3437 = vmatpush1.msra.mxu0 %v2434
  %3438 = vmatprep.subr.mxu0 %v2439
  %3439 = vmatpush1.msra.mxu0 %v2438
  %3440 = vmatprep.subr.mxu0 %v2443
  %3441 = vmatpush1.msra.mxu0 %v2442
  %3442 = vmatprep.subr.mxu0 %v2447
  %3443 = vmatpush1.msra.mxu0 %v2446
  %3444 = vmatprep.subr.mxu0 %v2451
  %3445 = vmatpush1.msra.mxu0 %v2450
  %3446 = vmatprep.subr.mxu0 %v2455
  %3447 = vmatpush1.msra.mxu0 %v2454
  %3448 = vmatprep.subr.mxu0 %v2459
  %3449 = vmatpush1.msra.mxu0 %v2458
  %3450 = vmatprep.subr.mxu0 %v2463
  %3451 = vmatpush1.msra.mxu0 %v2462
  %3452 = vmatprep.subr.mxu0 %v2467
  %3453 = vmatpush1.msra.mxu0 %v2466
  %3454 = vmatprep.subr.mxu0 %v2471
  %3455 = vmatpush1.msra.mxu0 %v2470
  %3456 = vmatprep.subr.mxu0 %v2475
  %3457 = vmatpush1.msra.mxu0 %v2474
  %3458 = vmatprep.subr.mxu0 %v2479
  %3459 = vmatpush1.msra.mxu0 %v2478
  %3460 = vmatprep.subr.mxu0 %v2483
  %3461 = vmatpush1.msra.mxu0 %v2482
  %3462 = vmatprep.subr.mxu0 0.0
  %3463 = vmatpush1.msra.mxu0 0.0
  %3464 = vmatprep.subr.mxu0 0.0
  %3465 = vmatpush1.msra.mxu0 0.0
  %3466 = vmatprep.subr.mxu0 0.0
  %3467 = vmatpush1.msra.mxu0 0.0
  %3468 = vmatprep.subr.mxu0 0.0
  %3469 = vmatpush1.msra.mxu0 0.0
  %3470 = vmatprep.subr.mxu0 0.0
  %3471 = vmatpush1.msra.mxu0 0.0
  %3472 = vmatprep.subr.mxu0 0.0
  %3473 = vmatpush1.msra.mxu0 0.0
  %3474 = vmatprep.subr.mxu0 0.0
  %3475 = vmatpush1.msra.mxu0 0.0
  %3476 = vmatprep.subr.mxu0 0.0
  %3477 = vmatpush1.msra.mxu0 0.0
  %3478 = vmatprep.subr.mxu0 0.0
  %3479 = vmatpush1.msra.mxu0 0.0
  %3480 = vmatprep.subr.mxu0 0.0
  %3481 = vmatpush1.msra.mxu0 0.0
  %3482 = vmatprep.subr.mxu0 0.0
  %3483 = vmatpush1.msra.mxu0 0.0
  %3484 = vmatprep.subr.mxu0 0.0
  %3485 = vmatpush1.msra.mxu0 0.0
  %3486 = vmatprep.subr.mxu0 0.0
  %3487 = vmatpush1.msra.mxu0 0.0
  %3488 = vmatprep.subr.mxu0 0.0
  %3489 = vmatpush1.msra.mxu0 0.0
  %3490 = vmatprep.subr.mxu0 0.0
  %3491 = vmatpush1.msra.mxu0 0.0
  %3492 = vmatprep.subr.mxu0 0.0
  %3493 = vmatpush1.msra.mxu0 0.0
  %3494 = vmatprep.mubr.f32.mxu0 0.0
  %3495 = vmatmul.mubr.f32.gmra.mrb[0].mxu0 %v3357
  %v3496 = vpop.f32.mrb[0].mxu0
  %v3497 = vadd.f32 0.0, %v3496
  %v3498 = vpop.f32.mrb[0].mxu0
  %v3499 = vadd.f32 0.0, %v3498
  %3500 = vdwg.mxu0
  %v3505 = vrot.slane %v3426, 4
  %v3506 = vrot.slane %v3428, 4
  %v3507 = vrot.slane %v3497, 4
  %v3508 = vrot.slane %v3499, 4
  %v3513 = vadd.f32 %v2574, %v3505
  %v3514 = vadd.f32 %v2576, %v3506
  %v3515 = vadd.f32 %v2645, %v3507
  %v3516 = vadd.f32 %v2647, %v3508
  %v3517 = vmul.f32 %v3513, 0.5
  %v3518 = vmul.f32 %v3514, 0.5
  %v3519 = vmul.f32 %v3515, 0.5
  %v3520 = vtanh.pop %v3517
  %v3521 = vtanh.pop %v3518
  %v3522 = vtanh.pop %v3519
  %v3523 = vmul.f32 %v3520, 0.5
  %v3524 = vmul.f32 %v3521, 0.5
  %v3525 = vmul.f32 %v3522, 0.5
  %v3526 = vadd.f32 %v3523, 0.5
  %v3527 = vadd.f32 %v3524, 0.5
  %v3528 = vadd.f32 %v3525, 0.5
  %v3529 = vtanh.pop %v3516
  %v3531 = vrot.slane %v3353, 7
  %v3533 = vmul.f32 %v3527, %v3531
  %v3534 = vmul.f32 %v3526, %v3529
  %v3535 = vadd.f32 %v3533, %v3534
  %v3536 = vtanh.pop %v3535
  %v3537 = vmul.f32 %v3528, %v3536
  %v3539 = vrot.slane %v3537, 4
  %3541 = vmatprep.subr.mxu0 %v2421
  %3542 = vmatpush1.msra.mxu0 %v2420
  %3543 = vmatprep.subr.mxu0 %v2425
  %3544 = vmatpush1.msra.mxu0 %v2424
  %3545 = vmatprep.subr.mxu0 %v2429
  %3546 = vmatpush1.msra.mxu0 %v2428
  %3547 = vmatprep.subr.mxu0 %v2433
  %3548 = vmatpush1.msra.mxu0 %v2432
  %3549 = vmatprep.subr.mxu0 %v2437
  %3550 = vmatpush1.msra.mxu0 %v2436
  %3551 = vmatprep.subr.mxu0 %v2441
  %3552 = vmatpush1.msra.mxu0 %v2440
  %3553 = vmatprep.subr.mxu0 %v2445
  %3554 = vmatpush1.msra.mxu0 %v2444
  %3555 = vmatprep.subr.mxu0 %v2449
  %3556 = vmatpush1.msra.mxu0 %v2448
  %3557 = vmatprep.subr.mxu0 %v2453
  %3558 = vmatpush1.msra.mxu0 %v2452
  %3559 = vmatprep.subr.mxu0 %v2457
  %3560 = vmatpush1.msra.mxu0 %v2456
  %3561 = vmatprep.subr.mxu0 %v2461
  %3562 = vmatpush1.msra.mxu0 %v2460
  %3563 = vmatprep.subr.mxu0 %v2465
  %3564 = vmatpush1.msra.mxu0 %v2464
  %3565 = vmatprep.subr.mxu0 %v2469
  %3566 = vmatpush1.msra.mxu0 %v2468
  %3567 = vmatprep.subr.mxu0 %v2473
  %3568 = vmatpush1.msra.mxu0 %v2472
  %3569 = vmatprep.subr.mxu0 %v2477
  %3570 = vmatpush1.msra.mxu0 %v2476
  %3571 = vmatprep.subr.mxu0 %v2481
  %3572 = vmatpush1.msra.mxu0 %v2480
  %3573 = vmatprep.subr.mxu0 0.0
  %3574 = vmatpush1.msra.mxu0 0.0
  %3575 = vmatprep.subr.mxu0 0.0
  %3576 = vmatpush1.msra.mxu0 0.0
  %3577 = vmatprep.subr.mxu0 0.0
  %3578 = vmatpush1.msra.mxu0 0.0
  %3579 = vmatprep.subr.mxu0 0.0
  %3580 = vmatpush1.msra.mxu0 0.0
  %3581 = vmatprep.subr.mxu0 0.0
  %3582 = vmatpush1.msra.mxu0 0.0
  %3583 = vmatprep.subr.mxu0 0.0
  %3584 = vmatpush1.msra.mxu0 0.0
  %3585 = vmatprep.subr.mxu0 0.0
  %3586 = vmatpush1.msra.mxu0 0.0
  %3587 = vmatprep.subr.mxu0 0.0
  %3588 = vmatpush1.msra.mxu0 0.0
  %3589 = vmatprep.subr.mxu0 0.0
  %3590 = vmatpush1.msra.mxu0 0.0
  %3591 = vmatprep.subr.mxu0 0.0
  %3592 = vmatpush1.msra.mxu0 0.0
  %3593 = vmatprep.subr.mxu0 0.0
  %3594 = vmatpush1.msra.mxu0 0.0
  %3595 = vmatprep.subr.mxu0 0.0
  %3596 = vmatpush1.msra.mxu0 0.0
  %3597 = vmatprep.subr.mxu0 0.0
  %3598 = vmatpush1.msra.mxu0 0.0
  %3599 = vmatprep.subr.mxu0 0.0
  %3600 = vmatpush1.msra.mxu0 0.0
  %3601 = vmatprep.subr.mxu0 0.0
  %3602 = vmatpush1.msra.mxu0 0.0
  %3603 = vmatprep.subr.mxu0 0.0
  %3604 = vmatpush1.msra.mxu0 0.0
  %3605 = vmatprep.mubr.f32.mxu0 0.0
  %3606 = vmatmul.mubr.f32.gmra.mrb[0].mxu0 %v3539
  %v3607 = vpop.f32.mrb[0].mxu0
  %v3608 = vadd.f32 0.0, %v3607
  %v3609 = vpop.f32.mrb[0].mxu0
  %v3610 = vadd.f32 0.0, %v3609
  %3611 = vdwg.mxu0
  %3612 = vmatprep.subr.mxu0 %v2423
  %3613 = vmatpush1.msra.mxu0 %v2422
  %3614 = vmatprep.subr.mxu0 %v2427
  %3615 = vmatpush1.msra.mxu0 %v2426
  %3616 = vmatprep.subr.mxu0 %v2431
  %3617 = vmatpush1.msra.mxu0 %v2430
  %3618 = vmatprep.subr.mxu0 %v2435
  %3619 = vmatpush1.msra.mxu0 %v2434
  %3620 = vmatprep.subr.mxu0 %v2439
  %3621 = vmatpush1.msra.mxu0 %v2438
  %3622 = vmatprep.subr.mxu0 %v2443
  %3623 = vmatpush1.msra.mxu0 %v2442
  %3624 = vmatprep.subr.mxu0 %v2447
  %3625 = vmatpush1.msra.mxu0 %v2446
  %3626 = vmatprep.subr.mxu0 %v2451
  %3627 = vmatpush1.msra.mxu0 %v2450
  %3628 = vmatprep.subr.mxu0 %v2455
  %3629 = vmatpush1.msra.mxu0 %v2454
  %3630 = vmatprep.subr.mxu0 %v2459
  %3631 = vmatpush1.msra.mxu0 %v2458
  %3632 = vmatprep.subr.mxu0 %v2463
  %3633 = vmatpush1.msra.mxu0 %v2462
  %3634 = vmatprep.subr.mxu0 %v2467
  %3635 = vmatpush1.msra.mxu0 %v2466
  %3636 = vmatprep.subr.mxu0 %v2471
  %3637 = vmatpush1.msra.mxu0 %v2470
  %3638 = vmatprep.subr.mxu0 %v2475
  %3639 = vmatpush1.msra.mxu0 %v2474
  %3640 = vmatprep.subr.mxu0 %v2479
  %3641 = vmatpush1.msra.mxu0 %v2478
  %3642 = vmatprep.subr.mxu0 %v2483
  %3643 = vmatpush1.msra.mxu0 %v2482
  %3644 = vmatprep.subr.mxu0 0.0
  %3645 = vmatpush1.msra.mxu0 0.0
  %3646 = vmatprep.subr.mxu0 0.0
  %3647 = vmatpush1.msra.mxu0 0.0
  %3648 = vmatprep.subr.mxu0 0.0
  %3649 = vmatpush1.msra.mxu0 0.0
  %3650 = vmatprep.subr.mxu0 0.0
  %3651 = vmatpush1.msra.mxu0 0.0
  %3652 = vmatprep.subr.mxu0 0.0
  %3653 = vmatpush1.msra.mxu0 0.0
  %3654 = vmatprep.subr.mxu0 0.0
  %3655 = vmatpush1.msra.mxu0 0.0
  %3656 = vmatprep.subr.mxu0 0.0
  %3657 = vmatpush1.msra.mxu0 0.0
  %3658 = vmatprep.subr.mxu0 0.0
  %3659 = vmatpush1.msra.mxu0 0.0
  %3660 = vmatprep.subr.mxu0 0.0
  %3661 = vmatpush1.msra.mxu0 0.0
  %3662 = vmatprep.subr.mxu0 0.0
  %3663 = vmatpush1.msra.mxu0 0.0
  %3664 = vmatprep.subr.mxu0 0.0
  %3665 = vmatpush1.msra.mxu0 0.0
  %3666 = vmatprep.subr.mxu0 0.0
  %3667 = vmatpush1.msra.mxu0 0.0
  %3668 = vmatprep.subr.mxu0 0.0
  %3669 = vmatpush1.msra.mxu0 0.0
  %3670 = vmatprep.subr.mxu0 0.0
  %3671 = vmatpush1.msra.mxu0 0.0
  %3672 = vmatprep.subr.mxu0 0.0
  %3673 = vmatpush1.msra.mxu0 0.0
  %3674 = vmatprep.subr.mxu0 0.0
  %3675 = vmatpush1.msra.mxu0 0.0
  %3676 = vmatprep.mubr.f32.mxu0 0.0
  %3677 = vmatmul.mubr.f32.gmra.mrb[0].mxu0 %v3539
  %v3678 = vpop.f32.mrb[0].mxu0
  %v3679 = vadd.f32 0.0, %v3678
  %v3680 = vpop.f32.mrb[0].mxu0
  %v3681 = vadd.f32 0.0, %v3680
  %3682 = vdwg.mxu0
  %v3687 = vrot.slane %v3608, 3
  %v3688 = vrot.slane %v3610, 3
  %v3689 = vrot.slane %v3679, 3
  %v3690 = vrot.slane %v3681, 3
  %v3695 = vadd.f32 %v2574, %v3687
  %v3696 = vadd.f32 %v2576, %v3688
  %v3697 = vadd.f32 %v2645, %v3689
  %v3698 = vadd.f32 %v2647, %v3690
  %v3699 = vmul.f32 %v3695, 0.5
  %v3700 = vmul.f32 %v3696, 0.5
  %v3701 = vmul.f32 %v3697, 0.5
  %v3702 = vtanh.pop %v3699
  %v3703 = vtanh.pop %v3700
  %v3704 = vtanh.pop %v3701
  %v3705 = vmul.f32 %v3702, 0.5
  %v3706 = vmul.f32 %v3703, 0.5
  %v3707 = vmul.f32 %v3704, 0.5
  %v3708 = vadd.f32 %v3705, 0.5
  %v3709 = vadd.f32 %v3706, 0.5
  %v3710 = vadd.f32 %v3707, 0.5
  %v3711 = vtanh.pop %v3698
  %v3713 = vrot.slane %v3535, 7
  %v3715 = vmul.f32 %v3709, %v3713
  %v3716 = vmul.f32 %v3708, %v3711
  %v3717 = vadd.f32 %v3715, %v3716
  %v3718 = vtanh.pop %v3717
  %v3719 = vmul.f32 %v3710, %v3718
  %v3721 = vrot.slane %v3719, 5
  %3723 = vmatprep.subr.mxu0 %v2421
  %3724 = vmatpush1.msra.mxu0 %v2420
  %3725 = vmatprep.subr.mxu0 %v2425
  %3726 = vmatpush1.msra.mxu0 %v2424
  %3727 = vmatprep.subr.mxu0 %v2429
  %3728 = vmatpush1.msra.mxu0 %v2428
  %3729 = vmatprep.subr.mxu0 %v2433
  %3730 = vmatpush1.msra.mxu0 %v2432
  %3731 = vmatprep.subr.mxu0 %v2437
  %3732 = vmatpush1.msra.mxu0 %v2436
  %3733 = vmatprep.subr.mxu0 %v2441
  %3734 = vmatpush1.msra.mxu0 %v2440
  %3735 = vmatprep.subr.mxu0 %v2445
  %3736 = vmatpush1.msra.mxu0 %v2444
  %3737 = vmatprep.subr.mxu0 %v2449
  %3738 = vmatpush1.msra.mxu0 %v2448
  %3739 = vmatprep.subr.mxu0 %v2453
  %3740 = vmatpush1.msra.mxu0 %v2452
  %3741 = vmatprep.subr.mxu0 %v2457
  %3742 = vmatpush1.msra.mxu0 %v2456
  %3743 = vmatprep.subr.mxu0 %v2461
  %3744 = vmatpush1.msra.mxu0 %v2460
  %3745 = vmatprep.subr.mxu0 %v2465
  %3746 = vmatpush1.msra.mxu0 %v2464
  %3747 = vmatprep.subr.mxu0 %v2469
  %3748 = vmatpush1.msra.mxu0 %v2468
  %3749 = vmatprep.subr.mxu0 %v2473
  %3750 = vmatpush1.msra.mxu0 %v2472
  %3751 = vmatprep.subr.mxu0 %v2477
  %3752 = vmatpush1.msra.mxu0 %v2476
  %3753 = vmatprep.subr.mxu0 %v2481
  %3754 = vmatpush1.msra.mxu0 %v2480
  %3755 = vmatprep.subr.mxu0 0.0
  %3756 = vmatpush1.msra.mxu0 0.0
  %3757 = vmatprep.subr.mxu0 0.0
  %3758 = vmatpush1.msra.mxu0 0.0
  %3759 = vmatprep.subr.mxu0 0.0
  %3760 = vmatpush1.msra.mxu0 0.0
  %3761 = vmatprep.subr.mxu0 0.0
  %3762 = vmatpush1.msra.mxu0 0.0
  %3763 = vmatprep.subr.mxu0 0.0
  %3764 = vmatpush1.msra.mxu0 0.0
  %3765 = vmatprep.subr.mxu0 0.0
  %3766 = vmatpush1.msra.mxu0 0.0
  %3767 = vmatprep.subr.mxu0 0.0
  %3768 = vmatpush1.msra.mxu0 0.0
  %3769 = vmatprep.subr.mxu0 0.0
  %3770 = vmatpush1.msra.mxu0 0.0
  %3771 = vmatprep.subr.mxu0 0.0
  %3772 = vmatpush1.msra.mxu0 0.0
  %3773 = vmatprep.subr.mxu0 0.0
  %3774 = vmatpush1.msra.mxu0 0.0
  %3775 = vmatprep.subr.mxu0 0.0
  %3776 = vmatpush1.msra.mxu0 0.0
  %3777 = vmatprep.subr.mxu0 0.0
  %3778 = vmatpush1.msra.mxu0 0.0
  %3779 = vmatprep.subr.mxu0 0.0
  %3780 = vmatpush1.msra.mxu0 0.0
  %3781 = vmatprep.subr.mxu0 0.0
  %3782 = vmatpush1.msra.mxu0 0.0
  %3783 = vmatprep.subr.mxu0 0.0
  %3784 = vmatpush1.msra.mxu0 0.0
  %3785 = vmatprep.subr.mxu0 0.0
  %3786 = vmatpush1.msra.mxu0 0.0
  %3787 = vmatprep.mubr.f32.mxu0 0.0
  %3788 = vmatmul.mubr.f32.gmra.mrb[0].mxu0 %v3721
  %v3789 = vpop.f32.mrb[0].mxu0
  %v3790 = vadd.f32 0.0, %v3789
  %v3791 = vpop.f32.mrb[0].mxu0
  %v3792 = vadd.f32 0.0, %v3791
  %3793 = vdwg.mxu0
  %3794 = vmatprep.subr.mxu0 %v2423
  %3795 = vmatpush1.msra.mxu0 %v2422
  %3796 = vmatprep.subr.mxu0 %v2427
  %3797 = vmatpush1.msra.mxu0 %v2426
  %3798 = vmatprep.subr.mxu0 %v2431
  %3799 = vmatpush1.msra.mxu0 %v2430
  %3800 = vmatprep.subr.mxu0 %v2435
  %3801 = vmatpush1.msra.mxu0 %v2434
  %3802 = vmatprep.subr.mxu0 %v2439
  %3803 = vmatpush1.msra.mxu0 %v2438
  %3804 = vmatprep.subr.mxu0 %v2443
  %3805 = vmatpush1.msra.mxu0 %v2442
  %3806 = vmatprep.subr.mxu0 %v2447
  %3807 = vmatpush1.msra.mxu0 %v2446
  %3808 = vmatprep.subr.mxu0 %v2451
  %3809 = vmatpush1.msra.mxu0 %v2450
  %3810 = vmatprep.subr.mxu0 %v2455
  %3811 = vmatpush1.msra.mxu0 %v2454
  %3812 = vmatprep.subr.mxu0 %v2459
  %3813 = vmatpush1.msra.mxu0 %v2458
  %3814 = vmatprep.subr.mxu0 %v2463
  %3815 = vmatpush1.msra.mxu0 %v2462
  %3816 = vmatprep.subr.mxu0 %v2467
  %3817 = vmatpush1.msra.mxu0 %v2466
  %3818 = vmatprep.subr.mxu0 %v2471
  %3819 = vmatpush1.msra.mxu0 %v2470
  %3820 = vmatprep.subr.mxu0 %v2475
  %3821 = vmatpush1.msra.mxu0 %v2474
  %3822 = vmatprep.subr.mxu0 %v2479
  %3823 = vmatpush1.msra.mxu0 %v2478
  %3824 = vmatprep.subr.mxu0 %v2483
  %3825 = vmatpush1.msra.mxu0 %v2482
  %3826 = vmatprep.subr.mxu0 0.0
  %3827 = vmatpush1.msra.mxu0 0.0
  %3828 = vmatprep.subr.mxu0 0.0
  %3829 = vmatpush1.msra.mxu0 0.0
  %3830 = vmatprep.subr.mxu0 0.0
  %3831 = vmatpush1.msra.mxu0 0.0
  %3832 = vmatprep.subr.mxu0 0.0
  %3833 = vmatpush1.msra.mxu0 0.0
  %3834 = vmatprep.subr.mxu0 0.0
  %3835 = vmatpush1.msra.mxu0 0.0
  %3836 = vmatprep.subr.mxu0 0.0
  %3837 = vmatpush1.msra.mxu0 0.0
  %3838 = vmatprep.subr.mxu0 0.0
  %3839 = vmatpush1.msra.mxu0 0.0
  %3840 = vmatprep.subr.mxu0 0.0
  %3841 = vmatpush1.msra.mxu0 0.0
  %3842 = vmatprep.subr.mxu0 0.0
  %3843 = vmatpush1.msra.mxu0 0.0
  %3844 = vmatprep.subr.mxu0 0.0
  %3845 = vmatpush1.msra.mxu0 0.0
  %3846 = vmatprep.subr.mxu0 0.0
  %3847 = vmatpush1.msra.mxu0 0.0
  %3848 = vmatprep.subr.mxu0 0.0
  %3849 = vmatpush1.msra.mxu0 0.0
  %3850 = vmatprep.subr.mxu0 0.0
  %3851 = vmatpush1.msra.mxu0 0.0
  %3852 = vmatprep.subr.mxu0 0.0
  %3853 = vmatpush1.msra.mxu0 0.0
  %3854 = vmatprep.subr.mxu0 0.0
  %3855 = vmatpush1.msra.mxu0 0.0
  %3856 = vmatprep.subr.mxu0 0.0
  %3857 = vmatpush1.msra.mxu0 0.0
  %3858 = vmatprep.mubr.f32.mxu0 0.0
  %3859 = vmatmul.mubr.f32.gmra.mrb[0].mxu0 %v3721
  %v3860 = vpop.f32.mrb[0].mxu0
  %v3861 = vadd.f32 0.0, %v3860
  %v3862 = vpop.f32.mrb[0].mxu0
  %v3863 = vadd.f32 0.0, %v3862
  %3864 = vdwg.mxu0
  %v3869 = vrot.slane %v3790, 2
  %v3870 = vrot.slane %v3792, 2
  %v3871 = vrot.slane %v3861, 2
  %v3872 = vrot.slane %v3863, 2
  %v3877 = vadd.f32 %v2574, %v3869
  %v3878 = vadd.f32 %v2576, %v3870
  %v3879 = vadd.f32 %v2645, %v3871
  %v3880 = vadd.f32 %v2647, %v3872
  %v3881 = vmul.f32 %v3877, 0.5
  %v3882 = vmul.f32 %v3878, 0.5
  %v3883 = vmul.f32 %v3879, 0.5
  %v3884 = vtanh.pop %v3881
  %v3885 = vtanh.pop %v3882
  %v3886 = vtanh.pop %v3883
  %v3887 = vmul.f32 %v3884, 0.5
  %v3888 = vmul.f32 %v3885, 0.5
  %v3889 = vmul.f32 %v3886, 0.5
  %v3890 = vadd.f32 %v3887, 0.5
  %v3891 = vadd.f32 %v3888, 0.5
  %v3892 = vadd.f32 %v3889, 0.5
  %v3893 = vtanh.pop %v3880
  %v3895 = vrot.slane %v3717, 7
  %v3897 = vmul.f32 %v3891, %v3895
  %v3898 = vmul.f32 %v3890, %v3893
  %v3899 = vadd.f32 %v3897, %v3898
  %v3900 = vtanh.pop %v3899
  %v3901 = vmul.f32 %v3892, %v3900
  %v3903 = vrot.slane %v3901, 6
  %3905 = vmatprep.subr.mxu0 %v2421
  %3906 = vmatpush1.msra.mxu0 %v2420
  %3907 = vmatprep.subr.mxu0 %v2425
  %3908 = vmatpush1.msra.mxu0 %v2424
  %3909 = vmatprep.subr.mxu0 %v2429
  %3910 = vmatpush1.msra.mxu0 %v2428
  %3911 = vmatprep.subr.mxu0 %v2433
  %3912 = vmatpush1.msra.mxu0 %v2432
  %3913 = vmatprep.subr.mxu0 %v2437
  %3914 = vmatpush1.msra.mxu0 %v2436
  %3915 = vmatprep.subr.mxu0 %v2441
  %3916 = vmatpush1.msra.mxu0 %v2440
  %3917 = vmatprep.subr.mxu0 %v2445
  %3918 = vmatpush1.msra.mxu0 %v2444
  %3919 = vmatprep.subr.mxu0 %v2449
  %3920 = vmatpush1.msra.mxu0 %v2448
  %3921 = vmatprep.subr.mxu0 %v2453
  %3922 = vmatpush1.msra.mxu0 %v2452
  %3923 = vmatprep.subr.mxu0 %v2457
  %3924 = vmatpush1.msra.mxu0 %v2456
  %3925 = vmatprep.subr.mxu0 %v2461
  %3926 = vmatpush1.msra.mxu0 %v2460
  %3927 = vmatprep.subr.mxu0 %v2465
  %3928 = vmatpush1.msra.mxu0 %v2464
  %3929 = vmatprep.subr.mxu0 %v2469
  %3930 = vmatpush1.msra.mxu0 %v2468
  %3931 = vmatprep.subr.mxu0 %v2473
  %3932 = vmatpush1.msra.mxu0 %v2472
  %3933 = vmatprep.subr.mxu0 %v2477
  %3934 = vmatpush1.msra.mxu0 %v2476
  %3935 = vmatprep.subr.mxu0 %v2481
  %3936 = vmatpush1.msra.mxu0 %v2480
  %3937 = vmatprep.subr.mxu0 0.0
  %3938 = vmatpush1.msra.mxu0 0.0
  %3939 = vmatprep.subr.mxu0 0.0
  %3940 = vmatpush1.msra.mxu0 0.0
  %3941 = vmatprep.subr.mxu0 0.0
  %3942 = vmatpush1.msra.mxu0 0.0
  %3943 = vmatprep.subr.mxu0 0.0
  %3944 = vmatpush1.msra.mxu0 0.0
  %3945 = vmatprep.subr.mxu0 0.0
  %3946 = vmatpush1.msra.mxu0 0.0
  %3947 = vmatprep.subr.mxu0 0.0
  %3948 = vmatpush1.msra.mxu0 0.0
  %3949 = vmatprep.subr.mxu0 0.0
  %3950 = vmatpush1.msra.mxu0 0.0
  %3951 = vmatprep.subr.mxu0 0.0
  %3952 = vmatpush1.msra.mxu0 0.0
  %3953 = vmatprep.subr.mxu0 0.0
  %3954 = vmatpush1.msra.mxu0 0.0
  %3955 = vmatprep.subr.mxu0 0.0
  %3956 = vmatpush1.msra.mxu0 0.0
  %3957 = vmatprep.subr.mxu0 0.0
  %3958 = vmatpush1.msra.mxu0 0.0
  %3959 = vmatprep.subr.mxu0 0.0
  %3960 = vmatpush1.msra.mxu0 0.0
  %3961 = vmatprep.subr.mxu0 0.0
  %3962 = vmatpush1.msra.mxu0 0.0
  %3963 = vmatprep.subr.mxu0 0.0
  %3964 = vmatpush1.msra.mxu0 0.0
  %3965 = vmatprep.subr.mxu0 0.0
  %3966 = vmatpush1.msra.mxu0 0.0
  %3967 = vmatprep.subr.mxu0 0.0
  %3968 = vmatpush1.msra.mxu0 0.0
  %3969 = vmatprep.mubr.f32.mxu0 0.0
  %3970 = vmatmul.mubr.f32.gmra.mrb[0].mxu0 %v3903
  %v3971 = vpop.f32.mrb[0].mxu0
  %v3972 = vadd.f32 0.0, %v3971
  %v3973 = vpop.f32.mrb[0].mxu0
  %v3974 = vadd.f32 0.0, %v3973
  %3975 = vdwg.mxu0
  %3976 = vmatprep.subr.mxu0 %v2423
  %3977 = vmatpush1.msra.mxu0 %v2422
  %3978 = vmatprep.subr.mxu0 %v2427
  %3979 = vmatpush1.msra.mxu0 %v2426
  %3980 = vmatprep.subr.mxu0 %v2431
  %3981 = vmatpush1.msra.mxu0 %v2430
  %3982 = vmatprep.subr.mxu0 %v2435
  %3983 = vmatpush1.msra.mxu0 %v2434
  %3984 = vmatprep.subr.mxu0 %v2439
  %3985 = vmatpush1.msra.mxu0 %v2438
  %3986 = vmatprep.subr.mxu0 %v2443
  %3987 = vmatpush1.msra.mxu0 %v2442
  %3988 = vmatprep.subr.mxu0 %v2447
  %3989 = vmatpush1.msra.mxu0 %v2446
  %3990 = vmatprep.subr.mxu0 %v2451
  %3991 = vmatpush1.msra.mxu0 %v2450
  %3992 = vmatprep.subr.mxu0 %v2455
  %3993 = vmatpush1.msra.mxu0 %v2454
  %3994 = vmatprep.subr.mxu0 %v2459
  %3995 = vmatpush1.msra.mxu0 %v2458
  %3996 = vmatprep.subr.mxu0 %v2463
  %3997 = vmatpush1.msra.mxu0 %v2462
  %3998 = vmatprep.subr.mxu0 %v2467
  %3999 = vmatpush1.msra.mxu0 %v2466
  %4000 = vmatprep.subr.mxu0 %v2471
  %4001 = vmatpush1.msra.mxu0 %v2470
  %4002 = vmatprep.subr.mxu0 %v2475
  %4003 = vmatpush1.msra.mxu0 %v2474
  %4004 = vmatprep.subr.mxu0 %v2479
  %4005 = vmatpush1.msra.mxu0 %v2478
  %4006 = vmatprep.subr.mxu0 %v2483
  %4007 = vmatpush1.msra.mxu0 %v2482
  %4008 = vmatprep.subr.mxu0 0.0
  %4009 = vmatpush1.msra.mxu0 0.0
  %4010 = vmatprep.subr.mxu0 0.0
  %4011 = vmatpush1.msra.mxu0 0.0
  %4012 = vmatprep.subr.mxu0 0.0
  %4013 = vmatpush1.msra.mxu0 0.0
  %4014 = vmatprep.subr.mxu0 0.0
  %4015 = vmatpush1.msra.mxu0 0.0
  %4016 = vmatprep.subr.mxu0 0.0
  %4017 = vmatpush1.msra.mxu0 0.0
  %4018 = vmatprep.subr.mxu0 0.0
  %4019 = vmatpush1.msra.mxu0 0.0
  %4020 = vmatprep.subr.mxu0 0.0
  %4021 = vmatpush1.msra.mxu0 0.0
  %4022 = vmatprep.subr.mxu0 0.0
  %4023 = vmatpush1.msra.mxu0 0.0
  %4024 = vmatprep.subr.mxu0 0.0
  %4025 = vmatpush1.msra.mxu0 0.0
  %4026 = vmatprep.subr.mxu0 0.0
  %4027 = vmatpush1.msra.mxu0 0.0
  %4028 = vmatprep.subr.mxu0 0.0
  %4029 = vmatpush1.msra.mxu0 0.0
  %4030 = vmatprep.subr.mxu0 0.0
  %4031 = vmatpush1.msra.mxu0 0.0
  %4032 = vmatprep.subr.mxu0 0.0
  %4033 = vmatpush1.msra.mxu0 0.0
  %4034 = vmatprep.subr.mxu0 0.0
  %4035 = vmatpush1.msra.mxu0 0.0
  %4036 = vmatprep.subr.mxu0 0.0
  %4037 = vmatpush1.msra.mxu0 0.0
  %4038 = vmatprep.subr.mxu0 0.0
  %4039 = vmatpush1.msra.mxu0 0.0
  %4040 = vmatprep.mubr.f32.mxu0 0.0
  %4041 = vmatmul.mubr.f32.gmra.mrb[0].mxu0 %v3903
  %v4042 = vpop.f32.mrb[0].mxu0
  %v4043 = vadd.f32 0.0, %v4042
  %v4044 = vpop.f32.mrb[0].mxu0
  %v4045 = vadd.f32 0.0, %v4044
  %4046 = vdwg.mxu0
  %v4051 = vrot.slane %v3972, 1
  %v4052 = vrot.slane %v3974, 1
  %v4053 = vrot.slane %v4043, 1
  %v4054 = vrot.slane %v4045, 1
  %v4059 = vadd.f32 %v2574, %v4051
  %v4060 = vadd.f32 %v2576, %v4052
  %v4061 = vadd.f32 %v2645, %v4053
  %v4062 = vadd.f32 %v2647, %v4054
  %v4063 = vmul.f32 %v4059, 0.5
  %v4064 = vmul.f32 %v4060, 0.5
  %v4065 = vmul.f32 %v4061, 0.5
  %v4066 = vtanh.pop %v4063
  %v4067 = vtanh.pop %v4064
  %v4068 = vtanh.pop %v4065
  %v4069 = vmul.f32 %v4066, 0.5
  %v4070 = vmul.f32 %v4067, 0.5
  %v4071 = vmul.f32 %v4068, 0.5
  %v4072 = vadd.f32 %v4069, 0.5
  %v4073 = vadd.f32 %v4070, 0.5
  %v4074 = vadd.f32 %v4071, 0.5
  %v4075 = vtanh.pop %v4062
  %v4077 = vrot.slane %v3899, 7
  %v4079 = vmul.f32 %v4073, %v4077
  %v4080 = vmul.f32 %v4072, %v4075
  %v4081 = vadd.f32 %v4079, %v4080
  %v4082 = vtanh.pop %v4081
  %v4083 = vmul.f32 %v4074, %v4082
  %s4084 = smul.u32 8, 33
  %s4085 = smul.u32 %s4084, 4
  %s4086 = sshll.u32 %s4085, 4
  %4087 = dma.done [#allocation5], %s4086
  %s4088 = sshll.u32 %s4085, 4
  %4089 = dma.done %s321, %s4088
  %s4090 = smul.u32 8, 1
  %s4091 = sshll.u32 %s4090, 4
  %4092 = dma.done %s626, %s4091
  %v4093 = vld [vmem:[#allocation2] sm:$0xff]
  %v4094 = vld [vmem:[#allocation2 + $0x8] sm:$0xff]
  %v4095 = vld [vmem:[#allocation2 + $0x10] sm:$0xff]
  %v4096 = vld [vmem:[#allocation2 + $0x18] sm:$0xff]
  %v4097 = vld [vmem:[#allocation2 + $0x20] sm:$0xff]
  %v4098 = vld [vmem:[#allocation2 + $0x28] sm:$0xff]
  %v4099 = vld [vmem:[#allocation2 + $0x30] sm:$0xff]
  %v4100 = vld [vmem:[#allocation2 + $0x38] sm:$0xff]
  %v4101 = vld [vmem:[#allocation2 + $0x40] sm:$0xff]
  %v4102 = vld [vmem:[#allocation2 + $0x48] sm:$0xff]
  %v4103 = vld [vmem:[#allocation2 + $0x50] sm:$0xff]
  %v4104 = vld [vmem:[#allocation2 + $0x58] sm:$0xff]
  %v4105 = vld [vmem:[#allocation2 + $0x60] sm:$0xff]
  %v4106 = vld [vmem:[#allocation2 + $0x68] sm:$0xff]
  %v4107 = vld [vmem:[#allocation2 + $0x70] sm:$0xff]
  %v4108 = vld [vmem:[#allocation2 + $0x78] sm:$0xff]
  %v4109 = vld [vmem:[#allocation2 + $0x80] sm:$0xff]
  %v4110 = vld [vmem:[#allocation2 + $0x88] sm:$0xff]
  %v4111 = vld [vmem:[#allocation2 + $0x90] sm:$0xff]
  %v4112 = vld [vmem:[#allocation2 + $0x98] sm:$0xff]
  %v4113 = vld [vmem:[#allocation2 + $0xa0] sm:$0xff]
  %v4114 = vld [vmem:[#allocation2 + $0xa8] sm:$0xff]
  %v4115 = vld [vmem:[#allocation2 + $0xb0] sm:$0xff]
  %v4116 = vld [vmem:[#allocation2 + $0xb8] sm:$0xff]
  %v4117 = vld [vmem:[#allocation2 + $0xc0] sm:$0xff]
  %v4118 = vld [vmem:[#allocation2 + $0xc8] sm:$0xff]
  %v4119 = vld [vmem:[#allocation2 + $0xd0] sm:$0xff]
  %v4120 = vld [vmem:[#allocation2 + $0xd8] sm:$0xff]
  %v4121 = vld [vmem:[#allocation2 + $0xe0] sm:$0xff]
  %v4122 = vld [vmem:[#allocation2 + $0xe8] sm:$0xff]
  %v4123 = vld [vmem:[#allocation2 + $0xf0] sm:$0xff]
  %v4124 = vld [vmem:[#allocation2 + $0xf8] sm:$0xff]
  %v4125 = vld [vmem:[#allocation2 + $0x100] sm:$0xff]
  %v4126 = vld [vmem:[#allocation2 + $0x108] sm:$0xff]
  %v4127 = vld [vmem:[#allocation2 + $0x110] sm:$0xff]
  %v4128 = vld [vmem:[#allocation2 + $0x118] sm:$0xff]
  %v4129 = vld [vmem:[#allocation2 + $0x120] sm:$0xff]
  %v4130 = vld [vmem:[#allocation2 + $0x128] sm:$0xff]
  %v4131 = vld [vmem:[#allocation2 + $0x130] sm:$0xff]
  %v4132 = vld [vmem:[#allocation2 + $0x138] sm:$0xff]
  %v4133 = vld [vmem:[#allocation2 + $0x140] sm:$0xff]
  %v4134 = vld [vmem:[#allocation2 + $0x148] sm:$0xff]
  %v4135 = vld [vmem:[#allocation2 + $0x150] sm:$0xff]
  %v4136 = vld [vmem:[#allocation2 + $0x158] sm:$0xff]
  %v4137 = vld [vmem:[#allocation2 + $0x160] sm:$0xff]
  %v4138 = vld [vmem:[#allocation2 + $0x168] sm:$0xff]
  %v4139 = vld [vmem:[#allocation2 + $0x170] sm:$0xff]
  %v4140 = vld [vmem:[#allocation2 + $0x178] sm:$0xff]
  %v4141 = vld [vmem:[#allocation2 + $0x180] sm:$0xff]
  %v4142 = vld [vmem:[#allocation2 + $0x188] sm:$0xff]
  %v4143 = vld [vmem:[#allocation2 + $0x190] sm:$0xff]
  %v4144 = vld [vmem:[#allocation2 + $0x198] sm:$0xff]
  %v4145 = vld [vmem:[#allocation2 + $0x1a0] sm:$0xff]
  %v4146 = vld [vmem:[#allocation2 + $0x1a8] sm:$0xff]
  %v4147 = vld [vmem:[#allocation2 + $0x1b0] sm:$0xff]
  %v4148 = vld [vmem:[#allocation2 + $0x1b8] sm:$0xff]
  %v4149 = vld [vmem:[#allocation2 + $0x1c0] sm:$0xff]
  %v4150 = vld [vmem:[#allocation2 + $0x1c8] sm:$0xff]
  %v4151 = vld [vmem:[#allocation2 + $0x1d0] sm:$0xff]
  %v4152 = vld [vmem:[#allocation2 + $0x1d8] sm:$0xff]
  %v4153 = vld [vmem:[#allocation2 + $0x1e0] sm:$0xff]
  %v4154 = vld [vmem:[#allocation2 + $0x1e8] sm:$0xff]
  %v4155 = vld [vmem:[#allocation2 + $0x1f0] sm:$0xff]
  %v4156 = vld [vmem:[#allocation2 + $0x1f8] sm:$0xff]
  %v4157 = vld [vmem:[#allocation2 + $0x200] sm:$0xff]
  %v4158 = vld [vmem:[#allocation2 + $0x208] sm:$0xff]
  %v4159 = vld [vmem:[#allocation2 + $0x210] sm:$0xff]
  %v4160 = vld [vmem:[#allocation2 + $0x218] sm:$0xff]
  %v4161 = vld [vmem:[#allocation2 + $0x220] sm:$0xff]
  %v4162 = vld [vmem:[#allocation2 + $0x228] sm:$0xff]
  %v4163 = vld [vmem:[#allocation2 + $0x230] sm:$0xff]
  %v4164 = vld [vmem:[#allocation2 + $0x238] sm:$0xff]
  %v4165 = vld [vmem:[#allocation2 + $0x240] sm:$0xff]
  %v4166 = vld [vmem:[#allocation2 + $0x248] sm:$0xff]
  %v4167 = vld [vmem:[#allocation2 + $0x250] sm:$0xff]
  %v4168 = vld [vmem:[#allocation2 + $0x258] sm:$0xff]
  %v4169 = vld [vmem:[#allocation2 + $0x260] sm:$0xff]
  %v4170 = vld [vmem:[#allocation2 + $0x268] sm:$0xff]
  %v4171 = vld [vmem:[#allocation2 + $0x270] sm:$0xff]
  %v4172 = vld [vmem:[#allocation2 + $0x278] sm:$0xff]
  %v4173 = vld [vmem:[#allocation2 + $0x280] sm:$0xff]
  %v4174 = vld [vmem:[#allocation2 + $0x288] sm:$0xff]
  %v4175 = vld [vmem:[#allocation2 + $0x290] sm:$0xff]
  %v4176 = vld [vmem:[#allocation2 + $0x298] sm:$0xff]
  %v4177 = vld [vmem:[#allocation2 + $0x2a0] sm:$0xff]
  %v4178 = vld [vmem:[#allocation2 + $0x2a8] sm:$0xff]
  %v4179 = vld [vmem:[#allocation2 + $0x2b0] sm:$0xff]
  %v4180 = vld [vmem:[#allocation2 + $0x2b8] sm:$0xff]
  %v4181 = vld [vmem:[#allocation2 + $0x2c0] sm:$0xff]
  %v4182 = vld [vmem:[#allocation2 + $0x2c8] sm:$0xff]
  %v4183 = vld [vmem:[#allocation2 + $0x2d0] sm:$0xff]
  %v4184 = vld [vmem:[#allocation2 + $0x2d8] sm:$0xff]
  %v4185 = vld [vmem:[#allocation2 + $0x2e0] sm:$0xff]
  %v4186 = vld [vmem:[#allocation2 + $0x2e8] sm:$0xff]
  %v4187 = vld [vmem:[#allocation2 + $0x2f0] sm:$0xff]
  %v4188 = vld [vmem:[#allocation2 + $0x2f8] sm:$0xff]
  %v4189 = vld [vmem:[#allocation2 + $0x300] sm:$0xff]
  %v4190 = vld [vmem:[#allocation2 + $0x308] sm:$0xff]
  %v4191 = vld [vmem:[#allocation2 + $0x310] sm:$0xff]
  %v4192 = vld [vmem:[#allocation2 + $0x318] sm:$0xff]
  %v4193 = vld [vmem:[#allocation2 + $0x320] sm:$0xff]
  %v4194 = vld [vmem:[#allocation2 + $0x328] sm:$0xff]
  %v4195 = vld [vmem:[#allocation2 + $0x330] sm:$0xff]
  %v4196 = vld [vmem:[#allocation2 + $0x338] sm:$0xff]
  %v4197 = vld [vmem:[#allocation2 + $0x340] sm:$0xff]
  %v4198 = vld [vmem:[#allocation2 + $0x348] sm:$0xff]
  %v4199 = vld [vmem:[#allocation2 + $0x350] sm:$0xff]
  %v4200 = vld [vmem:[#allocation2 + $0x358] sm:$0xff]
  %v4201 = vld [vmem:[#allocation2 + $0x360] sm:$0xff]
  %v4202 = vld [vmem:[#allocation2 + $0x368] sm:$0xff]
  %v4203 = vld [vmem:[#allocation2 + $0x370] sm:$0xff]
  %v4204 = vld [vmem:[#allocation2 + $0x378] sm:$0xff]
  %v4205 = vld [vmem:[#allocation2 + $0x380] sm:$0xff]
  %v4206 = vld [vmem:[#allocation2 + $0x388] sm:$0xff]
  %v4207 = vld [vmem:[#allocation2 + $0x390] sm:$0xff]
  %v4208 = vld [vmem:[#allocation2 + $0x398] sm:$0xff]
  %v4209 = vld [vmem:[#allocation2 + $0x3a0] sm:$0xff]
  %v4210 = vld [vmem:[#allocation2 + $0x3a8] sm:$0xff]
  %v4211 = vld [vmem:[#allocation2 + $0x3b0] sm:$0xff]
  %v4212 = vld [vmem:[#allocation2 + $0x3b8] sm:$0xff]
  %v4213 = vld [vmem:[#allocation2 + $0x3c0] sm:$0xff]
  %v4214 = vld [vmem:[#allocation2 + $0x3c8] sm:$0xff]
  %v4215 = vld [vmem:[#allocation2 + $0x3d0] sm:$0xff]
  %v4216 = vld [vmem:[#allocation2 + $0x3d8] sm:$0xff]
  %v4217 = vld [vmem:[#allocation2 + $0x3e0] sm:$0xff]
  %v4218 = vld [vmem:[#allocation2 + $0x3e8] sm:$0xff]
  %v4219 = vld [vmem:[#allocation2 + $0x3f0] sm:$0xff]
  %v4220 = vld [vmem:[#allocation2 + $0x3f8] sm:$0xff]
  %s4221 = scalar_lea.vmem [#allocation2], 1024
  %v4222 = vld [vmem:[%s4221] ss:$8 sm:$0xf]
  %v4224 = vrot.slane %v4083, 7
  %v4227 = vlaneseq
  %v4228 = vshrl.u32 %v4227, 7
  %v4229 = vsub.s32 0, %v4228
  %v4230 = vrot.slane %v4222, %v4229
  %v4231 = vlaneseq
  %v4232 = vshrl.u32 %v4231, 7
  %v4233 = vsub.s32 1, %v4232
  %v4234 = vrot.slane %v4222, %v4233
  %v4235 = vlaneseq
  %v4236 = vshrl.u32 %v4235, 7
  %v4237 = vsub.s32 2, %v4236
  %v4238 = vrot.slane %v4222, %v4237
  %v4239 = vlaneseq
  %v4240 = vshrl.u32 %v4239, 7
  %v4241 = vsub.s32 3, %v4240
  %v4242 = vrot.slane %v4222, %v4241
  %4247 = vmatprep.subr.mxu0 %v4094
  %4248 = vmatpush1.msra.mxu0 %v4093
  %4249 = vmatprep.subr.mxu0 %v4098
  %4250 = vmatpush1.msra.mxu0 %v4097
  %4251 = vmatprep.subr.mxu0 %v4102
  %4252 = vmatpush1.msra.mxu0 %v4101
  %4253 = vmatprep.subr.mxu0 %v4106
  %4254 = vmatpush1.msra.mxu0 %v4105
  %4255 = vmatprep.subr.mxu0 %v4110
  %4256 = vmatpush1.msra.mxu0 %v4109
  %4257 = vmatprep.subr.mxu0 %v4114
  %4258 = vmatpush1.msra.mxu0 %v4113
  %4259 = vmatprep.subr.mxu0 %v4118
  %4260 = vmatpush1.msra.mxu0 %v4117
  %4261 = vmatprep.subr.mxu0 %v4122
  %4262 = vmatpush1.msra.mxu0 %v4121
  %4263 = vmatprep.subr.mxu0 %v4126
  %4264 = vmatpush1.msra.mxu0 %v4125
  %4265 = vmatprep.subr.mxu0 %v4130
  %4266 = vmatpush1.msra.mxu0 %v4129
  %4267 = vmatprep.subr.mxu0 %v4134
  %4268 = vmatpush1.msra.mxu0 %v4133
  %4269 = vmatprep.subr.mxu0 %v4138
  %4270 = vmatpush1.msra.mxu0 %v4137
  %4271 = vmatprep.subr.mxu0 %v4142
  %4272 = vmatpush1.msra.mxu0 %v4141
  %4273 = vmatprep.subr.mxu0 %v4146
  %4274 = vmatpush1.msra.mxu0 %v4145
  %4275 = vmatprep.subr.mxu0 %v4150
  %4276 = vmatpush1.msra.mxu0 %v4149
  %4277 = vmatprep.subr.mxu0 %v4154
  %4278 = vmatpush1.msra.mxu0 %v4153
  %4279 = vmatprep.subr.mxu0 0.0
  %4280 = vmatpush1.msra.mxu0 0.0
  %4281 = vmatprep.subr.mxu0 0.0
  %4282 = vmatpush1.msra.mxu0 0.0
  %4283 = vmatprep.subr.mxu0 0.0
  %4284 = vmatpush1.msra.mxu0 0.0
  %4285 = vmatprep.subr.mxu0 0.0
  %4286 = vmatpush1.msra.mxu0 0.0
  %4287 = vmatprep.subr.mxu0 0.0
  %4288 = vmatpush1.msra.mxu0 0.0
  %4289 = vmatprep.subr.mxu0 0.0
  %4290 = vmatpush1.msra.mxu0 0.0
  %4291 = vmatprep.subr.mxu0 0.0
  %4292 = vmatpush1.msra.mxu0 0.0
  %4293 = vmatprep.subr.mxu0 0.0
  %4294 = vmatpush1.msra.mxu0 0.0
  %4295 = vmatprep.subr.mxu0 0.0
  %4296 = vmatpush1.msra.mxu0 0.0
  %4297 = vmatprep.subr.mxu0 0.0
  %4298 = vmatpush1.msra.mxu0 0.0
  %4299 = vmatprep.subr.mxu0 0.0
  %4300 = vmatpush1.msra.mxu0 0.0
  %4301 = vmatprep.subr.mxu0 0.0
  %4302 = vmatpush1.msra.mxu0 0.0
  %4303 = vmatprep.subr.mxu0 0.0
  %4304 = vmatpush1.msra.mxu0 0.0
  %4305 = vmatprep.subr.mxu0 0.0
  %4306 = vmatpush1.msra.mxu0 0.0
  %4307 = vmatprep.subr.mxu0 0.0
  %4308 = vmatpush1.msra.mxu0 0.0
  %4309 = vmatprep.subr.mxu0 0.0
  %4310 = vmatpush1.msra.mxu0 0.0
  %4311 = vmatprep.mubr.f32.mxu0 0.0
  %4312 = vmatmul.mubr.f32.gmra.mrb[0].mxu0 %v4224
  %v4313 = vpop.f32.mrb[0].mxu0
  %v4314 = vadd.f32 %v4230, %v4313
  %v4315 = vpop.f32.mrb[0].mxu0
  %v4316 = vadd.f32 %v4234, %v4315
  %4317 = vdwg.mxu0
  %4318 = vmatprep.subr.mxu0 %v4096
  %4319 = vmatpush1.msra.mxu0 %v4095
  %4320 = vmatprep.subr.mxu0 %v4100
  %4321 = vmatpush1.msra.mxu0 %v4099
  %4322 = vmatprep.subr.mxu0 %v4104
  %4323 = vmatpush1.msra.mxu0 %v4103
  %4324 = vmatprep.subr.mxu0 %v4108
  %4325 = vmatpush1.msra.mxu0 %v4107
  %4326 = vmatprep.subr.mxu0 %v4112
  %4327 = vmatpush1.msra.mxu0 %v4111
  %4328 = vmatprep.subr.mxu0 %v4116
  %4329 = vmatpush1.msra.mxu0 %v4115
  %4330 = vmatprep.subr.mxu0 %v4120
  %4331 = vmatpush1.msra.mxu0 %v4119
  %4332 = vmatprep.subr.mxu0 %v4124
  %4333 = vmatpush1.msra.mxu0 %v4123
  %4334 = vmatprep.subr.mxu0 %v4128
  %4335 = vmatpush1.msra.mxu0 %v4127
  %4336 = vmatprep.subr.mxu0 %v4132
  %4337 = vmatpush1.msra.mxu0 %v4131
  %4338 = vmatprep.subr.mxu0 %v4136
  %4339 = vmatpush1.msra.mxu0 %v4135
  %4340 = vmatprep.subr.mxu0 %v4140
  %4341 = vmatpush1.msra.mxu0 %v4139
  %4342 = vmatprep.subr.mxu0 %v4144
  %4343 = vmatpush1.msra.mxu0 %v4143
  %4344 = vmatprep.subr.mxu0 %v4148
  %4345 = vmatpush1.msra.mxu0 %v4147
  %4346 = vmatprep.subr.mxu0 %v4152
  %4347 = vmatpush1.msra.mxu0 %v4151
  %4348 = vmatprep.subr.mxu0 %v4156
  %4349 = vmatpush1.msra.mxu0 %v4155
  %4350 = vmatprep.subr.mxu0 0.0
  %4351 = vmatpush1.msra.mxu0 0.0
  %4352 = vmatprep.subr.mxu0 0.0
  %4353 = vmatpush1.msra.mxu0 0.0
  %4354 = vmatprep.subr.mxu0 0.0
  %4355 = vmatpush1.msra.mxu0 0.0
  %4356 = vmatprep.subr.mxu0 0.0
  %4357 = vmatpush1.msra.mxu0 0.0
  %4358 = vmatprep.subr.mxu0 0.0
  %4359 = vmatpush1.msra.mxu0 0.0
  %4360 = vmatprep.subr.mxu0 0.0
  %4361 = vmatpush1.msra.mxu0 0.0
  %4362 = vmatprep.subr.mxu0 0.0
  %4363 = vmatpush1.msra.mxu0 0.0
  %4364 = vmatprep.subr.mxu0 0.0
  %4365 = vmatpush1.msra.mxu0 0.0
  %4366 = vmatprep.subr.mxu0 0.0
  %4367 = vmatpush1.msra.mxu0 0.0
  %4368 = vmatprep.subr.mxu0 0.0
  %4369 = vmatpush1.msra.mxu0 0.0
  %4370 = vmatprep.subr.mxu0 0.0
  %4371 = vmatpush1.msra.mxu0 0.0
  %4372 = vmatprep.subr.mxu0 0.0
  %4373 = vmatpush1.msra.mxu0 0.0
  %4374 = vmatprep.subr.mxu0 0.0
  %4375 = vmatpush1.msra.mxu0 0.0
  %4376 = vmatprep.subr.mxu0 0.0
  %4377 = vmatpush1.msra.mxu0 0.0
  %4378 = vmatprep.subr.mxu0 0.0
  %4379 = vmatpush1.msra.mxu0 0.0
  %4380 = vmatprep.subr.mxu0 0.0
  %4381 = vmatpush1.msra.mxu0 0.0
  %4382 = vmatprep.mubr.f32.mxu0 0.0
  %4383 = vmatmul.mubr.f32.gmra.mrb[0].mxu0 %v4224
  %v4384 = vpop.f32.mrb[0].mxu0
  %v4385 = vadd.f32 %v4238, %v4384
  %v4386 = vpop.f32.mrb[0].mxu0
  %v4387 = vadd.f32 %v4242, %v4386
  %4388 = vdwg.mxu0
  %4389 = vmatprep.subr.mxu0 %v4158
  %4390 = vmatpush1.msra.mxu0 %v4157
  %4391 = vmatprep.subr.mxu0 %v4162
  %4392 = vmatpush1.msra.mxu0 %v4161
  %4393 = vmatprep.subr.mxu0 %v4166
  %4394 = vmatpush1.msra.mxu0 %v4165
  %4395 = vmatprep.subr.mxu0 %v4170
  %4396 = vmatpush1.msra.mxu0 %v4169
  %4397 = vmatprep.subr.mxu0 %v4174
  %4398 = vmatpush1.msra.mxu0 %v4173
  %4399 = vmatprep.subr.mxu0 %v4178
  %4400 = vmatpush1.msra.mxu0 %v4177
  %4401 = vmatprep.subr.mxu0 %v4182
  %4402 = vmatpush1.msra.mxu0 %v4181
  %4403 = vmatprep.subr.mxu0 %v4186
  %4404 = vmatpush1.msra.mxu0 %v4185
  %4405 = vmatprep.subr.mxu0 %v4190
  %4406 = vmatpush1.msra.mxu0 %v4189
  %4407 = vmatprep.subr.mxu0 %v4194
  %4408 = vmatpush1.msra.mxu0 %v4193
  %4409 = vmatprep.subr.mxu0 %v4198
  %4410 = vmatpush1.msra.mxu0 %v4197
  %4411 = vmatprep.subr.mxu0 %v4202
  %4412 = vmatpush1.msra.mxu0 %v4201
  %4413 = vmatprep.subr.mxu0 %v4206
  %4414 = vmatpush1.msra.mxu0 %v4205
  %4415 = vmatprep.subr.mxu0 %v4210
  %4416 = vmatpush1.msra.mxu0 %v4209
  %4417 = vmatprep.subr.mxu0 %v4214
  %4418 = vmatpush1.msra.mxu0 %v4213
  %4419 = vmatprep.subr.mxu0 %v4218
  %4420 = vmatpush1.msra.mxu0 %v4217
  %4421 = vmatprep.subr.mxu0 0.0
  %4422 = vmatpush1.msra.mxu0 0.0
  %4423 = vmatprep.subr.mxu0 0.0
  %4424 = vmatpush1.msra.mxu0 0.0
  %4425 = vmatprep.subr.mxu0 0.0
  %4426 = vmatpush1.msra.mxu0 0.0
  %4427 = vmatprep.subr.mxu0 0.0
  %4428 = vmatpush1.msra.mxu0 0.0
  %4429 = vmatprep.subr.mxu0 0.0
  %4430 = vmatpush1.msra.mxu0 0.0
  %4431 = vmatprep.subr.mxu0 0.0
  %4432 = vmatpush1.msra.mxu0 0.0
  %4433 = vmatprep.subr.mxu0 0.0
  %4434 = vmatpush1.msra.mxu0 0.0
  %4435 = vmatprep.subr.mxu0 0.0
  %4436 = vmatpush1.msra.mxu0 0.0
  %4437 = vmatprep.subr.mxu0 0.0
  %4438 = vmatpush1.msra.mxu0 0.0
  %4439 = vmatprep.subr.mxu0 0.0
  %4440 = vmatpush1.msra.mxu0 0.0
  %4441 = vmatprep.subr.mxu0 0.0
  %4442 = vmatpush1.msra.mxu0 0.0
  %4443 = vmatprep.subr.mxu0 0.0
  %4444 = vmatpush1.msra.mxu0 0.0
  %4445 = vmatprep.subr.mxu0 0.0
  %4446 = vmatpush1.msra.mxu0 0.0
  %4447 = vmatprep.subr.mxu0 0.0
  %4448 = vmatpush1.msra.mxu0 0.0
  %4449 = vmatprep.subr.mxu0 0.0
  %4450 = vmatpush1.msra.mxu0 0.0
  %4451 = vmatprep.subr.mxu0 0.0
  %4452 = vmatpush1.msra.mxu0 0.0
  %4453 = vmatprep.mubr.f32.mxu0 0.0
  %4454 = vmatmul.mubr.f32.gmra.mrb[0].mxu0 0.0
  %v4455 = vpop.f32.mrb[0].mxu0
  %v4456 = vadd.f32 0.0, %v4455
  %v4457 = vpop.f32.mrb[0].mxu0
  %v4458 = vadd.f32 0.0, %v4457
  %4459 = vdwg.mxu0
  %4460 = vmatprep.subr.mxu0 %v4160
  %4461 = vmatpush1.msra.mxu0 %v4159
  %4462 = vmatprep.subr.mxu0 %v4164
  %4463 = vmatpush1.msra.mxu0 %v4163
  %4464 = vmatprep.subr.mxu0 %v4168
  %4465 = vmatpush1.msra.mxu0 %v4167
  %4466 = vmatprep.subr.mxu0 %v4172
  %4467 = vmatpush1.msra.mxu0 %v4171
  %4468 = vmatprep.subr.mxu0 %v4176
  %4469 = vmatpush1.msra.mxu0 %v4175
  %4470 = vmatprep.subr.mxu0 %v4180
  %4471 = vmatpush1.msra.mxu0 %v4179
  %4472 = vmatprep.subr.mxu0 %v4184
  %4473 = vmatpush1.msra.mxu0 %v4183
  %4474 = vmatprep.subr.mxu0 %v4188
  %4475 = vmatpush1.msra.mxu0 %v4187
  %4476 = vmatprep.subr.mxu0 %v4192
  %4477 = vmatpush1.msra.mxu0 %v4191
  %4478 = vmatprep.subr.mxu0 %v4196
  %4479 = vmatpush1.msra.mxu0 %v4195
  %4480 = vmatprep.subr.mxu0 %v4200
  %4481 = vmatpush1.msra.mxu0 %v4199
  %4482 = vmatprep.subr.mxu0 %v4204
  %4483 = vmatpush1.msra.mxu0 %v4203
  %4484 = vmatprep.subr.mxu0 %v4208
  %4485 = vmatpush1.msra.mxu0 %v4207
  %4486 = vmatprep.subr.mxu0 %v4212
  %4487 = vmatpush1.msra.mxu0 %v4211
  %4488 = vmatprep.subr.mxu0 %v4216
  %4489 = vmatpush1.msra.mxu0 %v4215
  %4490 = vmatprep.subr.mxu0 %v4220
  %4491 = vmatpush1.msra.mxu0 %v4219
  %4492 = vmatprep.subr.mxu0 0.0
  %4493 = vmatpush1.msra.mxu0 0.0
  %4494 = vmatprep.subr.mxu0 0.0
  %4495 = vmatpush1.msra.mxu0 0.0
  %4496 = vmatprep.subr.mxu0 0.0
  %4497 = vmatpush1.msra.mxu0 0.0
  %4498 = vmatprep.subr.mxu0 0.0
  %4499 = vmatpush1.msra.mxu0 0.0
  %4500 = vmatprep.subr.mxu0 0.0
  %4501 = vmatpush1.msra.mxu0 0.0
  %4502 = vmatprep.subr.mxu0 0.0
  %4503 = vmatpush1.msra.mxu0 0.0
  %4504 = vmatprep.subr.mxu0 0.0
  %4505 = vmatpush1.msra.mxu0 0.0
  %4506 = vmatprep.subr.mxu0 0.0
  %4507 = vmatpush1.msra.mxu0 0.0
  %4508 = vmatprep.subr.mxu0 0.0
  %4509 = vmatpush1.msra.mxu0 0.0
  %4510 = vmatprep.subr.mxu0 0.0
  %4511 = vmatpush1.msra.mxu0 0.0
  %4512 = vmatprep.subr.mxu0 0.0
  %4513 = vmatpush1.msra.mxu0 0.0
  %4514 = vmatprep.subr.mxu0 0.0
  %4515 = vmatpush1.msra.mxu0 0.0
  %4516 = vmatprep.subr.mxu0 0.0
  %4517 = vmatpush1.msra.mxu0 0.0
  %4518 = vmatprep.subr.mxu0 0.0
  %4519 = vmatpush1.msra.mxu0 0.0
  %4520 = vmatprep.subr.mxu0 0.0
  %4521 = vmatpush1.msra.mxu0 0.0
  %4522 = vmatprep.subr.mxu0 0.0
  %4523 = vmatpush1.msra.mxu0 0.0
  %4524 = vmatprep.mubr.f32.mxu0 0.0
  %4525 = vmatmul.mubr.f32.gmra.mrb[0].mxu0 0.0
  %v4526 = vpop.f32.mrb[0].mxu0
  %v4527 = vadd.f32 0.0, %v4526
  %v4528 = vpop.f32.mrb[0].mxu0
  %v4529 = vadd.f32 0.0, %v4528
  %4530 = vdwg.mxu0
  %v4531 = vadd.f32 %v4314, %v4456
  %v4532 = vadd.f32 %v4316, %v4458
  %v4533 = vadd.f32 %v4385, %v4527
  %v4534 = vadd.f32 %v4387, %v4529
  %v4535 = vmul.f32 %v4531, 0.5
  %v4536 = vmul.f32 %v4532, 0.5
  %v4537 = vmul.f32 %v4533, 0.5
  %v4538 = vtanh.pop %v4535
  %v4539 = vtanh.pop %v4536
  %v4540 = vtanh.pop %v4537
  %v4541 = vmul.f32 %v4538, 0.5
  %v4542 = vmul.f32 %v4539, 0.5
  %v4543 = vmul.f32 %v4540, 0.5
  %v4544 = vadd.f32 %v4541, 0.5
  %v4545 = vadd.f32 %v4542, 0.5
  %v4546 = vadd.f32 %v4543, 0.5
  %v4547 = vtanh.pop %v4534
  %v4548 = vmul.f32 %v4545, 0.0
  %v4549 = vmul.f32 %v4544, %v4547
  %v4550 = vadd.f32 %v4548, %v4549
  %v4551 = vtanh.pop %v4550
  %v4552 = vmul.f32 %v4546, %v4551
  %4553 = vmatprep.subr.mxu0 %v4158
  %4554 = vmatpush1.msra.mxu0 %v4157
  %4555 = vmatprep.subr.mxu0 %v4162
  %4556 = vmatpush1.msra.mxu0 %v4161
  %4557 = vmatprep.subr.mxu0 %v4166
  %4558 = vmatpush1.msra.mxu0 %v4165
  %4559 = vmatprep.subr.mxu0 %v4170
  %4560 = vmatpush1.msra.mxu0 %v4169
  %4561 = vmatprep.subr.mxu0 %v4174
  %4562 = vmatpush1.msra.mxu0 %v4173
  %4563 = vmatprep.subr.mxu0 %v4178
  %4564 = vmatpush1.msra.mxu0 %v4177
  %4565 = vmatprep.subr.mxu0 %v4182
  %4566 = vmatpush1.msra.mxu0 %v4181
  %4567 = vmatprep.subr.mxu0 %v4186
  %4568 = vmatpush1.msra.mxu0 %v4185
  %4569 = vmatprep.subr.mxu0 %v4190
  %4570 = vmatpush1.msra.mxu0 %v4189
  %4571 = vmatprep.subr.mxu0 %v4194
  %4572 = vmatpush1.msra.mxu0 %v4193
  %4573 = vmatprep.subr.mxu0 %v4198
  %4574 = vmatpush1.msra.mxu0 %v4197
  %4575 = vmatprep.subr.mxu0 %v4202
  %4576 = vmatpush1.msra.mxu0 %v4201
  %4577 = vmatprep.subr.mxu0 %v4206
  %4578 = vmatpush1.msra.mxu0 %v4205
  %4579 = vmatprep.subr.mxu0 %v4210
  %4580 = vmatpush1.msra.mxu0 %v4209
  %4581 = vmatprep.subr.mxu0 %v4214
  %4582 = vmatpush1.msra.mxu0 %v4213
  %4583 = vmatprep.subr.mxu0 %v4218
  %4584 = vmatpush1.msra.mxu0 %v4217
  %4585 = vmatprep.subr.mxu0 0.0
  %4586 = vmatpush1.msra.mxu0 0.0
  %4587 = vmatprep.subr.mxu0 0.0
  %4588 = vmatpush1.msra.mxu0 0.0
  %4589 = vmatprep.subr.mxu0 0.0
  %4590 = vmatpush1.msra.mxu0 0.0
  %4591 = vmatprep.subr.mxu0 0.0
  %4592 = vmatpush1.msra.mxu0 0.0
  %4593 = vmatprep.subr.mxu0 0.0
  %4594 = vmatpush1.msra.mxu0 0.0
  %4595 = vmatprep.subr.mxu0 0.0
  %4596 = vmatpush1.msra.mxu0 0.0
  %4597 = vmatprep.subr.mxu0 0.0
  %4598 = vmatpush1.msra.mxu0 0.0
  %4599 = vmatprep.subr.mxu0 0.0
  %4600 = vmatpush1.msra.mxu0 0.0
  %4601 = vmatprep.subr.mxu0 0.0
  %4602 = vmatpush1.msra.mxu0 0.0
  %4603 = vmatprep.subr.mxu0 0.0
  %4604 = vmatpush1.msra.mxu0 0.0
  %4605 = vmatprep.subr.mxu0 0.0
  %4606 = vmatpush1.msra.mxu0 0.0
  %4607 = vmatprep.subr.mxu0 0.0
  %4608 = vmatpush1.msra.mxu0 0.0
  %4609 = vmatprep.subr.mxu0 0.0
  %4610 = vmatpush1.msra.mxu0 0.0
  %4611 = vmatprep.subr.mxu0 0.0
  %4612 = vmatpush1.msra.mxu0 0.0
  %4613 = vmatprep.subr.mxu0 0.0
  %4614 = vmatpush1.msra.mxu0 0.0
  %4615 = vmatprep.subr.mxu0 0.0
  %4616 = vmatpush1.msra.mxu0 0.0
  %4617 = vmatprep.mubr.f32.mxu0 0.0
  %4618 = vmatmul.mubr.f32.gmra.mrb[0].mxu0 %v4552
  %v4619 = vpop.f32.mrb[0].mxu0
  %v4620 = vadd.f32 0.0, %v4619
  %v4621 = vpop.f32.mrb[0].mxu0
  %v4622 = vadd.f32 0.0, %v4621
  %4623 = vdwg.mxu0
  %4624 = vmatprep.subr.mxu0 %v4160
  %4625 = vmatpush1.msra.mxu0 %v4159
  %4626 = vmatprep.subr.mxu0 %v4164
  %4627 = vmatpush1.msra.mxu0 %v4163
  %4628 = vmatprep.subr.mxu0 %v4168
  %4629 = vmatpush1.msra.mxu0 %v4167
  %4630 = vmatprep.subr.mxu0 %v4172
  %4631 = vmatpush1.msra.mxu0 %v4171
  %4632 = vmatprep.subr.mxu0 %v4176
  %4633 = vmatpush1.msra.mxu0 %v4175
  %4634 = vmatprep.subr.mxu0 %v4180
  %4635 = vmatpush1.msra.mxu0 %v4179
  %4636 = vmatprep.subr.mxu0 %v4184
  %4637 = vmatpush1.msra.mxu0 %v4183
  %4638 = vmatprep.subr.mxu0 %v4188
  %4639 = vmatpush1.msra.mxu0 %v4187
  %4640 = vmatprep.subr.mxu0 %v4192
  %4641 = vmatpush1.msra.mxu0 %v4191
  %4642 = vmatprep.subr.mxu0 %v4196
  %4643 = vmatpush1.msra.mxu0 %v4195
  %4644 = vmatprep.subr.mxu0 %v4200
  %4645 = vmatpush1.msra.mxu0 %v4199
  %4646 = vmatprep.subr.mxu0 %v4204
  %4647 = vmatpush1.msra.mxu0 %v4203
  %4648 = vmatprep.subr.mxu0 %v4208
  %4649 = vmatpush1.msra.mxu0 %v4207
  %4650 = vmatprep.subr.mxu0 %v4212
  %4651 = vmatpush1.msra.mxu0 %v4211
  %4652 = vmatprep.subr.mxu0 %v4216
  %4653 = vmatpush1.msra.mxu0 %v4215
  %4654 = vmatprep.subr.mxu0 %v4220
  %4655 = vmatpush1.msra.mxu0 %v4219
  %4656 = vmatprep.subr.mxu0 0.0
  %4657 = vmatpush1.msra.mxu0 0.0
  %4658 = vmatprep.subr.mxu0 0.0
  %4659 = vmatpush1.msra.mxu0 0.0
  %4660 = vmatprep.subr.mxu0 0.0
  %4661 = vmatpush1.msra.mxu0 0.0
  %4662 = vmatprep.subr.mxu0 0.0
  %4663 = vmatpush1.msra.mxu0 0.0
  %4664 = vmatprep.subr.mxu0 0.0
  %4665 = vmatpush1.msra.mxu0 0.0
  %4666 = vmatprep.subr.mxu0 0.0
  %4667 = vmatpush1.msra.mxu0 0.0
  %4668 = vmatprep.subr.mxu0 0.0
  %4669 = vmatpush1.msra.mxu0 0.0
  %4670 = vmatprep.subr.mxu0 0.0
  %4671 = vmatpush1.msra.mxu0 0.0
  %4672 = vmatprep.subr.mxu0 0.0
  %4673 = vmatpush1.msra.mxu0 0.0
  %4674 = vmatprep.subr.mxu0 0.0
  %4675 = vmatpush1.msra.mxu0 0.0
  %4676 = vmatprep.subr.mxu0 0.0
  %4677 = vmatpush1.msra.mxu0 0.0
  %4678 = vmatprep.subr.mxu0 0.0
  %4679 = vmatpush1.msra.mxu0 0.0
  %4680 = vmatprep.subr.mxu0 0.0
  %4681 = vmatpush1.msra.mxu0 0.0
  %4682 = vmatprep.subr.mxu0 0.0
  %4683 = vmatpush1.msra.mxu0 0.0
  %4684 = vmatprep.subr.mxu0 0.0
  %4685 = vmatpush1.msra.mxu0 0.0
  %4686 = vmatprep.subr.mxu0 0.0
  %4687 = vmatpush1.msra.mxu0 0.0
  %4688 = vmatprep.mubr.f32.mxu0 0.0
  %4689 = vmatmul.mubr.f32.gmra.mrb[0].mxu0 %v4552
  %v4690 = vpop.f32.mrb[0].mxu0
  %v4691 = vadd.f32 0.0, %v4690
  %v4692 = vpop.f32.mrb[0].mxu0
  %v4693 = vadd.f32 0.0, %v4692
  %4694 = vdwg.mxu0
  %v4695 = vadd.f32 %v4314, %v4620
  %v4696 = vadd.f32 %v4316, %v4622
  %v4697 = vadd.f32 %v4385, %v4691
  %v4698 = vadd.f32 %v4387, %v4693
  %v4699 = vmul.f32 %v4695, 0.5
  %v4700 = vmul.f32 %v4696, 0.5
  %v4701 = vmul.f32 %v4697, 0.5
  %v4702 = vtanh.pop %v4699
  %v4703 = vtanh.pop %v4700
  %v4704 = vtanh.pop %v4701
  %v4705 = vmul.f32 %v4702, 0.5
  %v4706 = vmul.f32 %v4703, 0.5
  %v4707 = vmul.f32 %v4704, 0.5
  %v4708 = vadd.f32 %v4705, 0.5
  %v4709 = vadd.f32 %v4706, 0.5
  %v4710 = vadd.f32 %v4707, 0.5
  %v4711 = vtanh.pop %v4698
  %v4712 = vmul.f32 %v4709, %v4550
  %v4713 = vmul.f32 %v4708, %v4711
  %v4714 = vadd.f32 %v4712, %v4713
  %v4715 = vtanh.pop %v4714
  %v4716 = vmul.f32 %v4710, %v4715
  %4717 = vmatprep.subr.mxu0 %v4158
  %4718 = vmatpush1.msra.mxu0 %v4157
  %4719 = vmatprep.subr.mxu0 %v4162
  %4720 = vmatpush1.msra.mxu0 %v4161
  %4721 = vmatprep.subr.mxu0 %v4166
  %4722 = vmatpush1.msra.mxu0 %v4165
  %4723 = vmatprep.subr.mxu0 %v4170
  %4724 = vmatpush1.msra.mxu0 %v4169
  %4725 = vmatprep.subr.mxu0 %v4174
  %4726 = vmatpush1.msra.mxu0 %v4173
  %4727 = vmatprep.subr.mxu0 %v4178
  %4728 = vmatpush1.msra.mxu0 %v4177
  %4729 = vmatprep.subr.mxu0 %v4182
  %4730 = vmatpush1.msra.mxu0 %v4181
  %4731 = vmatprep.subr.mxu0 %v4186
  %4732 = vmatpush1.msra.mxu0 %v4185
  %4733 = vmatprep.subr.mxu0 %v4190
  %4734 = vmatpush1.msra.mxu0 %v4189
  %4735 = vmatprep.subr.mxu0 %v4194
  %4736 = vmatpush1.msra.mxu0 %v4193
  %4737 = vmatprep.subr.mxu0 %v4198
  %4738 = vmatpush1.msra.mxu0 %v4197
  %4739 = vmatprep.subr.mxu0 %v4202
  %4740 = vmatpush1.msra.mxu0 %v4201
  %4741 = vmatprep.subr.mxu0 %v4206
  %4742 = vmatpush1.msra.mxu0 %v4205
  %4743 = vmatprep.subr.mxu0 %v4210
  %4744 = vmatpush1.msra.mxu0 %v4209
  %4745 = vmatprep.subr.mxu0 %v4214
  %4746 = vmatpush1.msra.mxu0 %v4213
  %4747 = vmatprep.subr.mxu0 %v4218
  %4748 = vmatpush1.msra.mxu0 %v4217
  %4749 = vmatprep.subr.mxu0 0.0
  %4750 = vmatpush1.msra.mxu0 0.0
  %4751 = vmatprep.subr.mxu0 0.0
  %4752 = vmatpush1.msra.mxu0 0.0
  %4753 = vmatprep.subr.mxu0 0.0
  %4754 = vmatpush1.msra.mxu0 0.0
  %4755 = vmatprep.subr.mxu0 0.0
  %4756 = vmatpush1.msra.mxu0 0.0
  %4757 = vmatprep.subr.mxu0 0.0
  %4758 = vmatpush1.msra.mxu0 0.0
  %4759 = vmatprep.subr.mxu0 0.0
  %4760 = vmatpush1.msra.mxu0 0.0
  %4761 = vmatprep.subr.mxu0 0.0
  %4762 = vmatpush1.msra.mxu0 0.0
  %4763 = vmatprep.subr.mxu0 0.0
  %4764 = vmatpush1.msra.mxu0 0.0
  %4765 = vmatprep.subr.mxu0 0.0
  %4766 = vmatpush1.msra.mxu0 0.0
  %4767 = vmatprep.subr.mxu0 0.0
  %4768 = vmatpush1.msra.mxu0 0.0
  %4769 = vmatprep.subr.mxu0 0.0
  %4770 = vmatpush1.msra.mxu0 0.0
  %4771 = vmatprep.subr.mxu0 0.0
  %4772 = vmatpush1.msra.mxu0 0.0
  %4773 = vmatprep.subr.mxu0 0.0
  %4774 = vmatpush1.msra.mxu0 0.0
  %4775 = vmatprep.subr.mxu0 0.0
  %4776 = vmatpush1.msra.mxu0 0.0
  %4777 = vmatprep.subr.mxu0 0.0
  %4778 = vmatpush1.msra.mxu0 0.0
  %4779 = vmatprep.subr.mxu0 0.0
  %4780 = vmatpush1.msra.mxu0 0.0
  %4781 = vmatprep.mubr.f32.mxu0 0.0
  %4782 = vmatmul.mubr.f32.gmra.mrb[0].mxu0 %v4716
  %v4783 = vpop.f32.mrb[0].mxu0
  %v4784 = vadd.f32 0.0, %v4783
  %v4785 = vpop.f32.mrb[0].mxu0
  %v4786 = vadd.f32 0.0, %v4785
  %4787 = vdwg.mxu0
  %4788 = vmatprep.subr.mxu0 %v4160
  %4789 = vmatpush1.msra.mxu0 %v4159
  %4790 = vmatprep.subr.mxu0 %v4164
  %4791 = vmatpush1.msra.mxu0 %v4163
  %4792 = vmatprep.subr.mxu0 %v4168
  %4793 = vmatpush1.msra.mxu0 %v4167
  %4794 = vmatprep.subr.mxu0 %v4172
  %4795 = vmatpush1.msra.mxu0 %v4171
  %4796 = vmatprep.subr.mxu0 %v4176
  %4797 = vmatpush1.msra.mxu0 %v4175
  %4798 = vmatprep.subr.mxu0 %v4180
  %4799 = vmatpush1.msra.mxu0 %v4179
  %4800 = vmatprep.subr.mxu0 %v4184
  %4801 = vmatpush1.msra.mxu0 %v4183
  %4802 = vmatprep.subr.mxu0 %v4188
  %4803 = vmatpush1.msra.mxu0 %v4187
  %4804 = vmatprep.subr.mxu0 %v4192
  %4805 = vmatpush1.msra.mxu0 %v4191
  %4806 = vmatprep.subr.mxu0 %v4196
  %4807 = vmatpush1.msra.mxu0 %v4195
  %4808 = vmatprep.subr.mxu0 %v4200
  %4809 = vmatpush1.msra.mxu0 %v4199
  %4810 = vmatprep.subr.mxu0 %v4204
  %4811 = vmatpush1.msra.mxu0 %v4203
  %4812 = vmatprep.subr.mxu0 %v4208
  %4813 = vmatpush1.msra.mxu0 %v4207
  %4814 = vmatprep.subr.mxu0 %v4212
  %4815 = vmatpush1.msra.mxu0 %v4211
  %4816 = vmatprep.subr.mxu0 %v4216
  %4817 = vmatpush1.msra.mxu0 %v4215
  %4818 = vmatprep.subr.mxu0 %v4220
  %4819 = vmatpush1.msra.mxu0 %v4219
  %4820 = vmatprep.subr.mxu0 0.0
  %4821 = vmatpush1.msra.mxu0 0.0
  %4822 = vmatprep.subr.mxu0 0.0
  %4823 = vmatpush1.msra.mxu0 0.0
  %4824 = vmatprep.subr.mxu0 0.0
  %4825 = vmatpush1.msra.mxu0 0.0
  %4826 = vmatprep.subr.mxu0 0.0
  %4827 = vmatpush1.msra.mxu0 0.0
  %4828 = vmatprep.subr.mxu0 0.0
  %4829 = vmatpush1.msra.mxu0 0.0
  %4830 = vmatprep.subr.mxu0 0.0
  %4831 = vmatpush1.msra.mxu0 0.0
  %4832 = vmatprep.subr.mxu0 0.0
  %4833 = vmatpush1.msra.mxu0 0.0
  %4834 = vmatprep.subr.mxu0 0.0
  %4835 = vmatpush1.msra.mxu0 0.0
  %4836 = vmatprep.subr.mxu0 0.0
  %4837 = vmatpush1.msra.mxu0 0.0
  %4838 = vmatprep.subr.mxu0 0.0
  %4839 = vmatpush1.msra.mxu0 0.0
  %4840 = vmatprep.subr.mxu0 0.0
  %4841 = vmatpush1.msra.mxu0 0.0
  %4842 = vmatprep.subr.mxu0 0.0
  %4843 = vmatpush1.msra.mxu0 0.0
  %4844 = vmatprep.subr.mxu0 0.0
  %4845 = vmatpush1.msra.mxu0 0.0
  %4846 = vmatprep.subr.mxu0 0.0
  %4847 = vmatpush1.msra.mxu0 0.0
  %4848 = vmatprep.subr.mxu0 0.0
  %4849 = vmatpush1.msra.mxu0 0.0
  %4850 = vmatprep.subr.mxu0 0.0
  %4851 = vmatpush1.msra.mxu0 0.0
  %4852 = vmatprep.mubr.f32.mxu0 0.0
  %4853 = vmatmul.mubr.f32.gmra.mrb[0].mxu0 %v4716
  %v4854 = vpop.f32.mrb[0].mxu0
  %v4855 = vadd.f32 0.0, %v4854
  %v4856 = vpop.f32.mrb[0].mxu0
  %v4857 = vadd.f32 0.0, %v4856
  %4858 = vdwg.mxu0
  %v4859 = vadd.f32 %v4314, %v4784
  %v4860 = vadd.f32 %v4316, %v4786
  %v4861 = vadd.f32 %v4385, %v4855
  %v4862 = vadd.f32 %v4387, %v4857
  %v4863 = vmul.f32 %v4859, 0.5
  %v4864 = vmul.f32 %v4860, 0.5
  %v4865 = vmul.f32 %v4861, 0.5
  %v4866 = vtanh.pop %v4863
  %v4867 = vtanh.pop %v4864
  %v4868 = vtanh.pop %v4865
  %v4869 = vmul.f32 %v4866, 0.5
  %v4870 = vmul.f32 %v4867, 0.5
  %v4871 = vmul.f32 %v4868, 0.5
  %v4872 = vadd.f32 %v4869, 0.5
  %v4873 = vadd.f32 %v4870, 0.5
  %v4874 = vadd.f32 %v4871, 0.5
  %v4875 = vtanh.pop %v4862
  %v4876 = vmul.f32 %v4873, %v4714
  %v4877 = vmul.f32 %v4872, %v4875
  %v4878 = vadd.f32 %v4876, %v4877
  %v4879 = vtanh.pop %v4878
  %v4880 = vmul.f32 %v4874, %v4879
  %4881 = vmatprep.subr.mxu0 %v4158
  %4882 = vmatpush1.msra.mxu0 %v4157
  %4883 = vmatprep.subr.mxu0 %v4162
  %4884 = vmatpush1.msra.mxu0 %v4161
  %4885 = vmatprep.subr.mxu0 %v4166
  %4886 = vmatpush1.msra.mxu0 %v4165
  %4887 = vmatprep.subr.mxu0 %v4170
  %4888 = vmatpush1.msra.mxu0 %v4169
  %4889 = vmatprep.subr.mxu0 %v4174
  %4890 = vmatpush1.msra.mxu0 %v4173
  %4891 = vmatprep.subr.mxu0 %v4178
  %4892 = vmatpush1.msra.mxu0 %v4177
  %4893 = vmatprep.subr.mxu0 %v4182
  %4894 = vmatpush1.msra.mxu0 %v4181
  %4895 = vmatprep.subr.mxu0 %v4186
  %4896 = vmatpush1.msra.mxu0 %v4185
  %4897 = vmatprep.subr.mxu0 %v4190
  %4898 = vmatpush1.msra.mxu0 %v4189
  %4899 = vmatprep.subr.mxu0 %v4194
  %4900 = vmatpush1.msra.mxu0 %v4193
  %4901 = vmatprep.subr.mxu0 %v4198
  %4902 = vmatpush1.msra.mxu0 %v4197
  %4903 = vmatprep.subr.mxu0 %v4202
  %4904 = vmatpush1.msra.mxu0 %v4201
  %4905 = vmatprep.subr.mxu0 %v4206
  %4906 = vmatpush1.msra.mxu0 %v4205
  %4907 = vmatprep.subr.mxu0 %v4210
  %4908 = vmatpush1.msra.mxu0 %v4209
  %4909 = vmatprep.subr.mxu0 %v4214
  %4910 = vmatpush1.msra.mxu0 %v4213
  %4911 = vmatprep.subr.mxu0 %v4218
  %4912 = vmatpush1.msra.mxu0 %v4217
  %4913 = vmatprep.subr.mxu0 0.0
  %4914 = vmatpush1.msra.mxu0 0.0
  %4915 = vmatprep.subr.mxu0 0.0
  %4916 = vmatpush1.msra.mxu0 0.0
  %4917 = vmatprep.subr.mxu0 0.0
  %4918 = vmatpush1.msra.mxu0 0.0
  %4919 = vmatprep.subr.mxu0 0.0
  %4920 = vmatpush1.msra.mxu0 0.0
  %4921 = vmatprep.subr.mxu0 0.0
  %4922 = vmatpush1.msra.mxu0 0.0
  %4923 = vmatprep.subr.mxu0 0.0
  %4924 = vmatpush1.msra.mxu0 0.0
  %4925 = vmatprep.subr.mxu0 0.0
  %4926 = vmatpush1.msra.mxu0 0.0
  %4927 = vmatprep.subr.mxu0 0.0
  %4928 = vmatpush1.msra.mxu0 0.0
  %4929 = vmatprep.subr.mxu0 0.0
  %4930 = vmatpush1.msra.mxu0 0.0
  %4931 = vmatprep.subr.mxu0 0.0
  %4932 = vmatpush1.msra.mxu0 0.0
  %4933 = vmatprep.subr.mxu0 0.0
  %4934 = vmatpush1.msra.mxu0 0.0
  %4935 = vmatprep.subr.mxu0 0.0
  %4936 = vmatpush1.msra.mxu0 0.0
  %4937 = vmatprep.subr.mxu0 0.0
  %4938 = vmatpush1.msra.mxu0 0.0
  %4939 = vmatprep.subr.mxu0 0.0
  %4940 = vmatpush1.msra.mxu0 0.0
  %4941 = vmatprep.subr.mxu0 0.0
  %4942 = vmatpush1.msra.mxu0 0.0
  %4943 = vmatprep.subr.mxu0 0.0
  %4944 = vmatpush1.msra.mxu0 0.0
  %4945 = vmatprep.mubr.f32.mxu0 0.0
  %4946 = vmatmul.mubr.f32.gmra.mrb[0].mxu0 %v4880
  %v4947 = vpop.f32.mrb[0].mxu0
  %v4948 = vadd.f32 0.0, %v4947
  %v4949 = vpop.f32.mrb[0].mxu0
  %v4950 = vadd.f32 0.0, %v4949
  %4951 = vdwg.mxu0
  %4952 = vmatprep.subr.mxu0 %v4160
  %4953 = vmatpush1.msra.mxu0 %v4159
  %4954 = vmatprep.subr.mxu0 %v4164
  %4955 = vmatpush1.msra.mxu0 %v4163
  %4956 = vmatprep.subr.mxu0 %v4168
  %4957 = vmatpush1.msra.mxu0 %v4167
  %4958 = vmatprep.subr.mxu0 %v4172
  %4959 = vmatpush1.msra.mxu0 %v4171
  %4960 = vmatprep.subr.mxu0 %v4176
  %4961 = vmatpush1.msra.mxu0 %v4175
  %4962 = vmatprep.subr.mxu0 %v4180
  %4963 = vmatpush1.msra.mxu0 %v4179
  %4964 = vmatprep.subr.mxu0 %v4184
  %4965 = vmatpush1.msra.mxu0 %v4183
  %4966 = vmatprep.subr.mxu0 %v4188
  %4967 = vmatpush1.msra.mxu0 %v4187
  %4968 = vmatprep.subr.mxu0 %v4192
  %4969 = vmatpush1.msra.mxu0 %v4191
  %4970 = vmatprep.subr.mxu0 %v4196
  %4971 = vmatpush1.msra.mxu0 %v4195
  %4972 = vmatprep.subr.mxu0 %v4200
  %4973 = vmatpush1.msra.mxu0 %v4199
  %4974 = vmatprep.subr.mxu0 %v4204
  %4975 = vmatpush1.msra.mxu0 %v4203
  %4976 = vmatprep.subr.mxu0 %v4208
  %4977 = vmatpush1.msra.mxu0 %v4207
  %4978 = vmatprep.subr.mxu0 %v4212
  %4979 = vmatpush1.msra.mxu0 %v4211
  %4980 = vmatprep.subr.mxu0 %v4216
  %4981 = vmatpush1.msra.mxu0 %v4215
  %4982 = vmatprep.subr.mxu0 %v4220
  %4983 = vmatpush1.msra.mxu0 %v4219
  %4984 = vmatprep.subr.mxu0 0.0
  %4985 = vmatpush1.msra.mxu0 0.0
  %4986 = vmatprep.subr.mxu0 0.0
  %4987 = vmatpush1.msra.mxu0 0.0
  %4988 = vmatprep.subr.mxu0 0.0
  %4989 = vmatpush1.msra.mxu0 0.0
  %4990 = vmatprep.subr.mxu0 0.0
  %4991 = vmatpush1.msra.mxu0 0.0
  %4992 = vmatprep.subr.mxu0 0.0
  %4993 = vmatpush1.msra.mxu0 0.0
  %4994 = vmatprep.subr.mxu0 0.0
  %4995 = vmatpush1.msra.mxu0 0.0
  %4996 = vmatprep.subr.mxu0 0.0
  %4997 = vmatpush1.msra.mxu0 0.0
  %4998 = vmatprep.subr.mxu0 0.0
  %4999 = vmatpush1.msra.mxu0 0.0
  %5000 = vmatprep.subr.mxu0 0.0
  %5001 = vmatpush1.msra.mxu0 0.0
  %5002 = vmatprep.subr.mxu0 0.0
  %5003 = vmatpush1.msra.mxu0 0.0
  %5004 = vmatprep.subr.mxu0 0.0
  %5005 = vmatpush1.msra.mxu0 0.0
  %5006 = vmatprep.subr.mxu0 0.0
  %5007 = vmatpush1.msra.mxu0 0.0
  %5008 = vmatprep.subr.mxu0 0.0
  %5009 = vmatpush1.msra.mxu0 0.0
  %5010 = vmatprep.subr.mxu0 0.0
  %5011 = vmatpush1.msra.mxu0 0.0
  %5012 = vmatprep.subr.mxu0 0.0
  %5013 = vmatpush1.msra.mxu0 0.0
  %5014 = vmatprep.subr.mxu0 0.0
  %5015 = vmatpush1.msra.mxu0 0.0
  %5016 = vmatprep.mubr.f32.mxu0 0.0
  %5017 = vmatmul.mubr.f32.gmra.mrb[0].mxu0 %v4880
  %v5018 = vpop.f32.mrb[0].mxu0
  %v5019 = vadd.f32 0.0, %v5018
  %v5020 = vpop.f32.mrb[0].mxu0
  %v5021 = vadd.f32 0.0, %v5020
  %5022 = vdwg.mxu0
  %v5023 = vadd.f32 %v4314, %v4948
  %v5024 = vadd.f32 %v4316, %v4950
  %v5025 = vadd.f32 %v4385, %v5019
  %v5026 = vadd.f32 %v4387, %v5021
  %v5027 = vmul.f32 %v5023, 0.5
  %v5028 = vmul.f32 %v5024, 0.5
  %v5029 = vmul.f32 %v5025, 0.5
  %v5030 = vtanh.pop %v5027
  %v5031 = vtanh.pop %v5028
  %v5032 = vtanh.pop %v5029
  %v5033 = vmul.f32 %v5030, 0.5
  %v5034 = vmul.f32 %v5031, 0.5
  %v5035 = vmul.f32 %v5032, 0.5
  %v5036 = vadd.f32 %v5033, 0.5
  %v5037 = vadd.f32 %v5034, 0.5
  %v5038 = vadd.f32 %v5035, 0.5
  %v5039 = vtanh.pop %v5026
  %v5040 = vmul.f32 %v5037, %v4878
  %v5041 = vmul.f32 %v5036, %v5039
  %v5042 = vadd.f32 %v5040, %v5041
  %v5043 = vtanh.pop %v5042
  %v5044 = vmul.f32 %v5038, %v5043
  %5045 = vmatprep.subr.mxu0 %v4158
  %5046 = vmatpush1.msra.mxu0 %v4157
  %5047 = vmatprep.subr.mxu0 %v4162
  %5048 = vmatpush1.msra.mxu0 %v4161
  %5049 = vmatprep.subr.mxu0 %v4166
  %5050 = vmatpush1.msra.mxu0 %v4165
  %5051 = vmatprep.subr.mxu0 %v4170
  %5052 = vmatpush1.msra.mxu0 %v4169
  %5053 = vmatprep.subr.mxu0 %v4174
  %5054 = vmatpush1.msra.mxu0 %v4173
  %5055 = vmatprep.subr.mxu0 %v4178
  %5056 = vmatpush1.msra.mxu0 %v4177
  %5057 = vmatprep.subr.mxu0 %v4182
  %5058 = vmatpush1.msra.mxu0 %v4181
  %5059 = vmatprep.subr.mxu0 %v4186
  %5060 = vmatpush1.msra.mxu0 %v4185
  %5061 = vmatprep.subr.mxu0 %v4190
  %5062 = vmatpush1.msra.mxu0 %v4189
  %5063 = vmatprep.subr.mxu0 %v4194
  %5064 = vmatpush1.msra.mxu0 %v4193
  %5065 = vmatprep.subr.mxu0 %v4198
  %5066 = vmatpush1.msra.mxu0 %v4197
  %5067 = vmatprep.subr.mxu0 %v4202
  %5068 = vmatpush1.msra.mxu0 %v4201
  %5069 = vmatprep.subr.mxu0 %v4206
  %5070 = vmatpush1.msra.mxu0 %v4205
  %5071 = vmatprep.subr.mxu0 %v4210
  %5072 = vmatpush1.msra.mxu0 %v4209
  %5073 = vmatprep.subr.mxu0 %v4214
  %5074 = vmatpush1.msra.mxu0 %v4213
  %5075 = vmatprep.subr.mxu0 %v4218
  %5076 = vmatpush1.msra.mxu0 %v4217
  %5077 = vmatprep.subr.mxu0 0.0
  %5078 = vmatpush1.msra.mxu0 0.0
  %5079 = vmatprep.subr.mxu0 0.0
  %5080 = vmatpush1.msra.mxu0 0.0
  %5081 = vmatprep.subr.mxu0 0.0
  %5082 = vmatpush1.msra.mxu0 0.0
  %5083 = vmatprep.subr.mxu0 0.0
  %5084 = vmatpush1.msra.mxu0 0.0
  %5085 = vmatprep.subr.mxu0 0.0
  %5086 = vmatpush1.msra.mxu0 0.0
  %5087 = vmatprep.subr.mxu0 0.0
  %5088 = vmatpush1.msra.mxu0 0.0
  %5089 = vmatprep.subr.mxu0 0.0
  %5090 = vmatpush1.msra.mxu0 0.0
  %5091 = vmatprep.subr.mxu0 0.0
  %5092 = vmatpush1.msra.mxu0 0.0
  %5093 = vmatprep.subr.mxu0 0.0
  %5094 = vmatpush1.msra.mxu0 0.0
  %5095 = vmatprep.subr.mxu0 0.0
  %5096 = vmatpush1.msra.mxu0 0.0
  %5097 = vmatprep.subr.mxu0 0.0
  %5098 = vmatpush1.msra.mxu0 0.0
  %5099 = vmatprep.subr.mxu0 0.0
  %5100 = vmatpush1.msra.mxu0 0.0
  %5101 = vmatprep.subr.mxu0 0.0
  %5102 = vmatpush1.msra.mxu0 0.0
  %5103 = vmatprep.subr.mxu0 0.0
  %5104 = vmatpush1.msra.mxu0 0.0
  %5105 = vmatprep.subr.mxu0 0.0
  %5106 = vmatpush1.msra.mxu0 0.0
  %5107 = vmatprep.subr.mxu0 0.0
  %5108 = vmatpush1.msra.mxu0 0.0
  %5109 = vmatprep.mubr.f32.mxu0 0.0
  %5110 = vmatmul.mubr.f32.gmra.mrb[0].mxu0 %v5044
  %v5111 = vpop.f32.mrb[0].mxu0
  %v5112 = vadd.f32 0.0, %v5111
  %v5113 = vpop.f32.mrb[0].mxu0
  %v5114 = vadd.f32 0.0, %v5113
  %5115 = vdwg.mxu0
  %5116 = vmatprep.subr.mxu0 %v4160
  %5117 = vmatpush1.msra.mxu0 %v4159
  %5118 = vmatprep.subr.mxu0 %v4164
  %5119 = vmatpush1.msra.mxu0 %v4163
  %5120 = vmatprep.subr.mxu0 %v4168
  %5121 = vmatpush1.msra.mxu0 %v4167
  %5122 = vmatprep.subr.mxu0 %v4172
  %5123 = vmatpush1.msra.mxu0 %v4171
  %5124 = vmatprep.subr.mxu0 %v4176
  %5125 = vmatpush1.msra.mxu0 %v4175
  %5126 = vmatprep.subr.mxu0 %v4180
  %5127 = vmatpush1.msra.mxu0 %v4179
  %5128 = vmatprep.subr.mxu0 %v4184
  %5129 = vmatpush1.msra.mxu0 %v4183
  %5130 = vmatprep.subr.mxu0 %v4188
  %5131 = vmatpush1.msra.mxu0 %v4187
  %5132 = vmatprep.subr.mxu0 %v4192
  %5133 = vmatpush1.msra.mxu0 %v4191
  %5134 = vmatprep.subr.mxu0 %v4196
  %5135 = vmatpush1.msra.mxu0 %v4195
  %5136 = vmatprep.subr.mxu0 %v4200
  %5137 = vmatpush1.msra.mxu0 %v4199
  %5138 = vmatprep.subr.mxu0 %v4204
  %5139 = vmatpush1.msra.mxu0 %v4203
  %5140 = vmatprep.subr.mxu0 %v4208
  %5141 = vmatpush1.msra.mxu0 %v4207
  %5142 = vmatprep.subr.mxu0 %v4212
  %5143 = vmatpush1.msra.mxu0 %v4211
  %5144 = vmatprep.subr.mxu0 %v4216
  %5145 = vmatpush1.msra.mxu0 %v4215
  %5146 = vmatprep.subr.mxu0 %v4220
  %5147 = vmatpush1.msra.mxu0 %v4219
  %5148 = vmatprep.subr.mxu0 0.0
  %5149 = vmatpush1.msra.mxu0 0.0
  %5150 = vmatprep.subr.mxu0 0.0
  %5151 = vmatpush1.msra.mxu0 0.0
  %5152 = vmatprep.subr.mxu0 0.0
  %5153 = vmatpush1.msra.mxu0 0.0
  %5154 = vmatprep.subr.mxu0 0.0
  %5155 = vmatpush1.msra.mxu0 0.0
  %5156 = vmatprep.subr.mxu0 0.0
  %5157 = vmatpush1.msra.mxu0 0.0
  %5158 = vmatprep.subr.mxu0 0.0
  %5159 = vmatpush1.msra.mxu0 0.0
  %5160 = vmatprep.subr.mxu0 0.0
  %5161 = vmatpush1.msra.mxu0 0.0
  %5162 = vmatprep.subr.mxu0 0.0
  %5163 = vmatpush1.msra.mxu0 0.0
  %5164 = vmatprep.subr.mxu0 0.0
  %5165 = vmatpush1.msra.mxu0 0.0
  %5166 = vmatprep.subr.mxu0 0.0
  %5167 = vmatpush1.msra.mxu0 0.0
  %5168 = vmatprep.subr.mxu0 0.0
  %5169 = vmatpush1.msra.mxu0 0.0
  %5170 = vmatprep.subr.mxu0 0.0
  %5171 = vmatpush1.msra.mxu0 0.0
  %5172 = vmatprep.subr.mxu0 0.0
  %5173 = vmatpush1.msra.mxu0 0.0
  %5174 = vmatprep.subr.mxu0 0.0
  %5175 = vmatpush1.msra.mxu0 0.0
  %5176 = vmatprep.subr.mxu0 0.0
  %5177 = vmatpush1.msra.mxu0 0.0
  %5178 = vmatprep.subr.mxu0 0.0
  %5179 = vmatpush1.msra.mxu0 0.0
  %5180 = vmatprep.mubr.f32.mxu0 0.0
  %5181 = vmatmul.mubr.f32.gmra.mrb[0].mxu0 %v5044
  %v5182 = vpop.f32.mrb[0].mxu0
  %v5183 = vadd.f32 0.0, %v5182
  %v5184 = vpop.f32.mrb[0].mxu0
  %v5185 = vadd.f32 0.0, %v5184
  %5186 = vdwg.mxu0
  %v5187 = vadd.f32 %v4314, %v5112
  %v5188 = vadd.f32 %v4316, %v5114
  %v5189 = vadd.f32 %v4385, %v5183
  %v5190 = vadd.f32 %v4387, %v5185
  %v5191 = vmul.f32 %v5187, 0.5
  %v5192 = vmul.f32 %v5188, 0.5
  %v5193 = vmul.f32 %v5189, 0.5
  %v5194 = vtanh.pop %v5191
  %v5195 = vtanh.pop %v5192
  %v5196 = vtanh.pop %v5193
  %v5197 = vmul.f32 %v5194, 0.5
  %v5198 = vmul.f32 %v5195, 0.5
  %v5199 = vmul.f32 %v5196, 0.5
  %v5200 = vadd.f32 %v5197, 0.5
  %v5201 = vadd.f32 %v5198, 0.5
  %v5202 = vadd.f32 %v5199, 0.5
  %v5203 = vtanh.pop %v5190
  %v5204 = vmul.f32 %v5201, %v5042
  %v5205 = vmul.f32 %v5200, %v5203
  %v5206 = vadd.f32 %v5204, %v5205
  %v5207 = vtanh.pop %v5206
  %v5208 = vmul.f32 %v5202, %v5207
  %5209 = vmatprep.subr.mxu0 %v4158
  %5210 = vmatpush1.msra.mxu0 %v4157
  %5211 = vmatprep.subr.mxu0 %v4162
  %5212 = vmatpush1.msra.mxu0 %v4161
  %5213 = vmatprep.subr.mxu0 %v4166
  %5214 = vmatpush1.msra.mxu0 %v4165
  %5215 = vmatprep.subr.mxu0 %v4170
  %5216 = vmatpush1.msra.mxu0 %v4169
  %5217 = vmatprep.subr.mxu0 %v4174
  %5218 = vmatpush1.msra.mxu0 %v4173
  %5219 = vmatprep.subr.mxu0 %v4178
  %5220 = vmatpush1.msra.mxu0 %v4177
  %5221 = vmatprep.subr.mxu0 %v4182
  %5222 = vmatpush1.msra.mxu0 %v4181
  %5223 = vmatprep.subr.mxu0 %v4186
  %5224 = vmatpush1.msra.mxu0 %v4185
  %5225 = vmatprep.subr.mxu0 %v4190
  %5226 = vmatpush1.msra.mxu0 %v4189
  %5227 = vmatprep.subr.mxu0 %v4194
  %5228 = vmatpush1.msra.mxu0 %v4193
  %5229 = vmatprep.subr.mxu0 %v4198
  %5230 = vmatpush1.msra.mxu0 %v4197
  %5231 = vmatprep.subr.mxu0 %v4202
  %5232 = vmatpush1.msra.mxu0 %v4201
  %5233 = vmatprep.subr.mxu0 %v4206
  %5234 = vmatpush1.msra.mxu0 %v4205
  %5235 = vmatprep.subr.mxu0 %v4210
  %5236 = vmatpush1.msra.mxu0 %v4209
  %5237 = vmatprep.subr.mxu0 %v4214
  %5238 = vmatpush1.msra.mxu0 %v4213
  %5239 = vmatprep.subr.mxu0 %v4218
  %5240 = vmatpush1.msra.mxu0 %v4217
  %5241 = vmatprep.subr.mxu0 0.0
  %5242 = vmatpush1.msra.mxu0 0.0
  %5243 = vmatprep.subr.mxu0 0.0
  %5244 = vmatpush1.msra.mxu0 0.0
  %5245 = vmatprep.subr.mxu0 0.0
  %5246 = vmatpush1.msra.mxu0 0.0
  %5247 = vmatprep.subr.mxu0 0.0
  %5248 = vmatpush1.msra.mxu0 0.0
  %5249 = vmatprep.subr.mxu0 0.0
  %5250 = vmatpush1.msra.mxu0 0.0
  %5251 = vmatprep.subr.mxu0 0.0
  %5252 = vmatpush1.msra.mxu0 0.0
  %5253 = vmatprep.subr.mxu0 0.0
  %5254 = vmatpush1.msra.mxu0 0.0
  %5255 = vmatprep.subr.mxu0 0.0
  %5256 = vmatpush1.msra.mxu0 0.0
  %5257 = vmatprep.subr.mxu0 0.0
  %5258 = vmatpush1.msra.mxu0 0.0
  %5259 = vmatprep.subr.mxu0 0.0
  %5260 = vmatpush1.msra.mxu0 0.0
  %5261 = vmatprep.subr.mxu0 0.0
  %5262 = vmatpush1.msra.mxu0 0.0
  %5263 = vmatprep.subr.mxu0 0.0
  %5264 = vmatpush1.msra.mxu0 0.0
  %5265 = vmatprep.subr.mxu0 0.0
  %5266 = vmatpush1.msra.mxu0 0.0
  %5267 = vmatprep.subr.mxu0 0.0
  %5268 = vmatpush1.msra.mxu0 0.0
  %5269 = vmatprep.subr.mxu0 0.0
  %5270 = vmatpush1.msra.mxu0 0.0
  %5271 = vmatprep.subr.mxu0 0.0
  %5272 = vmatpush1.msra.mxu0 0.0
  %5273 = vmatprep.mubr.f32.mxu0 0.0
  %5274 = vmatmul.mubr.f32.gmra.mrb[0].mxu0 %v5208
  %v5275 = vpop.f32.mrb[0].mxu0
  %v5276 = vadd.f32 0.0, %v5275
  %v5277 = vpop.f32.mrb[0].mxu0
  %v5278 = vadd.f32 0.0, %v5277
  %5279 = vdwg.mxu0
  %5280 = vmatprep.subr.mxu0 %v4160
  %5281 = vmatpush1.msra.mxu0 %v4159
  %5282 = vmatprep.subr.mxu0 %v4164
  %5283 = vmatpush1.msra.mxu0 %v4163
  %5284 = vmatprep.subr.mxu0 %v4168
  %5285 = vmatpush1.msra.mxu0 %v4167
  %5286 = vmatprep.subr.mxu0 %v4172
  %5287 = vmatpush1.msra.mxu0 %v4171
  %5288 = vmatprep.subr.mxu0 %v4176
  %5289 = vmatpush1.msra.mxu0 %v4175
  %5290 = vmatprep.subr.mxu0 %v4180
  %5291 = vmatpush1.msra.mxu0 %v4179
  %5292 = vmatprep.subr.mxu0 %v4184
  %5293 = vmatpush1.msra.mxu0 %v4183
  %5294 = vmatprep.subr.mxu0 %v4188
  %5295 = vmatpush1.msra.mxu0 %v4187
  %5296 = vmatprep.subr.mxu0 %v4192
  %5297 = vmatpush1.msra.mxu0 %v4191
  %5298 = vmatprep.subr.mxu0 %v4196
  %5299 = vmatpush1.msra.mxu0 %v4195
  %5300 = vmatprep.subr.mxu0 %v4200
  %5301 = vmatpush1.msra.mxu0 %v4199
  %5302 = vmatprep.subr.mxu0 %v4204
  %5303 = vmatpush1.msra.mxu0 %v4203
  %5304 = vmatprep.subr.mxu0 %v4208
  %5305 = vmatpush1.msra.mxu0 %v4207
  %5306 = vmatprep.subr.mxu0 %v4212
  %5307 = vmatpush1.msra.mxu0 %v4211
  %5308 = vmatprep.subr.mxu0 %v4216
  %5309 = vmatpush1.msra.mxu0 %v4215
  %5310 = vmatprep.subr.mxu0 %v4220
  %5311 = vmatpush1.msra.mxu0 %v4219
  %5312 = vmatprep.subr.mxu0 0.0
  %5313 = vmatpush1.msra.mxu0 0.0
  %5314 = vmatprep.subr.mxu0 0.0
  %5315 = vmatpush1.msra.mxu0 0.0
  %5316 = vmatprep.subr.mxu0 0.0
  %5317 = vmatpush1.msra.mxu0 0.0
  %5318 = vmatprep.subr.mxu0 0.0
  %5319 = vmatpush1.msra.mxu0 0.0
  %5320 = vmatprep.subr.mxu0 0.0
  %5321 = vmatpush1.msra.mxu0 0.0
  %5322 = vmatprep.subr.mxu0 0.0
  %5323 = vmatpush1.msra.mxu0 0.0
  %5324 = vmatprep.subr.mxu0 0.0
  %5325 = vmatpush1.msra.mxu0 0.0
  %5326 = vmatprep.subr.mxu0 0.0
  %5327 = vmatpush1.msra.mxu0 0.0
  %5328 = vmatprep.subr.mxu0 0.0
  %5329 = vmatpush1.msra.mxu0 0.0
  %5330 = vmatprep.subr.mxu0 0.0
  %5331 = vmatpush1.msra.mxu0 0.0
  %5332 = vmatprep.subr.mxu0 0.0
  %5333 = vmatpush1.msra.mxu0 0.0
  %5334 = vmatprep.subr.mxu0 0.0
  %5335 = vmatpush1.msra.mxu0 0.0
  %5336 = vmatprep.subr.mxu0 0.0
  %5337 = vmatpush1.msra.mxu0 0.0
  %5338 = vmatprep.subr.mxu0 0.0
  %5339 = vmatpush1.msra.mxu0 0.0
  %5340 = vmatprep.subr.mxu0 0.0
  %5341 = vmatpush1.msra.mxu0 0.0
  %5342 = vmatprep.subr.mxu0 0.0
  %5343 = vmatpush1.msra.mxu0 0.0
  %5344 = vmatprep.mubr.f32.mxu0 0.0
  %5345 = vmatmul.mubr.f32.gmra.mrb[0].mxu0 %v5208
  %v5346 = vpop.f32.mrb[0].mxu0
  %v5347 = vadd.f32 0.0, %v5346
  %v5348 = vpop.f32.mrb[0].mxu0
  %v5349 = vadd.f32 0.0, %v5348
  %5350 = vdwg.mxu0
  %v5351 = vadd.f32 %v4314, %v5276
  %v5352 = vadd.f32 %v4316, %v5278
  %v5353 = vadd.f32 %v4385, %v5347
  %v5354 = vadd.f32 %v4387, %v5349
  %v5355 = vmul.f32 %v5351, 0.5
  %v5356 = vmul.f32 %v5352, 0.5
  %v5357 = vmul.f32 %v5353, 0.5
  %v5358 = vtanh.pop %v5355
  %v5359 = vtanh.pop %v5356
  %v5360 = vtanh.pop %v5357
  %v5361 = vmul.f32 %v5358, 0.5
  %v5362 = vmul.f32 %v5359, 0.5
  %v5363 = vmul.f32 %v5360, 0.5
  %v5364 = vadd.f32 %v5361, 0.5
  %v5365 = vadd.f32 %v5362, 0.5
  %v5366 = vadd.f32 %v5363, 0.5
  %v5367 = vtanh.pop %v5354
  %v5368 = vmul.f32 %v5365, %v5206
  %v5369 = vmul.f32 %v5364, %v5367
  %v5370 = vadd.f32 %v5368, %v5369
  %v5371 = vtanh.pop %v5370
  %v5372 = vmul.f32 %v5366, %v5371
  %5373 = vmatprep.subr.mxu0 %v4158
  %5374 = vmatpush1.msra.mxu0 %v4157
  %5375 = vmatprep.subr.mxu0 %v4162
  %5376 = vmatpush1.msra.mxu0 %v4161
  %5377 = vmatprep.subr.mxu0 %v4166
  %5378 = vmatpush1.msra.mxu0 %v4165
  %5379 = vmatprep.subr.mxu0 %v4170
  %5380 = vmatpush1.msra.mxu0 %v4169
  %5381 = vmatprep.subr.mxu0 %v4174
  %5382 = vmatpush1.msra.mxu0 %v4173
  %5383 = vmatprep.subr.mxu0 %v4178
  %5384 = vmatpush1.msra.mxu0 %v4177
  %5385 = vmatprep.subr.mxu0 %v4182
  %5386 = vmatpush1.msra.mxu0 %v4181
  %5387 = vmatprep.subr.mxu0 %v4186
  %5388 = vmatpush1.msra.mxu0 %v4185
  %5389 = vmatprep.subr.mxu0 %v4190
  %5390 = vmatpush1.msra.mxu0 %v4189
  %5391 = vmatprep.subr.mxu0 %v4194
  %5392 = vmatpush1.msra.mxu0 %v4193
  %5393 = vmatprep.subr.mxu0 %v4198
  %5394 = vmatpush1.msra.mxu0 %v4197
  %5395 = vmatprep.subr.mxu0 %v4202
  %5396 = vmatpush1.msra.mxu0 %v4201
  %5397 = vmatprep.subr.mxu0 %v4206
  %5398 = vmatpush1.msra.mxu0 %v4205
  %5399 = vmatprep.subr.mxu0 %v4210
  %5400 = vmatpush1.msra.mxu0 %v4209
  %5401 = vmatprep.subr.mxu0 %v4214
  %5402 = vmatpush1.msra.mxu0 %v4213
  %5403 = vmatprep.subr.mxu0 %v4218
  %5404 = vmatpush1.msra.mxu0 %v4217
  %5405 = vmatprep.subr.mxu0 0.0
  %5406 = vmatpush1.msra.mxu0 0.0
  %5407 = vmatprep.subr.mxu0 0.0
  %5408 = vmatpush1.msra.mxu0 0.0
  %5409 = vmatprep.subr.mxu0 0.0
  %5410 = vmatpush1.msra.mxu0 0.0
  %5411 = vmatprep.subr.mxu0 0.0
  %5412 = vmatpush1.msra.mxu0 0.0
  %5413 = vmatprep.subr.mxu0 0.0
  %5414 = vmatpush1.msra.mxu0 0.0
  %5415 = vmatprep.subr.mxu0 0.0
  %5416 = vmatpush1.msra.mxu0 0.0
  %5417 = vmatprep.subr.mxu0 0.0
  %5418 = vmatpush1.msra.mxu0 0.0
  %5419 = vmatprep.subr.mxu0 0.0
  %5420 = vmatpush1.msra.mxu0 0.0
  %5421 = vmatprep.subr.mxu0 0.0
  %5422 = vmatpush1.msra.mxu0 0.0
  %5423 = vmatprep.subr.mxu0 0.0
  %5424 = vmatpush1.msra.mxu0 0.0
  %5425 = vmatprep.subr.mxu0 0.0
  %5426 = vmatpush1.msra.mxu0 0.0
  %5427 = vmatprep.subr.mxu0 0.0
  %5428 = vmatpush1.msra.mxu0 0.0
  %5429 = vmatprep.subr.mxu0 0.0
  %5430 = vmatpush1.msra.mxu0 0.0
  %5431 = vmatprep.subr.mxu0 0.0
  %5432 = vmatpush1.msra.mxu0 0.0
  %5433 = vmatprep.subr.mxu0 0.0
  %5434 = vmatpush1.msra.mxu0 0.0
  %5435 = vmatprep.subr.mxu0 0.0
  %5436 = vmatpush1.msra.mxu0 0.0
  %5437 = vmatprep.mubr.f32.mxu0 0.0
  %5438 = vmatmul.mubr.f32.gmra.mrb[0].mxu0 %v5372
  %v5439 = vpop.f32.mrb[0].mxu0
  %v5440 = vadd.f32 0.0, %v5439
  %v5441 = vpop.f32.mrb[0].mxu0
  %v5442 = vadd.f32 0.0, %v5441
  %5443 = vdwg.mxu0
  %5444 = vmatprep.subr.mxu0 %v4160
  %5445 = vmatpush1.msra.mxu0 %v4159
  %5446 = vmatprep.subr.mxu0 %v4164
  %5447 = vmatpush1.msra.mxu0 %v4163
  %5448 = vmatprep.subr.mxu0 %v4168
  %5449 = vmatpush1.msra.mxu0 %v4167
  %5450 = vmatprep.subr.mxu0 %v4172
  %5451 = vmatpush1.msra.mxu0 %v4171
  %5452 = vmatprep.subr.mxu0 %v4176
  %5453 = vmatpush1.msra.mxu0 %v4175
  %5454 = vmatprep.subr.mxu0 %v4180
  %5455 = vmatpush1.msra.mxu0 %v4179
  %5456 = vmatprep.subr.mxu0 %v4184
  %5457 = vmatpush1.msra.mxu0 %v4183
  %5458 = vmatprep.subr.mxu0 %v4188
  %5459 = vmatpush1.msra.mxu0 %v4187
  %5460 = vmatprep.subr.mxu0 %v4192
  %5461 = vmatpush1.msra.mxu0 %v4191
  %5462 = vmatprep.subr.mxu0 %v4196
  %5463 = vmatpush1.msra.mxu0 %v4195
  %5464 = vmatprep.subr.mxu0 %v4200
  %5465 = vmatpush1.msra.mxu0 %v4199
  %5466 = vmatprep.subr.mxu0 %v4204
  %5467 = vmatpush1.msra.mxu0 %v4203
  %5468 = vmatprep.subr.mxu0 %v4208
  %5469 = vmatpush1.msra.mxu0 %v4207
  %5470 = vmatprep.subr.mxu0 %v4212
  %5471 = vmatpush1.msra.mxu0 %v4211
  %5472 = vmatprep.subr.mxu0 %v4216
  %5473 = vmatpush1.msra.mxu0 %v4215
  %5474 = vmatprep.subr.mxu0 %v4220
  %5475 = vmatpush1.msra.mxu0 %v4219
  %5476 = vmatprep.subr.mxu0 0.0
  %5477 = vmatpush1.msra.mxu0 0.0
  %5478 = vmatprep.subr.mxu0 0.0
  %5479 = vmatpush1.msra.mxu0 0.0
  %5480 = vmatprep.subr.mxu0 0.0
  %5481 = vmatpush1.msra.mxu0 0.0
  %5482 = vmatprep.subr.mxu0 0.0
  %5483 = vmatpush1.msra.mxu0 0.0
  %5484 = vmatprep.subr.mxu0 0.0
  %5485 = vmatpush1.msra.mxu0 0.0
  %5486 = vmatprep.subr.mxu0 0.0
  %5487 = vmatpush1.msra.mxu0 0.0
  %5488 = vmatprep.subr.mxu0 0.0
  %5489 = vmatpush1.msra.mxu0 0.0
  %5490 = vmatprep.subr.mxu0 0.0
  %5491 = vmatpush1.msra.mxu0 0.0
  %5492 = vmatprep.subr.mxu0 0.0
  %5493 = vmatpush1.msra.mxu0 0.0
  %5494 = vmatprep.subr.mxu0 0.0
  %5495 = vmatpush1.msra.mxu0 0.0
  %5496 = vmatprep.subr.mxu0 0.0
  %5497 = vmatpush1.msra.mxu0 0.0
  %5498 = vmatprep.subr.mxu0 0.0
  %5499 = vmatpush1.msra.mxu0 0.0
  %5500 = vmatprep.subr.mxu0 0.0
  %5501 = vmatpush1.msra.mxu0 0.0
  %5502 = vmatprep.subr.mxu0 0.0
  %5503 = vmatpush1.msra.mxu0 0.0
  %5504 = vmatprep.subr.mxu0 0.0
  %5505 = vmatpush1.msra.mxu0 0.0
  %5506 = vmatprep.subr.mxu0 0.0
  %5507 = vmatpush1.msra.mxu0 0.0
  %5508 = vmatprep.mubr.f32.mxu0 0.0
  %5509 = vmatmul.mubr.f32.gmra.mrb[0].mxu0 %v5372
  %v5510 = vpop.f32.mrb[0].mxu0
  %v5511 = vadd.f32 0.0, %v5510
  %v5512 = vpop.f32.mrb[0].mxu0
  %v5513 = vadd.f32 0.0, %v5512
  %5514 = vdwg.mxu0
  %v5515 = vadd.f32 %v4314, %v5440
  %v5516 = vadd.f32 %v4316, %v5442
  %v5517 = vadd.f32 %v4385, %v5511
  %v5518 = vadd.f32 %v4387, %v5513
  %v5519 = vmul.f32 %v5515, 0.5
  %v5520 = vmul.f32 %v5516, 0.5
  %v5521 = vmul.f32 %v5517, 0.5
  %v5522 = vtanh.pop %v5519
  %v5523 = vtanh.pop %v5520
  %v5524 = vtanh.pop %v5521
  %v5525 = vmul.f32 %v5522, 0.5
  %v5526 = vmul.f32 %v5523, 0.5
  %v5527 = vmul.f32 %v5524, 0.5
  %v5528 = vadd.f32 %v5525, 0.5
  %v5529 = vadd.f32 %v5526, 0.5
  %v5530 = vadd.f32 %v5527, 0.5
  %v5531 = vtanh.pop %v5518
  %v5532 = vmul.f32 %v5529, %v5370
  %v5533 = vmul.f32 %v5528, %v5531
  %v5534 = vadd.f32 %v5532, %v5533
  %v5535 = vtanh.pop %v5534
  %v5536 = vmul.f32 %v5530, %v5535
  %5537 = vmatprep.subr.mxu0 %v4158
  %5538 = vmatpush1.msra.mxu0 %v4157
  %5539 = vmatprep.subr.mxu0 %v4162
  %5540 = vmatpush1.msra.mxu0 %v4161
  %5541 = vmatprep.subr.mxu0 %v4166
  %5542 = vmatpush1.msra.mxu0 %v4165
  %5543 = vmatprep.subr.mxu0 %v4170
  %5544 = vmatpush1.msra.mxu0 %v4169
  %5545 = vmatprep.subr.mxu0 %v4174
  %5546 = vmatpush1.msra.mxu0 %v4173
  %5547 = vmatprep.subr.mxu0 %v4178
  %5548 = vmatpush1.msra.mxu0 %v4177
  %5549 = vmatprep.subr.mxu0 %v4182
  %5550 = vmatpush1.msra.mxu0 %v4181
  %5551 = vmatprep.subr.mxu0 %v4186
  %5552 = vmatpush1.msra.mxu0 %v4185
  %5553 = vmatprep.subr.mxu0 %v4190
  %5554 = vmatpush1.msra.mxu0 %v4189
  %5555 = vmatprep.subr.mxu0 %v4194
  %5556 = vmatpush1.msra.mxu0 %v4193
  %5557 = vmatprep.subr.mxu0 %v4198
  %5558 = vmatpush1.msra.mxu0 %v4197
  %5559 = vmatprep.subr.mxu0 %v4202
  %5560 = vmatpush1.msra.mxu0 %v4201
  %5561 = vmatprep.subr.mxu0 %v4206
  %5562 = vmatpush1.msra.mxu0 %v4205
  %5563 = vmatprep.subr.mxu0 %v4210
  %5564 = vmatpush1.msra.mxu0 %v4209
  %5565 = vmatprep.subr.mxu0 %v4214
  %5566 = vmatpush1.msra.mxu0 %v4213
  %5567 = vmatprep.subr.mxu0 %v4218
  %5568 = vmatpush1.msra.mxu0 %v4217
  %5569 = vmatprep.subr.mxu0 0.0
  %5570 = vmatpush1.msra.mxu0 0.0
  %5571 = vmatprep.subr.mxu0 0.0
  %5572 = vmatpush1.msra.mxu0 0.0
  %5573 = vmatprep.subr.mxu0 0.0
  %5574 = vmatpush1.msra.mxu0 0.0
  %5575 = vmatprep.subr.mxu0 0.0
  %5576 = vmatpush1.msra.mxu0 0.0
  %5577 = vmatprep.subr.mxu0 0.0
  %5578 = vmatpush1.msra.mxu0 0.0
  %5579 = vmatprep.subr.mxu0 0.0
  %5580 = vmatpush1.msra.mxu0 0.0
  %5581 = vmatprep.subr.mxu0 0.0
  %5582 = vmatpush1.msra.mxu0 0.0
  %5583 = vmatprep.subr.mxu0 0.0
  %5584 = vmatpush1.msra.mxu0 0.0
  %5585 = vmatprep.subr.mxu0 0.0
  %5586 = vmatpush1.msra.mxu0 0.0
  %5587 = vmatprep.subr.mxu0 0.0
  %5588 = vmatpush1.msra.mxu0 0.0
  %5589 = vmatprep.subr.mxu0 0.0
  %5590 = vmatpush1.msra.mxu0 0.0
  %5591 = vmatprep.subr.mxu0 0.0
  %5592 = vmatpush1.msra.mxu0 0.0
  %5593 = vmatprep.subr.mxu0 0.0
  %5594 = vmatpush1.msra.mxu0 0.0
  %5595 = vmatprep.subr.mxu0 0.0
  %5596 = vmatpush1.msra.mxu0 0.0
  %5597 = vmatprep.subr.mxu0 0.0
  %5598 = vmatpush1.msra.mxu0 0.0
  %5599 = vmatprep.subr.mxu0 0.0
  %5600 = vmatpush1.msra.mxu0 0.0
  %5601 = vmatprep.mubr.f32.mxu0 0.0
  %5602 = vmatmul.mubr.f32.gmra.mrb[0].mxu0 %v5536
  %v5603 = vpop.f32.mrb[0].mxu0
  %v5604 = vadd.f32 0.0, %v5603
  %v5605 = vpop.f32.mrb[0].mxu0
  %v5606 = vadd.f32 0.0, %v5605
  %5607 = vdwg.mxu0
  %5608 = vmatprep.subr.mxu0 %v4160
  %5609 = vmatpush1.msra.mxu0 %v4159
  %5610 = vmatprep.subr.mxu0 %v4164
  %5611 = vmatpush1.msra.mxu0 %v4163
  %5612 = vmatprep.subr.mxu0 %v4168
  %5613 = vmatpush1.msra.mxu0 %v4167
  %5614 = vmatprep.subr.mxu0 %v4172
  %5615 = vmatpush1.msra.mxu0 %v4171
  %5616 = vmatprep.subr.mxu0 %v4176
  %5617 = vmatpush1.msra.mxu0 %v4175
  %5618 = vmatprep.subr.mxu0 %v4180
  %5619 = vmatpush1.msra.mxu0 %v4179
  %5620 = vmatprep.subr.mxu0 %v4184
  %5621 = vmatpush1.msra.mxu0 %v4183
  %5622 = vmatprep.subr.mxu0 %v4188
  %5623 = vmatpush1.msra.mxu0 %v4187
  %5624 = vmatprep.subr.mxu0 %v4192
  %5625 = vmatpush1.msra.mxu0 %v4191
  %5626 = vmatprep.subr.mxu0 %v4196
  %5627 = vmatpush1.msra.mxu0 %v4195
  %5628 = vmatprep.subr.mxu0 %v4200
  %5629 = vmatpush1.msra.mxu0 %v4199
  %5630 = vmatprep.subr.mxu0 %v4204
  %5631 = vmatpush1.msra.mxu0 %v4203
  %5632 = vmatprep.subr.mxu0 %v4208
  %5633 = vmatpush1.msra.mxu0 %v4207
  %5634 = vmatprep.subr.mxu0 %v4212
  %5635 = vmatpush1.msra.mxu0 %v4211
  %5636 = vmatprep.subr.mxu0 %v4216
  %5637 = vmatpush1.msra.mxu0 %v4215
  %5638 = vmatprep.subr.mxu0 %v4220
  %5639 = vmatpush1.msra.mxu0 %v4219
  %5640 = vmatprep.subr.mxu0 0.0
  %5641 = vmatpush1.msra.mxu0 0.0
  %5642 = vmatprep.subr.mxu0 0.0
  %5643 = vmatpush1.msra.mxu0 0.0
  %5644 = vmatprep.subr.mxu0 0.0
  %5645 = vmatpush1.msra.mxu0 0.0
  %5646 = vmatprep.subr.mxu0 0.0
  %5647 = vmatpush1.msra.mxu0 0.0
  %5648 = vmatprep.subr.mxu0 0.0
  %5649 = vmatpush1.msra.mxu0 0.0
  %5650 = vmatprep.subr.mxu0 0.0
  %5651 = vmatpush1.msra.mxu0 0.0
  %5652 = vmatprep.subr.mxu0 0.0
  %5653 = vmatpush1.msra.mxu0 0.0
  %5654 = vmatprep.subr.mxu0 0.0
  %5655 = vmatpush1.msra.mxu0 0.0
  %5656 = vmatprep.subr.mxu0 0.0
  %5657 = vmatpush1.msra.mxu0 0.0
  %5658 = vmatprep.subr.mxu0 0.0
  %5659 = vmatpush1.msra.mxu0 0.0
  %5660 = vmatprep.subr.mxu0 0.0
  %5661 = vmatpush1.msra.mxu0 0.0
  %5662 = vmatprep.subr.mxu0 0.0
  %5663 = vmatpush1.msra.mxu0 0.0
  %5664 = vmatprep.subr.mxu0 0.0
  %5665 = vmatpush1.msra.mxu0 0.0
  %5666 = vmatprep.subr.mxu0 0.0
  %5667 = vmatpush1.msra.mxu0 0.0
  %5668 = vmatprep.subr.mxu0 0.0
  %5669 = vmatpush1.msra.mxu0 0.0
  %5670 = vmatprep.subr.mxu0 0.0
  %5671 = vmatpush1.msra.mxu0 0.0
  %5672 = vmatprep.mubr.f32.mxu0 0.0
  %5673 = vmatmul.mubr.f32.gmra.mrb[0].mxu0 %v5536
  %v5674 = vpop.f32.mrb[0].mxu0
  %v5675 = vadd.f32 0.0, %v5674
  %v5676 = vpop.f32.mrb[0].mxu0
  %v5677 = vadd.f32 0.0, %v5676
  %5678 = vdwg.mxu0
  %v5679 = vadd.f32 %v4314, %v5604
  %v5680 = vadd.f32 %v4316, %v5606
  %v5681 = vadd.f32 %v4385, %v5675
  %v5682 = vadd.f32 %v4387, %v5677
  %v5683 = vmul.f32 %v5679, 0.5
  %v5684 = vmul.f32 %v5680, 0.5
  %v5685 = vmul.f32 %v5681, 0.5
  %v5686 = vtanh.pop %v5683
  %v5687 = vtanh.pop %v5684
  %v5688 = vtanh.pop %v5685
  %v5689 = vmul.f32 %v5686, 0.5
  %v5690 = vmul.f32 %v5687, 0.5
  %v5691 = vmul.f32 %v5688, 0.5
  %v5692 = vadd.f32 %v5689, 0.5
  %v5693 = vadd.f32 %v5690, 0.5
  %v5694 = vadd.f32 %v5691, 0.5
  %v5695 = vtanh.pop %v5682
  %v5696 = vmul.f32 %v5693, %v5534
  %v5697 = vmul.f32 %v5692, %v5695
  %v5698 = vadd.f32 %v5696, %v5697
  %v5699 = vtanh.pop %v5698
  %v5700 = vmul.f32 %v5694, %v5699
  %v5702 = vrot.slane %v4716, 7
  %v5705 = vrot.slane %v4880, 6
  %v5708 = vrot.slane %v5044, 5
  %v5711 = vrot.slane %v5208, 4
  %v5714 = vrot.slane %v5372, 3
  %v5717 = vrot.slane %v5536, 2
  %v5720 = vrot.slane %v5700, 1
  %v5722 = vsel %vm2342, %v4552, %v5702
  %v5723 = vsel %vm2344, %v5722, %v5705
  %v5724 = vsel %vm2346, %v5723, %v5708
  %v5725 = vsel %vm2348, %v5724, %v5711
  %v5726 = vsel %vm2350, %v5725, %v5714
  %v5727 = vsel %vm2352, %v5726, %v5717
  %v5728 = vsel %vm2354, %v5727, %v5720
  %v5729 = vld [vmem:[#allocation3] sm:$0xff]
  %v5730 = vld [vmem:[#allocation3 + $0x8] sm:$0xff]
  %v5731 = vld [vmem:[#allocation3 + $0x10] sm:$0xff]
  %v5732 = vld [vmem:[#allocation3 + $0x18] sm:$0xff]
  %v5733 = vld [vmem:[#allocation3 + $0x20] sm:$0xff]
  %v5734 = vld [vmem:[#allocation3 + $0x28] sm:$0xff]
  %v5735 = vld [vmem:[#allocation3 + $0x30] sm:$0xff]
  %v5736 = vld [vmem:[#allocation3 + $0x38] sm:$0xff]
  %v5737 = vld [vmem:[#allocation3 + $0x40] sm:$0xff]
  %v5738 = vld [vmem:[#allocation3 + $0x48] sm:$0xff]
  %v5739 = vld [vmem:[#allocation3 + $0x50] sm:$0xff]
  %v5740 = vld [vmem:[#allocation3 + $0x58] sm:$0xff]
  %v5741 = vld [vmem:[#allocation3 + $0x60] sm:$0xff]
  %v5742 = vld [vmem:[#allocation3 + $0x68] sm:$0xff]
  %v5743 = vld [vmem:[#allocation3 + $0x70] sm:$0xff]
  %v5744 = vld [vmem:[#allocation3 + $0x78] sm:$0xff]
  %v5745 = vld [vmem:[#allocation3 + $0x80] sm:$0xff]
  %v5746 = vld [vmem:[#allocation3 + $0x88] sm:$0xff]
  %v5747 = vld [vmem:[#allocation3 + $0x90] sm:$0xff]
  %v5748 = vld [vmem:[#allocation3 + $0x98] sm:$0xff]
  %v5749 = vld [vmem:[#allocation3 + $0xa0] sm:$0xff]
  %v5750 = vld [vmem:[#allocation3 + $0xa8] sm:$0xff]
  %v5751 = vld [vmem:[#allocation3 + $0xb0] sm:$0xff]
  %v5752 = vld [vmem:[#allocation3 + $0xb8] sm:$0xff]
  %v5753 = vld [vmem:[#allocation3 + $0xc0] sm:$0xff]
  %v5754 = vld [vmem:[#allocation3 + $0xc8] sm:$0xff]
  %v5755 = vld [vmem:[#allocation3 + $0xd0] sm:$0xff]
  %v5756 = vld [vmem:[#allocation3 + $0xd8] sm:$0xff]
  %v5757 = vld [vmem:[#allocation3 + $0xe0] sm:$0xff]
  %v5758 = vld [vmem:[#allocation3 + $0xe8] sm:$0xff]
  %v5759 = vld [vmem:[#allocation3 + $0xf0] sm:$0xff]
  %v5760 = vld [vmem:[#allocation3 + $0xf8] sm:$0xff]
  %v5761 = vld [vmem:[#allocation3 + $0x100] sm:$0xff]
  %v5762 = vld [vmem:[#allocation3 + $0x108] sm:$0xff]
  %v5763 = vld [vmem:[#allocation3 + $0x110] sm:$0xff]
  %v5764 = vld [vmem:[#allocation3 + $0x118] sm:$0xff]
  %v5765 = vld [vmem:[#allocation3 + $0x120] sm:$0xff]
  %v5766 = vld [vmem:[#allocation3 + $0x128] sm:$0xff]
  %v5767 = vld [vmem:[#allocation3 + $0x130] sm:$0xff]
  %v5768 = vld [vmem:[#allocation3 + $0x138] sm:$0xff]
  %v5769 = vld [vmem:[#allocation3 + $0x140] sm:$0xff]
  %v5770 = vld [vmem:[#allocation3 + $0x148] sm:$0xff]
  %v5771 = vld [vmem:[#allocation3 + $0x150] sm:$0xff]
  %v5772 = vld [vmem:[#allocation3 + $0x158] sm:$0xff]
  %v5773 = vld [vmem:[#allocation3 + $0x160] sm:$0xff]
  %v5774 = vld [vmem:[#allocation3 + $0x168] sm:$0xff]
  %v5775 = vld [vmem:[#allocation3 + $0x170] sm:$0xff]
  %v5776 = vld [vmem:[#allocation3 + $0x178] sm:$0xff]
  %v5777 = vld [vmem:[#allocation3 + $0x180] sm:$0xff]
  %v5778 = vld [vmem:[#allocation3 + $0x188] sm:$0xff]
  %v5779 = vld [vmem:[#allocation3 + $0x190] sm:$0xff]
  %v5780 = vld [vmem:[#allocation3 + $0x198] sm:$0xff]
  %v5781 = vld [vmem:[#allocation3 + $0x1a0] sm:$0xff]
  %v5782 = vld [vmem:[#allocation3 + $0x1a8] sm:$0xff]
  %v5783 = vld [vmem:[#allocation3 + $0x1b0] sm:$0xff]
  %v5784 = vld [vmem:[#allocation3 + $0x1b8] sm:$0xff]
  %v5785 = vld [vmem:[#allocation3 + $0x1c0] sm:$0xff]
  %v5786 = vld [vmem:[#allocation3 + $0x1c8] sm:$0xff]
  %v5787 = vld [vmem:[#allocation3 + $0x1d0] sm:$0xff]
  %v5788 = vld [vmem:[#allocation3 + $0x1d8] sm:$0xff]
  %v5789 = vld [vmem:[#allocation3 + $0x1e0] sm:$0xff]
  %v5790 = vld [vmem:[#allocation3 + $0x1e8] sm:$0xff]
  %v5791 = vld [vmem:[#allocation3 + $0x1f0] sm:$0xff]
  %v5792 = vld [vmem:[#allocation3 + $0x1f8] sm:$0xff]
  %v5793 = vld [vmem:[#allocation3 + $0x200] sm:$0xff]
  %v5794 = vld [vmem:[#allocation3 + $0x208] sm:$0xff]
  %v5795 = vld [vmem:[#allocation3 + $0x210] sm:$0xff]
  %v5796 = vld [vmem:[#allocation3 + $0x218] sm:$0xff]
  %v5797 = vld [vmem:[#allocation3 + $0x220] sm:$0xff]
  %v5798 = vld [vmem:[#allocation3 + $0x228] sm:$0xff]
  %v5799 = vld [vmem:[#allocation3 + $0x230] sm:$0xff]
  %v5800 = vld [vmem:[#allocation3 + $0x238] sm:$0xff]
  %v5801 = vld [vmem:[#allocation3 + $0x240] sm:$0xff]
  %v5802 = vld [vmem:[#allocation3 + $0x248] sm:$0xff]
  %v5803 = vld [vmem:[#allocation3 + $0x250] sm:$0xff]
  %v5804 = vld [vmem:[#allocation3 + $0x258] sm:$0xff]
  %v5805 = vld [vmem:[#allocation3 + $0x260] sm:$0xff]
  %v5806 = vld [vmem:[#allocation3 + $0x268] sm:$0xff]
  %v5807 = vld [vmem:[#allocation3 + $0x270] sm:$0xff]
  %v5808 = vld [vmem:[#allocation3 + $0x278] sm:$0xff]
  %v5809 = vld [vmem:[#allocation3 + $0x280] sm:$0xff]
  %v5810 = vld [vmem:[#allocation3 + $0x288] sm:$0xff]
  %v5811 = vld [vmem:[#allocation3 + $0x290] sm:$0xff]
  %v5812 = vld [vmem:[#allocation3 + $0x298] sm:$0xff]
  %v5813 = vld [vmem:[#allocation3 + $0x2a0] sm:$0xff]
  %v5814 = vld [vmem:[#allocation3 + $0x2a8] sm:$0xff]
  %v5815 = vld [vmem:[#allocation3 + $0x2b0] sm:$0xff]
  %v5816 = vld [vmem:[#allocation3 + $0x2b8] sm:$0xff]
  %v5817 = vld [vmem:[#allocation3 + $0x2c0] sm:$0xff]
  %v5818 = vld [vmem:[#allocation3 + $0x2c8] sm:$0xff]
  %v5819 = vld [vmem:[#allocation3 + $0x2d0] sm:$0xff]
  %v5820 = vld [vmem:[#allocation3 + $0x2d8] sm:$0xff]
  %v5821 = vld [vmem:[#allocation3 + $0x2e0] sm:$0xff]
  %v5822 = vld [vmem:[#allocation3 + $0x2e8] sm:$0xff]
  %v5823 = vld [vmem:[#allocation3 + $0x2f0] sm:$0xff]
  %v5824 = vld [vmem:[#allocation3 + $0x2f8] sm:$0xff]
  %v5825 = vld [vmem:[#allocation3 + $0x300] sm:$0xff]
  %v5826 = vld [vmem:[#allocation3 + $0x308] sm:$0xff]
  %v5827 = vld [vmem:[#allocation3 + $0x310] sm:$0xff]
  %v5828 = vld [vmem:[#allocation3 + $0x318] sm:$0xff]
  %v5829 = vld [vmem:[#allocation3 + $0x320] sm:$0xff]
  %v5830 = vld [vmem:[#allocation3 + $0x328] sm:$0xff]
  %v5831 = vld [vmem:[#allocation3 + $0x330] sm:$0xff]
  %v5832 = vld [vmem:[#allocation3 + $0x338] sm:$0xff]
  %v5833 = vld [vmem:[#allocation3 + $0x340] sm:$0xff]
  %v5834 = vld [vmem:[#allocation3 + $0x348] sm:$0xff]
  %v5835 = vld [vmem:[#allocation3 + $0x350] sm:$0xff]
  %v5836 = vld [vmem:[#allocation3 + $0x358] sm:$0xff]
  %v5837 = vld [vmem:[#allocation3 + $0x360] sm:$0xff]
  %v5838 = vld [vmem:[#allocation3 + $0x368] sm:$0xff]
  %v5839 = vld [vmem:[#allocation3 + $0x370] sm:$0xff]
  %v5840 = vld [vmem:[#allocation3 + $0x378] sm:$0xff]
  %v5841 = vld [vmem:[#allocation3 + $0x380] sm:$0xff]
  %v5842 = vld [vmem:[#allocation3 + $0x388] sm:$0xff]
  %v5843 = vld [vmem:[#allocation3 + $0x390] sm:$0xff]
  %v5844 = vld [vmem:[#allocation3 + $0x398] sm:$0xff]
  %v5845 = vld [vmem:[#allocation3 + $0x3a0] sm:$0xff]
  %v5846 = vld [vmem:[#allocation3 + $0x3a8] sm:$0xff]
  %v5847 = vld [vmem:[#allocation3 + $0x3b0] sm:$0xff]
  %v5848 = vld [vmem:[#allocation3 + $0x3b8] sm:$0xff]
  %v5849 = vld [vmem:[#allocation3 + $0x3c0] sm:$0xff]
  %v5850 = vld [vmem:[#allocation3 + $0x3c8] sm:$0xff]
  %v5851 = vld [vmem:[#allocation3 + $0x3d0] sm:$0xff]
  %v5852 = vld [vmem:[#allocation3 + $0x3d8] sm:$0xff]
  %v5853 = vld [vmem:[#allocation3 + $0x3e0] sm:$0xff]
  %v5854 = vld [vmem:[#allocation3 + $0x3e8] sm:$0xff]
  %v5855 = vld [vmem:[#allocation3 + $0x3f0] sm:$0xff]
  %v5856 = vld [vmem:[#allocation3 + $0x3f8] sm:$0xff]
  %s5857 = scalar_lea.vmem [#allocation3], 1024
  %v5858 = vld [vmem:[%s5857] ss:$8 sm:$0xf]
  %v5860 = vlaneseq
  %v5861 = vshrl.u32 %v5860, 7
  %v5862 = vsub.s32 0, %v5861
  %v5863 = vrot.slane %v5858, %v5862
  %v5864 = vlaneseq
  %v5865 = vshrl.u32 %v5864, 7
  %v5866 = vsub.s32 1, %v5865
  %v5867 = vrot.slane %v5858, %v5866
  %v5868 = vlaneseq
  %v5869 = vshrl.u32 %v5868, 7
  %v5870 = vsub.s32 2, %v5869
  %v5871 = vrot.slane %v5858, %v5870
  %v5872 = vlaneseq
  %v5873 = vshrl.u32 %v5872, 7
  %v5874 = vsub.s32 3, %v5873
  %v5875 = vrot.slane %v5858, %v5874
  %5880 = vmatprep.subr.mxu0 %v5730
  %5881 = vmatpush1.msra.mxu0 %v5729
  %5882 = vmatprep.subr.mxu0 %v5734
  %5883 = vmatpush1.msra.mxu0 %v5733
  %5884 = vmatprep.subr.mxu0 %v5738
  %5885 = vmatpush1.msra.mxu0 %v5737
  %5886 = vmatprep.subr.mxu0 %v5742
  %5887 = vmatpush1.msra.mxu0 %v5741
  %5888 = vmatprep.subr.mxu0 %v5746
  %5889 = vmatpush1.msra.mxu0 %v5745
  %5890 = vmatprep.subr.mxu0 %v5750
  %5891 = vmatpush1.msra.mxu0 %v5749
  %5892 = vmatprep.subr.mxu0 %v5754
  %5893 = vmatpush1.msra.mxu0 %v5753
  %5894 = vmatprep.subr.mxu0 %v5758
  %5895 = vmatpush1.msra.mxu0 %v5757
  %5896 = vmatprep.subr.mxu0 %v5762
  %5897 = vmatpush1.msra.mxu0 %v5761
  %5898 = vmatprep.subr.mxu0 %v5766
  %5899 = vmatpush1.msra.mxu0 %v5765
  %5900 = vmatprep.subr.mxu0 %v5770
  %5901 = vmatpush1.msra.mxu0 %v5769
  %5902 = vmatprep.subr.mxu0 %v5774
  %5903 = vmatpush1.msra.mxu0 %v5773
  %5904 = vmatprep.subr.mxu0 %v5778
  %5905 = vmatpush1.msra.mxu0 %v5777
  %5906 = vmatprep.subr.mxu0 %v5782
  %5907 = vmatpush1.msra.mxu0 %v5781
  %5908 = vmatprep.subr.mxu0 %v5786
  %5909 = vmatpush1.msra.mxu0 %v5785
  %5910 = vmatprep.subr.mxu0 %v5790
  %5911 = vmatpush1.msra.mxu0 %v5789
  %5912 = vmatprep.subr.mxu0 0.0
  %5913 = vmatpush1.msra.mxu0 0.0
  %5914 = vmatprep.subr.mxu0 0.0
  %5915 = vmatpush1.msra.mxu0 0.0
  %5916 = vmatprep.subr.mxu0 0.0
  %5917 = vmatpush1.msra.mxu0 0.0
  %5918 = vmatprep.subr.mxu0 0.0
  %5919 = vmatpush1.msra.mxu0 0.0
  %5920 = vmatprep.subr.mxu0 0.0
  %5921 = vmatpush1.msra.mxu0 0.0
  %5922 = vmatprep.subr.mxu0 0.0
  %5923 = vmatpush1.msra.mxu0 0.0
  %5924 = vmatprep.subr.mxu0 0.0
  %5925 = vmatpush1.msra.mxu0 0.0
  %5926 = vmatprep.subr.mxu0 0.0
  %5927 = vmatpush1.msra.mxu0 0.0
  %5928 = vmatprep.subr.mxu0 0.0
  %5929 = vmatpush1.msra.mxu0 0.0
  %5930 = vmatprep.subr.mxu0 0.0
  %5931 = vmatpush1.msra.mxu0 0.0
  %5932 = vmatprep.subr.mxu0 0.0
  %5933 = vmatpush1.msra.mxu0 0.0
  %5934 = vmatprep.subr.mxu0 0.0
  %5935 = vmatpush1.msra.mxu0 0.0
  %5936 = vmatprep.subr.mxu0 0.0
  %5937 = vmatpush1.msra.mxu0 0.0
  %5938 = vmatprep.subr.mxu0 0.0
  %5939 = vmatpush1.msra.mxu0 0.0
  %5940 = vmatprep.subr.mxu0 0.0
  %5941 = vmatpush1.msra.mxu0 0.0
  %5942 = vmatprep.subr.mxu0 0.0
  %5943 = vmatpush1.msra.mxu0 0.0
  %5944 = vmatprep.mubr.f32.mxu0 0.0
  %5945 = vmatmul.mubr.f32.gmra.mrb[0].mxu0 %v5728
  %v5946 = vpop.f32.mrb[0].mxu0
  %v5947 = vadd.f32 %v5863, %v5946
  %v5948 = vpop.f32.mrb[0].mxu0
  %v5949 = vadd.f32 %v5867, %v5948
  %5950 = vdwg.mxu0
  %5951 = vmatprep.subr.mxu0 %v5732
  %5952 = vmatpush1.msra.mxu0 %v5731
  %5953 = vmatprep.subr.mxu0 %v5736
  %5954 = vmatpush1.msra.mxu0 %v5735
  %5955 = vmatprep.subr.mxu0 %v5740
  %5956 = vmatpush1.msra.mxu0 %v5739
  %5957 = vmatprep.subr.mxu0 %v5744
  %5958 = vmatpush1.msra.mxu0 %v5743
  %5959 = vmatprep.subr.mxu0 %v5748
  %5960 = vmatpush1.msra.mxu0 %v5747
  %5961 = vmatprep.subr.mxu0 %v5752
  %5962 = vmatpush1.msra.mxu0 %v5751
  %5963 = vmatprep.subr.mxu0 %v5756
  %5964 = vmatpush1.msra.mxu0 %v5755
  %5965 = vmatprep.subr.mxu0 %v5760
  %5966 = vmatpush1.msra.mxu0 %v5759
  %5967 = vmatprep.subr.mxu0 %v5764
  %5968 = vmatpush1.msra.mxu0 %v5763
  %5969 = vmatprep.subr.mxu0 %v5768
  %5970 = vmatpush1.msra.mxu0 %v5767
  %5971 = vmatprep.subr.mxu0 %v5772
  %5972 = vmatpush1.msra.mxu0 %v5771
  %5973 = vmatprep.subr.mxu0 %v5776
  %5974 = vmatpush1.msra.mxu0 %v5775
  %5975 = vmatprep.subr.mxu0 %v5780
  %5976 = vmatpush1.msra.mxu0 %v5779
  %5977 = vmatprep.subr.mxu0 %v5784
  %5978 = vmatpush1.msra.mxu0 %v5783
  %5979 = vmatprep.subr.mxu0 %v5788
  %5980 = vmatpush1.msra.mxu0 %v5787
  %5981 = vmatprep.subr.mxu0 %v5792
  %5982 = vmatpush1.msra.mxu0 %v5791
  %5983 = vmatprep.subr.mxu0 0.0
  %5984 = vmatpush1.msra.mxu0 0.0
  %5985 = vmatprep.subr.mxu0 0.0
  %5986 = vmatpush1.msra.mxu0 0.0
  %5987 = vmatprep.subr.mxu0 0.0
  %5988 = vmatpush1.msra.mxu0 0.0
  %5989 = vmatprep.subr.mxu0 0.0
  %5990 = vmatpush1.msra.mxu0 0.0
  %5991 = vmatprep.subr.mxu0 0.0
  %5992 = vmatpush1.msra.mxu0 0.0
  %5993 = vmatprep.subr.mxu0 0.0
  %5994 = vmatpush1.msra.mxu0 0.0
  %5995 = vmatprep.subr.mxu0 0.0
  %5996 = vmatpush1.msra.mxu0 0.0
  %5997 = vmatprep.subr.mxu0 0.0
  %5998 = vmatpush1.msra.mxu0 0.0
  %5999 = vmatprep.subr.mxu0 0.0
  %6000 = vmatpush1.msra.mxu0 0.0
  %6001 = vmatprep.subr.mxu0 0.0
  %6002 = vmatpush1.msra.mxu0 0.0
  %6003 = vmatprep.subr.mxu0 0.0
  %6004 = vmatpush1.msra.mxu0 0.0
  %6005 = vmatprep.subr.mxu0 0.0
  %6006 = vmatpush1.msra.mxu0 0.0
  %6007 = vmatprep.subr.mxu0 0.0
  %6008 = vmatpush1.msra.mxu0 0.0
  %6009 = vmatprep.subr.mxu0 0.0
  %6010 = vmatpush1.msra.mxu0 0.0
  %6011 = vmatprep.subr.mxu0 0.0
  %6012 = vmatpush1.msra.mxu0 0.0
  %6013 = vmatprep.subr.mxu0 0.0
  %6014 = vmatpush1.msra.mxu0 0.0
  %6015 = vmatprep.mubr.f32.mxu0 0.0
  %6016 = vmatmul.mubr.f32.gmra.mrb[0].mxu0 %v5728
  %v6017 = vpop.f32.mrb[0].mxu0
  %v6018 = vadd.f32 %v5871, %v6017
  %v6019 = vpop.f32.mrb[0].mxu0
  %v6020 = vadd.f32 %v5875, %v6019
  %6021 = vdwg.mxu0
  %6022 = vmatprep.subr.mxu0 %v5794
  %6023 = vmatpush1.msra.mxu0 %v5793
  %6024 = vmatprep.subr.mxu0 %v5798
  %6025 = vmatpush1.msra.mxu0 %v5797
  %6026 = vmatprep.subr.mxu0 %v5802
  %6027 = vmatpush1.msra.mxu0 %v5801
  %6028 = vmatprep.subr.mxu0 %v5806
  %6029 = vmatpush1.msra.mxu0 %v5805
  %6030 = vmatprep.subr.mxu0 %v5810
  %6031 = vmatpush1.msra.mxu0 %v5809
  %6032 = vmatprep.subr.mxu0 %v5814
  %6033 = vmatpush1.msra.mxu0 %v5813
  %6034 = vmatprep.subr.mxu0 %v5818
  %6035 = vmatpush1.msra.mxu0 %v5817
  %6036 = vmatprep.subr.mxu0 %v5822
  %6037 = vmatpush1.msra.mxu0 %v5821
  %6038 = vmatprep.subr.mxu0 %v5826
  %6039 = vmatpush1.msra.mxu0 %v5825
  %6040 = vmatprep.subr.mxu0 %v5830
  %6041 = vmatpush1.msra.mxu0 %v5829
  %6042 = vmatprep.subr.mxu0 %v5834
  %6043 = vmatpush1.msra.mxu0 %v5833
  %6044 = vmatprep.subr.mxu0 %v5838
  %6045 = vmatpush1.msra.mxu0 %v5837
  %6046 = vmatprep.subr.mxu0 %v5842
  %6047 = vmatpush1.msra.mxu0 %v5841
  %6048 = vmatprep.subr.mxu0 %v5846
  %6049 = vmatpush1.msra.mxu0 %v5845
  %6050 = vmatprep.subr.mxu0 %v5850
  %6051 = vmatpush1.msra.mxu0 %v5849
  %6052 = vmatprep.subr.mxu0 %v5854
  %6053 = vmatpush1.msra.mxu0 %v5853
  %6054 = vmatprep.subr.mxu0 0.0
  %6055 = vmatpush1.msra.mxu0 0.0
  %6056 = vmatprep.subr.mxu0 0.0
  %6057 = vmatpush1.msra.mxu0 0.0
  %6058 = vmatprep.subr.mxu0 0.0
  %6059 = vmatpush1.msra.mxu0 0.0
  %6060 = vmatprep.subr.mxu0 0.0
  %6061 = vmatpush1.msra.mxu0 0.0
  %6062 = vmatprep.subr.mxu0 0.0
  %6063 = vmatpush1.msra.mxu0 0.0
  %6064 = vmatprep.subr.mxu0 0.0
  %6065 = vmatpush1.msra.mxu0 0.0
  %6066 = vmatprep.subr.mxu0 0.0
  %6067 = vmatpush1.msra.mxu0 0.0
  %6068 = vmatprep.subr.mxu0 0.0
  %6069 = vmatpush1.msra.mxu0 0.0
  %6070 = vmatprep.subr.mxu0 0.0
  %6071 = vmatpush1.msra.mxu0 0.0
  %6072 = vmatprep.subr.mxu0 0.0
  %6073 = vmatpush1.msra.mxu0 0.0
  %6074 = vmatprep.subr.mxu0 0.0
  %6075 = vmatpush1.msra.mxu0 0.0
  %6076 = vmatprep.subr.mxu0 0.0
  %6077 = vmatpush1.msra.mxu0 0.0
  %6078 = vmatprep.subr.mxu0 0.0
  %6079 = vmatpush1.msra.mxu0 0.0
  %6080 = vmatprep.subr.mxu0 0.0
  %6081 = vmatpush1.msra.mxu0 0.0
  %6082 = vmatprep.subr.mxu0 0.0
  %6083 = vmatpush1.msra.mxu0 0.0
  %6084 = vmatprep.subr.mxu0 0.0
  %6085 = vmatpush1.msra.mxu0 0.0
  %6086 = vmatprep.mubr.f32.mxu0 0.0
  %6087 = vmatmul.mubr.f32.gmra.mrb[0].mxu0 0.0
  %v6088 = vpop.f32.mrb[0].mxu0
  %v6089 = vadd.f32 0.0, %v6088
  %v6090 = vpop.f32.mrb[0].mxu0
  %v6091 = vadd.f32 0.0, %v6090
  %6092 = vdwg.mxu0
  %6093 = vmatprep.subr.mxu0 %v5796
  %6094 = vmatpush1.msra.mxu0 %v5795
  %6095 = vmatprep.subr.mxu0 %v5800
  %6096 = vmatpush1.msra.mxu0 %v5799
  %6097 = vmatprep.subr.mxu0 %v5804
  %6098 = vmatpush1.msra.mxu0 %v5803
  %6099 = vmatprep.subr.mxu0 %v5808
  %6100 = vmatpush1.msra.mxu0 %v5807
  %6101 = vmatprep.subr.mxu0 %v5812
  %6102 = vmatpush1.msra.mxu0 %v5811
  %6103 = vmatprep.subr.mxu0 %v5816
  %6104 = vmatpush1.msra.mxu0 %v5815
  %6105 = vmatprep.subr.mxu0 %v5820
  %6106 = vmatpush1.msra.mxu0 %v5819
  %6107 = vmatprep.subr.mxu0 %v5824
  %6108 = vmatpush1.msra.mxu0 %v5823
  %6109 = vmatprep.subr.mxu0 %v5828
  %6110 = vmatpush1.msra.mxu0 %v5827
  %6111 = vmatprep.subr.mxu0 %v5832
  %6112 = vmatpush1.msra.mxu0 %v5831
  %6113 = vmatprep.subr.mxu0 %v5836
  %6114 = vmatpush1.msra.mxu0 %v5835
  %6115 = vmatprep.subr.mxu0 %v5840
  %6116 = vmatpush1.msra.mxu0 %v5839
  %6117 = vmatprep.subr.mxu0 %v5844
  %6118 = vmatpush1.msra.mxu0 %v5843
  %6119 = vmatprep.subr.mxu0 %v5848
  %6120 = vmatpush1.msra.mxu0 %v5847
  %6121 = vmatprep.subr.mxu0 %v5852
  %6122 = vmatpush1.msra.mxu0 %v5851
  %6123 = vmatprep.subr.mxu0 %v5856
  %6124 = vmatpush1.msra.mxu0 %v5855
  %6125 = vmatprep.subr.mxu0 0.0
  %6126 = vmatpush1.msra.mxu0 0.0
  %6127 = vmatprep.subr.mxu0 0.0
  %6128 = vmatpush1.msra.mxu0 0.0
  %6129 = vmatprep.subr.mxu0 0.0
  %6130 = vmatpush1.msra.mxu0 0.0
  %6131 = vmatprep.subr.mxu0 0.0
  %6132 = vmatpush1.msra.mxu0 0.0
  %6133 = vmatprep.subr.mxu0 0.0
  %6134 = vmatpush1.msra.mxu0 0.0
  %6135 = vmatprep.subr.mxu0 0.0
  %6136 = vmatpush1.msra.mxu0 0.0
  %6137 = vmatprep.subr.mxu0 0.0
  %6138 = vmatpush1.msra.mxu0 0.0
  %6139 = vmatprep.subr.mxu0 0.0
  %6140 = vmatpush1.msra.mxu0 0.0
  %6141 = vmatprep.subr.mxu0 0.0
  %6142 = vmatpush1.msra.mxu0 0.0
  %6143 = vmatprep.subr.mxu0 0.0
  %6144 = vmatpush1.msra.mxu0 0.0
  %6145 = vmatprep.subr.mxu0 0.0
  %6146 = vmatpush1.msra.mxu0 0.0
  %6147 = vmatprep.subr.mxu0 0.0
  %6148 = vmatpush1.msra.mxu0 0.0
  %6149 = vmatprep.subr.mxu0 0.0
  %6150 = vmatpush1.msra.mxu0 0.0
  %6151 = vmatprep.subr.mxu0 0.0
  %6152 = vmatpush1.msra.mxu0 0.0
  %6153 = vmatprep.subr.mxu0 0.0
  %6154 = vmatpush1.msra.mxu0 0.0
  %6155 = vmatprep.subr.mxu0 0.0
  %6156 = vmatpush1.msra.mxu0 0.0
  %6157 = vmatprep.mubr.f32.mxu0 0.0
  %6158 = vmatmul.mubr.f32.gmra.mrb[0].mxu0 0.0
  %v6159 = vpop.f32.mrb[0].mxu0
  %v6160 = vadd.f32 0.0, %v6159
  %v6161 = vpop.f32.mrb[0].mxu0
  %v6162 = vadd.f32 0.0, %v6161
  %6163 = vdwg.mxu0
  %v6164 = vadd.f32 %v5947, %v6089
  %v6165 = vadd.f32 %v5949, %v6091
  %v6166 = vadd.f32 %v6018, %v6160
  %v6167 = vadd.f32 %v6020, %v6162
  %v6168 = vmul.f32 %v6164, 0.5
  %v6169 = vmul.f32 %v6165, 0.5
  %v6170 = vmul.f32 %v6166, 0.5
  %v6171 = vtanh.pop %v6168
  %v6172 = vtanh.pop %v6169
  %v6173 = vtanh.pop %v6170
  %v6174 = vmul.f32 %v6171, 0.5
  %v6175 = vmul.f32 %v6172, 0.5
  %v6176 = vmul.f32 %v6173, 0.5
  %v6177 = vadd.f32 %v6174, 0.5
  %v6178 = vadd.f32 %v6175, 0.5
  %v6179 = vadd.f32 %v6176, 0.5
  %v6180 = vtanh.pop %v6167
  %v6181 = vmul.f32 %v6178, 0.0
  %v6182 = vmul.f32 %v6177, %v6180
  %v6183 = vadd.f32 %v6181, %v6182
  %v6184 = vtanh.pop %v6183
  %v6185 = vmul.f32 %v6179, %v6184
  %6186 = vmatprep.subr.mxu0 %v5794
  %6187 = vmatpush1.msra.mxu0 %v5793
  %6188 = vmatprep.subr.mxu0 %v5798
  %6189 = vmatpush1.msra.mxu0 %v5797
  %6190 = vmatprep.subr.mxu0 %v5802
  %6191 = vmatpush1.msra.mxu0 %v5801
  %6192 = vmatprep.subr.mxu0 %v5806
  %6193 = vmatpush1.msra.mxu0 %v5805
  %6194 = vmatprep.subr.mxu0 %v5810
  %6195 = vmatpush1.msra.mxu0 %v5809
  %6196 = vmatprep.subr.mxu0 %v5814
  %6197 = vmatpush1.msra.mxu0 %v5813
  %6198 = vmatprep.subr.mxu0 %v5818
  %6199 = vmatpush1.msra.mxu0 %v5817
  %6200 = vmatprep.subr.mxu0 %v5822
  %6201 = vmatpush1.msra.mxu0 %v5821
  %6202 = vmatprep.subr.mxu0 %v5826
  %6203 = vmatpush1.msra.mxu0 %v5825
  %6204 = vmatprep.subr.mxu0 %v5830
  %6205 = vmatpush1.msra.mxu0 %v5829
  %6206 = vmatprep.subr.mxu0 %v5834
  %6207 = vmatpush1.msra.mxu0 %v5833
  %6208 = vmatprep.subr.mxu0 %v5838
  %6209 = vmatpush1.msra.mxu0 %v5837
  %6210 = vmatprep.subr.mxu0 %v5842
  %6211 = vmatpush1.msra.mxu0 %v5841
  %6212 = vmatprep.subr.mxu0 %v5846
  %6213 = vmatpush1.msra.mxu0 %v5845
  %6214 = vmatprep.subr.mxu0 %v5850
  %6215 = vmatpush1.msra.mxu0 %v5849
  %6216 = vmatprep.subr.mxu0 %v5854
  %6217 = vmatpush1.msra.mxu0 %v5853
  %6218 = vmatprep.subr.mxu0 0.0
  %6219 = vmatpush1.msra.mxu0 0.0
  %6220 = vmatprep.subr.mxu0 0.0
  %6221 = vmatpush1.msra.mxu0 0.0
  %6222 = vmatprep.subr.mxu0 0.0
  %6223 = vmatpush1.msra.mxu0 0.0
  %6224 = vmatprep.subr.mxu0 0.0
  %6225 = vmatpush1.msra.mxu0 0.0
  %6226 = vmatprep.subr.mxu0 0.0
  %6227 = vmatpush1.msra.mxu0 0.0
  %6228 = vmatprep.subr.mxu0 0.0
  %6229 = vmatpush1.msra.mxu0 0.0
  %6230 = vmatprep.subr.mxu0 0.0
  %6231 = vmatpush1.msra.mxu0 0.0
  %6232 = vmatprep.subr.mxu0 0.0
  %6233 = vmatpush1.msra.mxu0 0.0
  %6234 = vmatprep.subr.mxu0 0.0
  %6235 = vmatpush1.msra.mxu0 0.0
  %6236 = vmatprep.subr.mxu0 0.0
  %6237 = vmatpush1.msra.mxu0 0.0
  %6238 = vmatprep.subr.mxu0 0.0
  %6239 = vmatpush1.msra.mxu0 0.0
  %6240 = vmatprep.subr.mxu0 0.0
  %6241 = vmatpush1.msra.mxu0 0.0
  %6242 = vmatprep.subr.mxu0 0.0
  %6243 = vmatpush1.msra.mxu0 0.0
  %6244 = vmatprep.subr.mxu0 0.0
  %6245 = vmatpush1.msra.mxu0 0.0
  %6246 = vmatprep.subr.mxu0 0.0
  %6247 = vmatpush1.msra.mxu0 0.0
  %6248 = vmatprep.subr.mxu0 0.0
  %6249 = vmatpush1.msra.mxu0 0.0
  %6250 = vmatprep.mubr.f32.mxu0 0.0
  %6251 = vmatmul.mubr.f32.gmra.mrb[0].mxu0 %v6185
  %v6252 = vpop.f32.mrb[0].mxu0
  %v6253 = vadd.f32 0.0, %v6252
  %v6254 = vpop.f32.mrb[0].mxu0
  %v6255 = vadd.f32 0.0, %v6254
  %6256 = vdwg.mxu0
  %6257 = vmatprep.subr.mxu0 %v5796
  %6258 = vmatpush1.msra.mxu0 %v5795
  %6259 = vmatprep.subr.mxu0 %v5800
  %6260 = vmatpush1.msra.mxu0 %v5799
  %6261 = vmatprep.subr.mxu0 %v5804
  %6262 = vmatpush1.msra.mxu0 %v5803
  %6263 = vmatprep.subr.mxu0 %v5808
  %6264 = vmatpush1.msra.mxu0 %v5807
  %6265 = vmatprep.subr.mxu0 %v5812
  %6266 = vmatpush1.msra.mxu0 %v5811
  %6267 = vmatprep.subr.mxu0 %v5816
  %6268 = vmatpush1.msra.mxu0 %v5815
  %6269 = vmatprep.subr.mxu0 %v5820
  %6270 = vmatpush1.msra.mxu0 %v5819
  %6271 = vmatprep.subr.mxu0 %v5824
  %6272 = vmatpush1.msra.mxu0 %v5823
  %6273 = vmatprep.subr.mxu0 %v5828
  %6274 = vmatpush1.msra.mxu0 %v5827
  %6275 = vmatprep.subr.mxu0 %v5832
  %6276 = vmatpush1.msra.mxu0 %v5831
  %6277 = vmatprep.subr.mxu0 %v5836
  %6278 = vmatpush1.msra.mxu0 %v5835
  %6279 = vmatprep.subr.mxu0 %v5840
  %6280 = vmatpush1.msra.mxu0 %v5839
  %6281 = vmatprep.subr.mxu0 %v5844
  %6282 = vmatpush1.msra.mxu0 %v5843
  %6283 = vmatprep.subr.mxu0 %v5848
  %6284 = vmatpush1.msra.mxu0 %v5847
  %6285 = vmatprep.subr.mxu0 %v5852
  %6286 = vmatpush1.msra.mxu0 %v5851
  %6287 = vmatprep.subr.mxu0 %v5856
  %6288 = vmatpush1.msra.mxu0 %v5855
  %6289 = vmatprep.subr.mxu0 0.0
  %6290 = vmatpush1.msra.mxu0 0.0
  %6291 = vmatprep.subr.mxu0 0.0
  %6292 = vmatpush1.msra.mxu0 0.0
  %6293 = vmatprep.subr.mxu0 0.0
  %6294 = vmatpush1.msra.mxu0 0.0
  %6295 = vmatprep.subr.mxu0 0.0
  %6296 = vmatpush1.msra.mxu0 0.0
  %6297 = vmatprep.subr.mxu0 0.0
  %6298 = vmatpush1.msra.mxu0 0.0
  %6299 = vmatprep.subr.mxu0 0.0
  %6300 = vmatpush1.msra.mxu0 0.0
  %6301 = vmatprep.subr.mxu0 0.0
  %6302 = vmatpush1.msra.mxu0 0.0
  %6303 = vmatprep.subr.mxu0 0.0
  %6304 = vmatpush1.msra.mxu0 0.0
  %6305 = vmatprep.subr.mxu0 0.0
  %6306 = vmatpush1.msra.mxu0 0.0
  %6307 = vmatprep.subr.mxu0 0.0
  %6308 = vmatpush1.msra.mxu0 0.0
  %6309 = vmatprep.subr.mxu0 0.0
  %6310 = vmatpush1.msra.mxu0 0.0
  %6311 = vmatprep.subr.mxu0 0.0
  %6312 = vmatpush1.msra.mxu0 0.0
  %6313 = vmatprep.subr.mxu0 0.0
  %6314 = vmatpush1.msra.mxu0 0.0
  %6315 = vmatprep.subr.mxu0 0.0
  %6316 = vmatpush1.msra.mxu0 0.0
  %6317 = vmatprep.subr.mxu0 0.0
  %6318 = vmatpush1.msra.mxu0 0.0
  %6319 = vmatprep.subr.mxu0 0.0
  %6320 = vmatpush1.msra.mxu0 0.0
  %6321 = vmatprep.mubr.f32.mxu0 0.0
  %6322 = vmatmul.mubr.f32.gmra.mrb[0].mxu0 %v6185
  %v6323 = vpop.f32.mrb[0].mxu0
  %v6324 = vadd.f32 0.0, %v6323
  %v6325 = vpop.f32.mrb[0].mxu0
  %v6326 = vadd.f32 0.0, %v6325
  %6327 = vdwg.mxu0
  %v6332 = vrot.slane %v6253, 7
  %v6333 = vrot.slane %v6255, 7
  %v6334 = vrot.slane %v6324, 7
  %v6335 = vrot.slane %v6326, 7
  %v6340 = vadd.f32 %v5947, %v6332
  %v6341 = vadd.f32 %v5949, %v6333
  %v6342 = vadd.f32 %v6018, %v6334
  %v6343 = vadd.f32 %v6020, %v6335
  %v6344 = vmul.f32 %v6340, 0.5
  %v6345 = vmul.f32 %v6341, 0.5
  %v6346 = vmul.f32 %v6342, 0.5
  %v6347 = vtanh.pop %v6344
  %v6348 = vtanh.pop %v6345
  %v6349 = vtanh.pop %v6346
  %v6350 = vmul.f32 %v6347, 0.5
  %v6351 = vmul.f32 %v6348, 0.5
  %v6352 = vmul.f32 %v6349, 0.5
  %v6353 = vadd.f32 %v6350, 0.5
  %v6354 = vadd.f32 %v6351, 0.5
  %v6355 = vadd.f32 %v6352, 0.5
  %v6356 = vtanh.pop %v6343
  %v6358 = vrot.slane %v6183, 7
  %v6360 = vmul.f32 %v6354, %v6358
  %v6361 = vmul.f32 %v6353, %v6356
  %v6362 = vadd.f32 %v6360, %v6361
  %v6363 = vtanh.pop %v6362
  %v6364 = vmul.f32 %v6355, %v6363
  %v6366 = vrot.slane %v6364, 1
  %6368 = vmatprep.subr.mxu0 %v5794
  %6369 = vmatpush1.msra.mxu0 %v5793
  %6370 = vmatprep.subr.mxu0 %v5798
  %6371 = vmatpush1.msra.mxu0 %v5797
  %6372 = vmatprep.subr.mxu0 %v5802
  %6373 = vmatpush1.msra.mxu0 %v5801
  %6374 = vmatprep.subr.mxu0 %v5806
  %6375 = vmatpush1.msra.mxu0 %v5805
  %6376 = vmatprep.subr.mxu0 %v5810
  %6377 = vmatpush1.msra.mxu0 %v5809
  %6378 = vmatprep.subr.mxu0 %v5814
  %6379 = vmatpush1.msra.mxu0 %v5813
  %6380 = vmatprep.subr.mxu0 %v5818
  %6381 = vmatpush1.msra.mxu0 %v5817
  %6382 = vmatprep.subr.mxu0 %v5822
  %6383 = vmatpush1.msra.mxu0 %v5821
  %6384 = vmatprep.subr.mxu0 %v5826
  %6385 = vmatpush1.msra.mxu0 %v5825
  %6386 = vmatprep.subr.mxu0 %v5830
  %6387 = vmatpush1.msra.mxu0 %v5829
  %6388 = vmatprep.subr.mxu0 %v5834
  %6389 = vmatpush1.msra.mxu0 %v5833
  %6390 = vmatprep.subr.mxu0 %v5838
  %6391 = vmatpush1.msra.mxu0 %v5837
  %6392 = vmatprep.subr.mxu0 %v5842
  %6393 = vmatpush1.msra.mxu0 %v5841
  %6394 = vmatprep.subr.mxu0 %v5846
  %6395 = vmatpush1.msra.mxu0 %v5845
  %6396 = vmatprep.subr.mxu0 %v5850
  %6397 = vmatpush1.msra.mxu0 %v5849
  %6398 = vmatprep.subr.mxu0 %v5854
  %6399 = vmatpush1.msra.mxu0 %v5853
  %6400 = vmatprep.subr.mxu0 0.0
  %6401 = vmatpush1.msra.mxu0 0.0
  %6402 = vmatprep.subr.mxu0 0.0
  %6403 = vmatpush1.msra.mxu0 0.0
  %6404 = vmatprep.subr.mxu0 0.0
  %6405 = vmatpush1.msra.mxu0 0.0
  %6406 = vmatprep.subr.mxu0 0.0
  %6407 = vmatpush1.msra.mxu0 0.0
  %6408 = vmatprep.subr.mxu0 0.0
  %6409 = vmatpush1.msra.mxu0 0.0
  %6410 = vmatprep.subr.mxu0 0.0
  %6411 = vmatpush1.msra.mxu0 0.0
  %6412 = vmatprep.subr.mxu0 0.0
  %6413 = vmatpush1.msra.mxu0 0.0
  %6414 = vmatprep.subr.mxu0 0.0
  %6415 = vmatpush1.msra.mxu0 0.0
  %6416 = vmatprep.subr.mxu0 0.0
  %6417 = vmatpush1.msra.mxu0 0.0
  %6418 = vmatprep.subr.mxu0 0.0
  %6419 = vmatpush1.msra.mxu0 0.0
  %6420 = vmatprep.subr.mxu0 0.0
  %6421 = vmatpush1.msra.mxu0 0.0
  %6422 = vmatprep.subr.mxu0 0.0
  %6423 = vmatpush1.msra.mxu0 0.0
  %6424 = vmatprep.subr.mxu0 0.0
  %6425 = vmatpush1.msra.mxu0 0.0
  %6426 = vmatprep.subr.mxu0 0.0
  %6427 = vmatpush1.msra.mxu0 0.0
  %6428 = vmatprep.subr.mxu0 0.0
  %6429 = vmatpush1.msra.mxu0 0.0
  %6430 = vmatprep.subr.mxu0 0.0
  %6431 = vmatpush1.msra.mxu0 0.0
  %6432 = vmatprep.mubr.f32.mxu0 0.0
  %6433 = vmatmul.mubr.f32.gmra.mrb[0].mxu0 %v6366
  %v6434 = vpop.f32.mrb[0].mxu0
  %v6435 = vadd.f32 0.0, %v6434
  %v6436 = vpop.f32.mrb[0].mxu0
  %v6437 = vadd.f32 0.0, %v6436
  %6438 = vdwg.mxu0
  %6439 = vmatprep.subr.mxu0 %v5796
  %6440 = vmatpush1.msra.mxu0 %v5795
  %6441 = vmatprep.subr.mxu0 %v5800
  %6442 = vmatpush1.msra.mxu0 %v5799
  %6443 = vmatprep.subr.mxu0 %v5804
  %6444 = vmatpush1.msra.mxu0 %v5803
  %6445 = vmatprep.subr.mxu0 %v5808
  %6446 = vmatpush1.msra.mxu0 %v5807
  %6447 = vmatprep.subr.mxu0 %v5812
  %6448 = vmatpush1.msra.mxu0 %v5811
  %6449 = vmatprep.subr.mxu0 %v5816
  %6450 = vmatpush1.msra.mxu0 %v5815
  %6451 = vmatprep.subr.mxu0 %v5820
  %6452 = vmatpush1.msra.mxu0 %v5819
  %6453 = vmatprep.subr.mxu0 %v5824
  %6454 = vmatpush1.msra.mxu0 %v5823
  %6455 = vmatprep.subr.mxu0 %v5828
  %6456 = vmatpush1.msra.mxu0 %v5827
  %6457 = vmatprep.subr.mxu0 %v5832
  %6458 = vmatpush1.msra.mxu0 %v5831
  %6459 = vmatprep.subr.mxu0 %v5836
  %6460 = vmatpush1.msra.mxu0 %v5835
  %6461 = vmatprep.subr.mxu0 %v5840
  %6462 = vmatpush1.msra.mxu0 %v5839
  %6463 = vmatprep.subr.mxu0 %v5844
  %6464 = vmatpush1.msra.mxu0 %v5843
  %6465 = vmatprep.subr.mxu0 %v5848
  %6466 = vmatpush1.msra.mxu0 %v5847
  %6467 = vmatprep.subr.mxu0 %v5852
  %6468 = vmatpush1.msra.mxu0 %v5851
  %6469 = vmatprep.subr.mxu0 %v5856
  %6470 = vmatpush1.msra.mxu0 %v5855
  %6471 = vmatprep.subr.mxu0 0.0
  %6472 = vmatpush1.msra.mxu0 0.0
  %6473 = vmatprep.subr.mxu0 0.0
  %6474 = vmatpush1.msra.mxu0 0.0
  %6475 = vmatprep.subr.mxu0 0.0
  %6476 = vmatpush1.msra.mxu0 0.0
  %6477 = vmatprep.subr.mxu0 0.0
  %6478 = vmatpush1.msra.mxu0 0.0
  %6479 = vmatprep.subr.mxu0 0.0
  %6480 = vmatpush1.msra.mxu0 0.0
  %6481 = vmatprep.subr.mxu0 0.0
  %6482 = vmatpush1.msra.mxu0 0.0
  %6483 = vmatprep.subr.mxu0 0.0
  %6484 = vmatpush1.msra.mxu0 0.0
  %6485 = vmatprep.subr.mxu0 0.0
  %6486 = vmatpush1.msra.mxu0 0.0
  %6487 = vmatprep.subr.mxu0 0.0
  %6488 = vmatpush1.msra.mxu0 0.0
  %6489 = vmatprep.subr.mxu0 0.0
  %6490 = vmatpush1.msra.mxu0 0.0
  %6491 = vmatprep.subr.mxu0 0.0
  %6492 = vmatpush1.msra.mxu0 0.0
  %6493 = vmatprep.subr.mxu0 0.0
  %6494 = vmatpush1.msra.mxu0 0.0
  %6495 = vmatprep.subr.mxu0 0.0
  %6496 = vmatpush1.msra.mxu0 0.0
  %6497 = vmatprep.subr.mxu0 0.0
  %6498 = vmatpush1.msra.mxu0 0.0
  %6499 = vmatprep.subr.mxu0 0.0
  %6500 = vmatpush1.msra.mxu0 0.0
  %6501 = vmatprep.subr.mxu0 0.0
  %6502 = vmatpush1.msra.mxu0 0.0
  %6503 = vmatprep.mubr.f32.mxu0 0.0
  %6504 = vmatmul.mubr.f32.gmra.mrb[0].mxu0 %v6366
  %v6505 = vpop.f32.mrb[0].mxu0
  %v6506 = vadd.f32 0.0, %v6505
  %v6507 = vpop.f32.mrb[0].mxu0
  %v6508 = vadd.f32 0.0, %v6507
  %6509 = vdwg.mxu0
  %v6514 = vrot.slane %v6435, 6
  %v6515 = vrot.slane %v6437, 6
  %v6516 = vrot.slane %v6506, 6
  %v6517 = vrot.slane %v6508, 6
  %v6522 = vadd.f32 %v5947, %v6514
  %v6523 = vadd.f32 %v5949, %v6515
  %v6524 = vadd.f32 %v6018, %v6516
  %v6525 = vadd.f32 %v6020, %v6517
  %v6526 = vmul.f32 %v6522, 0.5
  %v6527 = vmul.f32 %v6523, 0.5
  %v6528 = vmul.f32 %v6524, 0.5
  %v6529 = vtanh.pop %v6526
  %v6530 = vtanh.pop %v6527
  %v6531 = vtanh.pop %v6528
  %v6532 = vmul.f32 %v6529, 0.5
  %v6533 = vmul.f32 %v6530, 0.5
  %v6534 = vmul.f32 %v6531, 0.5
  %v6535 = vadd.f32 %v6532, 0.5
  %v6536 = vadd.f32 %v6533, 0.5
  %v6537 = vadd.f32 %v6534, 0.5
  %v6538 = vtanh.pop %v6525
  %v6540 = vrot.slane %v6362, 7
  %v6542 = vmul.f32 %v6536, %v6540
  %v6543 = vmul.f32 %v6535, %v6538
  %v6544 = vadd.f32 %v6542, %v6543
  %v6545 = vtanh.pop %v6544
  %v6546 = vmul.f32 %v6537, %v6545
  %v6548 = vrot.slane %v6546, 2
  %6550 = vmatprep.subr.mxu0 %v5794
  %6551 = vmatpush1.msra.mxu0 %v5793
  %6552 = vmatprep.subr.mxu0 %v5798
  %6553 = vmatpush1.msra.mxu0 %v5797
  %6554 = vmatprep.subr.mxu0 %v5802
  %6555 = vmatpush1.msra.mxu0 %v5801
  %6556 = vmatprep.subr.mxu0 %v5806
  %6557 = vmatpush1.msra.mxu0 %v5805
  %6558 = vmatprep.subr.mxu0 %v5810
  %6559 = vmatpush1.msra.mxu0 %v5809
  %6560 = vmatprep.subr.mxu0 %v5814
  %6561 = vmatpush1.msra.mxu0 %v5813
  %6562 = vmatprep.subr.mxu0 %v5818
  %6563 = vmatpush1.msra.mxu0 %v5817
  %6564 = vmatprep.subr.mxu0 %v5822
  %6565 = vmatpush1.msra.mxu0 %v5821
  %6566 = vmatprep.subr.mxu0 %v5826
  %6567 = vmatpush1.msra.mxu0 %v5825
  %6568 = vmatprep.subr.mxu0 %v5830
  %6569 = vmatpush1.msra.mxu0 %v5829
  %6570 = vmatprep.subr.mxu0 %v5834
  %6571 = vmatpush1.msra.mxu0 %v5833
  %6572 = vmatprep.subr.mxu0 %v5838
  %6573 = vmatpush1.msra.mxu0 %v5837
  %6574 = vmatprep.subr.mxu0 %v5842
  %6575 = vmatpush1.msra.mxu0 %v5841
  %6576 = vmatprep.subr.mxu0 %v5846
  %6577 = vmatpush1.msra.mxu0 %v5845
  %6578 = vmatprep.subr.mxu0 %v5850
  %6579 = vmatpush1.msra.mxu0 %v5849
  %6580 = vmatprep.subr.mxu0 %v5854
  %6581 = vmatpush1.msra.mxu0 %v5853
  %6582 = vmatprep.subr.mxu0 0.0
  %6583 = vmatpush1.msra.mxu0 0.0
  %6584 = vmatprep.subr.mxu0 0.0
  %6585 = vmatpush1.msra.mxu0 0.0
  %6586 = vmatprep.subr.mxu0 0.0
  %6587 = vmatpush1.msra.mxu0 0.0
  %6588 = vmatprep.subr.mxu0 0.0
  %6589 = vmatpush1.msra.mxu0 0.0
  %6590 = vmatprep.subr.mxu0 0.0
  %6591 = vmatpush1.msra.mxu0 0.0
  %6592 = vmatprep.subr.mxu0 0.0
  %6593 = vmatpush1.msra.mxu0 0.0
  %6594 = vmatprep.subr.mxu0 0.0
  %6595 = vmatpush1.msra.mxu0 0.0
  %6596 = vmatprep.subr.mxu0 0.0
  %6597 = vmatpush1.msra.mxu0 0.0
  %6598 = vmatprep.subr.mxu0 0.0
  %6599 = vmatpush1.msra.mxu0 0.0
  %6600 = vmatprep.subr.mxu0 0.0
  %6601 = vmatpush1.msra.mxu0 0.0
  %6602 = vmatprep.subr.mxu0 0.0
  %6603 = vmatpush1.msra.mxu0 0.0
  %6604 = vmatprep.subr.mxu0 0.0
  %6605 = vmatpush1.msra.mxu0 0.0
  %6606 = vmatprep.subr.mxu0 0.0
  %6607 = vmatpush1.msra.mxu0 0.0
  %6608 = vmatprep.subr.mxu0 0.0
  %6609 = vmatpush1.msra.mxu0 0.0
  %6610 = vmatprep.subr.mxu0 0.0
  %6611 = vmatpush1.msra.mxu0 0.0
  %6612 = vmatprep.subr.mxu0 0.0
  %6613 = vmatpush1.msra.mxu0 0.0
  %6614 = vmatprep.mubr.f32.mxu0 0.0
  %6615 = vmatmul.mubr.f32.gmra.mrb[0].mxu0 %v6548
  %v6616 = vpop.f32.mrb[0].mxu0
  %v6617 = vadd.f32 0.0, %v6616
  %v6618 = vpop.f32.mrb[0].mxu0
  %v6619 = vadd.f32 0.0, %v6618
  %6620 = vdwg.mxu0
  %6621 = vmatprep.subr.mxu0 %v5796
  %6622 = vmatpush1.msra.mxu0 %v5795
  %6623 = vmatprep.subr.mxu0 %v5800
  %6624 = vmatpush1.msra.mxu0 %v5799
  %6625 = vmatprep.subr.mxu0 %v5804
  %6626 = vmatpush1.msra.mxu0 %v5803
  %6627 = vmatprep.subr.mxu0 %v5808
  %6628 = vmatpush1.msra.mxu0 %v5807
  %6629 = vmatprep.subr.mxu0 %v5812
  %6630 = vmatpush1.msra.mxu0 %v5811
  %6631 = vmatprep.subr.mxu0 %v5816
  %6632 = vmatpush1.msra.mxu0 %v5815
  %6633 = vmatprep.subr.mxu0 %v5820
  %6634 = vmatpush1.msra.mxu0 %v5819
  %6635 = vmatprep.subr.mxu0 %v5824
  %6636 = vmatpush1.msra.mxu0 %v5823
  %6637 = vmatprep.subr.mxu0 %v5828
  %6638 = vmatpush1.msra.mxu0 %v5827
  %6639 = vmatprep.subr.mxu0 %v5832
  %6640 = vmatpush1.msra.mxu0 %v5831
  %6641 = vmatprep.subr.mxu0 %v5836
  %6642 = vmatpush1.msra.mxu0 %v5835
  %6643 = vmatprep.subr.mxu0 %v5840
  %6644 = vmatpush1.msra.mxu0 %v5839
  %6645 = vmatprep.subr.mxu0 %v5844
  %6646 = vmatpush1.msra.mxu0 %v5843
  %6647 = vmatprep.subr.mxu0 %v5848
  %6648 = vmatpush1.msra.mxu0 %v5847
  %6649 = vmatprep.subr.mxu0 %v5852
  %6650 = vmatpush1.msra.mxu0 %v5851
  %6651 = vmatprep.subr.mxu0 %v5856
  %6652 = vmatpush1.msra.mxu0 %v5855
  %6653 = vmatprep.subr.mxu0 0.0
  %6654 = vmatpush1.msra.mxu0 0.0
  %6655 = vmatprep.subr.mxu0 0.0
  %6656 = vmatpush1.msra.mxu0 0.0
  %6657 = vmatprep.subr.mxu0 0.0
  %6658 = vmatpush1.msra.mxu0 0.0
  %6659 = vmatprep.subr.mxu0 0.0
  %6660 = vmatpush1.msra.mxu0 0.0
  %6661 = vmatprep.subr.mxu0 0.0
  %6662 = vmatpush1.msra.mxu0 0.0
  %6663 = vmatprep.subr.mxu0 0.0
  %6664 = vmatpush1.msra.mxu0 0.0
  %6665 = vmatprep.subr.mxu0 0.0
  %6666 = vmatpush1.msra.mxu0 0.0
  %6667 = vmatprep.subr.mxu0 0.0
  %6668 = vmatpush1.msra.mxu0 0.0
  %6669 = vmatprep.subr.mxu0 0.0
  %6670 = vmatpush1.msra.mxu0 0.0
  %6671 = vmatprep.subr.mxu0 0.0
  %6672 = vmatpush1.msra.mxu0 0.0
  %6673 = vmatprep.subr.mxu0 0.0
  %6674 = vmatpush1.msra.mxu0 0.0
  %6675 = vmatprep.subr.mxu0 0.0
  %6676 = vmatpush1.msra.mxu0 0.0
  %6677 = vmatprep.subr.mxu0 0.0
  %6678 = vmatpush1.msra.mxu0 0.0
  %6679 = vmatprep.subr.mxu0 0.0
  %6680 = vmatpush1.msra.mxu0 0.0
  %6681 = vmatprep.subr.mxu0 0.0
  %6682 = vmatpush1.msra.mxu0 0.0
  %6683 = vmatprep.subr.mxu0 0.0
  %6684 = vmatpush1.msra.mxu0 0.0
  %6685 = vmatprep.mubr.f32.mxu0 0.0
  %6686 = vmatmul.mubr.f32.gmra.mrb[0].mxu0 %v6548
  %v6687 = vpop.f32.mrb[0].mxu0
  %v6688 = vadd.f32 0.0, %v6687
  %v6689 = vpop.f32.mrb[0].mxu0
  %v6690 = vadd.f32 0.0, %v6689
  %6691 = vdwg.mxu0
  %v6696 = vrot.slane %v6617, 5
  %v6697 = vrot.slane %v6619, 5
  %v6698 = vrot.slane %v6688, 5
  %v6699 = vrot.slane %v6690, 5
  %v6704 = vadd.f32 %v5947, %v6696
  %v6705 = vadd.f32 %v5949, %v6697
  %v6706 = vadd.f32 %v6018, %v6698
  %v6707 = vadd.f32 %v6020, %v6699
  %v6708 = vmul.f32 %v6704, 0.5
  %v6709 = vmul.f32 %v6705, 0.5
  %v6710 = vmul.f32 %v6706, 0.5
  %v6711 = vtanh.pop %v6708
  %v6712 = vtanh.pop %v6709
  %v6713 = vtanh.pop %v6710
  %v6714 = vmul.f32 %v6711, 0.5
  %v6715 = vmul.f32 %v6712, 0.5
  %v6716 = vmul.f32 %v6713, 0.5
  %v6717 = vadd.f32 %v6714, 0.5
  %v6718 = vadd.f32 %v6715, 0.5
  %v6719 = vadd.f32 %v6716, 0.5
  %v6720 = vtanh.pop %v6707
  %v6722 = vrot.slane %v6544, 7
  %v6724 = vmul.f32 %v6718, %v6722
  %v6725 = vmul.f32 %v6717, %v6720
  %v6726 = vadd.f32 %v6724, %v6725
  %v6727 = vtanh.pop %v6726
  %v6728 = vmul.f32 %v6719, %v6727
  %v6730 = vrot.slane %v6728, 3
  %6732 = vmatprep.subr.mxu0 %v5794
  %6733 = vmatpush1.msra.mxu0 %v5793
  %6734 = vmatprep.subr.mxu0 %v5798
  %6735 = vmatpush1.msra.mxu0 %v5797
  %6736 = vmatprep.subr.mxu0 %v5802
  %6737 = vmatpush1.msra.mxu0 %v5801
  %6738 = vmatprep.subr.mxu0 %v5806
  %6739 = vmatpush1.msra.mxu0 %v5805
  %6740 = vmatprep.subr.mxu0 %v5810
  %6741 = vmatpush1.msra.mxu0 %v5809
  %6742 = vmatprep.subr.mxu0 %v5814
  %6743 = vmatpush1.msra.mxu0 %v5813
  %6744 = vmatprep.subr.mxu0 %v5818
  %6745 = vmatpush1.msra.mxu0 %v5817
  %6746 = vmatprep.subr.mxu0 %v5822
  %6747 = vmatpush1.msra.mxu0 %v5821
  %6748 = vmatprep.subr.mxu0 %v5826
  %6749 = vmatpush1.msra.mxu0 %v5825
  %6750 = vmatprep.subr.mxu0 %v5830
  %6751 = vmatpush1.msra.mxu0 %v5829
  %6752 = vmatprep.subr.mxu0 %v5834
  %6753 = vmatpush1.msra.mxu0 %v5833
  %6754 = vmatprep.subr.mxu0 %v5838
  %6755 = vmatpush1.msra.mxu0 %v5837
  %6756 = vmatprep.subr.mxu0 %v5842
  %6757 = vmatpush1.msra.mxu0 %v5841
  %6758 = vmatprep.subr.mxu0 %v5846
  %6759 = vmatpush1.msra.mxu0 %v5845
  %6760 = vmatprep.subr.mxu0 %v5850
  %6761 = vmatpush1.msra.mxu0 %v5849
  %6762 = vmatprep.subr.mxu0 %v5854
  %6763 = vmatpush1.msra.mxu0 %v5853
  %6764 = vmatprep.subr.mxu0 0.0
  %6765 = vmatpush1.msra.mxu0 0.0
  %6766 = vmatprep.subr.mxu0 0.0
  %6767 = vmatpush1.msra.mxu0 0.0
  %6768 = vmatprep.subr.mxu0 0.0
  %6769 = vmatpush1.msra.mxu0 0.0
  %6770 = vmatprep.subr.mxu0 0.0
  %6771 = vmatpush1.msra.mxu0 0.0
  %6772 = vmatprep.subr.mxu0 0.0
  %6773 = vmatpush1.msra.mxu0 0.0
  %6774 = vmatprep.subr.mxu0 0.0
  %6775 = vmatpush1.msra.mxu0 0.0
  %6776 = vmatprep.subr.mxu0 0.0
  %6777 = vmatpush1.msra.mxu0 0.0
  %6778 = vmatprep.subr.mxu0 0.0
  %6779 = vmatpush1.msra.mxu0 0.0
  %6780 = vmatprep.subr.mxu0 0.0
  %6781 = vmatpush1.msra.mxu0 0.0
  %6782 = vmatprep.subr.mxu0 0.0
  %6783 = vmatpush1.msra.mxu0 0.0
  %6784 = vmatprep.subr.mxu0 0.0
  %6785 = vmatpush1.msra.mxu0 0.0
  %6786 = vmatprep.subr.mxu0 0.0
  %6787 = vmatpush1.msra.mxu0 0.0
  %6788 = vmatprep.subr.mxu0 0.0
  %6789 = vmatpush1.msra.mxu0 0.0
  %6790 = vmatprep.subr.mxu0 0.0
  %6791 = vmatpush1.msra.mxu0 0.0
  %6792 = vmatprep.subr.mxu0 0.0
  %6793 = vmatpush1.msra.mxu0 0.0
  %6794 = vmatprep.subr.mxu0 0.0
  %6795 = vmatpush1.msra.mxu0 0.0
  %6796 = vmatprep.mubr.f32.mxu0 0.0
  %6797 = vmatmul.mubr.f32.gmra.mrb[0].mxu0 %v6730
  %v6798 = vpop.f32.mrb[0].mxu0
  %v6799 = vadd.f32 0.0, %v6798
  %v6800 = vpop.f32.mrb[0].mxu0
  %v6801 = vadd.f32 0.0, %v6800
  %6802 = vdwg.mxu0
  %6803 = vmatprep.subr.mxu0 %v5796
  %6804 = vmatpush1.msra.mxu0 %v5795
  %6805 = vmatprep.subr.mxu0 %v5800
  %6806 = vmatpush1.msra.mxu0 %v5799
  %6807 = vmatprep.subr.mxu0 %v5804
  %6808 = vmatpush1.msra.mxu0 %v5803
  %6809 = vmatprep.subr.mxu0 %v5808
  %6810 = vmatpush1.msra.mxu0 %v5807
  %6811 = vmatprep.subr.mxu0 %v5812
  %6812 = vmatpush1.msra.mxu0 %v5811
  %6813 = vmatprep.subr.mxu0 %v5816
  %6814 = vmatpush1.msra.mxu0 %v5815
  %6815 = vmatprep.subr.mxu0 %v5820
  %6816 = vmatpush1.msra.mxu0 %v5819
  %6817 = vmatprep.subr.mxu0 %v5824
  %6818 = vmatpush1.msra.mxu0 %v5823
  %6819 = vmatprep.subr.mxu0 %v5828
  %6820 = vmatpush1.msra.mxu0 %v5827
  %6821 = vmatprep.subr.mxu0 %v5832
  %6822 = vmatpush1.msra.mxu0 %v5831
  %6823 = vmatprep.subr.mxu0 %v5836
  %6824 = vmatpush1.msra.mxu0 %v5835
  %6825 = vmatprep.subr.mxu0 %v5840
  %6826 = vmatpush1.msra.mxu0 %v5839
  %6827 = vmatprep.subr.mxu0 %v5844
  %6828 = vmatpush1.msra.mxu0 %v5843
  %6829 = vmatprep.subr.mxu0 %v5848
  %6830 = vmatpush1.msra.mxu0 %v5847
  %6831 = vmatprep.subr.mxu0 %v5852
  %6832 = vmatpush1.msra.mxu0 %v5851
  %6833 = vmatprep.subr.mxu0 %v5856
  %6834 = vmatpush1.msra.mxu0 %v5855
  %6835 = vmatprep.subr.mxu0 0.0
  %6836 = vmatpush1.msra.mxu0 0.0
  %6837 = vmatprep.subr.mxu0 0.0
  %6838 = vmatpush1.msra.mxu0 0.0
  %6839 = vmatprep.subr.mxu0 0.0
  %6840 = vmatpush1.msra.mxu0 0.0
  %6841 = vmatprep.subr.mxu0 0.0
  %6842 = vmatpush1.msra.mxu0 0.0
  %6843 = vmatprep.subr.mxu0 0.0
  %6844 = vmatpush1.msra.mxu0 0.0
  %6845 = vmatprep.subr.mxu0 0.0
  %6846 = vmatpush1.msra.mxu0 0.0
  %6847 = vmatprep.subr.mxu0 0.0
  %6848 = vmatpush1.msra.mxu0 0.0
  %6849 = vmatprep.subr.mxu0 0.0
  %6850 = vmatpush1.msra.mxu0 0.0
  %6851 = vmatprep.subr.mxu0 0.0
  %6852 = vmatpush1.msra.mxu0 0.0
  %6853 = vmatprep.subr.mxu0 0.0
  %6854 = vmatpush1.msra.mxu0 0.0
  %6855 = vmatprep.subr.mxu0 0.0
  %6856 = vmatpush1.msra.mxu0 0.0
  %6857 = vmatprep.subr.mxu0 0.0
  %6858 = vmatpush1.msra.mxu0 0.0
  %6859 = vmatprep.subr.mxu0 0.0
  %6860 = vmatpush1.msra.mxu0 0.0
  %6861 = vmatprep.subr.mxu0 0.0
  %6862 = vmatpush1.msra.mxu0 0.0
  %6863 = vmatprep.subr.mxu0 0.0
  %6864 = vmatpush1.msra.mxu0 0.0
  %6865 = vmatprep.subr.mxu0 0.0
  %6866 = vmatpush1.msra.mxu0 0.0
  %6867 = vmatprep.mubr.f32.mxu0 0.0
  %6868 = vmatmul.mubr.f32.gmra.mrb[0].mxu0 %v6730
  %v6869 = vpop.f32.mrb[0].mxu0
  %v6870 = vadd.f32 0.0, %v6869
  %v6871 = vpop.f32.mrb[0].mxu0
  %v6872 = vadd.f32 0.0, %v6871
  %6873 = vdwg.mxu0
  %v6878 = vrot.slane %v6799, 4
  %v6879 = vrot.slane %v6801, 4
  %v6880 = vrot.slane %v6870, 4
  %v6881 = vrot.slane %v6872, 4
  %v6886 = vadd.f32 %v5947, %v6878
  %v6887 = vadd.f32 %v5949, %v6879
  %v6888 = vadd.f32 %v6018, %v6880
  %v6889 = vadd.f32 %v6020, %v6881
  %v6890 = vmul.f32 %v6886, 0.5
  %v6891 = vmul.f32 %v6887, 0.5
  %v6892 = vmul.f32 %v6888, 0.5
  %v6893 = vtanh.pop %v6890
  %v6894 = vtanh.pop %v6891
  %v6895 = vtanh.pop %v6892
  %v6896 = vmul.f32 %v6893, 0.5
  %v6897 = vmul.f32 %v6894, 0.5
  %v6898 = vmul.f32 %v6895, 0.5
  %v6899 = vadd.f32 %v6896, 0.5
  %v6900 = vadd.f32 %v6897, 0.5
  %v6901 = vadd.f32 %v6898, 0.5
  %v6902 = vtanh.pop %v6889
  %v6904 = vrot.slane %v6726, 7
  %v6906 = vmul.f32 %v6900, %v6904
  %v6907 = vmul.f32 %v6899, %v6902
  %v6908 = vadd.f32 %v6906, %v6907
  %v6909 = vtanh.pop %v6908
  %v6910 = vmul.f32 %v6901, %v6909
  %v6912 = vrot.slane %v6910, 4
  %6914 = vmatprep.subr.mxu0 %v5794
  %6915 = vmatpush1.msra.mxu0 %v5793
  %6916 = vmatprep.subr.mxu0 %v5798
  %6917 = vmatpush1.msra.mxu0 %v5797
  %6918 = vmatprep.subr.mxu0 %v5802
  %6919 = vmatpush1.msra.mxu0 %v5801
  %6920 = vmatprep.subr.mxu0 %v5806
  %6921 = vmatpush1.msra.mxu0 %v5805
  %6922 = vmatprep.subr.mxu0 %v5810
  %6923 = vmatpush1.msra.mxu0 %v5809
  %6924 = vmatprep.subr.mxu0 %v5814
  %6925 = vmatpush1.msra.mxu0 %v5813
  %6926 = vmatprep.subr.mxu0 %v5818
  %6927 = vmatpush1.msra.mxu0 %v5817
  %6928 = vmatprep.subr.mxu0 %v5822
  %6929 = vmatpush1.msra.mxu0 %v5821
  %6930 = vmatprep.subr.mxu0 %v5826
  %6931 = vmatpush1.msra.mxu0 %v5825
  %6932 = vmatprep.subr.mxu0 %v5830
  %6933 = vmatpush1.msra.mxu0 %v5829
  %6934 = vmatprep.subr.mxu0 %v5834
  %6935 = vmatpush1.msra.mxu0 %v5833
  %6936 = vmatprep.subr.mxu0 %v5838
  %6937 = vmatpush1.msra.mxu0 %v5837
  %6938 = vmatprep.subr.mxu0 %v5842
  %6939 = vmatpush1.msra.mxu0 %v5841
  %6940 = vmatprep.subr.mxu0 %v5846
  %6941 = vmatpush1.msra.mxu0 %v5845
  %6942 = vmatprep.subr.mxu0 %v5850
  %6943 = vmatpush1.msra.mxu0 %v5849
  %6944 = vmatprep.subr.mxu0 %v5854
  %6945 = vmatpush1.msra.mxu0 %v5853
  %6946 = vmatprep.subr.mxu0 0.0
  %6947 = vmatpush1.msra.mxu0 0.0
  %6948 = vmatprep.subr.mxu0 0.0
  %6949 = vmatpush1.msra.mxu0 0.0
  %6950 = vmatprep.subr.mxu0 0.0
  %6951 = vmatpush1.msra.mxu0 0.0
  %6952 = vmatprep.subr.mxu0 0.0
  %6953 = vmatpush1.msra.mxu0 0.0
  %6954 = vmatprep.subr.mxu0 0.0
  %6955 = vmatpush1.msra.mxu0 0.0
  %6956 = vmatprep.subr.mxu0 0.0
  %6957 = vmatpush1.msra.mxu0 0.0
  %6958 = vmatprep.subr.mxu0 0.0
  %6959 = vmatpush1.msra.mxu0 0.0
  %6960 = vmatprep.subr.mxu0 0.0
  %6961 = vmatpush1.msra.mxu0 0.0
  %6962 = vmatprep.subr.mxu0 0.0
  %6963 = vmatpush1.msra.mxu0 0.0
  %6964 = vmatprep.subr.mxu0 0.0
  %6965 = vmatpush1.msra.mxu0 0.0
  %6966 = vmatprep.subr.mxu0 0.0
  %6967 = vmatpush1.msra.mxu0 0.0
  %6968 = vmatprep.subr.mxu0 0.0
  %6969 = vmatpush1.msra.mxu0 0.0
  %6970 = vmatprep.subr.mxu0 0.0
  %6971 = vmatpush1.msra.mxu0 0.0
  %6972 = vmatprep.subr.mxu0 0.0
  %6973 = vmatpush1.msra.mxu0 0.0
  %6974 = vmatprep.subr.mxu0 0.0
  %6975 = vmatpush1.msra.mxu0 0.0
  %6976 = vmatprep.subr.mxu0 0.0
  %6977 = vmatpush1.msra.mxu0 0.0
  %6978 = vmatprep.mubr.f32.mxu0 0.0
  %6979 = vmatmul.mubr.f32.gmra.mrb[0].mxu0 %v6912
  %v6980 = vpop.f32.mrb[0].mxu0
  %v6981 = vadd.f32 0.0, %v6980
  %v6982 = vpop.f32.mrb[0].mxu0
  %v6983 = vadd.f32 0.0, %v6982
  %6984 = vdwg.mxu0
  %6985 = vmatprep.subr.mxu0 %v5796
  %6986 = vmatpush1.msra.mxu0 %v5795
  %6987 = vmatprep.subr.mxu0 %v5800
  %6988 = vmatpush1.msra.mxu0 %v5799
  %6989 = vmatprep.subr.mxu0 %v5804
  %6990 = vmatpush1.msra.mxu0 %v5803
  %6991 = vmatprep.subr.mxu0 %v5808
  %6992 = vmatpush1.msra.mxu0 %v5807
  %6993 = vmatprep.subr.mxu0 %v5812
  %6994 = vmatpush1.msra.mxu0 %v5811
  %6995 = vmatprep.subr.mxu0 %v5816
  %6996 = vmatpush1.msra.mxu0 %v5815
  %6997 = vmatprep.subr.mxu0 %v5820
  %6998 = vmatpush1.msra.mxu0 %v5819
  %6999 = vmatprep.subr.mxu0 %v5824
  %7000 = vmatpush1.msra.mxu0 %v5823
  %7001 = vmatprep.subr.mxu0 %v5828
  %7002 = vmatpush1.msra.mxu0 %v5827
  %7003 = vmatprep.subr.mxu0 %v5832
  %7004 = vmatpush1.msra.mxu0 %v5831
  %7005 = vmatprep.subr.mxu0 %v5836
  %7006 = vmatpush1.msra.mxu0 %v5835
  %7007 = vmatprep.subr.mxu0 %v5840
  %7008 = vmatpush1.msra.mxu0 %v5839
  %7009 = vmatprep.subr.mxu0 %v5844
  %7010 = vmatpush1.msra.mxu0 %v5843
  %7011 = vmatprep.subr.mxu0 %v5848
  %7012 = vmatpush1.msra.mxu0 %v5847
  %7013 = vmatprep.subr.mxu0 %v5852
  %7014 = vmatpush1.msra.mxu0 %v5851
  %7015 = vmatprep.subr.mxu0 %v5856
  %7016 = vmatpush1.msra.mxu0 %v5855
  %7017 = vmatprep.subr.mxu0 0.0
  %7018 = vmatpush1.msra.mxu0 0.0
  %7019 = vmatprep.subr.mxu0 0.0
  %7020 = vmatpush1.msra.mxu0 0.0
  %7021 = vmatprep.subr.mxu0 0.0
  %7022 = vmatpush1.msra.mxu0 0.0
  %7023 = vmatprep.subr.mxu0 0.0
  %7024 = vmatpush1.msra.mxu0 0.0
  %7025 = vmatprep.subr.mxu0 0.0
  %7026 = vmatpush1.msra.mxu0 0.0
  %7027 = vmatprep.subr.mxu0 0.0
  %7028 = vmatpush1.msra.mxu0 0.0
  %7029 = vmatprep.subr.mxu0 0.0
  %7030 = vmatpush1.msra.mxu0 0.0
  %7031 = vmatprep.subr.mxu0 0.0
  %7032 = vmatpush1.msra.mxu0 0.0
  %7033 = vmatprep.subr.mxu0 0.0
  %7034 = vmatpush1.msra.mxu0 0.0
  %7035 = vmatprep.subr.mxu0 0.0
  %7036 = vmatpush1.msra.mxu0 0.0
  %7037 = vmatprep.subr.mxu0 0.0
  %7038 = vmatpush1.msra.mxu0 0.0
  %7039 = vmatprep.subr.mxu0 0.0
  %7040 = vmatpush1.msra.mxu0 0.0
  %7041 = vmatprep.subr.mxu0 0.0
  %7042 = vmatpush1.msra.mxu0 0.0
  %7043 = vmatprep.subr.mxu0 0.0
  %7044 = vmatpush1.msra.mxu0 0.0
  %7045 = vmatprep.subr.mxu0 0.0
  %7046 = vmatpush1.msra.mxu0 0.0
  %7047 = vmatprep.subr.mxu0 0.0
  %7048 = vmatpush1.msra.mxu0 0.0
  %7049 = vmatprep.mubr.f32.mxu0 0.0
  %7050 = vmatmul.mubr.f32.gmra.mrb[0].mxu0 %v6912
  %v7051 = vpop.f32.mrb[0].mxu0
  %v7052 = vadd.f32 0.0, %v7051
  %v7053 = vpop.f32.mrb[0].mxu0
  %v7054 = vadd.f32 0.0, %v7053
  %7055 = vdwg.mxu0
  %v7060 = vrot.slane %v6981, 3
  %v7061 = vrot.slane %v6983, 3
  %v7062 = vrot.slane %v7052, 3
  %v7063 = vrot.slane %v7054, 3
  %v7068 = vadd.f32 %v5947, %v7060
  %v7069 = vadd.f32 %v5949, %v7061
  %v7070 = vadd.f32 %v6018, %v7062
  %v7071 = vadd.f32 %v6020, %v7063
  %v7072 = vmul.f32 %v7068, 0.5
  %v7073 = vmul.f32 %v7069, 0.5
  %v7074 = vmul.f32 %v7070, 0.5
  %v7075 = vtanh.pop %v7072
  %v7076 = vtanh.pop %v7073
  %v7077 = vtanh.pop %v7074
  %v7078 = vmul.f32 %v7075, 0.5
  %v7079 = vmul.f32 %v7076, 0.5
  %v7080 = vmul.f32 %v7077, 0.5
  %v7081 = vadd.f32 %v7078, 0.5
  %v7082 = vadd.f32 %v7079, 0.5
  %v7083 = vadd.f32 %v7080, 0.5
  %v7084 = vtanh.pop %v7071
  %v7086 = vrot.slane %v6908, 7
  %v7088 = vmul.f32 %v7082, %v7086
  %v7089 = vmul.f32 %v7081, %v7084
  %v7090 = vadd.f32 %v7088, %v7089
  %v7091 = vtanh.pop %v7090
  %v7092 = vmul.f32 %v7083, %v7091
  %v7094 = vrot.slane %v7092, 5
  %7096 = vmatprep.subr.mxu0 %v5794
  %7097 = vmatpush1.msra.mxu0 %v5793
  %7098 = vmatprep.subr.mxu0 %v5798
  %7099 = vmatpush1.msra.mxu0 %v5797
  %7100 = vmatprep.subr.mxu0 %v5802
  %7101 = vmatpush1.msra.mxu0 %v5801
  %7102 = vmatprep.subr.mxu0 %v5806
  %7103 = vmatpush1.msra.mxu0 %v5805
  %7104 = vmatprep.subr.mxu0 %v5810
  %7105 = vmatpush1.msra.mxu0 %v5809
  %7106 = vmatprep.subr.mxu0 %v5814
  %7107 = vmatpush1.msra.mxu0 %v5813
  %7108 = vmatprep.subr.mxu0 %v5818
  %7109 = vmatpush1.msra.mxu0 %v5817
  %7110 = vmatprep.subr.mxu0 %v5822
  %7111 = vmatpush1.msra.mxu0 %v5821
  %7112 = vmatprep.subr.mxu0 %v5826
  %7113 = vmatpush1.msra.mxu0 %v5825
  %7114 = vmatprep.subr.mxu0 %v5830
  %7115 = vmatpush1.msra.mxu0 %v5829
  %7116 = vmatprep.subr.mxu0 %v5834
  %7117 = vmatpush1.msra.mxu0 %v5833
  %7118 = vmatprep.subr.mxu0 %v5838
  %7119 = vmatpush1.msra.mxu0 %v5837
  %7120 = vmatprep.subr.mxu0 %v5842
  %7121 = vmatpush1.msra.mxu0 %v5841
  %7122 = vmatprep.subr.mxu0 %v5846
  %7123 = vmatpush1.msra.mxu0 %v5845
  %7124 = vmatprep.subr.mxu0 %v5850
  %7125 = vmatpush1.msra.mxu0 %v5849
  %7126 = vmatprep.subr.mxu0 %v5854
  %7127 = vmatpush1.msra.mxu0 %v5853
  %7128 = vmatprep.subr.mxu0 0.0
  %7129 = vmatpush1.msra.mxu0 0.0
  %7130 = vmatprep.subr.mxu0 0.0
  %7131 = vmatpush1.msra.mxu0 0.0
  %7132 = vmatprep.subr.mxu0 0.0
  %7133 = vmatpush1.msra.mxu0 0.0
  %7134 = vmatprep.subr.mxu0 0.0
  %7135 = vmatpush1.msra.mxu0 0.0
  %7136 = vmatprep.subr.mxu0 0.0
  %7137 = vmatpush1.msra.mxu0 0.0
  %7138 = vmatprep.subr.mxu0 0.0
  %7139 = vmatpush1.msra.mxu0 0.0
  %7140 = vmatprep.subr.mxu0 0.0
  %7141 = vmatpush1.msra.mxu0 0.0
  %7142 = vmatprep.subr.mxu0 0.0
  %7143 = vmatpush1.msra.mxu0 0.0
  %7144 = vmatprep.subr.mxu0 0.0
  %7145 = vmatpush1.msra.mxu0 0.0
  %7146 = vmatprep.subr.mxu0 0.0
  %7147 = vmatpush1.msra.mxu0 0.0
  %7148 = vmatprep.subr.mxu0 0.0
  %7149 = vmatpush1.msra.mxu0 0.0
  %7150 = vmatprep.subr.mxu0 0.0
  %7151 = vmatpush1.msra.mxu0 0.0
  %7152 = vmatprep.subr.mxu0 0.0
  %7153 = vmatpush1.msra.mxu0 0.0
  %7154 = vmatprep.subr.mxu0 0.0
  %7155 = vmatpush1.msra.mxu0 0.0
  %7156 = vmatprep.subr.mxu0 0.0
  %7157 = vmatpush1.msra.mxu0 0.0
  %7158 = vmatprep.subr.mxu0 0.0
  %7159 = vmatpush1.msra.mxu0 0.0
  %7160 = vmatprep.mubr.f32.mxu0 0.0
  %7161 = vmatmul.mubr.f32.gmra.mrb[0].mxu0 %v7094
  %v7162 = vpop.f32.mrb[0].mxu0
  %v7163 = vadd.f32 0.0, %v7162
  %v7164 = vpop.f32.mrb[0].mxu0
  %v7165 = vadd.f32 0.0, %v7164
  %7166 = vdwg.mxu0
  %7167 = vmatprep.subr.mxu0 %v5796
  %7168 = vmatpush1.msra.mxu0 %v5795
  %7169 = vmatprep.subr.mxu0 %v5800
  %7170 = vmatpush1.msra.mxu0 %v5799
  %7171 = vmatprep.subr.mxu0 %v5804
  %7172 = vmatpush1.msra.mxu0 %v5803
  %7173 = vmatprep.subr.mxu0 %v5808
  %7174 = vmatpush1.msra.mxu0 %v5807
  %7175 = vmatprep.subr.mxu0 %v5812
  %7176 = vmatpush1.msra.mxu0 %v5811
  %7177 = vmatprep.subr.mxu0 %v5816
  %7178 = vmatpush1.msra.mxu0 %v5815
  %7179 = vmatprep.subr.mxu0 %v5820
  %7180 = vmatpush1.msra.mxu0 %v5819
  %7181 = vmatprep.subr.mxu0 %v5824
  %7182 = vmatpush1.msra.mxu0 %v5823
  %7183 = vmatprep.subr.mxu0 %v5828
  %7184 = vmatpush1.msra.mxu0 %v5827
  %7185 = vmatprep.subr.mxu0 %v5832
  %7186 = vmatpush1.msra.mxu0 %v5831
  %7187 = vmatprep.subr.mxu0 %v5836
  %7188 = vmatpush1.msra.mxu0 %v5835
  %7189 = vmatprep.subr.mxu0 %v5840
  %7190 = vmatpush1.msra.mxu0 %v5839
  %7191 = vmatprep.subr.mxu0 %v5844
  %7192 = vmatpush1.msra.mxu0 %v5843
  %7193 = vmatprep.subr.mxu0 %v5848
  %7194 = vmatpush1.msra.mxu0 %v5847
  %7195 = vmatprep.subr.mxu0 %v5852
  %7196 = vmatpush1.msra.mxu0 %v5851
  %7197 = vmatprep.subr.mxu0 %v5856
  %7198 = vmatpush1.msra.mxu0 %v5855
  %7199 = vmatprep.subr.mxu0 0.0
  %7200 = vmatpush1.msra.mxu0 0.0
  %7201 = vmatprep.subr.mxu0 0.0
  %7202 = vmatpush1.msra.mxu0 0.0
  %7203 = vmatprep.subr.mxu0 0.0
  %7204 = vmatpush1.msra.mxu0 0.0
  %7205 = vmatprep.subr.mxu0 0.0
  %7206 = vmatpush1.msra.mxu0 0.0
  %7207 = vmatprep.subr.mxu0 0.0
  %7208 = vmatpush1.msra.mxu0 0.0
  %7209 = vmatprep.subr.mxu0 0.0
  %7210 = vmatpush1.msra.mxu0 0.0
  %7211 = vmatprep.subr.mxu0 0.0
  %7212 = vmatpush1.msra.mxu0 0.0
  %7213 = vmatprep.subr.mxu0 0.0
  %7214 = vmatpush1.msra.mxu0 0.0
  %7215 = vmatprep.subr.mxu0 0.0
  %7216 = vmatpush1.msra.mxu0 0.0
  %7217 = vmatprep.subr.mxu0 0.0
  %7218 = vmatpush1.msra.mxu0 0.0
  %7219 = vmatprep.subr.mxu0 0.0
  %7220 = vmatpush1.msra.mxu0 0.0
  %7221 = vmatprep.subr.mxu0 0.0
  %7222 = vmatpush1.msra.mxu0 0.0
  %7223 = vmatprep.subr.mxu0 0.0
  %7224 = vmatpush1.msra.mxu0 0.0
  %7225 = vmatprep.subr.mxu0 0.0
  %7226 = vmatpush1.msra.mxu0 0.0
  %7227 = vmatprep.subr.mxu0 0.0
  %7228 = vmatpush1.msra.mxu0 0.0
  %7229 = vmatprep.subr.mxu0 0.0
  %7230 = vmatpush1.msra.mxu0 0.0
  %7231 = vmatprep.mubr.f32.mxu0 0.0
  %7232 = vmatmul.mubr.f32.gmra.mrb[0].mxu0 %v7094
  %v7233 = vpop.f32.mrb[0].mxu0
  %v7234 = vadd.f32 0.0, %v7233
  %v7235 = vpop.f32.mrb[0].mxu0
  %v7236 = vadd.f32 0.0, %v7235
  %7237 = vdwg.mxu0
  %v7242 = vrot.slane %v7163, 2
  %v7243 = vrot.slane %v7165, 2
  %v7244 = vrot.slane %v7234, 2
  %v7245 = vrot.slane %v7236, 2
  %v7250 = vadd.f32 %v5947, %v7242
  %v7251 = vadd.f32 %v5949, %v7243
  %v7252 = vadd.f32 %v6018, %v7244
  %v7253 = vadd.f32 %v6020, %v7245
  %v7254 = vmul.f32 %v7250, 0.5
  %v7255 = vmul.f32 %v7251, 0.5
  %v7256 = vmul.f32 %v7252, 0.5
  %v7257 = vtanh.pop %v7254
  %v7258 = vtanh.pop %v7255
  %v7259 = vtanh.pop %v7256
  %v7260 = vmul.f32 %v7257, 0.5
  %v7261 = vmul.f32 %v7258, 0.5
  %v7262 = vmul.f32 %v7259, 0.5
  %v7263 = vadd.f32 %v7260, 0.5
  %v7264 = vadd.f32 %v7261, 0.5
  %v7265 = vadd.f32 %v7262, 0.5
  %v7266 = vtanh.pop %v7253
  %v7268 = vrot.slane %v7090, 7
  %v7270 = vmul.f32 %v7264, %v7268
  %v7271 = vmul.f32 %v7263, %v7266
  %v7272 = vadd.f32 %v7270, %v7271
  %v7273 = vtanh.pop %v7272
  %v7274 = vmul.f32 %v7265, %v7273
  %v7276 = vrot.slane %v7274, 6
  %7278 = vmatprep.subr.mxu0 %v5794
  %7279 = vmatpush1.msra.mxu0 %v5793
  %7280 = vmatprep.subr.mxu0 %v5798
  %7281 = vmatpush1.msra.mxu0 %v5797
  %7282 = vmatprep.subr.mxu0 %v5802
  %7283 = vmatpush1.msra.mxu0 %v5801
  %7284 = vmatprep.subr.mxu0 %v5806
  %7285 = vmatpush1.msra.mxu0 %v5805
  %7286 = vmatprep.subr.mxu0 %v5810
  %7287 = vmatpush1.msra.mxu0 %v5809
  %7288 = vmatprep.subr.mxu0 %v5814
  %7289 = vmatpush1.msra.mxu0 %v5813
  %7290 = vmatprep.subr.mxu0 %v5818
  %7291 = vmatpush1.msra.mxu0 %v5817
  %7292 = vmatprep.subr.mxu0 %v5822
  %7293 = vmatpush1.msra.mxu0 %v5821
  %7294 = vmatprep.subr.mxu0 %v5826
  %7295 = vmatpush1.msra.mxu0 %v5825
  %7296 = vmatprep.subr.mxu0 %v5830
  %7297 = vmatpush1.msra.mxu0 %v5829
  %7298 = vmatprep.subr.mxu0 %v5834
  %7299 = vmatpush1.msra.mxu0 %v5833
  %7300 = vmatprep.subr.mxu0 %v5838
  %7301 = vmatpush1.msra.mxu0 %v5837
  %7302 = vmatprep.subr.mxu0 %v5842
  %7303 = vmatpush1.msra.mxu0 %v5841
  %7304 = vmatprep.subr.mxu0 %v5846
  %7305 = vmatpush1.msra.mxu0 %v5845
  %7306 = vmatprep.subr.mxu0 %v5850
  %7307 = vmatpush1.msra.mxu0 %v5849
  %7308 = vmatprep.subr.mxu0 %v5854
  %7309 = vmatpush1.msra.mxu0 %v5853
  %7310 = vmatprep.subr.mxu0 0.0
  %7311 = vmatpush1.msra.mxu0 0.0
  %7312 = vmatprep.subr.mxu0 0.0
  %7313 = vmatpush1.msra.mxu0 0.0
  %7314 = vmatprep.subr.mxu0 0.0
  %7315 = vmatpush1.msra.mxu0 0.0
  %7316 = vmatprep.subr.mxu0 0.0
  %7317 = vmatpush1.msra.mxu0 0.0
  %7318 = vmatprep.subr.mxu0 0.0
  %7319 = vmatpush1.msra.mxu0 0.0
  %7320 = vmatprep.subr.mxu0 0.0
  %7321 = vmatpush1.msra.mxu0 0.0
  %7322 = vmatprep.subr.mxu0 0.0
  %7323 = vmatpush1.msra.mxu0 0.0
  %7324 = vmatprep.subr.mxu0 0.0
  %7325 = vmatpush1.msra.mxu0 0.0
  %7326 = vmatprep.subr.mxu0 0.0
  %7327 = vmatpush1.msra.mxu0 0.0
  %7328 = vmatprep.subr.mxu0 0.0
  %7329 = vmatpush1.msra.mxu0 0.0
  %7330 = vmatprep.subr.mxu0 0.0
  %7331 = vmatpush1.msra.mxu0 0.0
  %7332 = vmatprep.subr.mxu0 0.0
  %7333 = vmatpush1.msra.mxu0 0.0
  %7334 = vmatprep.subr.mxu0 0.0
  %7335 = vmatpush1.msra.mxu0 0.0
  %7336 = vmatprep.subr.mxu0 0.0
  %7337 = vmatpush1.msra.mxu0 0.0
  %7338 = vmatprep.subr.mxu0 0.0
  %7339 = vmatpush1.msra.mxu0 0.0
  %7340 = vmatprep.subr.mxu0 0.0
  %7341 = vmatpush1.msra.mxu0 0.0
  %7342 = vmatprep.mubr.f32.mxu0 0.0
  %7343 = vmatmul.mubr.f32.gmra.mrb[0].mxu0 %v7276
  %v7344 = vpop.f32.mrb[0].mxu0
  %v7345 = vadd.f32 0.0, %v7344
  %v7346 = vpop.f32.mrb[0].mxu0
  %v7347 = vadd.f32 0.0, %v7346
  %7348 = vdwg.mxu0
  %7349 = vmatprep.subr.mxu0 %v5796
  %7350 = vmatpush1.msra.mxu0 %v5795
  %7351 = vmatprep.subr.mxu0 %v5800
  %7352 = vmatpush1.msra.mxu0 %v5799
  %7353 = vmatprep.subr.mxu0 %v5804
  %7354 = vmatpush1.msra.mxu0 %v5803
  %7355 = vmatprep.subr.mxu0 %v5808
  %7356 = vmatpush1.msra.mxu0 %v5807
  %7357 = vmatprep.subr.mxu0 %v5812
  %7358 = vmatpush1.msra.mxu0 %v5811
  %7359 = vmatprep.subr.mxu0 %v5816
  %7360 = vmatpush1.msra.mxu0 %v5815
  %7361 = vmatprep.subr.mxu0 %v5820
  %7362 = vmatpush1.msra.mxu0 %v5819
  %7363 = vmatprep.subr.mxu0 %v5824
  %7364 = vmatpush1.msra.mxu0 %v5823
  %7365 = vmatprep.subr.mxu0 %v5828
  %7366 = vmatpush1.msra.mxu0 %v5827
  %7367 = vmatprep.subr.mxu0 %v5832
  %7368 = vmatpush1.msra.mxu0 %v5831
  %7369 = vmatprep.subr.mxu0 %v5836
  %7370 = vmatpush1.msra.mxu0 %v5835
  %7371 = vmatprep.subr.mxu0 %v5840
  %7372 = vmatpush1.msra.mxu0 %v5839
  %7373 = vmatprep.subr.mxu0 %v5844
  %7374 = vmatpush1.msra.mxu0 %v5843
  %7375 = vmatprep.subr.mxu0 %v5848
  %7376 = vmatpush1.msra.mxu0 %v5847
  %7377 = vmatprep.subr.mxu0 %v5852
  %7378 = vmatpush1.msra.mxu0 %v5851
  %7379 = vmatprep.subr.mxu0 %v5856
  %7380 = vmatpush1.msra.mxu0 %v5855
  %7381 = vmatprep.subr.mxu0 0.0
  %7382 = vmatpush1.msra.mxu0 0.0
  %7383 = vmatprep.subr.mxu0 0.0
  %7384 = vmatpush1.msra.mxu0 0.0
  %7385 = vmatprep.subr.mxu0 0.0
  %7386 = vmatpush1.msra.mxu0 0.0
  %7387 = vmatprep.subr.mxu0 0.0
  %7388 = vmatpush1.msra.mxu0 0.0
  %7389 = vmatprep.subr.mxu0 0.0
  %7390 = vmatpush1.msra.mxu0 0.0
  %7391 = vmatprep.subr.mxu0 0.0
  %7392 = vmatpush1.msra.mxu0 0.0
  %7393 = vmatprep.subr.mxu0 0.0
  %7394 = vmatpush1.msra.mxu0 0.0
  %7395 = vmatprep.subr.mxu0 0.0
  %7396 = vmatpush1.msra.mxu0 0.0
  %7397 = vmatprep.subr.mxu0 0.0
  %7398 = vmatpush1.msra.mxu0 0.0
  %7399 = vmatprep.subr.mxu0 0.0
  %7400 = vmatpush1.msra.mxu0 0.0
  %7401 = vmatprep.subr.mxu0 0.0
  %7402 = vmatpush1.msra.mxu0 0.0
  %7403 = vmatprep.subr.mxu0 0.0
  %7404 = vmatpush1.msra.mxu0 0.0
  %7405 = vmatprep.subr.mxu0 0.0
  %7406 = vmatpush1.msra.mxu0 0.0
  %7407 = vmatprep.subr.mxu0 0.0
  %7408 = vmatpush1.msra.mxu0 0.0
  %7409 = vmatprep.subr.mxu0 0.0
  %7410 = vmatpush1.msra.mxu0 0.0
  %7411 = vmatprep.subr.mxu0 0.0
  %7412 = vmatpush1.msra.mxu0 0.0
  %7413 = vmatprep.mubr.f32.mxu0 0.0
  %7414 = vmatmul.mubr.f32.gmra.mrb[0].mxu0 %v7276
  %v7415 = vpop.f32.mrb[0].mxu0
  %v7416 = vadd.f32 0.0, %v7415
  %v7417 = vpop.f32.mrb[0].mxu0
  %v7418 = vadd.f32 0.0, %v7417
  %7419 = vdwg.mxu0
  %v7424 = vrot.slane %v7345, 1
  %v7425 = vrot.slane %v7347, 1
  %v7426 = vrot.slane %v7416, 1
  %v7427 = vrot.slane %v7418, 1
  %v7432 = vadd.f32 %v5947, %v7424
  %v7433 = vadd.f32 %v5949, %v7425
  %v7434 = vadd.f32 %v6018, %v7426
  %v7435 = vadd.f32 %v6020, %v7427
  %v7436 = vmul.f32 %v7432, 0.5
  %v7437 = vmul.f32 %v7433, 0.5
  %v7438 = vmul.f32 %v7434, 0.5
  %v7439 = vtanh.pop %v7436
  %v7440 = vtanh.pop %v7437
  %v7441 = vtanh.pop %v7438
  %v7442 = vmul.f32 %v7439, 0.5
  %v7443 = vmul.f32 %v7440, 0.5
  %v7444 = vmul.f32 %v7441, 0.5
  %v7445 = vadd.f32 %v7442, 0.5
  %v7446 = vadd.f32 %v7443, 0.5
  %v7447 = vadd.f32 %v7444, 0.5
  %v7448 = vtanh.pop %v7435
  %v7450 = vrot.slane %v7272, 7
  %v7452 = vmul.f32 %v7446, %v7450
  %v7453 = vmul.f32 %v7445, %v7448
  %v7454 = vadd.f32 %v7452, %v7453
  %v7455 = vtanh.pop %v7454
  %v7456 = vmul.f32 %v7447, %v7455
  %v7457 = vsel %vm2342, %v6185, %v6364
  %v7458 = vsel %vm2344, %v7457, %v6546
  %v7459 = vsel %vm2346, %v7458, %v6728
  %v7460 = vsel %vm2348, %v7459, %v6910
  %v7461 = vsel %vm2350, %v7460, %v7092
  %v7462 = vsel %vm2352, %v7461, %v7274
  %v7463 = vsel %vm2354, %v7462, %v7456
  %v7464 = vld [vmem:[#allocation4] sm:$0x1]
  %v7465 = vld [vmem:[#allocation4 + $0x1] sm:$0x1]
  %v7466 = vlaneseq
  %v7467 = vshrl.u32 %v7466, 7
  %v7468 = vsub.s32 0, %v7467
  %v7469 = vrot.slane %v7464, %v7468
  %v7470 = vmul.f32 %v7463, %v7469
  %7471 = vadd.xlane.f32.xlu0 %v7470
  %v7472 = vpop.xlane.xlu0 %7471
  %v7473 = vlaneseq
  %v7474 = vshrl.u32 %v7473, 7
  %v7475 = vsub.s32 0, %v7474
  %v7476 = vrot.slane %v7465, %v7475
  %v7477 = vadd.f32 %v7472, %v7476
  %vm7478 = vcmask 7168
  %7479 = vst.msk [vmem:[%s6] sm:$0xff] %vm7478, %v7477
  // Predicated region
  $region116: #{recurrent_autoencoder.1} parent=0 // pred_check
    _
  $region117: #{recurrent_autoencoder.1} parent=0 // pred_check_branch
    %7481 = sbr.rel (0) target = $region119
  $region118: #{recurrent_autoencoder.1} parent=0 // pred_region
    _
  $region119: #{recurrent_autoencoder.1} parent=0 // pred_fallthru
    _
  // Predicated region
  $region120: #{recurrent_autoencoder.1} parent=0 // pred_check
    _
  $region121: #{recurrent_autoencoder.1} parent=0 // pred_check_branch
    %7483 = sbr.rel (0) target = $region123
  $region122: #{recurrent_autoencoder.1} parent=0 // pred_region
    _
  $region123: #{recurrent_autoencoder.1} parent=0 // pred_fallthru
    _
  %7484 = vsyncmov [#allocation5]
  %s7485 = vpop.sfrf %7484
  %p7486 = scmp.eq.s32.totalorder %s7485, 0
  %p7487 = pneg %p7486
  %7489 = shalt.err (%p7487)
  %s7490 = scalar_lea.sflag [#allocation5], 1
  %7491 = vsyncmov %s7490
  %s7492 = vpop.sfrf %7491
  %p7493 = scmp.eq.s32.totalorder %s7492, 0
  %p7494 = pneg %p7493
  %7496 = shalt.err (%p7494)
  %s7497 = scalar_lea.sflag [#allocation5], 2
  %7498 = vsyncmov %s7497
  %s7499 = vpop.sfrf %7498
  %p7500 = scmp.eq.s32.totalorder %s7499, 0
  %p7501 = pneg %p7500
  %7503 = shalt.err (%p7501)

</llo_original>
